<compile_context>
chip_gen: v6e
topology: v6e:2x2x1
jax: 0.10.0
libtpu: 0.0.40
codegen_flags: <defaults>
</compile_context>

<pallas_src>
import jax
import jax.numpy as jnp
from jax.experimental import pallas as pl
from jax.experimental.pallas import tpu as pltpu

# ---------------------------------------------------------------------------
# Hyper-parameters (small, consistent with the module; the PyTorch forward
# implicitly requires h3 == h4 == h5 for fc5/fc6 to type-check).
# ---------------------------------------------------------------------------
NUM_ITEMS = 64
ITEM_EMBED = 16
NUM_USERS = 32
USER_EMBED = 16
HISTORY_LEN = 8           # T
H1 = 32
H2 = 32
H3 = 32                   # LSTM hidden size
H4 = 32                   # == H3
H5 = 32                   # == H4
G = 4 * H3                # 128 gate lanes == one full vreg width
EMB = ITEM_EMBED + USER_EMBED

BATCH = 256
TILE_B = 128              # rows per grid step (fills v5e MXU; use 256 on v6e/v7x)

assert H3 == H4 == H5, "forward() requires h3 == h4 == h5"
assert H1 == H2 == H3 == 32 and G == 128
assert NUM_ITEMS + NUM_USERS <= 128   # one-hot for both ids fits one vreg width


def _sigmoid(x):
    # exp on the EUP + approximate reciprocal on the EUP (keeps the VALU free).
    return pl.reciprocal(1.0 + jnp.exp(-x), approx=True)


def recanet_kernel(ids_ref, x4_ref, wl_ref, wm_ref, bias_ref, out_ref):
    f32 = jnp.float32
    bf16 = jnp.bfloat16
    TB = ids_ref.shape[0]
    T = x4_ref.shape[1]

    # ---- unpack the parameter slabs (static slices, one-time) --------------
    wih1 = wl_ref[0:H2, :]                   # (32, 128)  bf16
    whh1_big = wl_ref[H2:H2 + G, :]          # (128, 128) bf16, rows 32:128 = 0
    w2fused = wl_ref[H2 + G:H2 + 2 * G, :]   # (128, 128) bf16: [wih2; whh2; 0]

    emb_tbl = wm_ref[0:128, :]               # (128, 32) bf16 packed embeddings
    w_fc1 = wm_ref[128:160, :]               # (32, 32) bf16
    w_fc2a = wm_ref[160:192, :]
    w_fc5 = wm_ref[192:224, :]
    w_fc6 = wm_ref[224:256, :]

    bias = bias_ref[...]                     # (8, 128) f32
    bl1 = bias[0:1, :]                       # b_ih_l0 + b_hh_l0
    bl2 = bias[1:2, :]                       # b_ih_l1 + b_hh_l1
    b1 = bias[2:3, 0:32]
    b2 = bias[2:3, 32:64]
    w2b = bias[2:3, 64:96]                   # the "+1" input row of fc2
    b5 = bias[2:3, 96:128]
    b6 = bias[3:4, 0:32]
    w7 = bias[3:4, 32:64]                    # fc7 weight as a lane row
    b7 = bias[3:4, 64:96]                    # fc7 bias (replicated over lanes)

    ids = ids_ref[...]                       # (TB, 2) int32: [item_id, user_id]
    x4 = x4_ref[...]                         # (TB, T)  f32

    # ---- embedding lookup + concat as one one-hot MXU matmul ----------------
    # one-hot lanes: [0, 64) item id, [64, 96) user id (+NUM_ITEMS offset).
    # emb_tbl rows [0,64) = [item_emb | 0], rows [64,96) = [0 | user_emb], so a
    # single (TB,128)x(128,32) matmul yields cat(item_vec, user_vec).
    lane = jax.lax.broadcasted_iota(jnp.int32, (TB, G), 1)
    hit = (lane == ids[:, 0:1]) | (lane == (ids[:, 1:2] + NUM_ITEMS))
    onehot = jnp.where(hit, 1.0, 0.0).astype(bf16)
    xcat = jnp.dot(onehot, emb_tbl, preferred_element_type=f32)   # (TB, 32)

    # ---- fc1 ----------------------------------------------------------------
    x11 = jnp.maximum(
        jnp.dot(xcat.astype(bf16), w_fc1, preferred_element_type=f32) + b1, 0.0)

    # ---- fc2 + layer-1 LSTM input projection, folded over time --------------
    base = jnp.dot(x11.astype(bf16), w_fc2a, preferred_element_type=f32) + b2
    xt_all = jnp.concatenate(
        [jnp.maximum(base + x4[:, t:t + 1] * w2b, 0.0) for t in range(T)],
        axis=0)                              # (T*TB, H2)
    ih1 = (jnp.dot(xt_all.astype(bf16), wih1, preferred_element_type=f32)
           + bl1).reshape(T, TB, G)          # (T, TB, 128) gate pre-activations

    bl2_full = jnp.broadcast_to(bl2, (TB, G))     # hoisted: no per-step bcast

    # ---- 2-layer LSTM, unrolled over T --------------------------------------
    # States are "block-0 packed": the H3-wide h/c live in lanes [0, H3) of a
    # full 128-lane vreg (zeros elsewhere).  Gate lane order: [i | f | g | o]
    # (PyTorch order).  Gates are combined with whole-vreg sigmoid/tanh plus
    # lane rolls (XLU) and a single lane mask -- no 32-lane sub-vreg slices.
    blk0 = lane < H3

    def lstm_update(g, c):
        sg = _sigmoid(g)                                   # [si | sf | .. | so]
        tg = jnp.tanh(g)                                   # [.. | .. | g^ | ..]
        ig = sg * pltpu.roll(tg, 2 * H3, axis=1)           # block0 = i * g^
        fcp = sg * pltpu.roll(c, H3, axis=1)               # block1 = f * c
        c_new = jnp.where(blk0, ig + pltpu.roll(fcp, 3 * H3, axis=1), 0.0)
        h_new = pltpu.roll(sg, H3, axis=1) * jnp.tanh(c_new)   # block0 = o*tanh(c')
        return c_new, h_new

    zeros = jnp.zeros((TB, G), f32)
    c1, h1, c2, h2 = zeros, zeros, zeros, zeros
    for t in range(T):                        # static unroll, T is small
        # layer 1: precomputed input term + one fused recurrent matmul
        g1 = ih1[t] + jnp.dot(h1.astype(bf16), whh1_big,
                              preferred_element_type=f32)
        c1, h1 = lstm_update(g1, c1)
        # layer 2: packed [h1 | h2 | 0 | 0] against stacked [wih2; whh2; 0]
        combo = h1 + pltpu.roll(h2, H3, axis=1)
        g2 = bl2_full + jnp.dot(combo.astype(bf16), w2fused,
                                preferred_element_type=f32)
        c2, h2 = lstm_update(g2, c2)

    # ---- head: fc5 -> fc6 -> fc7 -> sigmoid ----------------------------------
    x22 = h2[:, 0:H3]                         # hx[1]: final layer-2 hidden
    x5 = jnp.maximum(
        jnp.dot(x22.astype(bf16), w_fc5, preferred_element_type=f32) + b5, 0.0)
    x6 = jnp.maximum(
        jnp.dot(x5.astype(bf16), w_fc6, preferred_element_type=f32) + b6, 0.0)
    logit = jnp.sum(x6 * w7, axis=1, keepdims=True) + b7[:, 0:1]   # (TB, 1)
    out_ref[...] = _sigmoid(logit)


def recanet_forward(input1, input2, x4, w_lstm, w_misc, biases, *, tile_b=TILE_B):
    """item ids (B,), user ids (B,), history (B,T) + packed slabs -> (B,)."""
    B, T = x4.shape
    assert B % tile_b == 0
    ids = jnp.stack([input1.astype(jnp.int32), input2.astype(jnp.int32)], axis=1)
    out = pl.pallas_call(
        recanet_kernel,
        out_shape=jax.ShapeDtypeStruct((B, 1), jnp.float32),
        grid=(B // tile_b,),
        in_specs=[
            pl.BlockSpec((tile_b, 2), lambda b: (b, 0)),
            pl.BlockSpec((tile_b, T), lambda b: (b, 0)),
            pl.BlockSpec(w_lstm.shape, lambda b: (0, 0)),
            pl.BlockSpec(w_misc.shape, lambda b: (0, 0)),
            pl.BlockSpec(biases.shape, lambda b: (0, 0)),
        ],
        out_specs=pl.BlockSpec((tile_b, 1), lambda b: (b, 0)),
        compiler_params=pltpu.CompilerParams(
            dimension_semantics=("parallel",)),
    )(ids, x4, w_lstm, w_misc, biases)
    return out.reshape(-1)


# ---------------------------------------------------------------------------
# Parameters: synthetic init + host-side packing into slabs.
# ---------------------------------------------------------------------------
def init_params(key):
    ks = jax.random.split(key, 20)

    def n(k, shape, s):
        return jax.random.normal(k, shape, jnp.float32) * s

    return dict(
        item_emb=n(ks[0], (NUM_ITEMS, ITEM_EMBED), 0.5),
        user_emb=n(ks[1], (NUM_USERS, USER_EMBED), 0.5),
        w1=n(ks[2], (EMB, H1), 0.3), b1=n(ks[3], (H1,), 0.1),
        w2a=n(ks[4], (H1, H2), 0.3), w2b=n(ks[5], (1, H2), 0.3),
        b2=n(ks[6], (H2,), 0.1),
        wih1=n(ks[7], (H2, G), 0.3), whh1=n(ks[8], (H3, G), 0.3),
        bl1=n(ks[9], (G,), 0.1),
        wih2=n(ks[10], (H3, G), 0.3), whh2=n(ks[11], (H3, G), 0.3),
        bl2=n(ks[12], (G,), 0.1),
        w5=n(ks[13], (H4, H5), 0.3), b5=n(ks[14], (H5,), 0.1),
        w6=n(ks[15], (H5, H5), 0.3), b6=n(ks[16], (H5,), 0.1),
        w7=n(ks[17], (H5,), 0.3), b7=n(ks[18], (1,), 0.1),
    )


def pack_params(p):
    f32 = jnp.float32
    # LSTM weight slab (bf16): rows [0:32) wih1; [32:160) whh1 zero-padded to
    # 128 rows (so the block-0-packed h1 is fed directly); [160:288) the fused
    # layer-2 weight [wih2 ; whh2 ; 0].
    whh1_big = jnp.zeros((G, G), f32).at[:H3].set(p["whh1"])
    w2fused = (jnp.zeros((G, G), f32)
               .at[:H3].set(p["wih2"])
               .at[H3:2 * H3].set(p["whh2"]))
    w_lstm = jnp.concatenate([p["wih1"], whh1_big, w2fused],
                             axis=0).astype(jnp.bfloat16)         # (288, 128)
    # Misc weight slab (bf16): packed embedding table | fc1 | fc2 | fc5 | fc6.
    emb_tbl = (jnp.zeros((G, EMB), f32)
               .at[0:NUM_ITEMS, 0:ITEM_EMBED].set(p["item_emb"])
               .at[NUM_ITEMS:NUM_ITEMS + NUM_USERS, ITEM_EMBED:EMB]
               .set(p["user_emb"]))                               # (128, 32)
    w_misc = jnp.concatenate([emb_tbl, p["w1"], p["w2a"], p["w5"], p["w6"]],
                             axis=0).astype(jnp.bfloat16)         # (256, 32)
    # Bias slab (f32, 8x128): row0 bl1, row1 bl2, row2 [b1|b2|w2b|b5],
    # row3 [b6|w7|b7(bcast)|0].
    row2 = jnp.concatenate([p["b1"], p["b2"], p["w2b"].reshape(-1), p["b5"]])
    row3 = jnp.concatenate([p["b6"], p["w7"],
                            jnp.broadcast_to(p["b7"], (H5,)),
                            jnp.zeros((32,), f32)])
    biases = (jnp.zeros((8, G), f32)
              .at[0].set(p["bl1"]).at[1].set(p["bl2"])
              .at[2].set(row2).at[3].set(row3))
    return w_lstm, w_misc, biases


def recanet_reference(input1, input2, x4, p):
    """Pure-JAX f32 reference with the module's forward semantics."""
    def cell(g, c):
        i = jax.nn.sigmoid(g[:, 0 * H3:1 * H3])
        f = jax.nn.sigmoid(g[:, 1 * H3:2 * H3])
        gg = jnp.tanh(g[:, 2 * H3:3 * H3])
        o = jax.nn.sigmoid(g[:, 3 * H3:4 * H3])
        c = f * c + i * gg
        return c, o * jnp.tanh(c)

    xcat = jnp.concatenate(
        [p["item_emb"][input1], p["user_emb"][input2]], axis=1)
    B = xcat.shape[0]
    x11 = jax.nn.relu(xcat @ p["w1"] + p["b1"])
    z = jnp.zeros((B, H3), jnp.float32)
    c1, h1, c2, h2 = z, z, z, z
    for t in range(x4.shape[1]):
        xt = jax.nn.relu(x11 @ p["w2a"] + p["b2"] + x4[:, t:t + 1] * p["w2b"])
        c1, h1 = cell(xt @ p["wih1"] + h1 @ p["whh1"] + p["bl1"], c1)
        c2, h2 = cell(h1 @ p["wih2"] + h2 @ p["whh2"] + p["bl2"], c2)
    x5 = jax.nn.relu(h2 @ p["w5"] + p["b5"])
    x6 = jax.nn.relu(x5 @ p["w6"] + p["b6"])
    return jax.nn.sigmoid(x6 @ p["w7"] + p["b7"])


if __name__ == "__main__":
    key = jax.random.PRNGKey(0)
    k_par, k1, k2, k4 = jax.random.split(key, 4)
    p = init_params(k_par)
    w_lstm, w_misc, biases = pack_params(p)

    # inputs: item ids (B,), user ids (B,), history features (B, T)
    input1 = jax.random.randint(k1, (BATCH,), 0, NUM_ITEMS, dtype=jnp.int32)
    input2 = jax.random.randint(k2, (BATCH,), 0, NUM_USERS, dtype=jnp.int32)
    input4 = jax.random.normal(k4, (BATCH, HISTORY_LEN), jnp.float32)

    out = recanet_forward(input1, input2, input4, w_lstm, w_misc, biases)
    out = jax.block_until_ready(out)

    assert out.shape == (BATCH,)
    assert bool(jnp.all(jnp.isfinite(out)))

    # Numerical check vs. the pure-JAX f32 reference (kernel uses bf16 matmuls
    # and an approximate reciprocal, hence the loose tolerance).
    ref = recanet_reference(input1, input2, input4, p)
    max_err = float(jnp.max(jnp.abs(out - ref)))
    assert max_err < 5e-2, f"kernel deviates from reference: max_err={max_err}"

    print("KERNEL_OK")
</pallas_src>

<mosaic_0001>
module attributes {stable_mosaic.version = 11 : i64} {
  func.func @recanet_kernel(%arg0: i32, %arg1: memref<128x2xi32, #tpu.memory_space<vmem>>, %arg2: memref<128x8xf32, #tpu.memory_space<vmem>>, %arg3: memref<288x128xbf16, #tpu.memory_space<vmem>>, %arg4: memref<256x32xbf16, #tpu.memory_space<vmem>>, %arg5: memref<8x128xf32, #tpu.memory_space<vmem>>, %arg6: memref<128x1xf32, #tpu.memory_space<vmem>>) attributes {dimension_semantics = [#tpu.dimension_semantics<parallel>], iteration_bounds = array<i64: 2>, scalar_prefetch = 0 : i64, scratch_operands = 0 : i64, tpu.core_type = #tpu.core_type<tc>, window_params = [{transform_indices = @transform_0, window_bounds = array<i64: 128, 2>}, {transform_indices = @transform_1, window_bounds = array<i64: 128, 8>}, {pipeline_mode = #tpu.pipeline_mode<synchronous>, transform_indices = @transform_2, window_bounds = array<i64: 288, 128>}, {pipeline_mode = #tpu.pipeline_mode<synchronous>, transform_indices = @transform_3, window_bounds = array<i64: 256, 32>}, {pipeline_mode = #tpu.pipeline_mode<synchronous>, transform_indices = @transform_4, window_bounds = array<i64: 8, 128>}, {transform_indices = @transform_5, window_bounds = array<i64: 128, 1>}]} {
    %c0 = arith.constant 0 : index
    %c0_0 = arith.constant 0 : index
    %0 = vector.load %arg3[%c0, %c0_0] : memref<288x128xbf16, #tpu.memory_space<vmem>>, vector<32x128xbf16>
    %c32 = arith.constant 32 : index
    %c0_1 = arith.constant 0 : index
    %1 = vector.load %arg3[%c32, %c0_1] : memref<288x128xbf16, #tpu.memory_space<vmem>>, vector<128x128xbf16>
    %c160 = arith.constant 160 : index
    %c0_2 = arith.constant 0 : index
    %2 = vector.load %arg3[%c160, %c0_2] : memref<288x128xbf16, #tpu.memory_space<vmem>>, vector<128x128xbf16>
    %c0_3 = arith.constant 0 : index
    %c0_4 = arith.constant 0 : index
    %3 = vector.load %arg4[%c0_3, %c0_4] : memref<256x32xbf16, #tpu.memory_space<vmem>>, vector<128x32xbf16>
    %c128 = arith.constant 128 : index
    %c0_5 = arith.constant 0 : index
    %4 = vector.load %arg4[%c128, %c0_5] : memref<256x32xbf16, #tpu.memory_space<vmem>>, vector<32x32xbf16>
    %c160_6 = arith.constant 160 : index
    %c0_7 = arith.constant 0 : index
    %5 = vector.load %arg4[%c160_6, %c0_7] : memref<256x32xbf16, #tpu.memory_space<vmem>>, vector<32x32xbf16>
    %c192 = arith.constant 192 : index
    %c0_8 = arith.constant 0 : index
    %6 = vector.load %arg4[%c192, %c0_8] : memref<256x32xbf16, #tpu.memory_space<vmem>>, vector<32x32xbf16>
    %c224 = arith.constant 224 : index
    %c0_9 = arith.constant 0 : index
    %7 = vector.load %arg4[%c224, %c0_9] : memref<256x32xbf16, #tpu.memory_space<vmem>>, vector<32x32xbf16>
    %c0_10 = arith.constant 0 : index
    %c0_11 = arith.constant 0 : index
    %8 = vector.load %arg5[%c0_10, %c0_11] : memref<8x128xf32, #tpu.memory_space<vmem>>, vector<8x128xf32>
    %9 = vector.extract_strided_slice %8 {offsets = [0, 0], sizes = [1, 128], strides = [1, 1]} : vector<8x128xf32> to vector<1x128xf32>
    %10 = vector.extract_strided_slice %8 {offsets = [1, 0], sizes = [1, 128], strides = [1, 1]} : vector<8x128xf32> to vector<1x128xf32>
    %11 = vector.extract_strided_slice %8 {offsets = [2, 0], sizes = [1, 32], strides = [1, 1]} : vector<8x128xf32> to vector<1x32xf32>
    %12 = vector.extract_strided_slice %8 {offsets = [2, 32], sizes = [1, 32], strides = [1, 1]} : vector<8x128xf32> to vector<1x32xf32>
    %13 = vector.extract_strided_slice %8 {offsets = [2, 64], sizes = [1, 32], strides = [1, 1]} : vector<8x128xf32> to vector<1x32xf32>
    %14 = vector.extract_strided_slice %8 {offsets = [2, 96], sizes = [1, 32], strides = [1, 1]} : vector<8x128xf32> to vector<1x32xf32>
    %15 = vector.extract_strided_slice %8 {offsets = [3, 0], sizes = [1, 32], strides = [1, 1]} : vector<8x128xf32> to vector<1x32xf32>
    %16 = vector.extract_strided_slice %8 {offsets = [3, 32], sizes = [1, 32], strides = [1, 1]} : vector<8x128xf32> to vector<1x32xf32>
    %17 = vector.extract_strided_slice %8 {offsets = [3, 64], sizes = [1, 32], strides = [1, 1]} : vector<8x128xf32> to vector<1x32xf32>
    %c0_12 = arith.constant 0 : index
    %c0_13 = arith.constant 0 : index
    %18 = vector.load %arg1[%c0_12, %c0_13] : memref<128x2xi32, #tpu.memory_space<vmem>>, vector<128x2xi32>
    %c0_14 = arith.constant 0 : index
    %c0_15 = arith.constant 0 : index
    %19 = vector.load %arg2[%c0_14, %c0_15] : memref<128x8xf32, #tpu.memory_space<vmem>>, vector<128x8xf32>
    %20 = tpu.iota {dimensions = array<i32: 1>} : vector<128x128xi32>
    %21 = vector.extract_strided_slice %18 {offsets = [0, 0], sizes = [128, 1], strides = [1, 1]} : vector<128x2xi32> to vector<128x1xi32>
    %22 = vector.broadcast %21 : vector<128x1xi32> to vector<128x128xi32>
    %23 = arith.cmpi eq, %20, %22 : vector<128x128xi32>
    %24 = vector.extract_strided_slice %18 {offsets = [0, 1], sizes = [128, 1], strides = [1, 1]} : vector<128x2xi32> to vector<128x1xi32>
    %c64_i32 = arith.constant 64 : i32
    %25 = vector.broadcast %c64_i32 : i32 to vector<128x1xi32>
    %26 = arith.addi %24, %25 : vector<128x1xi32>
    %27 = vector.broadcast %26 : vector<128x1xi32> to vector<128x128xi32>
    %28 = arith.cmpi eq, %20, %27 : vector<128x128xi32>
    %29 = arith.ori %23, %28 : vector<128x128xi1>
    %cst = arith.constant 1.000000e+00 : f32
    %cst_16 = arith.constant 0.000000e+00 : f32
    %30 = vector.broadcast %cst : f32 to vector<128x128xf32>
    %31 = vector.broadcast %cst_16 : f32 to vector<128x128xf32>
    %32 = arith.select %29, %30, %31 : vector<128x128xi1>, vector<128x128xf32>
    %33 = arith.truncf %32 : vector<128x128xf32> to vector<128x128xbf16>
    %cst_17 = arith.constant dense<0.000000e+00> : vector<128x32xf32>
    %34 = tpu.matmul %33, %3, %cst_17 {dimension_numbers = #tpu.dot_dimension_numbers<[1], [0], [0], [1], [0, 0, 1, 1], [], []>} : vector<128x128xbf16>, vector<128x32xbf16>, vector<128x32xf32> -> vector<128x32xf32>
    %35 = arith.truncf %34 : vector<128x32xf32> to vector<128x32xbf16>
    %cst_18 = arith.constant dense<0.000000e+00> : vector<128x32xf32>
    %36 = tpu.matmul %35, %4, %cst_18 {dimension_numbers = #tpu.dot_dimension_numbers<[1], [0], [0], [1], [0, 0, 1, 1], [], []>} : vector<128x32xbf16>, vector<32x32xbf16>, vector<128x32xf32> -> vector<128x32xf32>
    %37 = vector.broadcast %11 : vector<1x32xf32> to vector<128x32xf32>
    %38 = arith.addf %36, %37 : vector<128x32xf32>
    %cst_19 = arith.constant 0.000000e+00 : f32
    %39 = vector.broadcast %cst_19 : f32 to vector<128x32xf32>
    %40 = arith.maximumf %38, %39 : vector<128x32xf32>
    %41 = arith.truncf %40 : vector<128x32xf32> to vector<128x32xbf16>
    %cst_20 = arith.constant dense<0.000000e+00> : vector<128x32xf32>
    %42 = tpu.matmul %41, %5, %cst_20 {dimension_numbers = #tpu.dot_dimension_numbers<[1], [0], [0], [1], [0, 0, 1, 1], [], []>} : vector<128x32xbf16>, vector<32x32xbf16>, vector<128x32xf32> -> vector<128x32xf32>
    %43 = vector.broadcast %12 : vector<1x32xf32> to vector<128x32xf32>
    %44 = arith.addf %42, %43 : vector<128x32xf32>
    %45 = vector.extract_strided_slice %19 {offsets = [0, 0], sizes = [128, 1], strides = [1, 1]} : vector<128x8xf32> to vector<128x1xf32>
    %46 = vector.broadcast %45 : vector<128x1xf32> to vector<128x32xf32>
    %47 = vector.broadcast %13 : vector<1x32xf32> to vector<128x32xf32>
    %48 = arith.mulf %46, %47 : vector<128x32xf32>
    %49 = arith.addf %44, %48 : vector<128x32xf32>
    %cst_21 = arith.constant 0.000000e+00 : f32
    %50 = vector.broadcast %cst_21 : f32 to vector<128x32xf32>
    %51 = arith.maximumf %49, %50 : vector<128x32xf32>
    %52 = vector.extract_strided_slice %19 {offsets = [0, 1], sizes = [128, 1], strides = [1, 1]} : vector<128x8xf32> to vector<128x1xf32>
    %53 = vector.broadcast %52 : vector<128x1xf32> to vector<128x32xf32>
    %54 = vector.broadcast %13 : vector<1x32xf32> to vector<128x32xf32>
    %55 = arith.mulf %53, %54 : vector<128x32xf32>
    %56 = arith.addf %44, %55 : vector<128x32xf32>
    %cst_22 = arith.constant 0.000000e+00 : f32
    %57 = vector.broadcast %cst_22 : f32 to vector<128x32xf32>
    %58 = arith.maximumf %56, %57 : vector<128x32xf32>
    %59 = vector.extract_strided_slice %19 {offsets = [0, 2], sizes = [128, 1], strides = [1, 1]} : vector<128x8xf32> to vector<128x1xf32>
    %60 = vector.broadcast %59 : vector<128x1xf32> to vector<128x32xf32>
    %61 = vector.broadcast %13 : vector<1x32xf32> to vector<128x32xf32>
    %62 = arith.mulf %60, %61 : vector<128x32xf32>
    %63 = arith.addf %44, %62 : vector<128x32xf32>
    %cst_23 = arith.constant 0.000000e+00 : f32
    %64 = vector.broadcast %cst_23 : f32 to vector<128x32xf32>
    %65 = arith.maximumf %63, %64 : vector<128x32xf32>
    %66 = vector.extract_strided_slice %19 {offsets = [0, 3], sizes = [128, 1], strides = [1, 1]} : vector<128x8xf32> to vector<128x1xf32>
    %67 = vector.broadcast %66 : vector<128x1xf32> to vector<128x32xf32>
    %68 = vector.broadcast %13 : vector<1x32xf32> to vector<128x32xf32>
    %69 = arith.mulf %67, %68 : vector<128x32xf32>
    %70 = arith.addf %44, %69 : vector<128x32xf32>
    %cst_24 = arith.constant 0.000000e+00 : f32
    %71 = vector.broadcast %cst_24 : f32 to vector<128x32xf32>
    %72 = arith.maximumf %70, %71 : vector<128x32xf32>
    %73 = vector.extract_strided_slice %19 {offsets = [0, 4], sizes = [128, 1], strides = [1, 1]} : vector<128x8xf32> to vector<128x1xf32>
    %74 = vector.broadcast %73 : vector<128x1xf32> to vector<128x32xf32>
    %75 = vector.broadcast %13 : vector<1x32xf32> to vector<128x32xf32>
    %76 = arith.mulf %74, %75 : vector<128x32xf32>
    %77 = arith.addf %44, %76 : vector<128x32xf32>
    %cst_25 = arith.constant 0.000000e+00 : f32
    %78 = vector.broadcast %cst_25 : f32 to vector<128x32xf32>
    %79 = arith.maximumf %77, %78 : vector<128x32xf32>
    %80 = vector.extract_strided_slice %19 {offsets = [0, 5], sizes = [128, 1], strides = [1, 1]} : vector<128x8xf32> to vector<128x1xf32>
    %81 = vector.broadcast %80 : vector<128x1xf32> to vector<128x32xf32>
    %82 = vector.broadcast %13 : vector<1x32xf32> to vector<128x32xf32>
    %83 = arith.mulf %81, %82 : vector<128x32xf32>
    %84 = arith.addf %44, %83 : vector<128x32xf32>
    %cst_26 = arith.constant 0.000000e+00 : f32
    %85 = vector.broadcast %cst_26 : f32 to vector<128x32xf32>
    %86 = arith.maximumf %84, %85 : vector<128x32xf32>
    %87 = vector.extract_strided_slice %19 {offsets = [0, 6], sizes = [128, 1], strides = [1, 1]} : vector<128x8xf32> to vector<128x1xf32>
    %88 = vector.broadcast %87 : vector<128x1xf32> to vector<128x32xf32>
    %89 = vector.broadcast %13 : vector<1x32xf32> to vector<128x32xf32>
    %90 = arith.mulf %88, %89 : vector<128x32xf32>
    %91 = arith.addf %44, %90 : vector<128x32xf32>
    %cst_27 = arith.constant 0.000000e+00 : f32
    %92 = vector.broadcast %cst_27 : f32 to vector<128x32xf32>
    %93 = arith.maximumf %91, %92 : vector<128x32xf32>
    %94 = vector.extract_strided_slice %19 {offsets = [0, 7], sizes = [128, 1], strides = [1, 1]} : vector<128x8xf32> to vector<128x1xf32>
    %95 = vector.broadcast %94 : vector<128x1xf32> to vector<128x32xf32>
    %96 = vector.broadcast %13 : vector<1x32xf32> to vector<128x32xf32>
    %97 = arith.mulf %95, %96 : vector<128x32xf32>
    %98 = arith.addf %44, %97 : vector<128x32xf32>
    %cst_28 = arith.constant 0.000000e+00 : f32
    %99 = vector.broadcast %cst_28 : f32 to vector<128x32xf32>
    %100 = arith.maximumf %98, %99 : vector<128x32xf32>
    %101 = tpu.concatenate %51, %58, %65, %72, %79, %86, %93, %100 in 0 : vector<128x32xf32>, vector<128x32xf32>, vector<128x32xf32>, vector<128x32xf32>, vector<128x32xf32>, vector<128x32xf32>, vector<128x32xf32>, vector<128x32xf32> -> vector<1024x32xf32>
    %102 = arith.truncf %101 : vector<1024x32xf32> to vector<1024x32xbf16>
    %cst_29 = arith.constant dense<0.000000e+00> : vector<1024x128xf32>
    %103 = tpu.matmul %102, %0, %cst_29 {dimension_numbers = #tpu.dot_dimension_numbers<[1], [0], [0], [1], [0, 0, 1, 1], [], []>} : vector<1024x32xbf16>, vector<32x128xbf16>, vector<1024x128xf32> -> vector<1024x128xf32>
    %104 = vector.broadcast %9 : vector<1x128xf32> to vector<1024x128xf32>
    %105 = arith.addf %103, %104 : vector<1024x128xf32>
    %106 = vector.shape_cast %105 : vector<1024x128xf32> to vector<8x128x128xf32>
    %107 = vector.shape_cast %10 : vector<1x128xf32> to vector<1x128xf32>
    %108 = vector.broadcast %107 : vector<1x128xf32> to vector<128x128xf32>
    %c32_i32 = arith.constant 32 : i32
    %109 = vector.broadcast %c32_i32 : i32 to vector<128x128xi32>
    %110 = arith.cmpi slt, %20, %109 : vector<128x128xi32>
    %cst_30 = arith.constant 0.000000e+00 : f32
    %111 = vector.broadcast %cst_30 : f32 to vector<128x128xf32>
    %112 = vector.extract_strided_slice %106 {offsets = [0, 0, 0], sizes = [1, 128, 128], strides = [1, 1, 1]} : vector<8x128x128xf32> to vector<1x128x128xf32>
    %113 = vector.shape_cast %112 : vector<1x128x128xf32> to vector<128x128xf32>
    %114 = arith.truncf %111 : vector<128x128xf32> to vector<128x128xbf16>
    %cst_31 = arith.constant dense<0.000000e+00> : vector<128x128xf32>
    %115 = tpu.matmul %114, %1, %cst_31 {dimension_numbers = #tpu.dot_dimension_numbers<[1], [0], [0], [1], [0, 0, 1, 1], [], []>} : vector<128x128xbf16>, vector<128x128xbf16>, vector<128x128xf32> -> vector<128x128xf32>
    %116 = arith.addf %113, %115 : vector<128x128xf32>
    %cst_32 = arith.constant 0.000000e+00 : f32
    %117 = vector.broadcast %cst_32 : f32 to vector<128x128xf32>
    %118 = arith.subf %117, %116 : vector<128x128xf32>
    %119 = math.exp %118 : vector<128x128xf32>
    %cst_33 = arith.constant 1.000000e+00 : f32
    %120 = vector.broadcast %cst_33 : f32 to vector<128x128xf32>
    %121 = arith.addf %120, %119 : vector<128x128xf32>
    %122 = tpu.reciprocal %121 {approx = true} : vector<128x128xf32> -> vector<128x128xf32>
    %123 = math.tanh %116 : vector<128x128xf32>
    %c64_i32_34 = arith.constant 64 : i32
    %124 = tpu.dynamic_rotate %123 by %c64_i32_34 dim 1 : vector<128x128xf32>, i32 -> vector<128x128xf32>
    %125 = arith.mulf %122, %124 : vector<128x128xf32>
    %c32_i32_35 = arith.constant 32 : i32
    %126 = tpu.dynamic_rotate %111 by %c32_i32_35 dim 1 : vector<128x128xf32>, i32 -> vector<128x128xf32>
    %127 = arith.mulf %122, %126 : vector<128x128xf32>
    %c96_i32 = arith.constant 96 : i32
    %128 = tpu.dynamic_rotate %127 by %c96_i32 dim 1 : vector<128x128xf32>, i32 -> vector<128x128xf32>
    %129 = arith.addf %125, %128 : vector<128x128xf32>
    %cst_36 = arith.constant 0.000000e+00 : f32
    %130 = vector.broadcast %cst_36 : f32 to vector<128x128xf32>
    %131 = arith.select %110, %129, %130 : vector<128x128xi1>, vector<128x128xf32>
    %c32_i32_37 = arith.constant 32 : i32
    %132 = tpu.dynamic_rotate %122 by %c32_i32_37 dim 1 : vector<128x128xf32>, i32 -> vector<128x128xf32>
    %133 = math.tanh %131 : vector<128x128xf32>
    %134 = arith.mulf %132, %133 : vector<128x128xf32>
    %c32_i32_38 = arith.constant 32 : i32
    %135 = tpu.dynamic_rotate %111 by %c32_i32_38 dim 1 : vector<128x128xf32>, i32 -> vector<128x128xf32>
    %136 = arith.addf %134, %135 : vector<128x128xf32>
    %137 = arith.truncf %136 : vector<128x128xf32> to vector<128x128xbf16>
    %cst_39 = arith.constant dense<0.000000e+00> : vector<128x128xf32>
    %138 = tpu.matmul %137, %2, %cst_39 {dimension_numbers = #tpu.dot_dimension_numbers<[1], [0], [0], [1], [0, 0, 1, 1], [], []>} : vector<128x128xbf16>, vector<128x128xbf16>, vector<128x128xf32> -> vector<128x128xf32>
    %139 = arith.addf %108, %138 : vector<128x128xf32>
    %cst_40 = arith.constant 0.000000e+00 : f32
    %140 = vector.broadcast %cst_40 : f32 to vector<128x128xf32>
    %141 = arith.subf %140, %139 : vector<128x128xf32>
    %142 = math.exp %141 : vector<128x128xf32>
    %cst_41 = arith.constant 1.000000e+00 : f32
    %143 = vector.broadcast %cst_41 : f32 to vector<128x128xf32>
    %144 = arith.addf %143, %142 : vector<128x128xf32>
    %145 = tpu.reciprocal %144 {approx = true} : vector<128x128xf32> -> vector<128x128xf32>
    %146 = math.tanh %139 : vector<128x128xf32>
    %c64_i32_42 = arith.constant 64 : i32
    %147 = tpu.dynamic_rotate %146 by %c64_i32_42 dim 1 : vector<128x128xf32>, i32 -> vector<128x128xf32>
    %148 = arith.mulf %145, %147 : vector<128x128xf32>
    %c32_i32_43 = arith.constant 32 : i32
    %149 = tpu.dynamic_rotate %111 by %c32_i32_43 dim 1 : vector<128x128xf32>, i32 -> vector<128x128xf32>
    %150 = arith.mulf %145, %149 : vector<128x128xf32>
    %c96_i32_44 = arith.constant 96 : i32
    %151 = tpu.dynamic_rotate %150 by %c96_i32_44 dim 1 : vector<128x128xf32>, i32 -> vector<128x128xf32>
    %152 = arith.addf %148, %151 : vector<128x128xf32>
    %cst_45 = arith.constant 0.000000e+00 : f32
    %153 = vector.broadcast %cst_45 : f32 to vector<128x128xf32>
    %154 = arith.select %110, %152, %153 : vector<128x128xi1>, vector<128x128xf32>
    %c32_i32_46 = arith.constant 32 : i32
    %155 = tpu.dynamic_rotate %145 by %c32_i32_46 dim 1 : vector<128x128xf32>, i32 -> vector<128x128xf32>
    %156 = math.tanh %154 : vector<128x128xf32>
    %157 = arith.mulf %155, %156 : vector<128x128xf32>
    %158 = vector.extract_strided_slice %106 {offsets = [1, 0, 0], sizes = [1, 128, 128], strides = [1, 1, 1]} : vector<8x128x128xf32> to vector<1x128x128xf32>
    %159 = vector.shape_cast %158 : vector<1x128x128xf32> to vector<128x128xf32>
    %160 = arith.truncf %134 : vector<128x128xf32> to vector<128x128xbf16>
    %cst_47 = arith.constant dense<0.000000e+00> : vector<128x128xf32>
    %161 = tpu.matmul %160, %1, %cst_47 {dimension_numbers = #tpu.dot_dimension_numbers<[1], [0], [0], [1], [0, 0, 1, 1], [], []>} : vector<128x128xbf16>, vector<128x128xbf16>, vector<128x128xf32> -> vector<128x128xf32>
    %162 = arith.addf %159, %161 : vector<128x128xf32>
    %cst_48 = arith.constant 0.000000e+00 : f32
    %163 = vector.broadcast %cst_48 : f32 to vector<128x128xf32>
    %164 = arith.subf %163, %162 : vector<128x128xf32>
    %165 = math.exp %164 : vector<128x128xf32>
    %cst_49 = arith.constant 1.000000e+00 : f32
    %166 = vector.broadcast %cst_49 : f32 to vector<128x128xf32>
    %167 = arith.addf %166, %165 : vector<128x128xf32>
    %168 = tpu.reciprocal %167 {approx = true} : vector<128x128xf32> -> vector<128x128xf32>
    %169 = math.tanh %162 : vector<128x128xf32>
    %c64_i32_50 = arith.constant 64 : i32
    %170 = tpu.dynamic_rotate %169 by %c64_i32_50 dim 1 : vector<128x128xf32>, i32 -> vector<128x128xf32>
    %171 = arith.mulf %168, %170 : vector<128x128xf32>
    %c32_i32_51 = arith.constant 32 : i32
    %172 = tpu.dynamic_rotate %131 by %c32_i32_51 dim 1 : vector<128x128xf32>, i32 -> vector<128x128xf32>
    %173 = arith.mulf %168, %172 : vector<128x128xf32>
    %c96_i32_52 = arith.constant 96 : i32
    %174 = tpu.dynamic_rotate %173 by %c96_i32_52 dim 1 : vector<128x128xf32>, i32 -> vector<128x128xf32>
    %175 = arith.addf %171, %174 : vector<128x128xf32>
    %cst_53 = arith.constant 0.000000e+00 : f32
    %176 = vector.broadcast %cst_53 : f32 to vector<128x128xf32>
    %177 = arith.select %110, %175, %176 : vector<128x128xi1>, vector<128x128xf32>
    %c32_i32_54 = arith.constant 32 : i32
    %178 = tpu.dynamic_rotate %168 by %c32_i32_54 dim 1 : vector<128x128xf32>, i32 -> vector<128x128xf32>
    %179 = math.tanh %177 : vector<128x128xf32>
    %180 = arith.mulf %178, %179 : vector<128x128xf32>
    %c32_i32_55 = arith.constant 32 : i32
    %181 = tpu.dynamic_rotate %157 by %c32_i32_55 dim 1 : vector<128x128xf32>, i32 -> vector<128x128xf32>
    %182 = arith.addf %180, %181 : vector<128x128xf32>
    %183 = arith.truncf %182 : vector<128x128xf32> to vector<128x128xbf16>
    %cst_56 = arith.constant dense<0.000000e+00> : vector<128x128xf32>
    %184 = tpu.matmul %183, %2, %cst_56 {dimension_numbers = #tpu.dot_dimension_numbers<[1], [0], [0], [1], [0, 0, 1, 1], [], []>} : vector<128x128xbf16>, vector<128x128xbf16>, vector<128x128xf32> -> vector<128x128xf32>
    %185 = arith.addf %108, %184 : vector<128x128xf32>
    %cst_57 = arith.constant 0.000000e+00 : f32
    %186 = vector.broadcast %cst_57 : f32 to vector<128x128xf32>
    %187 = arith.subf %186, %185 : vector<128x128xf32>
    %188 = math.exp %187 : vector<128x128xf32>
    %cst_58 = arith.constant 1.000000e+00 : f32
    %189 = vector.broadcast %cst_58 : f32 to vector<128x128xf32>
    %190 = arith.addf %189, %188 : vector<128x128xf32>
    %191 = tpu.reciprocal %190 {approx = true} : vector<128x128xf32> -> vector<128x128xf32>
    %192 = math.tanh %185 : vector<128x128xf32>
    %c64_i32_59 = arith.constant 64 : i32
    %193 = tpu.dynamic_rotate %192 by %c64_i32_59 dim 1 : vector<128x128xf32>, i32 -> vector<128x128xf32>
    %194 = arith.mulf %191, %193 : vector<128x128xf32>
    %c32_i32_60 = arith.constant 32 : i32
    %195 = tpu.dynamic_rotate %154 by %c32_i32_60 dim 1 : vector<128x128xf32>, i32 -> vector<128x128xf32>
    %196 = arith.mulf %191, %195 : vector<128x128xf32>
    %c96_i32_61 = arith.constant 96 : i32
    %197 = tpu.dynamic_rotate %196 by %c96_i32_61 dim 1 : vector<128x128xf32>, i32 -> vector<128x128xf32>
    %198 = arith.addf %194, %197 : vector<128x128xf32>
    %cst_62 = arith.constant 0.000000e+00 : f32
    %199 = vector.broadcast %cst_62 : f32 to vector<128x128xf32>
    %200 = arith.select %110, %198, %199 : vector<128x128xi1>, vector<128x128xf32>
    %c32_i32_63 = arith.constant 32 : i32
    %201 = tpu.dynamic_rotate %191 by %c32_i32_63 dim 1 : vector<128x128xf32>, i32 -> vector<128x128xf32>
    %202 = math.tanh %200 : vector<128x128xf32>
    %203 = arith.mulf %201, %202 : vector<128x128xf32>
    %204 = vector.extract_strided_slice %106 {offsets = [2, 0, 0], sizes = [1, 128, 128], strides = [1, 1, 1]} : vector<8x128x128xf32> to vector<1x128x128xf32>
    %205 = vector.shape_cast %204 : vector<1x128x128xf32> to vector<128x128xf32>
    %206 = arith.truncf %180 : vector<128x128xf32> to vector<128x128xbf16>
    %cst_64 = arith.constant dense<0.000000e+00> : vector<128x128xf32>
    %207 = tpu.matmul %206, %1, %cst_64 {dimension_numbers = #tpu.dot_dimension_numbers<[1], [0], [0], [1], [0, 0, 1, 1], [], []>} : vector<128x128xbf16>, vector<128x128xbf16>, vector<128x128xf32> -> vector<128x128xf32>
    %208 = arith.addf %205, %207 : vector<128x128xf32>
    %cst_65 = arith.constant 0.000000e+00 : f32
    %209 = vector.broadcast %cst_65 : f32 to vector<128x128xf32>
    %210 = arith.subf %209, %208 : vector<128x128xf32>
    %211 = math.exp %210 : vector<128x128xf32>
    %cst_66 = arith.constant 1.000000e+00 : f32
    %212 = vector.broadcast %cst_66 : f32 to vector<128x128xf32>
    %213 = arith.addf %212, %211 : vector<128x128xf32>
    %214 = tpu.reciprocal %213 {approx = true} : vector<128x128xf32> -> vector<128x128xf32>
    %215 = math.tanh %208 : vector<128x128xf32>
    %c64_i32_67 = arith.constant 64 : i32
    %216 = tpu.dynamic_rotate %215 by %c64_i32_67 dim 1 : vector<128x128xf32>, i32 -> vector<128x128xf32>
    %217 = arith.mulf %214, %216 : vector<128x128xf32>
    %c32_i32_68 = arith.constant 32 : i32
    %218 = tpu.dynamic_rotate %177 by %c32_i32_68 dim 1 : vector<128x128xf32>, i32 -> vector<128x128xf32>
    %219 = arith.mulf %214, %218 : vector<128x128xf32>
    %c96_i32_69 = arith.constant 96 : i32
    %220 = tpu.dynamic_rotate %219 by %c96_i32_69 dim 1 : vector<128x128xf32>, i32 -> vector<128x128xf32>
    %221 = arith.addf %217, %220 : vector<128x128xf32>
    %cst_70 = arith.constant 0.000000e+00 : f32
    %222 = vector.broadcast %cst_70 : f32 to vector<128x128xf32>
    %223 = arith.select %110, %221, %222 : vector<128x128xi1>, vector<128x128xf32>
    %c32_i32_71 = arith.constant 32 : i32
    %224 = tpu.dynamic_rotate %214 by %c32_i32_71 dim 1 : vector<128x128xf32>, i32 -> vector<128x128xf32>
    %225 = math.tanh %223 : vector<128x128xf32>
    %226 = arith.mulf %224, %225 : vector<128x128xf32>
    %c32_i32_72 = arith.constant 32 : i32
    %227 = tpu.dynamic_rotate %203 by %c32_i32_72 dim 1 : vector<128x128xf32>, i32 -> vector<128x128xf32>
    %228 = arith.addf %226, %227 : vector<128x128xf32>
    %229 = arith.truncf %228 : vector<128x128xf32> to vector<128x128xbf16>
    %cst_73 = arith.constant dense<0.000000e+00> : vector<128x128xf32>
    %230 = tpu.matmul %229, %2, %cst_73 {dimension_numbers = #tpu.dot_dimension_numbers<[1], [0], [0], [1], [0, 0, 1, 1], [], []>} : vector<128x128xbf16>, vector<128x128xbf16>, vector<128x128xf32> -> vector<128x128xf32>
    %231 = arith.addf %108, %230 : vector<128x128xf32>
    %cst_74 = arith.constant 0.000000e+00 : f32
    %232 = vector.broadcast %cst_74 : f32 to vector<128x128xf32>
    %233 = arith.subf %232, %231 : vector<128x128xf32>
    %234 = math.exp %233 : vector<128x128xf32>
    %cst_75 = arith.constant 1.000000e+00 : f32
    %235 = vector.broadcast %cst_75 : f32 to vector<128x128xf32>
    %236 = arith.addf %235, %234 : vector<128x128xf32>
    %237 = tpu.reciprocal %236 {approx = true} : vector<128x128xf32> -> vector<128x128xf32>
    %238 = math.tanh %231 : vector<128x128xf32>
    %c64_i32_76 = arith.constant 64 : i32
    %239 = tpu.dynamic_rotate %238 by %c64_i32_76 dim 1 : vector<128x128xf32>, i32 -> vector<128x128xf32>
    %240 = arith.mulf %237, %239 : vector<128x128xf32>
    %c32_i32_77 = arith.constant 32 : i32
    %241 = tpu.dynamic_rotate %200 by %c32_i32_77 dim 1 : vector<128x128xf32>, i32 -> vector<128x128xf32>
    %242 = arith.mulf %237, %241 : vector<128x128xf32>
    %c96_i32_78 = arith.constant 96 : i32
    %243 = tpu.dynamic_rotate %242 by %c96_i32_78 dim 1 : vector<128x128xf32>, i32 -> vector<128x128xf32>
    %244 = arith.addf %240, %243 : vector<128x128xf32>
    %cst_79 = arith.constant 0.000000e+00 : f32
    %245 = vector.broadcast %cst_79 : f32 to vector<128x128xf32>
    %246 = arith.select %110, %244, %245 : vector<128x128xi1>, vector<128x128xf32>
    %c32_i32_80 = arith.constant 32 : i32
    %247 = tpu.dynamic_rotate %237 by %c32_i32_80 dim 1 : vector<128x128xf32>, i32 -> vector<128x128xf32>
    %248 = math.tanh %246 : vector<128x128xf32>
    %249 = arith.mulf %247, %248 : vector<128x128xf32>
    %250 = vector.extract_strided_slice %106 {offsets = [3, 0, 0], sizes = [1, 128, 128], strides = [1, 1, 1]} : vector<8x128x128xf32> to vector<1x128x128xf32>
    %251 = vector.shape_cast %250 : vector<1x128x128xf32> to vector<128x128xf32>
    %252 = arith.truncf %226 : vector<128x128xf32> to vector<128x128xbf16>
    %cst_81 = arith.constant dense<0.000000e+00> : vector<128x128xf32>
    %253 = tpu.matmul %252, %1, %cst_81 {dimension_numbers = #tpu.dot_dimension_numbers<[1], [0], [0], [1], [0, 0, 1, 1], [], []>} : vector<128x128xbf16>, vector<128x128xbf16>, vector<128x128xf32> -> vector<128x128xf32>
    %254 = arith.addf %251, %253 : vector<128x128xf32>
    %cst_82 = arith.constant 0.000000e+00 : f32
    %255 = vector.broadcast %cst_82 : f32 to vector<128x128xf32>
    %256 = arith.subf %255, %254 : vector<128x128xf32>
    %257 = math.exp %256 : vector<128x128xf32>
    %cst_83 = arith.constant 1.000000e+00 : f32
    %258 = vector.broadcast %cst_83 : f32 to vector<128x128xf32>
    %259 = arith.addf %258, %257 : vector<128x128xf32>
    %260 = tpu.reciprocal %259 {approx = true} : vector<128x128xf32> -> vector<128x128xf32>
    %261 = math.tanh %254 : vector<128x128xf32>
    %c64_i32_84 = arith.constant 64 : i32
    %262 = tpu.dynamic_rotate %261 by %c64_i32_84 dim 1 : vector<128x128xf32>, i32 -> vector<128x128xf32>
    %263 = arith.mulf %260, %262 : vector<128x128xf32>
    %c32_i32_85 = arith.constant 32 : i32
    %264 = tpu.dynamic_rotate %223 by %c32_i32_85 dim 1 : vector<128x128xf32>, i32 -> vector<128x128xf32>
    %265 = arith.mulf %260, %264 : vector<128x128xf32>
    %c96_i32_86 = arith.constant 96 : i32
    %266 = tpu.dynamic_rotate %265 by %c96_i32_86 dim 1 : vector<128x128xf32>, i32 -> vector<128x128xf32>
    %267 = arith.addf %263, %266 : vector<128x128xf32>
    %cst_87 = arith.constant 0.000000e+00 : f32
    %268 = vector.broadcast %cst_87 : f32 to vector<128x128xf32>
    %269 = arith.select %110, %267, %268 : vector<128x128xi1>, vector<128x128xf32>
    %c32_i32_88 = arith.constant 32 : i32
    %270 = tpu.dynamic_rotate %260 by %c32_i32_88 dim 1 : vector<128x128xf32>, i32 -> vector<128x128xf32>
    %271 = math.tanh %269 : vector<128x128xf32>
    %272 = arith.mulf %270, %271 : vector<128x128xf32>
    %c32_i32_89 = arith.constant 32 : i32
    %273 = tpu.dynamic_rotate %249 by %c32_i32_89 dim 1 : vector<128x128xf32>, i32 -> vector<128x128xf32>
    %274 = arith.addf %272, %273 : vector<128x128xf32>
    %275 = arith.truncf %274 : vector<128x128xf32> to vector<128x128xbf16>
    %cst_90 = arith.constant dense<0.000000e+00> : vector<128x128xf32>
    %276 = tpu.matmul %275, %2, %cst_90 {dimension_numbers = #tpu.dot_dimension_numbers<[1], [0], [0], [1], [0, 0, 1, 1], [], []>} : vector<128x128xbf16>, vector<128x128xbf16>, vector<128x128xf32> -> vector<128x128xf32>
    %277 = arith.addf %108, %276 : vector<128x128xf32>
    %cst_91 = arith.constant 0.000000e+00 : f32
    %278 = vector.broadcast %cst_91 : f32 to vector<128x128xf32>
    %279 = arith.subf %278, %277 : vector<128x128xf32>
    %280 = math.exp %279 : vector<128x128xf32>
    %cst_92 = arith.constant 1.000000e+00 : f32
    %281 = vector.broadcast %cst_92 : f32 to vector<128x128xf32>
    %282 = arith.addf %281, %280 : vector<128x128xf32>
    %283 = tpu.reciprocal %282 {approx = true} : vector<128x128xf32> -> vector<128x128xf32>
    %284 = math.tanh %277 : vector<128x128xf32>
    %c64_i32_93 = arith.constant 64 : i32
    %285 = tpu.dynamic_rotate %284 by %c64_i32_93 dim 1 : vector<128x128xf32>, i32 -> vector<128x128xf32>
    %286 = arith.mulf %283, %285 : vector<128x128xf32>
    %c32_i32_94 = arith.constant 32 : i32
    %287 = tpu.dynamic_rotate %246 by %c32_i32_94 dim 1 : vector<128x128xf32>, i32 -> vector<128x128xf32>
    %288 = arith.mulf %283, %287 : vector<128x128xf32>
    %c96_i32_95 = arith.constant 96 : i32
    %289 = tpu.dynamic_rotate %288 by %c96_i32_95 dim 1 : vector<128x128xf32>, i32 -> vector<128x128xf32>
    %290 = arith.addf %286, %289 : vector<128x128xf32>
    %cst_96 = arith.constant 0.000000e+00 : f32
    %291 = vector.broadcast %cst_96 : f32 to vector<128x128xf32>
    %292 = arith.select %110, %290, %291 : vector<128x128xi1>, vector<128x128xf32>
    %c32_i32_97 = arith.constant 32 : i32
    %293 = tpu.dynamic_rotate %283 by %c32_i32_97 dim 1 : vector<128x128xf32>, i32 -> vector<128x128xf32>
    %294 = math.tanh %292 : vector<128x128xf32>
    %295 = arith.mulf %293, %294 : vector<128x128xf32>
    %296 = vector.extract_strided_slice %106 {offsets = [4, 0, 0], sizes = [1, 128, 128], strides = [1, 1, 1]} : vector<8x128x128xf32> to vector<1x128x128xf32>
    %297 = vector.shape_cast %296 : vector<1x128x128xf32> to vector<128x128xf32>
    %298 = arith.truncf %272 : vector<128x128xf32> to vector<128x128xbf16>
    %cst_98 = arith.constant dense<0.000000e+00> : vector<128x128xf32>
    %299 = tpu.matmul %298, %1, %cst_98 {dimension_numbers = #tpu.dot_dimension_numbers<[1], [0], [0], [1], [0, 0, 1, 1], [], []>} : vector<128x128xbf16>, vector<128x128xbf16>, vector<128x128xf32> -> vector<128x128xf32>
    %300 = arith.addf %297, %299 : vector<128x128xf32>
    %cst_99 = arith.constant 0.000000e+00 : f32
    %301 = vector.broadcast %cst_99 : f32 to vector<128x128xf32>
    %302 = arith.subf %301, %300 : vector<128x128xf32>
    %303 = math.exp %302 : vector<128x128xf32>
    %cst_100 = arith.constant 1.000000e+00 : f32
    %304 = vector.broadcast %cst_100 : f32 to vector<128x128xf32>
    %305 = arith.addf %304, %303 : vector<128x128xf32>
    %306 = tpu.reciprocal %305 {approx = true} : vector<128x128xf32> -> vector<128x128xf32>
    %307 = math.tanh %300 : vector<128x128xf32>
    %c64_i32_101 = arith.constant 64 : i32
    %308 = tpu.dynamic_rotate %307 by %c64_i32_101 dim 1 : vector<128x128xf32>, i32 -> vector<128x128xf32>
    %309 = arith.mulf %306, %308 : vector<128x128xf32>
    %c32_i32_102 = arith.constant 32 : i32
    %310 = tpu.dynamic_rotate %269 by %c32_i32_102 dim 1 : vector<128x128xf32>, i32 -> vector<128x128xf32>
    %311 = arith.mulf %306, %310 : vector<128x128xf32>
    %c96_i32_103 = arith.constant 96 : i32
    %312 = tpu.dynamic_rotate %311 by %c96_i32_103 dim 1 : vector<128x128xf32>, i32 -> vector<128x128xf32>
    %313 = arith.addf %309, %312 : vector<128x128xf32>
    %cst_104 = arith.constant 0.000000e+00 : f32
    %314 = vector.broadcast %cst_104 : f32 to vector<128x128xf32>
    %315 = arith.select %110, %313, %314 : vector<128x128xi1>, vector<128x128xf32>
    %c32_i32_105 = arith.constant 32 : i32
    %316 = tpu.dynamic_rotate %306 by %c32_i32_105 dim 1 : vector<128x128xf32>, i32 -> vector<128x128xf32>
    %317 = math.tanh %315 : vector<128x128xf32>
    %318 = arith.mulf %316, %317 : vector<128x128xf32>
    %c32_i32_106 = arith.constant 32 : i32
    %319 = tpu.dynamic_rotate %295 by %c32_i32_106 dim 1 : vector<128x128xf32>, i32 -> vector<128x128xf32>
    %320 = arith.addf %318, %319 : vector<128x128xf32>
    %321 = arith.truncf %320 : vector<128x128xf32> to vector<128x128xbf16>
    %cst_107 = arith.constant dense<0.000000e+00> : vector<128x128xf32>
    %322 = tpu.matmul %321, %2, %cst_107 {dimension_numbers = #tpu.dot_dimension_numbers<[1], [0], [0], [1], [0, 0, 1, 1], [], []>} : vector<128x128xbf16>, vector<128x128xbf16>, vector<128x128xf32> -> vector<128x128xf32>
    %323 = arith.addf %108, %322 : vector<128x128xf32>
    %cst_108 = arith.constant 0.000000e+00 : f32
    %324 = vector.broadcast %cst_108 : f32 to vector<128x128xf32>
    %325 = arith.subf %324, %323 : vector<128x128xf32>
    %326 = math.exp %325 : vector<128x128xf32>
    %cst_109 = arith.constant 1.000000e+00 : f32
    %327 = vector.broadcast %cst_109 : f32 to vector<128x128xf32>
    %328 = arith.addf %327, %326 : vector<128x128xf32>
    %329 = tpu.reciprocal %328 {approx = true} : vector<128x128xf32> -> vector<128x128xf32>
    %330 = math.tanh %323 : vector<128x128xf32>
    %c64_i32_110 = arith.constant 64 : i32
    %331 = tpu.dynamic_rotate %330 by %c64_i32_110 dim 1 : vector<128x128xf32>, i32 -> vector<128x128xf32>
    %332 = arith.mulf %329, %331 : vector<128x128xf32>
    %c32_i32_111 = arith.constant 32 : i32
    %333 = tpu.dynamic_rotate %292 by %c32_i32_111 dim 1 : vector<128x128xf32>, i32 -> vector<128x128xf32>
    %334 = arith.mulf %329, %333 : vector<128x128xf32>
    %c96_i32_112 = arith.constant 96 : i32
    %335 = tpu.dynamic_rotate %334 by %c96_i32_112 dim 1 : vector<128x128xf32>, i32 -> vector<128x128xf32>
    %336 = arith.addf %332, %335 : vector<128x128xf32>
    %cst_113 = arith.constant 0.000000e+00 : f32
    %337 = vector.broadcast %cst_113 : f32 to vector<128x128xf32>
    %338 = arith.select %110, %336, %337 : vector<128x128xi1>, vector<128x128xf32>
    %c32_i32_114 = arith.constant 32 : i32
    %339 = tpu.dynamic_rotate %329 by %c32_i32_114 dim 1 : vector<128x128xf32>, i32 -> vector<128x128xf32>
    %340 = math.tanh %338 : vector<128x128xf32>
    %341 = arith.mulf %339, %340 : vector<128x128xf32>
    %342 = vector.extract_strided_slice %106 {offsets = [5, 0, 0], sizes = [1, 128, 128], strides = [1, 1, 1]} : vector<8x128x128xf32> to vector<1x128x128xf32>
    %343 = vector.shape_cast %342 : vector<1x128x128xf32> to vector<128x128xf32>
    %344 = arith.truncf %318 : vector<128x128xf32> to vector<128x128xbf16>
    %cst_115 = arith.constant dense<0.000000e+00> : vector<128x128xf32>
    %345 = tpu.matmul %344, %1, %cst_115 {dimension_numbers = #tpu.dot_dimension_numbers<[1], [0], [0], [1], [0, 0, 1, 1], [], []>} : vector<128x128xbf16>, vector<128x128xbf16>, vector<128x128xf32> -> vector<128x128xf32>
    %346 = arith.addf %343, %345 : vector<128x128xf32>
    %cst_116 = arith.constant 0.000000e+00 : f32
    %347 = vector.broadcast %cst_116 : f32 to vector<128x128xf32>
    %348 = arith.subf %347, %346 : vector<128x128xf32>
    %349 = math.exp %348 : vector<128x128xf32>
    %cst_117 = arith.constant 1.000000e+00 : f32
    %350 = vector.broadcast %cst_117 : f32 to vector<128x128xf32>
    %351 = arith.addf %350, %349 : vector<128x128xf32>
    %352 = tpu.reciprocal %351 {approx = true} : vector<128x128xf32> -> vector<128x128xf32>
    %353 = math.tanh %346 : vector<128x128xf32>
    %c64_i32_118 = arith.constant 64 : i32
    %354 = tpu.dynamic_rotate %353 by %c64_i32_118 dim 1 : vector<128x128xf32>, i32 -> vector<128x128xf32>
    %355 = arith.mulf %352, %354 : vector<128x128xf32>
    %c32_i32_119 = arith.constant 32 : i32
    %356 = tpu.dynamic_rotate %315 by %c32_i32_119 dim 1 : vector<128x128xf32>, i32 -> vector<128x128xf32>
    %357 = arith.mulf %352, %356 : vector<128x128xf32>
    %c96_i32_120 = arith.constant 96 : i32
    %358 = tpu.dynamic_rotate %357 by %c96_i32_120 dim 1 : vector<128x128xf32>, i32 -> vector<128x128xf32>
    %359 = arith.addf %355, %358 : vector<128x128xf32>
    %cst_121 = arith.constant 0.000000e+00 : f32
    %360 = vector.broadcast %cst_121 : f32 to vector<128x128xf32>
    %361 = arith.select %110, %359, %360 : vector<128x128xi1>, vector<128x128xf32>
    %c32_i32_122 = arith.constant 32 : i32
    %362 = tpu.dynamic_rotate %352 by %c32_i32_122 dim 1 : vector<128x128xf32>, i32 -> vector<128x128xf32>
    %363 = math.tanh %361 : vector<128x128xf32>
    %364 = arith.mulf %362, %363 : vector<128x128xf32>
    %c32_i32_123 = arith.constant 32 : i32
    %365 = tpu.dynamic_rotate %341 by %c32_i32_123 dim 1 : vector<128x128xf32>, i32 -> vector<128x128xf32>
    %366 = arith.addf %364, %365 : vector<128x128xf32>
    %367 = arith.truncf %366 : vector<128x128xf32> to vector<128x128xbf16>
    %cst_124 = arith.constant dense<0.000000e+00> : vector<128x128xf32>
    %368 = tpu.matmul %367, %2, %cst_124 {dimension_numbers = #tpu.dot_dimension_numbers<[1], [0], [0], [1], [0, 0, 1, 1], [], []>} : vector<128x128xbf16>, vector<128x128xbf16>, vector<128x128xf32> -> vector<128x128xf32>
    %369 = arith.addf %108, %368 : vector<128x128xf32>
    %cst_125 = arith.constant 0.000000e+00 : f32
    %370 = vector.broadcast %cst_125 : f32 to vector<128x128xf32>
    %371 = arith.subf %370, %369 : vector<128x128xf32>
    %372 = math.exp %371 : vector<128x128xf32>
    %cst_126 = arith.constant 1.000000e+00 : f32
    %373 = vector.broadcast %cst_126 : f32 to vector<128x128xf32>
    %374 = arith.addf %373, %372 : vector<128x128xf32>
    %375 = tpu.reciprocal %374 {approx = true} : vector<128x128xf32> -> vector<128x128xf32>
    %376 = math.tanh %369 : vector<128x128xf32>
    %c64_i32_127 = arith.constant 64 : i32
    %377 = tpu.dynamic_rotate %376 by %c64_i32_127 dim 1 : vector<128x128xf32>, i32 -> vector<128x128xf32>
    %378 = arith.mulf %375, %377 : vector<128x128xf32>
    %c32_i32_128 = arith.constant 32 : i32
    %379 = tpu.dynamic_rotate %338 by %c32_i32_128 dim 1 : vector<128x128xf32>, i32 -> vector<128x128xf32>
    %380 = arith.mulf %375, %379 : vector<128x128xf32>
    %c96_i32_129 = arith.constant 96 : i32
    %381 = tpu.dynamic_rotate %380 by %c96_i32_129 dim 1 : vector<128x128xf32>, i32 -> vector<128x128xf32>
    %382 = arith.addf %378, %381 : vector<128x128xf32>
    %cst_130 = arith.constant 0.000000e+00 : f32
    %383 = vector.broadcast %cst_130 : f32 to vector<128x128xf32>
    %384 = arith.select %110, %382, %383 : vector<128x128xi1>, vector<128x128xf32>
    %c32_i32_131 = arith.constant 32 : i32
    %385 = tpu.dynamic_rotate %375 by %c32_i32_131 dim 1 : vector<128x128xf32>, i32 -> vector<128x128xf32>
    %386 = math.tanh %384 : vector<128x128xf32>
    %387 = arith.mulf %385, %386 : vector<128x128xf32>
    %388 = vector.extract_strided_slice %106 {offsets = [6, 0, 0], sizes = [1, 128, 128], strides = [1, 1, 1]} : vector<8x128x128xf32> to vector<1x128x128xf32>
    %389 = vector.shape_cast %388 : vector<1x128x128xf32> to vector<128x128xf32>
    %390 = arith.truncf %364 : vector<128x128xf32> to vector<128x128xbf16>
    %cst_132 = arith.constant dense<0.000000e+00> : vector<128x128xf32>
    %391 = tpu.matmul %390, %1, %cst_132 {dimension_numbers = #tpu.dot_dimension_numbers<[1], [0], [0], [1], [0, 0, 1, 1], [], []>} : vector<128x128xbf16>, vector<128x128xbf16>, vector<128x128xf32> -> vector<128x128xf32>
    %392 = arith.addf %389, %391 : vector<128x128xf32>
    %cst_133 = arith.constant 0.000000e+00 : f32
    %393 = vector.broadcast %cst_133 : f32 to vector<128x128xf32>
    %394 = arith.subf %393, %392 : vector<128x128xf32>
    %395 = math.exp %394 : vector<128x128xf32>
    %cst_134 = arith.constant 1.000000e+00 : f32
    %396 = vector.broadcast %cst_134 : f32 to vector<128x128xf32>
    %397 = arith.addf %396, %395 : vector<128x128xf32>
    %398 = tpu.reciprocal %397 {approx = true} : vector<128x128xf32> -> vector<128x128xf32>
    %399 = math.tanh %392 : vector<128x128xf32>
    %c64_i32_135 = arith.constant 64 : i32
    %400 = tpu.dynamic_rotate %399 by %c64_i32_135 dim 1 : vector<128x128xf32>, i32 -> vector<128x128xf32>
    %401 = arith.mulf %398, %400 : vector<128x128xf32>
    %c32_i32_136 = arith.constant 32 : i32
    %402 = tpu.dynamic_rotate %361 by %c32_i32_136 dim 1 : vector<128x128xf32>, i32 -> vector<128x128xf32>
    %403 = arith.mulf %398, %402 : vector<128x128xf32>
    %c96_i32_137 = arith.constant 96 : i32
    %404 = tpu.dynamic_rotate %403 by %c96_i32_137 dim 1 : vector<128x128xf32>, i32 -> vector<128x128xf32>
    %405 = arith.addf %401, %404 : vector<128x128xf32>
    %cst_138 = arith.constant 0.000000e+00 : f32
    %406 = vector.broadcast %cst_138 : f32 to vector<128x128xf32>
    %407 = arith.select %110, %405, %406 : vector<128x128xi1>, vector<128x128xf32>
    %c32_i32_139 = arith.constant 32 : i32
    %408 = tpu.dynamic_rotate %398 by %c32_i32_139 dim 1 : vector<128x128xf32>, i32 -> vector<128x128xf32>
    %409 = math.tanh %407 : vector<128x128xf32>
    %410 = arith.mulf %408, %409 : vector<128x128xf32>
    %c32_i32_140 = arith.constant 32 : i32
    %411 = tpu.dynamic_rotate %387 by %c32_i32_140 dim 1 : vector<128x128xf32>, i32 -> vector<128x128xf32>
    %412 = arith.addf %410, %411 : vector<128x128xf32>
    %413 = arith.truncf %412 : vector<128x128xf32> to vector<128x128xbf16>
    %cst_141 = arith.constant dense<0.000000e+00> : vector<128x128xf32>
    %414 = tpu.matmul %413, %2, %cst_141 {dimension_numbers = #tpu.dot_dimension_numbers<[1], [0], [0], [1], [0, 0, 1, 1], [], []>} : vector<128x128xbf16>, vector<128x128xbf16>, vector<128x128xf32> -> vector<128x128xf32>
    %415 = arith.addf %108, %414 : vector<128x128xf32>
    %cst_142 = arith.constant 0.000000e+00 : f32
    %416 = vector.broadcast %cst_142 : f32 to vector<128x128xf32>
    %417 = arith.subf %416, %415 : vector<128x128xf32>
    %418 = math.exp %417 : vector<128x128xf32>
    %cst_143 = arith.constant 1.000000e+00 : f32
    %419 = vector.broadcast %cst_143 : f32 to vector<128x128xf32>
    %420 = arith.addf %419, %418 : vector<128x128xf32>
    %421 = tpu.reciprocal %420 {approx = true} : vector<128x128xf32> -> vector<128x128xf32>
    %422 = math.tanh %415 : vector<128x128xf32>
    %c64_i32_144 = arith.constant 64 : i32
    %423 = tpu.dynamic_rotate %422 by %c64_i32_144 dim 1 : vector<128x128xf32>, i32 -> vector<128x128xf32>
    %424 = arith.mulf %421, %423 : vector<128x128xf32>
    %c32_i32_145 = arith.constant 32 : i32
    %425 = tpu.dynamic_rotate %384 by %c32_i32_145 dim 1 : vector<128x128xf32>, i32 -> vector<128x128xf32>
    %426 = arith.mulf %421, %425 : vector<128x128xf32>
    %c96_i32_146 = arith.constant 96 : i32
    %427 = tpu.dynamic_rotate %426 by %c96_i32_146 dim 1 : vector<128x128xf32>, i32 -> vector<128x128xf32>
    %428 = arith.addf %424, %427 : vector<128x128xf32>
    %cst_147 = arith.constant 0.000000e+00 : f32
    %429 = vector.broadcast %cst_147 : f32 to vector<128x128xf32>
    %430 = arith.select %110, %428, %429 : vector<128x128xi1>, vector<128x128xf32>
    %c32_i32_148 = arith.constant 32 : i32
    %431 = tpu.dynamic_rotate %421 by %c32_i32_148 dim 1 : vector<128x128xf32>, i32 -> vector<128x128xf32>
    %432 = math.tanh %430 : vector<128x128xf32>
    %433 = arith.mulf %431, %432 : vector<128x128xf32>
    %434 = vector.extract_strided_slice %106 {offsets = [7, 0, 0], sizes = [1, 128, 128], strides = [1, 1, 1]} : vector<8x128x128xf32> to vector<1x128x128xf32>
    %435 = vector.shape_cast %434 : vector<1x128x128xf32> to vector<128x128xf32>
    %436 = arith.truncf %410 : vector<128x128xf32> to vector<128x128xbf16>
    %cst_149 = arith.constant dense<0.000000e+00> : vector<128x128xf32>
    %437 = tpu.matmul %436, %1, %cst_149 {dimension_numbers = #tpu.dot_dimension_numbers<[1], [0], [0], [1], [0, 0, 1, 1], [], []>} : vector<128x128xbf16>, vector<128x128xbf16>, vector<128x128xf32> -> vector<128x128xf32>
    %438 = arith.addf %435, %437 : vector<128x128xf32>
    %cst_150 = arith.constant 0.000000e+00 : f32
    %439 = vector.broadcast %cst_150 : f32 to vector<128x128xf32>
    %440 = arith.subf %439, %438 : vector<128x128xf32>
    %441 = math.exp %440 : vector<128x128xf32>
    %cst_151 = arith.constant 1.000000e+00 : f32
    %442 = vector.broadcast %cst_151 : f32 to vector<128x128xf32>
    %443 = arith.addf %442, %441 : vector<128x128xf32>
    %444 = tpu.reciprocal %443 {approx = true} : vector<128x128xf32> -> vector<128x128xf32>
    %445 = math.tanh %438 : vector<128x128xf32>
    %c64_i32_152 = arith.constant 64 : i32
    %446 = tpu.dynamic_rotate %445 by %c64_i32_152 dim 1 : vector<128x128xf32>, i32 -> vector<128x128xf32>
    %447 = arith.mulf %444, %446 : vector<128x128xf32>
    %c32_i32_153 = arith.constant 32 : i32
    %448 = tpu.dynamic_rotate %407 by %c32_i32_153 dim 1 : vector<128x128xf32>, i32 -> vector<128x128xf32>
    %449 = arith.mulf %444, %448 : vector<128x128xf32>
    %c96_i32_154 = arith.constant 96 : i32
    %450 = tpu.dynamic_rotate %449 by %c96_i32_154 dim 1 : vector<128x128xf32>, i32 -> vector<128x128xf32>
    %451 = arith.addf %447, %450 : vector<128x128xf32>
    %cst_155 = arith.constant 0.000000e+00 : f32
    %452 = vector.broadcast %cst_155 : f32 to vector<128x128xf32>
    %453 = arith.select %110, %451, %452 : vector<128x128xi1>, vector<128x128xf32>
    %c32_i32_156 = arith.constant 32 : i32
    %454 = tpu.dynamic_rotate %444 by %c32_i32_156 dim 1 : vector<128x128xf32>, i32 -> vector<128x128xf32>
    %455 = math.tanh %453 : vector<128x128xf32>
    %456 = arith.mulf %454, %455 : vector<128x128xf32>
    %c32_i32_157 = arith.constant 32 : i32
    %457 = tpu.dynamic_rotate %433 by %c32_i32_157 dim 1 : vector<128x128xf32>, i32 -> vector<128x128xf32>
    %458 = arith.addf %456, %457 : vector<128x128xf32>
    %459 = arith.truncf %458 : vector<128x128xf32> to vector<128x128xbf16>
    %cst_158 = arith.constant dense<0.000000e+00> : vector<128x128xf32>
    %460 = tpu.matmul %459, %2, %cst_158 {dimension_numbers = #tpu.dot_dimension_numbers<[1], [0], [0], [1], [0, 0, 1, 1], [], []>} : vector<128x128xbf16>, vector<128x128xbf16>, vector<128x128xf32> -> vector<128x128xf32>
    %461 = arith.addf %108, %460 : vector<128x128xf32>
    %cst_159 = arith.constant 0.000000e+00 : f32
    %462 = vector.broadcast %cst_159 : f32 to vector<128x128xf32>
    %463 = arith.subf %462, %461 : vector<128x128xf32>
    %464 = math.exp %463 : vector<128x128xf32>
    %cst_160 = arith.constant 1.000000e+00 : f32
    %465 = vector.broadcast %cst_160 : f32 to vector<128x128xf32>
    %466 = arith.addf %465, %464 : vector<128x128xf32>
    %467 = tpu.reciprocal %466 {approx = true} : vector<128x128xf32> -> vector<128x128xf32>
    %468 = math.tanh %461 : vector<128x128xf32>
    %c64_i32_161 = arith.constant 64 : i32
    %469 = tpu.dynamic_rotate %468 by %c64_i32_161 dim 1 : vector<128x128xf32>, i32 -> vector<128x128xf32>
    %470 = arith.mulf %467, %469 : vector<128x128xf32>
    %c32_i32_162 = arith.constant 32 : i32
    %471 = tpu.dynamic_rotate %430 by %c32_i32_162 dim 1 : vector<128x128xf32>, i32 -> vector<128x128xf32>
    %472 = arith.mulf %467, %471 : vector<128x128xf32>
    %c96_i32_163 = arith.constant 96 : i32
    %473 = tpu.dynamic_rotate %472 by %c96_i32_163 dim 1 : vector<128x128xf32>, i32 -> vector<128x128xf32>
    %474 = arith.addf %470, %473 : vector<128x128xf32>
    %cst_164 = arith.constant 0.000000e+00 : f32
    %475 = vector.broadcast %cst_164 : f32 to vector<128x128xf32>
    %476 = arith.select %110, %474, %475 : vector<128x128xi1>, vector<128x128xf32>
    %c32_i32_165 = arith.constant 32 : i32
    %477 = tpu.dynamic_rotate %467 by %c32_i32_165 dim 1 : vector<128x128xf32>, i32 -> vector<128x128xf32>
    %478 = math.tanh %476 : vector<128x128xf32>
    %479 = arith.mulf %477, %478 : vector<128x128xf32>
    %480 = vector.extract_strided_slice %479 {offsets = [0, 0], sizes = [128, 32], strides = [1, 1]} : vector<128x128xf32> to vector<128x32xf32>
    %481 = arith.truncf %480 : vector<128x32xf32> to vector<128x32xbf16>
    %cst_166 = arith.constant dense<0.000000e+00> : vector<128x32xf32>
    %482 = tpu.matmul %481, %6, %cst_166 {dimension_numbers = #tpu.dot_dimension_numbers<[1], [0], [0], [1], [0, 0, 1, 1], [], []>} : vector<128x32xbf16>, vector<32x32xbf16>, vector<128x32xf32> -> vector<128x32xf32>
    %483 = vector.broadcast %14 : vector<1x32xf32> to vector<128x32xf32>
    %484 = arith.addf %482, %483 : vector<128x32xf32>
    %cst_167 = arith.constant 0.000000e+00 : f32
    %485 = vector.broadcast %cst_167 : f32 to vector<128x32xf32>
    %486 = arith.maximumf %484, %485 : vector<128x32xf32>
    %487 = arith.truncf %486 : vector<128x32xf32> to vector<128x32xbf16>
    %cst_168 = arith.constant dense<0.000000e+00> : vector<128x32xf32>
    %488 = tpu.matmul %487, %7, %cst_168 {dimension_numbers = #tpu.dot_dimension_numbers<[1], [0], [0], [1], [0, 0, 1, 1], [], []>} : vector<128x32xbf16>, vector<32x32xbf16>, vector<128x32xf32> -> vector<128x32xf32>
    %489 = vector.broadcast %15 : vector<1x32xf32> to vector<128x32xf32>
    %490 = arith.addf %488, %489 : vector<128x32xf32>
    %cst_169 = arith.constant 0.000000e+00 : f32
    %491 = vector.broadcast %cst_169 : f32 to vector<128x32xf32>
    %492 = arith.maximumf %490, %491 : vector<128x32xf32>
    %493 = vector.broadcast %16 : vector<1x32xf32> to vector<128x32xf32>
    %494 = arith.mulf %492, %493 : vector<128x32xf32>
    %cst_170 = arith.constant dense<0.000000e+00> : vector<128xf32>
    %495 = vector.multi_reduction <add>, %494, %cst_170 [1] : vector<128x32xf32> to vector<128xf32>
    %496 = vector.shape_cast %495 : vector<128xf32> to vector<128x1xf32>
    %497 = vector.extract_strided_slice %17 {offsets = [0, 0], sizes = [1, 1], strides = [1, 1]} : vector<1x32xf32> to vector<1x1xf32>
    %498 = vector.broadcast %497 : vector<1x1xf32> to vector<128x1xf32>
    %499 = arith.addf %496, %498 : vector<128x1xf32>
    %cst_171 = arith.constant 0.000000e+00 : f32
    %500 = vector.broadcast %cst_171 : f32 to vector<128x1xf32>
    %501 = arith.subf %500, %499 : vector<128x1xf32>
    %502 = math.exp %501 : vector<128x1xf32>
    %cst_172 = arith.constant 1.000000e+00 : f32
    %503 = vector.broadcast %cst_172 : f32 to vector<128x1xf32>
    %504 = arith.addf %503, %502 : vector<128x1xf32>
    %505 = tpu.reciprocal %504 {approx = true} : vector<128x1xf32> -> vector<128x1xf32>
    %c0_173 = arith.constant 0 : index
    %c0_174 = arith.constant 0 : index
    %506 = vector.load %arg6[%c0_173, %c0_174] : memref<128x1xf32, #tpu.memory_space<vmem>>, vector<128x1xf32>
    tpu.vector_store %arg6[%c0_173, %c0_174], %505 {strides = array<i32>} : memref<128x1xf32, #tpu.memory_space<vmem>>, vector<128x1xf32>,
    return
  }
  func.func @transform_0(%arg0: i32) -> (i32, i32) {
    %c0_i32 = arith.constant 0 : i32
    %c0_i32_0 = arith.constant 0 : i32
    return %arg0, %c0_i32 : i32, i32
  }
  func.func @transform_1(%arg0: i32) -> (i32, i32) {
    %c0_i32 = arith.constant 0 : i32
    %c0_i32_0 = arith.constant 0 : i32
    return %arg0, %c0_i32 : i32, i32
  }
  func.func @transform_2(%arg0: i32) -> (i32, i32) {
    %c0_i32 = arith.constant 0 : i32
    %c0_i32_0 = arith.constant 0 : i32
    %c0_i32_1 = arith.constant 0 : i32
    return %c0_i32, %c0_i32_0 : i32, i32
  }
  func.func @transform_3(%arg0: i32) -> (i32, i32) {
    %c0_i32 = arith.constant 0 : i32
    %c0_i32_0 = arith.constant 0 : i32
    %c0_i32_1 = arith.constant 0 : i32
    return %c0_i32, %c0_i32_0 : i32, i32
  }
  func.func @transform_4(%arg0: i32) -> (i32, i32) {
    %c0_i32 = arith.constant 0 : i32
    %c0_i32_0 = arith.constant 0 : i32
    %c0_i32_1 = arith.constant 0 : i32
    return %c0_i32, %c0_i32_0 : i32, i32
  }
  func.func @transform_5(%arg0: i32) -> (i32, i32) {
    %c0_i32 = arith.constant 0 : i32
    %c0_i32_0 = arith.constant 0 : i32
    return %arg0, %c0_i32 : i32, i32
  }
}

</mosaic_0001>

<llo_original>
// kernel: tpu_custom_call.1
$region0: #{tpu_custom_call.1}
  #allocation0 [shape = 'u32[]', space=smem, size = 0x4, offset = 0x4, fixed_abs, tag = 'smem constant byte address 0x4 - core index']
  #allocation1 [shape = 'u32[144,128]{1,0:T(1,128)}', space=vmem, size = 0x12000, scoped, tag = 'internal scratch']
  %s0 = inlined_call_operand.vmem [shape: s32[256,2], index: 0, kind: input, shape index: {}]
  %s1 = inlined_call_operand.vmem [shape: f32[256,8], index: 1, kind: input, shape index: {}]
  %s2 = inlined_call_operand.vmem [shape: bf16[288,128], index: 2, kind: input, shape index: {}]
  %s3 = inlined_call_operand.vmem [shape: bf16[256,32], index: 3, kind: input, shape index: {}]
  %s4 = inlined_call_operand.vmem [shape: f32[8,128], index: 4, kind: input, shape index: {}]
  %s5 = inlined_call_operand.vmem [shape: f32[256,1], index: 5, kind: output, shape index: {}]
  %s6 = sld [smem:[#allocation0]]
  $region53: #{tpu_custom_call.1} parent=0
    _
  %s8 = ssub.s32 1, %s6
  %s9 = scalar_select 0, %s8, %s6
  loop: start=0, step=1, limit=4
  $region2: #{tpu_custom_call.1} parent=0 // loop_pre_header
    _
  $region3: #{tpu_custom_call.1} parent=0 // loop_header
    %s11 = sphi 0, %s15
    %p12 = scmp.ge.s32.totalorder %s11, 4
    %s21 = sphi 0, %s23
    %s24 = sphi 0, %s21
    %s25 = sphi 0, %s24
    %s41 = sphi 0, %s25
    %s47 = sphi 0, %s49
    %s50 = sphi 0, %s47
    %s51 = sphi 0, %s50
    %s67 = sphi 0, %s51
    %s71 = sphi 0, %s71
    %s73 = sphi 0, %s71
    %s74 = sphi 0, %s73
    %s88 = sphi 0, %s74
    %s92 = sphi 0, %s92
    %s94 = sphi 0, %s92
    %s95 = sphi 0, %s94
    %s109 = sphi 0, %s95
    %s113 = sphi 0, %s113
    %s115 = sphi 0, %s113
    %s116 = sphi 0, %s115
    %s130 = sphi 0, %s116
    %s136 = sphi 0, %s138
    %s139 = sphi 0, %s136
    %s140 = sphi 0, %s139
    %s156 = sphi 0, %s140
  $region4: #{tpu_custom_call.1} parent=0 // loop_header_branch
    %14 = sbr.rel (%p12) target = $region8
  $region5: #{tpu_custom_call.1} parent=0 // loop_body
    %s16 = ssub.s32 %s11, 1
    %s17 = ssub.s32 %s11, 2
    %s18 = sadd.s32 %s11, 1
    %s19 = ssub.s32 %s11, %s18
    %p20 = scmp.eq.s32.totalorder %s19, 0
    %s22 = sadd.s32 %s21, 1
    %s23 = scalar_select %p20, %s21, %s22
    %p26 = pneg %p20
    %p27 = scmp.eq.s32.totalorder %s11, 1
    %p28 = por %p26, %p27
    %p29 = scmp.ne.s32.totalorder %s21, %s24
    %p30 = scmp.eq.s32.totalorder %s11, 0
    %p31 = por %p29, %p30
    %p32 = scmp.ne.s32.totalorder %s21, %s24
    %p33 = scmp.eq.s32.totalorder %s16, 1
    %p34 = por %p32, %p33
    %p35 = scmp.ne.s32.totalorder %s24, %s25
    %p36 = scmp.eq.s32.totalorder %s16, 0
    %p37 = por %p35, %p36
    %p38 = scmp.ne.s32.totalorder %s24, %s25
    %p39 = scmp.eq.s32.totalorder %s17, 1
    %p40 = por %p38, %p39
    %p42 = scmp.ne.s32.totalorder %s25, %s41
    %p43 = scmp.eq.s32.totalorder %s17, 0
    %p44 = por %p42, %p43
    %s45 = ssub.s32 %s11, %s18
    %p46 = scmp.eq.s32.totalorder %s45, 0
    %s48 = sadd.s32 %s47, 1
    %s49 = scalar_select %p46, %s47, %s48
    %p52 = pneg %p46
    %p53 = scmp.eq.s32.totalorder %s11, 1
    %p54 = por %p52, %p53
    %p55 = scmp.ne.s32.totalorder %s47, %s50
    %p56 = scmp.eq.s32.totalorder %s11, 0
    %p57 = por %p55, %p56
    %p58 = scmp.ne.s32.totalorder %s47, %s50
    %p59 = scmp.eq.s32.totalorder %s16, 1
    %p60 = por %p58, %p59
    %p61 = scmp.ne.s32.totalorder %s50, %s51
    %p62 = scmp.eq.s32.totalorder %s16, 0
    %p63 = por %p61, %p62
    %p64 = scmp.ne.s32.totalorder %s50, %s51
    %p65 = scmp.eq.s32.totalorder %s17, 1
    %p66 = por %p64, %p65
    %p68 = scmp.ne.s32.totalorder %s51, %s67
    %p69 = scmp.eq.s32.totalorder %s17, 0
    %p70 = por %p68, %p69
    %s72 = sadd.s32 %s71, 1
    %p75 = scmp.eq.s32.totalorder %s11, 1
    %p76 = scmp.ne.s32.totalorder %s71, %s73
    %p77 = scmp.eq.s32.totalorder %s11, 0
    %p78 = por %p76, %p77
    %p79 = scmp.ne.s32.totalorder %s71, %s73
    %p80 = scmp.eq.s32.totalorder %s16, 1
    %p81 = por %p79, %p80
    %p82 = scmp.ne.s32.totalorder %s73, %s74
    %p83 = scmp.eq.s32.totalorder %s16, 0
    %p84 = por %p82, %p83
    %p85 = scmp.ne.s32.totalorder %s73, %s74
    %p86 = scmp.eq.s32.totalorder %s17, 1
    %p87 = por %p85, %p86
    %p89 = scmp.ne.s32.totalorder %s74, %s88
    %p90 = scmp.eq.s32.totalorder %s17, 0
    %p91 = por %p89, %p90
    %s93 = sadd.s32 %s92, 1
    %p96 = scmp.eq.s32.totalorder %s11, 1
    %p97 = scmp.ne.s32.totalorder %s92, %s94
    %p98 = scmp.eq.s32.totalorder %s11, 0
    %p99 = por %p97, %p98
    %p100 = scmp.ne.s32.totalorder %s92, %s94
    %p101 = scmp.eq.s32.totalorder %s16, 1
    %p102 = por %p100, %p101
    %p103 = scmp.ne.s32.totalorder %s94, %s95
    %p104 = scmp.eq.s32.totalorder %s16, 0
    %p105 = por %p103, %p104
    %p106 = scmp.ne.s32.totalorder %s94, %s95
    %p107 = scmp.eq.s32.totalorder %s17, 1
    %p108 = por %p106, %p107
    %p110 = scmp.ne.s32.totalorder %s95, %s109
    %p111 = scmp.eq.s32.totalorder %s17, 0
    %p112 = por %p110, %p111
    %s114 = sadd.s32 %s113, 1
    %p117 = scmp.eq.s32.totalorder %s11, 1
    %p118 = scmp.ne.s32.totalorder %s113, %s115
    %p119 = scmp.eq.s32.totalorder %s11, 0
    %p120 = por %p118, %p119
    %p121 = scmp.ne.s32.totalorder %s113, %s115
    %p122 = scmp.eq.s32.totalorder %s16, 1
    %p123 = por %p121, %p122
    %p124 = scmp.ne.s32.totalorder %s115, %s116
    %p125 = scmp.eq.s32.totalorder %s16, 0
    %p126 = por %p124, %p125
    %p127 = scmp.ne.s32.totalorder %s115, %s116
    %p128 = scmp.eq.s32.totalorder %s17, 1
    %p129 = por %p127, %p128
    %p131 = scmp.ne.s32.totalorder %s116, %s130
    %p132 = scmp.eq.s32.totalorder %s17, 0
    %p133 = por %p131, %p132
    %s134 = ssub.s32 %s11, %s18
    %p135 = scmp.eq.s32.totalorder %s134, 0
    %s137 = sadd.s32 %s136, 1
    %s138 = scalar_select %p135, %s136, %s137
    %p141 = pneg %p135
    %p142 = scmp.eq.s32.totalorder %s11, 1
    %p143 = por %p141, %p142
    %p144 = scmp.ne.s32.totalorder %s136, %s139
    %p145 = scmp.eq.s32.totalorder %s11, 0
    %p146 = por %p144, %p145
    %p147 = scmp.ne.s32.totalorder %s136, %s139
    %p148 = scmp.eq.s32.totalorder %s16, 1
    %p149 = por %p147, %p148
    %p150 = scmp.ne.s32.totalorder %s139, %s140
    %p151 = scmp.eq.s32.totalorder %s16, 0
    %p152 = por %p150, %p151
    %p153 = scmp.ne.s32.totalorder %s139, %s140
    %p154 = scmp.eq.s32.totalorder %s17, 1
    %p155 = por %p153, %p154
    %p157 = scmp.ne.s32.totalorder %s140, %s156
    %p158 = scmp.eq.s32.totalorder %s17, 0
    %p159 = por %p157, %p158
    %p160 = scmp.le.s32.totalorder 1, %s11
    %p161 = scmp.lt.s32.totalorder %s11, 3
    %p162 = pnand %p160, %p161
    %p163 = pneg %p162
    // Predicated region
    $region9: #{tpu_custom_call.1} parent=5 // pred_check
      _
    $region10: #{tpu_custom_call.1} parent=5 // pred_check_branch
      %165 = sbr.rel (%p162) target = $region12
    $region11: #{tpu_custom_call.1} parent=5 // pred_region
      %s166 = ssub.s32 %s11, 1
      // Predicated region
      $region13: #{tpu_custom_call.1} parent=11 // pred_check
        %p167 = pneg %p84
      $region14: #{tpu_custom_call.1} parent=11 // pred_check_branch
        %169 = sbr.rel (%p167) target = $region16
      $region15: #{tpu_custom_call.1} parent=11 // pred_region
        _
      $region16: #{tpu_custom_call.1} parent=11 // pred_fallthru
        _
      // Predicated region
      $region17: #{tpu_custom_call.1} parent=11 // pred_check
        %p170 = pneg %p105
      $region18: #{tpu_custom_call.1} parent=11 // pred_check_branch
        %172 = sbr.rel (%p170) target = $region20
      $region19: #{tpu_custom_call.1} parent=11 // pred_region
        _
      $region20: #{tpu_custom_call.1} parent=11 // pred_fallthru
        _
      // Predicated region
      $region21: #{tpu_custom_call.1} parent=11 // pred_check
        %p173 = pneg %p126
      $region22: #{tpu_custom_call.1} parent=11 // pred_check_branch
        %175 = sbr.rel (%p173) target = $region24
      $region23: #{tpu_custom_call.1} parent=11 // pred_region
        _
      $region24: #{tpu_custom_call.1} parent=11 // pred_fallthru
        _
    $region12: #{tpu_custom_call.1} parent=5 // pred_fallthru
      _
    %p176 = scmp.lt.s32.totalorder %s11, 2
    // Predicated region
    $region25: #{tpu_custom_call.1} parent=5 // pred_check
      %p177 = pneg %p176
    $region26: #{tpu_custom_call.1} parent=5 // pred_check_branch
      %179 = sbr.rel (%p177) target = $region28
    $region27: #{tpu_custom_call.1} parent=5 // pred_region
      // Predicated region
      $region29: #{tpu_custom_call.1} parent=27 // pred_check
        %p180 = pneg %p31
      $region30: #{tpu_custom_call.1} parent=27 // pred_check_branch
        %182 = sbr.rel (%p180) target = $region32
      $region31: #{tpu_custom_call.1} parent=27 // pred_region
        %s183 = smul.u32 16, %s11
        %p184 = scmp.lt.s32.totalorder %s183, 31
        %s185 = scalar_select %p184, %s183, 31
        %s186 = smul.addr %s185, 8
        %s187 = scalar_lea.vmem %s0, %s186
        %s188 = smul.u32 16, %s11
      $region32: #{tpu_custom_call.1} parent=27 // pred_fallthru
        _
      // Predicated region
      $region33: #{tpu_custom_call.1} parent=27 // pred_check
        %p189 = pneg %p57
      $region34: #{tpu_custom_call.1} parent=27 // pred_check_branch
        %191 = sbr.rel (%p189) target = $region36
      $region35: #{tpu_custom_call.1} parent=27 // pred_region
        %s192 = smul.u32 16, %s11
        %p193 = scmp.lt.s32.totalorder %s192, 31
        %s194 = scalar_select %p193, %s192, 31
        %s195 = smul.addr %s194, 8
        %s196 = scalar_lea.vmem %s1, %s195
        %s197 = smul.u32 16, %s11
      $region36: #{tpu_custom_call.1} parent=27 // pred_fallthru
        _
    $region28: #{tpu_custom_call.1} parent=5 // pred_fallthru
      _
    %p198 = scmp.le.s32.totalorder 1, %s11
    %p199 = scmp.lt.s32.totalorder %s11, 3
    %p200 = pnand %p198, %p199
    %p201 = pneg %p200
    // Predicated region
    $region37: #{tpu_custom_call.1} parent=5 // pred_check
      _
    $region38: #{tpu_custom_call.1} parent=5 // pred_check_branch
      %203 = sbr.rel (%p200) target = $region40
    $region39: #{tpu_custom_call.1} parent=5 // pred_region
      %s204 = ssub.s32 %s11, 1
      %s205 = smul.u32 16, %s16
      %p206 = scmp.lt.s32.totalorder %s205, 31
      %s207 = scalar_select %p206, %s205, 31
      %s208 = smul.addr %s207, 8
      %s209 = scalar_lea.vmem %s0, %s208
      %p210 = pneg %p37
      %p211 = pneg %p34
      %s212 = smul.u32 16, %s16
      %p213 = scmp.lt.s32.totalorder %s212, 31
      %s214 = scalar_select %p213, %s212, 31
      %s215 = smul.addr %s214, 8
      %s216 = scalar_lea.vmem %s1, %s215
      %p217 = pneg %p63
      %p218 = pneg %p60
      %p219 = pneg %p84
      %p220 = pneg %p81
      %p221 = pneg %p105
      %p222 = pneg %p102
      %p223 = pneg %p126
      %p224 = pneg %p123
      %p225 = pneg %p152
      %p226 = pneg %p149
      %s227 = smul.u32 16, %s16
      %p228 = scmp.lt.s32.totalorder %s227, 31
      %s229 = scalar_select %p228, %s227, 31
      %s230 = smul.addr %s229, 8
      %s231 = scalar_lea.vmem %s5, %s230
      %s232 = smul.u32 16, %s16
      %p233 = scmp.lt.s32.totalorder %s232, 31
      %s234 = scalar_select %p233, %s232, 31
      %s235 = smul.addr %s234, 8
      %s236 = scalar_lea.vmem %s0, %s235
      %s237 = smul.u32 16, %s16
      %s238 = smul.u32 16, %s16
      %p239 = scmp.lt.s32.totalorder %s238, 31
      %s240 = scalar_select %p239, %s238, 31
      %s241 = smul.addr %s240, 8
      %s242 = scalar_lea.vmem %s1, %s241
      %s243 = smul.u32 16, %s16
      %s244 = smul.u32 16, %s16
      %p245 = scmp.lt.s32.totalorder %s244, 31
      %s246 = scalar_select %p245, %s244, 31
      %s247 = smul.addr %s246, 8
      %s248 = scalar_lea.vmem %s5, %s247
      %s249 = smul.u32 16, %s16
      %v251 = vld [vmem:[%s2] sm:$0xf]
      %v252 = vld [vmem:[%s2 + $0x4] sm:$0xf]
      %v253 = vld [vmem:[%s2 + $0x8] sm:$0xf]
      %v254 = vld [vmem:[%s2 + $0xc] sm:$0xf]
      %v255 = vld [vmem:[%s2 + $0x10] sm:$0xf]
      %v256 = vld [vmem:[%s2 + $0x14] sm:$0xf]
      %v257 = vld [vmem:[%s2 + $0x18] sm:$0xf]
      %v258 = vld [vmem:[%s2 + $0x1c] sm:$0xf]
      %v259 = vld [vmem:[%s2 + $0x20] sm:$0xf]
      %v260 = vld [vmem:[%s2 + $0x24] sm:$0xf]
      %v261 = vld [vmem:[%s2 + $0x28] sm:$0xf]
      %v262 = vld [vmem:[%s2 + $0x2c] sm:$0xf]
      %v263 = vld [vmem:[%s2 + $0x30] sm:$0xf]
      %v264 = vld [vmem:[%s2 + $0x34] sm:$0xf]
      %v265 = vld [vmem:[%s2 + $0x38] sm:$0xf]
      %v266 = vld [vmem:[%s2 + $0x3c] sm:$0xf]
      %v267 = vld [vmem:[%s2 + $0x40] sm:$0xf]
      %v268 = vld [vmem:[%s2 + $0x44] sm:$0xf]
      %v269 = vld [vmem:[%s2 + $0x48] sm:$0xf]
      %v270 = vld [vmem:[%s2 + $0x4c] sm:$0xf]
      %v271 = vld [vmem:[%s2 + $0x50] sm:$0xf]
      %v272 = vld [vmem:[%s2 + $0x54] sm:$0xf]
      %v273 = vld [vmem:[%s2 + $0x58] sm:$0xf]
      %v274 = vld [vmem:[%s2 + $0x5c] sm:$0xf]
      %v275 = vld [vmem:[%s2 + $0x60] sm:$0xf]
      %v276 = vld [vmem:[%s2 + $0x64] sm:$0xf]
      %v277 = vld [vmem:[%s2 + $0x68] sm:$0xf]
      %v278 = vld [vmem:[%s2 + $0x6c] sm:$0xf]
      %v279 = vld [vmem:[%s2 + $0x70] sm:$0xf]
      %v280 = vld [vmem:[%s2 + $0x74] sm:$0xf]
      %v281 = vld [vmem:[%s2 + $0x78] sm:$0xf]
      %v282 = vld [vmem:[%s2 + $0x7c] sm:$0xf]
      %v283 = vld [vmem:[%s2 + $0x80] sm:$0xf]
      %v284 = vld [vmem:[%s2 + $0x84] sm:$0xf]
      %v285 = vld [vmem:[%s2 + $0x88] sm:$0xf]
      %v286 = vld [vmem:[%s2 + $0x8c] sm:$0xf]
      %v287 = vld [vmem:[%s3] sm:$0xf]
      %v288 = vld [vmem:[%s3 + $0x4] sm:$0xf]
      %v289 = vld [vmem:[%s3 + $0x8] sm:$0xf]
      %v290 = vld [vmem:[%s3 + $0xc] sm:$0xf]
      %v291 = vld [vmem:[%s3 + $0x10] sm:$0xf]
      %v292 = vld [vmem:[%s3 + $0x14] sm:$0xf]
      %v293 = vld [vmem:[%s3 + $0x18] sm:$0xf]
      %v294 = vld [vmem:[%s3 + $0x1c] sm:$0xf]
      %v295 = vld [vmem:[%s3 + $0x20] sm:$0xf]
      %v296 = vld [vmem:[%s3 + $0x24] sm:$0xf]
      %v297 = vld [vmem:[%s3 + $0x28] sm:$0xf]
      %v298 = vld [vmem:[%s3 + $0x2c] sm:$0xf]
      %v299 = vld [vmem:[%s3 + $0x30] sm:$0xf]
      %v300 = vld [vmem:[%s3 + $0x34] sm:$0xf]
      %v301 = vld [vmem:[%s3 + $0x38] sm:$0xf]
      %v302 = vld [vmem:[%s3 + $0x3c] sm:$0xf]
      %v303 = vld [vmem:[%s3 + $0x40] sm:$0xf]
      %v304 = vld [vmem:[%s3 + $0x44] sm:$0xf]
      %v305 = vld [vmem:[%s3 + $0x48] sm:$0xf]
      %v306 = vld [vmem:[%s3 + $0x4c] sm:$0xf]
      %v307 = vld [vmem:[%s3 + $0x50] sm:$0xf]
      %v308 = vld [vmem:[%s3 + $0x54] sm:$0xf]
      %v309 = vld [vmem:[%s3 + $0x58] sm:$0xf]
      %v310 = vld [vmem:[%s3 + $0x5c] sm:$0xf]
      %v311 = vld [vmem:[%s3 + $0x60] sm:$0xf]
      %v312 = vld [vmem:[%s3 + $0x64] sm:$0xf]
      %v313 = vld [vmem:[%s3 + $0x68] sm:$0xf]
      %v314 = vld [vmem:[%s3 + $0x6c] sm:$0xf]
      %v315 = vld [vmem:[%s3 + $0x70] sm:$0xf]
      %v316 = vld [vmem:[%s3 + $0x74] sm:$0xf]
      %v317 = vld [vmem:[%s3 + $0x78] sm:$0xf]
      %v318 = vld [vmem:[%s3 + $0x7c] sm:$0xf]
      %v319 = vld [vmem:[%s4] sm:$0xff]
      %v320 = vld [vmem:[%s236] sm:$0xff]
      %v321 = vld [vmem:[%s236 + $0x8] sm:$0xff]
      %v322 = vld [vmem:[%s236 + $0x10] sm:$0xff]
      %v323 = vld [vmem:[%s236 + $0x18] sm:$0xff]
      %v324 = vld [vmem:[%s236 + $0x20] sm:$0xff]
      %v325 = vld [vmem:[%s236 + $0x28] sm:$0xff]
      %v326 = vld [vmem:[%s236 + $0x30] sm:$0xff]
      %v327 = vld [vmem:[%s236 + $0x38] sm:$0xff]
      %v328 = vld [vmem:[%s236 + $0x40] sm:$0xff]
      %v329 = vld [vmem:[%s236 + $0x48] sm:$0xff]
      %v330 = vld [vmem:[%s236 + $0x50] sm:$0xff]
      %v331 = vld [vmem:[%s236 + $0x58] sm:$0xff]
      %v332 = vld [vmem:[%s236 + $0x60] sm:$0xff]
      %v333 = vld [vmem:[%s236 + $0x68] sm:$0xff]
      %v334 = vld [vmem:[%s236 + $0x70] sm:$0xff]
      %v335 = vld [vmem:[%s236 + $0x78] sm:$0xff]
      %v336 = vld [vmem:[%s242] sm:$0xff]
      %v337 = vld [vmem:[%s242 + $0x8] sm:$0xff]
      %v338 = vld [vmem:[%s242 + $0x10] sm:$0xff]
      %v339 = vld [vmem:[%s242 + $0x18] sm:$0xff]
      %v340 = vld [vmem:[%s242 + $0x20] sm:$0xff]
      %v341 = vld [vmem:[%s242 + $0x28] sm:$0xff]
      %v342 = vld [vmem:[%s242 + $0x30] sm:$0xff]
      %v343 = vld [vmem:[%s242 + $0x38] sm:$0xff]
      %v344 = vld [vmem:[%s242 + $0x40] sm:$0xff]
      %v345 = vld [vmem:[%s242 + $0x48] sm:$0xff]
      %v346 = vld [vmem:[%s242 + $0x50] sm:$0xff]
      %v347 = vld [vmem:[%s242 + $0x58] sm:$0xff]
      %v348 = vld [vmem:[%s242 + $0x60] sm:$0xff]
      %v349 = vld [vmem:[%s242 + $0x68] sm:$0xff]
      %v350 = vld [vmem:[%s242 + $0x70] sm:$0xff]
      %v351 = vld [vmem:[%s242 + $0x78] sm:$0xff]
      %v352 = vlaneseq
      %v353 = vand.u32 %v352, 127
      %354 = vset.pattern.permute.xlu0 0
      %355 = vperm.xlu0 %354, %v320
      %v356 = vpop.permute.xlu0 %355
      %357 = vset.pattern.permute.xlu0 0
      %358 = vperm.xlu0 %357, %v321
      %v359 = vpop.permute.xlu0 %358
      %360 = vset.pattern.permute.xlu0 0
      %361 = vperm.xlu0 %360, %v322
      %v362 = vpop.permute.xlu0 %361
      %363 = vset.pattern.permute.xlu0 0
      %364 = vperm.xlu0 %363, %v323
      %v365 = vpop.permute.xlu0 %364
      %366 = vset.pattern.permute.xlu0 0
      %367 = vperm.xlu0 %366, %v324
      %v368 = vpop.permute.xlu0 %367
      %369 = vset.pattern.permute.xlu0 0
      %370 = vperm.xlu0 %369, %v325
      %v371 = vpop.permute.xlu0 %370
      %372 = vset.pattern.permute.xlu0 0
      %373 = vperm.xlu0 %372, %v326
      %v374 = vpop.permute.xlu0 %373
      %375 = vset.pattern.permute.xlu0 0
      %376 = vperm.xlu0 %375, %v327
      %v377 = vpop.permute.xlu0 %376
      %378 = vset.pattern.permute.xlu0 0
      %379 = vperm.xlu0 %378, %v328
      %v380 = vpop.permute.xlu0 %379
      %381 = vset.pattern.permute.xlu0 0
      %382 = vperm.xlu0 %381, %v329
      %v383 = vpop.permute.xlu0 %382
      %384 = vset.pattern.permute.xlu0 0
      %385 = vperm.xlu0 %384, %v330
      %v386 = vpop.permute.xlu0 %385
      %387 = vset.pattern.permute.xlu0 0
      %388 = vperm.xlu0 %387, %v331
      %v389 = vpop.permute.xlu0 %388
      %390 = vset.pattern.permute.xlu0 0
      %391 = vperm.xlu0 %390, %v332
      %v392 = vpop.permute.xlu0 %391
      %393 = vset.pattern.permute.xlu0 0
      %394 = vperm.xlu0 %393, %v333
      %v395 = vpop.permute.xlu0 %394
      %396 = vset.pattern.permute.xlu0 0
      %397 = vperm.xlu0 %396, %v334
      %v398 = vpop.permute.xlu0 %397
      %399 = vset.pattern.permute.xlu0 0
      %400 = vperm.xlu0 %399, %v335
      %v401 = vpop.permute.xlu0 %400
      %vm402 = vcmp.eq.s32.totalorder %v353, %v356
      %vm403 = vcmp.eq.s32.totalorder %v353, %v359
      %vm404 = vcmp.eq.s32.totalorder %v353, %v362
      %vm405 = vcmp.eq.s32.totalorder %v353, %v365
      %vm406 = vcmp.eq.s32.totalorder %v353, %v368
      %vm407 = vcmp.eq.s32.totalorder %v353, %v371
      %vm408 = vcmp.eq.s32.totalorder %v353, %v374
      %vm409 = vcmp.eq.s32.totalorder %v353, %v377
      %vm410 = vcmp.eq.s32.totalorder %v353, %v380
      %vm411 = vcmp.eq.s32.totalorder %v353, %v383
      %vm412 = vcmp.eq.s32.totalorder %v353, %v386
      %vm413 = vcmp.eq.s32.totalorder %v353, %v389
      %vm414 = vcmp.eq.s32.totalorder %v353, %v392
      %vm415 = vcmp.eq.s32.totalorder %v353, %v395
      %vm416 = vcmp.eq.s32.totalorder %v353, %v398
      %vm417 = vcmp.eq.s32.totalorder %v353, %v401
      %v418 = vadd.s32 %v320, 64
      %v419 = vadd.s32 %v321, 64
      %v420 = vadd.s32 %v322, 64
      %v421 = vadd.s32 %v323, 64
      %v422 = vadd.s32 %v324, 64
      %v423 = vadd.s32 %v325, 64
      %v424 = vadd.s32 %v326, 64
      %v425 = vadd.s32 %v327, 64
      %v426 = vadd.s32 %v328, 64
      %v427 = vadd.s32 %v329, 64
      %v428 = vadd.s32 %v330, 64
      %v429 = vadd.s32 %v331, 64
      %v430 = vadd.s32 %v332, 64
      %v431 = vadd.s32 %v333, 64
      %v432 = vadd.s32 %v334, 64
      %v433 = vadd.s32 %v335, 64
      %434 = vset.pattern.permute.xlu0 1
      %435 = vperm.xlu0 %434, %v418
      %v436 = vpop.permute.xlu0 %435
      %437 = vset.pattern.permute.xlu0 1
      %438 = vperm.xlu0 %437, %v419
      %v439 = vpop.permute.xlu0 %438
      %440 = vset.pattern.permute.xlu0 1
      %441 = vperm.xlu0 %440, %v420
      %v442 = vpop.permute.xlu0 %441
      %443 = vset.pattern.permute.xlu0 1
      %444 = vperm.xlu0 %443, %v421
      %v445 = vpop.permute.xlu0 %444
      %446 = vset.pattern.permute.xlu0 1
      %447 = vperm.xlu0 %446, %v422
      %v448 = vpop.permute.xlu0 %447
      %449 = vset.pattern.permute.xlu0 1
      %450 = vperm.xlu0 %449, %v423
      %v451 = vpop.permute.xlu0 %450
      %452 = vset.pattern.permute.xlu0 1
      %453 = vperm.xlu0 %452, %v424
      %v454 = vpop.permute.xlu0 %453
      %455 = vset.pattern.permute.xlu0 1
      %456 = vperm.xlu0 %455, %v425
      %v457 = vpop.permute.xlu0 %456
      %458 = vset.pattern.permute.xlu0 1
      %459 = vperm.xlu0 %458, %v426
      %v460 = vpop.permute.xlu0 %459
      %461 = vset.pattern.permute.xlu0 1
      %462 = vperm.xlu0 %461, %v427
      %v463 = vpop.permute.xlu0 %462
      %464 = vset.pattern.permute.xlu0 1
      %465 = vperm.xlu0 %464, %v428
      %v466 = vpop.permute.xlu0 %465
      %467 = vset.pattern.permute.xlu0 1
      %468 = vperm.xlu0 %467, %v429
      %v469 = vpop.permute.xlu0 %468
      %470 = vset.pattern.permute.xlu0 1
      %471 = vperm.xlu0 %470, %v430
      %v472 = vpop.permute.xlu0 %471
      %473 = vset.pattern.permute.xlu0 1
      %474 = vperm.xlu0 %473, %v431
      %v475 = vpop.permute.xlu0 %474
      %476 = vset.pattern.permute.xlu0 1
      %477 = vperm.xlu0 %476, %v432
      %v478 = vpop.permute.xlu0 %477
      %479 = vset.pattern.permute.xlu0 1
      %480 = vperm.xlu0 %479, %v433
      %v481 = vpop.permute.xlu0 %480
      %vm482 = vcmp.eq.s32.totalorder %v353, %v436
      %vm483 = vcmp.eq.s32.totalorder %v353, %v439
      %vm484 = vcmp.eq.s32.totalorder %v353, %v442
      %vm485 = vcmp.eq.s32.totalorder %v353, %v445
      %vm486 = vcmp.eq.s32.totalorder %v353, %v448
      %vm487 = vcmp.eq.s32.totalorder %v353, %v451
      %vm488 = vcmp.eq.s32.totalorder %v353, %v454
      %vm489 = vcmp.eq.s32.totalorder %v353, %v457
      %vm490 = vcmp.eq.s32.totalorder %v353, %v460
      %vm491 = vcmp.eq.s32.totalorder %v353, %v463
      %vm492 = vcmp.eq.s32.totalorder %v353, %v466
      %vm493 = vcmp.eq.s32.totalorder %v353, %v469
      %vm494 = vcmp.eq.s32.totalorder %v353, %v472
      %vm495 = vcmp.eq.s32.totalorder %v353, %v475
      %vm496 = vcmp.eq.s32.totalorder %v353, %v478
      %vm497 = vcmp.eq.s32.totalorder %v353, %v481
      %vm498 = vmor %vm402, %vm482
      %vm499 = vmor %vm403, %vm483
      %vm500 = vmor %vm404, %vm484
      %vm501 = vmor %vm405, %vm485
      %vm502 = vmor %vm406, %vm486
      %vm503 = vmor %vm407, %vm487
      %vm504 = vmor %vm408, %vm488
      %vm505 = vmor %vm409, %vm489
      %vm506 = vmor %vm410, %vm490
      %vm507 = vmor %vm411, %vm491
      %vm508 = vmor %vm412, %vm492
      %vm509 = vmor %vm413, %vm493
      %vm510 = vmor %vm414, %vm494
      %vm511 = vmor %vm415, %vm495
      %vm512 = vmor %vm416, %vm496
      %vm513 = vmor %vm417, %vm497
      %v514 = vsel %vm498, 1.0, 0.0
      %v515 = vsel %vm499, 1.0, 0.0
      %v516 = vsel %vm500, 1.0, 0.0
      %v517 = vsel %vm501, 1.0, 0.0
      %v518 = vsel %vm502, 1.0, 0.0
      %v519 = vsel %vm503, 1.0, 0.0
      %v520 = vsel %vm504, 1.0, 0.0
      %v521 = vsel %vm505, 1.0, 0.0
      %v522 = vsel %vm506, 1.0, 0.0
      %v523 = vsel %vm507, 1.0, 0.0
      %v524 = vsel %vm508, 1.0, 0.0
      %v525 = vsel %vm509, 1.0, 0.0
      %v526 = vsel %vm510, 1.0, 0.0
      %v527 = vsel %vm511, 1.0, 0.0
      %v528 = vsel %vm512, 1.0, 0.0
      %v529 = vsel %vm513, 1.0, 0.0
      %v530 = vpack.c.bf16 %v515, %v514
      %v531 = vpack.c.bf16 %v517, %v516
      %v532 = vpack.c.bf16 %v519, %v518
      %v533 = vpack.c.bf16 %v521, %v520
      %v534 = vpack.c.bf16 %v523, %v522
      %v535 = vpack.c.bf16 %v525, %v524
      %v536 = vpack.c.bf16 %v527, %v526
      %v537 = vpack.c.bf16 %v529, %v528
      %v554 = vunpack.c.l.b16 %v287
      %v555 = vunpack.c.l.b16 %v288
      %v556 = vunpack.c.l.b16 %v289
      %v557 = vunpack.c.l.b16 %v290
      %v558 = vunpack.c.l.b16 %v291
      %v559 = vunpack.c.l.b16 %v292
      %v560 = vunpack.c.l.b16 %v293
      %v561 = vunpack.c.l.b16 %v294
      %v562 = vunpack.c.l.b16 %v295
      %v563 = vunpack.c.l.b16 %v296
      %v564 = vunpack.c.l.b16 %v297
      %v565 = vunpack.c.l.b16 %v298
      %v566 = vunpack.c.l.b16 %v299
      %v567 = vunpack.c.l.b16 %v300
      %v568 = vunpack.c.l.b16 %v301
      %v569 = vunpack.c.l.b16 %v302
      %v570 = vpack.c.b16 %v555, %v554
      %v571 = vpack.c.b16 %v557, %v556
      %v572 = vpack.c.b16 %v559, %v558
      %v573 = vpack.c.b16 %v561, %v560
      %v574 = vpack.c.b16 %v563, %v562
      %v575 = vpack.c.b16 %v565, %v564
      %v576 = vpack.c.b16 %v567, %v566
      %v577 = vpack.c.b16 %v569, %v568
      %586 = vmatprep.subr.bf16.mxu0 0
      %587 = vmatpush1.bf16.msra.mxu0 %v577
      %588 = vmatprep.subr.bf16.mxu0 0
      %589 = vmatpush1.bf16.msra.mxu0 %v576
      %590 = vmatprep.subr.bf16.mxu0 0
      %591 = vmatpush1.bf16.msra.mxu0 %v575
      %592 = vmatprep.subr.bf16.mxu0 0
      %593 = vmatpush1.bf16.msra.mxu0 %v574
      %594 = vmatprep.subr.bf16.mxu0 0
      %595 = vmatpush1.bf16.msra.mxu0 %v573
      %596 = vmatprep.subr.bf16.mxu0 0
      %597 = vmatpush1.bf16.msra.mxu0 %v572
      %598 = vmatprep.subr.bf16.mxu0 0
      %599 = vmatpush1.bf16.msra.mxu0 %v571
      %600 = vmatprep.subr.bf16.mxu0 0
      %601 = vmatpush1.bf16.msra.mxu0 %v570
      %602 = vmatprep.subr.bf16.mxu0 0
      %603 = vmatpush2.bf16.msra.mxu0 0
      %604 = vmatprep.subr.bf16.mxu0 0
      %605 = vmatpush2.bf16.msra.mxu0 0
      %606 = vmatprep.subr.bf16.mxu0 0
      %607 = vmatpush2.bf16.msra.mxu0 0
      %608 = vmatprep.subr.bf16.mxu0 0
      %609 = vmatpush2.bf16.msra.mxu0 0
      %610 = vmatprep.subr.bf16.mxu0 0
      %611 = vmatpush2.bf16.msra.mxu0 0
      %612 = vmatprep.subr.bf16.mxu0 0
      %613 = vmatpush2.bf16.msra.mxu0 0
      %614 = vmatprep.subr.bf16.mxu0 0
      %615 = vmatpush2.bf16.msra.mxu0 0
      %616 = vmatprep.subr.bf16.mxu0 0
      %617 = vmatpush2.bf16.msra.mxu0 0
      %618 = vmatprep.mubr.bf16.mxu0 0
      %619 = vmatmul.mubr.bf16.gmra.mxu0 %v530
      %v620 = vpop.f32.mrf.mxu0
      %v621 = vadd.f32 0.0, %v620
      %v622 = vpop.f32.mrf.mxu0
      %v623 = vpop.f32.mrf.mxu0
      %v624 = vadd.f32 0.0, %v623
      %v625 = vpop.f32.mrf.mxu0
      %626 = vmatprep.mubr.bf16.mxu0 0
      %627 = vmatmul.mubr.bf16.gmra.mxu0 %v531
      %v628 = vpop.f32.mrf.mxu0
      %v629 = vadd.f32 0.0, %v628
      %v630 = vpop.f32.mrf.mxu0
      %v631 = vpop.f32.mrf.mxu0
      %v632 = vadd.f32 0.0, %v631
      %v633 = vpop.f32.mrf.mxu0
      %634 = vmatprep.mubr.bf16.mxu0 0
      %635 = vmatmul.mubr.bf16.gmra.mxu0 %v532
      %v636 = vpop.f32.mrf.mxu0
      %v637 = vadd.f32 0.0, %v636
      %v638 = vpop.f32.mrf.mxu0
      %v639 = vpop.f32.mrf.mxu0
      %v640 = vadd.f32 0.0, %v639
      %v641 = vpop.f32.mrf.mxu0
      %642 = vmatprep.mubr.bf16.mxu0 0
      %643 = vmatmul.mubr.bf16.gmra.mxu0 %v533
      %v644 = vpop.f32.mrf.mxu0
      %v645 = vadd.f32 0.0, %v644
      %v646 = vpop.f32.mrf.mxu0
      %v647 = vpop.f32.mrf.mxu0
      %v648 = vadd.f32 0.0, %v647
      %v649 = vpop.f32.mrf.mxu0
      %650 = vmatprep.mubr.bf16.mxu0 0
      %651 = vmatmul.mubr.bf16.gmra.mxu0 %v534
      %v652 = vpop.f32.mrf.mxu0
      %v653 = vadd.f32 0.0, %v652
      %v654 = vpop.f32.mrf.mxu0
      %v655 = vpop.f32.mrf.mxu0
      %v656 = vadd.f32 0.0, %v655
      %v657 = vpop.f32.mrf.mxu0
      %658 = vmatprep.mubr.bf16.mxu0 0
      %659 = vmatmul.mubr.bf16.gmra.mxu0 %v535
      %v660 = vpop.f32.mrf.mxu0
      %v661 = vadd.f32 0.0, %v660
      %v662 = vpop.f32.mrf.mxu0
      %v663 = vpop.f32.mrf.mxu0
      %v664 = vadd.f32 0.0, %v663
      %v665 = vpop.f32.mrf.mxu0
      %666 = vmatprep.mubr.bf16.mxu0 0
      %667 = vmatmul.mubr.bf16.gmra.mxu0 %v536
      %v668 = vpop.f32.mrf.mxu0
      %v669 = vadd.f32 0.0, %v668
      %v670 = vpop.f32.mrf.mxu0
      %v671 = vpop.f32.mrf.mxu0
      %v672 = vadd.f32 0.0, %v671
      %v673 = vpop.f32.mrf.mxu0
      %674 = vmatprep.mubr.bf16.mxu0 0
      %675 = vmatmul.mubr.bf16.gmra.mxu0 %v537
      %v676 = vpop.f32.mrf.mxu0
      %v677 = vadd.f32 0.0, %v676
      %v678 = vpop.f32.mrf.mxu0
      %v679 = vpop.f32.mrf.mxu0
      %v680 = vadd.f32 0.0, %v679
      %v681 = vpop.f32.mrf.mxu0
      %682 = vdwg.mxu0
      %v683 = vpack.c.bf16 %v624, %v621
      %v684 = vpack.c.bf16 %v632, %v629
      %v685 = vpack.c.bf16 %v640, %v637
      %v686 = vpack.c.bf16 %v648, %v645
      %v687 = vpack.c.bf16 %v656, %v653
      %v688 = vpack.c.bf16 %v664, %v661
      %v689 = vpack.c.bf16 %v672, %v669
      %v690 = vpack.c.bf16 %v680, %v677
      %v691 = vlaneseq
      %v692 = vshrl.u32 %v691, 7
      %v693 = vsub.s32 2, %v692
      %v694 = vrot.slane %v319, %v693
      %v699 = vunpack.c.l.b16 %v303
      %v700 = vunpack.c.l.b16 %v304
      %v701 = vunpack.c.l.b16 %v305
      %v702 = vunpack.c.l.b16 %v306
      %v703 = vpack.c.b16 %v700, %v699
      %v704 = vpack.c.b16 %v702, %v701
      %vm707 = vcmask 261120
      %v709 = vsel %vm707, %v683, 0
      %v712 = vsel %vm707, %v684, 0
      %v715 = vsel %vm707, %v685, 0
      %v718 = vsel %vm707, %v686, 0
      %v721 = vsel %vm707, %v687, 0
      %v724 = vsel %vm707, %v688, 0
      %v727 = vsel %vm707, %v689, 0
      %v730 = vsel %vm707, %v690, 0
      %732 = vmatprep.subr.bf16.mxu0 0
      %733 = vmatpush1.bf16.msra.mxu0 0
      %734 = vmatprep.subr.bf16.mxu0 0
      %735 = vmatpush1.bf16.msra.mxu0 0
      %736 = vmatprep.subr.bf16.mxu0 0
      %737 = vmatpush1.bf16.msra.mxu0 0
      %738 = vmatprep.subr.bf16.mxu0 0
      %739 = vmatpush1.bf16.msra.mxu0 0
      %740 = vmatprep.subr.bf16.mxu0 0
      %741 = vmatpush1.bf16.msra.mxu0 0
      %742 = vmatprep.subr.bf16.mxu0 0
      %743 = vmatpush1.bf16.msra.mxu0 0
      %744 = vmatprep.subr.bf16.mxu0 0
      %745 = vmatpush1.bf16.msra.mxu0 %v704
      %746 = vmatprep.subr.bf16.mxu0 0
      %747 = vmatpush1.bf16.msra.mxu0 %v703
      %748 = vmatprep.subr.bf16.mxu0 0
      %749 = vmatpush2.bf16.msra.mxu0 0
      %750 = vmatprep.subr.bf16.mxu0 0
      %751 = vmatpush2.bf16.msra.mxu0 0
      %752 = vmatprep.subr.bf16.mxu0 0
      %753 = vmatpush2.bf16.msra.mxu0 0
      %754 = vmatprep.subr.bf16.mxu0 0
      %755 = vmatpush2.bf16.msra.mxu0 0
      %756 = vmatprep.subr.bf16.mxu0 0
      %757 = vmatpush2.bf16.msra.mxu0 0
      %758 = vmatprep.subr.bf16.mxu0 0
      %759 = vmatpush2.bf16.msra.mxu0 0
      %760 = vmatprep.subr.bf16.mxu0 0
      %761 = vmatpush2.bf16.msra.mxu0 0
      %762 = vmatprep.subr.bf16.mxu0 0
      %763 = vmatpush2.bf16.msra.mxu0 0
      %764 = vmatprep.mubr.bf16.mxu0 0
      %765 = vmatmul.mubr.bf16.gmra.mxu0 %v709
      %v766 = vpop.f32.mrf.mxu0
      %v767 = vadd.f32 %v694, %v766
      %v768 = vpop.f32.mrf.mxu0
      %v769 = vpop.f32.mrf.mxu0
      %v770 = vadd.f32 %v694, %v769
      %v771 = vpop.f32.mrf.mxu0
      %772 = vmatprep.mubr.bf16.mxu0 0
      %773 = vmatmul.mubr.bf16.gmra.mxu0 %v712
      %v774 = vpop.f32.mrf.mxu0
      %v775 = vadd.f32 %v694, %v774
      %v776 = vpop.f32.mrf.mxu0
      %v777 = vpop.f32.mrf.mxu0
      %v778 = vadd.f32 %v694, %v777
      %v779 = vpop.f32.mrf.mxu0
      %780 = vmatprep.mubr.bf16.mxu0 0
      %781 = vmatmul.mubr.bf16.gmra.mxu0 %v715
      %v782 = vpop.f32.mrf.mxu0
      %v783 = vadd.f32 %v694, %v782
      %v784 = vpop.f32.mrf.mxu0
      %v785 = vpop.f32.mrf.mxu0
      %v786 = vadd.f32 %v694, %v785
      %v787 = vpop.f32.mrf.mxu0
      %788 = vmatprep.mubr.bf16.mxu0 0
      %789 = vmatmul.mubr.bf16.gmra.mxu0 %v718
      %v790 = vpop.f32.mrf.mxu0
      %v791 = vadd.f32 %v694, %v790
      %v792 = vpop.f32.mrf.mxu0
      %v793 = vpop.f32.mrf.mxu0
      %v794 = vadd.f32 %v694, %v793
      %v795 = vpop.f32.mrf.mxu0
      %796 = vmatprep.mubr.bf16.mxu0 0
      %797 = vmatmul.mubr.bf16.gmra.mxu0 %v721
      %v798 = vpop.f32.mrf.mxu0
      %v799 = vadd.f32 %v694, %v798
      %v800 = vpop.f32.mrf.mxu0
      %v801 = vpop.f32.mrf.mxu0
      %v802 = vadd.f32 %v694, %v801
      %v803 = vpop.f32.mrf.mxu0
      %804 = vmatprep.mubr.bf16.mxu0 0
      %805 = vmatmul.mubr.bf16.gmra.mxu0 %v724
      %v806 = vpop.f32.mrf.mxu0
      %v807 = vadd.f32 %v694, %v806
      %v808 = vpop.f32.mrf.mxu0
      %v809 = vpop.f32.mrf.mxu0
      %v810 = vadd.f32 %v694, %v809
      %v811 = vpop.f32.mrf.mxu0
      %812 = vmatprep.mubr.bf16.mxu0 0
      %813 = vmatmul.mubr.bf16.gmra.mxu0 %v727
      %v814 = vpop.f32.mrf.mxu0
      %v815 = vadd.f32 %v694, %v814
      %v816 = vpop.f32.mrf.mxu0
      %v817 = vpop.f32.mrf.mxu0
      %v818 = vadd.f32 %v694, %v817
      %v819 = vpop.f32.mrf.mxu0
      %820 = vmatprep.mubr.bf16.mxu0 0
      %821 = vmatmul.mubr.bf16.gmra.mxu0 %v730
      %v822 = vpop.f32.mrf.mxu0
      %v823 = vadd.f32 %v694, %v822
      %v824 = vpop.f32.mrf.mxu0
      %v825 = vpop.f32.mrf.mxu0
      %v826 = vadd.f32 %v694, %v825
      %v827 = vpop.f32.mrf.mxu0
      %828 = vdwg.mxu0
      %v829 = vmax.f32 %v767, 0.0
      %v830 = vmax.f32 %v770, 0.0
      %v831 = vmax.f32 %v775, 0.0
      %v832 = vmax.f32 %v778, 0.0
      %v833 = vmax.f32 %v783, 0.0
      %v834 = vmax.f32 %v786, 0.0
      %v835 = vmax.f32 %v791, 0.0
      %v836 = vmax.f32 %v794, 0.0
      %v837 = vmax.f32 %v799, 0.0
      %v838 = vmax.f32 %v802, 0.0
      %v839 = vmax.f32 %v807, 0.0
      %v840 = vmax.f32 %v810, 0.0
      %v841 = vmax.f32 %v815, 0.0
      %v842 = vmax.f32 %v818, 0.0
      %v843 = vmax.f32 %v823, 0.0
      %v844 = vmax.f32 %v826, 0.0
      %v845 = vpack.c.bf16 %v830, %v829
      %v846 = vpack.c.bf16 %v832, %v831
      %v847 = vpack.c.bf16 %v834, %v833
      %v848 = vpack.c.bf16 %v836, %v835
      %v849 = vpack.c.bf16 %v838, %v837
      %v850 = vpack.c.bf16 %v840, %v839
      %v851 = vpack.c.bf16 %v842, %v841
      %v852 = vpack.c.bf16 %v844, %v843
      %v857 = vunpack.c.l.b16 %v307
      %v858 = vunpack.c.l.b16 %v308
      %v859 = vunpack.c.l.b16 %v309
      %v860 = vunpack.c.l.b16 %v310
      %v861 = vpack.c.b16 %v858, %v857
      %v862 = vpack.c.b16 %v860, %v859
      %866 = vrot.lane.b32.xlu0 %v694, 96
      %v867 = vpop.permute.xlu0 %866
      %v870 = vsel %vm707, %v845, 0
      %v873 = vsel %vm707, %v846, 0
      %v876 = vsel %vm707, %v847, 0
      %v879 = vsel %vm707, %v848, 0
      %v882 = vsel %vm707, %v849, 0
      %v885 = vsel %vm707, %v850, 0
      %v888 = vsel %vm707, %v851, 0
      %v891 = vsel %vm707, %v852, 0
      %893 = vmatprep.subr.bf16.mxu0 0
      %894 = vmatpush1.bf16.msra.mxu0 0
      %895 = vmatprep.subr.bf16.mxu0 0
      %896 = vmatpush1.bf16.msra.mxu0 0
      %897 = vmatprep.subr.bf16.mxu0 0
      %898 = vmatpush1.bf16.msra.mxu0 0
      %899 = vmatprep.subr.bf16.mxu0 0
      %900 = vmatpush1.bf16.msra.mxu0 0
      %901 = vmatprep.subr.bf16.mxu0 0
      %902 = vmatpush1.bf16.msra.mxu0 0
      %903 = vmatprep.subr.bf16.mxu0 0
      %904 = vmatpush1.bf16.msra.mxu0 0
      %905 = vmatprep.subr.bf16.mxu0 0
      %906 = vmatpush1.bf16.msra.mxu0 %v862
      %907 = vmatprep.subr.bf16.mxu0 0
      %908 = vmatpush1.bf16.msra.mxu0 %v861
      %909 = vmatprep.subr.bf16.mxu0 0
      %910 = vmatpush2.bf16.msra.mxu0 0
      %911 = vmatprep.subr.bf16.mxu0 0
      %912 = vmatpush2.bf16.msra.mxu0 0
      %913 = vmatprep.subr.bf16.mxu0 0
      %914 = vmatpush2.bf16.msra.mxu0 0
      %915 = vmatprep.subr.bf16.mxu0 0
      %916 = vmatpush2.bf16.msra.mxu0 0
      %917 = vmatprep.subr.bf16.mxu0 0
      %918 = vmatpush2.bf16.msra.mxu0 0
      %919 = vmatprep.subr.bf16.mxu0 0
      %920 = vmatpush2.bf16.msra.mxu0 0
      %921 = vmatprep.subr.bf16.mxu0 0
      %922 = vmatpush2.bf16.msra.mxu0 0
      %923 = vmatprep.subr.bf16.mxu0 0
      %924 = vmatpush2.bf16.msra.mxu0 0
      %925 = vmatprep.mubr.bf16.mxu0 0
      %926 = vmatmul.mubr.bf16.gmra.mxu0 %v870
      %v927 = vpop.f32.mrf.mxu0
      %v928 = vadd.f32 %v867, %v927
      %v929 = vpop.f32.mrf.mxu0
      %v930 = vpop.f32.mrf.mxu0
      %v931 = vadd.f32 %v867, %v930
      %v932 = vpop.f32.mrf.mxu0
      %933 = vmatprep.mubr.bf16.mxu0 0
      %934 = vmatmul.mubr.bf16.gmra.mxu0 %v873
      %v935 = vpop.f32.mrf.mxu0
      %v936 = vadd.f32 %v867, %v935
      %v937 = vpop.f32.mrf.mxu0
      %v938 = vpop.f32.mrf.mxu0
      %v939 = vadd.f32 %v867, %v938
      %v940 = vpop.f32.mrf.mxu0
      %941 = vmatprep.mubr.bf16.mxu0 0
      %942 = vmatmul.mubr.bf16.gmra.mxu0 %v876
      %v943 = vpop.f32.mrf.mxu0
      %v944 = vadd.f32 %v867, %v943
      %v945 = vpop.f32.mrf.mxu0
      %v946 = vpop.f32.mrf.mxu0
      %v947 = vadd.f32 %v867, %v946
      %v948 = vpop.f32.mrf.mxu0
      %949 = vmatprep.mubr.bf16.mxu0 0
      %950 = vmatmul.mubr.bf16.gmra.mxu0 %v879
      %v951 = vpop.f32.mrf.mxu0
      %v952 = vadd.f32 %v867, %v951
      %v953 = vpop.f32.mrf.mxu0
      %v954 = vpop.f32.mrf.mxu0
      %v955 = vadd.f32 %v867, %v954
      %v956 = vpop.f32.mrf.mxu0
      %957 = vmatprep.mubr.bf16.mxu0 0
      %958 = vmatmul.mubr.bf16.gmra.mxu0 %v882
      %v959 = vpop.f32.mrf.mxu0
      %v960 = vadd.f32 %v867, %v959
      %v961 = vpop.f32.mrf.mxu0
      %v962 = vpop.f32.mrf.mxu0
      %v963 = vadd.f32 %v867, %v962
      %v964 = vpop.f32.mrf.mxu0
      %965 = vmatprep.mubr.bf16.mxu0 0
      %966 = vmatmul.mubr.bf16.gmra.mxu0 %v885
      %v967 = vpop.f32.mrf.mxu0
      %v968 = vadd.f32 %v867, %v967
      %v969 = vpop.f32.mrf.mxu0
      %v970 = vpop.f32.mrf.mxu0
      %v971 = vadd.f32 %v867, %v970
      %v972 = vpop.f32.mrf.mxu0
      %973 = vmatprep.mubr.bf16.mxu0 0
      %974 = vmatmul.mubr.bf16.gmra.mxu0 %v888
      %v975 = vpop.f32.mrf.mxu0
      %v976 = vadd.f32 %v867, %v975
      %v977 = vpop.f32.mrf.mxu0
      %v978 = vpop.f32.mrf.mxu0
      %v979 = vadd.f32 %v867, %v978
      %v980 = vpop.f32.mrf.mxu0
      %981 = vmatprep.mubr.bf16.mxu0 0
      %982 = vmatmul.mubr.bf16.gmra.mxu0 %v891
      %v983 = vpop.f32.mrf.mxu0
      %v984 = vadd.f32 %v867, %v983
      %v985 = vpop.f32.mrf.mxu0
      %v986 = vpop.f32.mrf.mxu0
      %v987 = vadd.f32 %v867, %v986
      %v988 = vpop.f32.mrf.mxu0
      %989 = vdwg.mxu0
      %991 = vset.pattern.permute.xlu0 0
      %992 = vperm.xlu0 %991, %v336
      %v993 = vpop.permute.xlu0 %992
      %996 = vset.pattern.permute.xlu0 0
      %997 = vperm.xlu0 %996, %v337
      %v998 = vpop.permute.xlu0 %997
      %1001 = vset.pattern.permute.xlu0 0
      %1002 = vperm.xlu0 %1001, %v338
      %v1003 = vpop.permute.xlu0 %1002
      %1006 = vset.pattern.permute.xlu0 0
      %1007 = vperm.xlu0 %1006, %v339
      %v1008 = vpop.permute.xlu0 %1007
      %1011 = vset.pattern.permute.xlu0 0
      %1012 = vperm.xlu0 %1011, %v340
      %v1013 = vpop.permute.xlu0 %1012
      %1016 = vset.pattern.permute.xlu0 0
      %1017 = vperm.xlu0 %1016, %v341
      %v1018 = vpop.permute.xlu0 %1017
      %1021 = vset.pattern.permute.xlu0 0
      %1022 = vperm.xlu0 %1021, %v342
      %v1023 = vpop.permute.xlu0 %1022
      %1026 = vset.pattern.permute.xlu0 0
      %1027 = vperm.xlu0 %1026, %v343
      %v1028 = vpop.permute.xlu0 %1027
      %1031 = vset.pattern.permute.xlu0 0
      %1032 = vperm.xlu0 %1031, %v344
      %v1033 = vpop.permute.xlu0 %1032
      %1036 = vset.pattern.permute.xlu0 0
      %1037 = vperm.xlu0 %1036, %v345
      %v1038 = vpop.permute.xlu0 %1037
      %1041 = vset.pattern.permute.xlu0 0
      %1042 = vperm.xlu0 %1041, %v346
      %v1043 = vpop.permute.xlu0 %1042
      %1046 = vset.pattern.permute.xlu0 0
      %1047 = vperm.xlu0 %1046, %v347
      %v1048 = vpop.permute.xlu0 %1047
      %1051 = vset.pattern.permute.xlu0 0
      %1052 = vperm.xlu0 %1051, %v348
      %v1053 = vpop.permute.xlu0 %1052
      %1056 = vset.pattern.permute.xlu0 0
      %1057 = vperm.xlu0 %1056, %v349
      %v1058 = vpop.permute.xlu0 %1057
      %1061 = vset.pattern.permute.xlu0 0
      %1062 = vperm.xlu0 %1061, %v350
      %v1063 = vpop.permute.xlu0 %1062
      %1066 = vset.pattern.permute.xlu0 0
      %1067 = vperm.xlu0 %1066, %v351
      %v1068 = vpop.permute.xlu0 %1067
      %v1070 = vmul.f32 %v993, %v694
      %v1071 = vmul.f32 %v998, %v694
      %v1072 = vmul.f32 %v1003, %v694
      %v1073 = vmul.f32 %v1008, %v694
      %v1074 = vmul.f32 %v1013, %v694
      %v1075 = vmul.f32 %v1018, %v694
      %v1076 = vmul.f32 %v1023, %v694
      %v1077 = vmul.f32 %v1028, %v694
      %v1078 = vmul.f32 %v1033, %v694
      %v1079 = vmul.f32 %v1038, %v694
      %v1080 = vmul.f32 %v1043, %v694
      %v1081 = vmul.f32 %v1048, %v694
      %v1082 = vmul.f32 %v1053, %v694
      %v1083 = vmul.f32 %v1058, %v694
      %v1084 = vmul.f32 %v1063, %v694
      %v1085 = vmul.f32 %v1068, %v694
      %1102 = vrot.lane.b32.xlu0 %v1070, 64
      %v1103 = vpop.permute.xlu0 %1102
      %1104 = vrot.lane.b32.xlu0 %v1071, 64
      %v1105 = vpop.permute.xlu0 %1104
      %1106 = vrot.lane.b32.xlu0 %v1072, 64
      %v1107 = vpop.permute.xlu0 %1106
      %1108 = vrot.lane.b32.xlu0 %v1073, 64
      %v1109 = vpop.permute.xlu0 %1108
      %1110 = vrot.lane.b32.xlu0 %v1074, 64
      %v1111 = vpop.permute.xlu0 %1110
      %1112 = vrot.lane.b32.xlu0 %v1075, 64
      %v1113 = vpop.permute.xlu0 %1112
      %1114 = vrot.lane.b32.xlu0 %v1076, 64
      %v1115 = vpop.permute.xlu0 %1114
      %1116 = vrot.lane.b32.xlu0 %v1077, 64
      %v1117 = vpop.permute.xlu0 %1116
      %1118 = vrot.lane.b32.xlu0 %v1078, 64
      %v1119 = vpop.permute.xlu0 %1118
      %1120 = vrot.lane.b32.xlu0 %v1079, 64
      %v1121 = vpop.permute.xlu0 %1120
      %1122 = vrot.lane.b32.xlu0 %v1080, 64
      %v1123 = vpop.permute.xlu0 %1122
      %1124 = vrot.lane.b32.xlu0 %v1081, 64
      %v1125 = vpop.permute.xlu0 %1124
      %1126 = vrot.lane.b32.xlu0 %v1082, 64
      %v1127 = vpop.permute.xlu0 %1126
      %1128 = vrot.lane.b32.xlu0 %v1083, 64
      %v1129 = vpop.permute.xlu0 %1128
      %1130 = vrot.lane.b32.xlu0 %v1084, 64
      %v1131 = vpop.permute.xlu0 %1130
      %1132 = vrot.lane.b32.xlu0 %v1085, 64
      %v1133 = vpop.permute.xlu0 %1132
      %v1150 = vadd.f32 %v928, %v1103
      %v1151 = vadd.f32 %v931, %v1105
      %v1152 = vadd.f32 %v936, %v1107
      %v1153 = vadd.f32 %v939, %v1109
      %v1154 = vadd.f32 %v944, %v1111
      %v1155 = vadd.f32 %v947, %v1113
      %v1156 = vadd.f32 %v952, %v1115
      %v1157 = vadd.f32 %v955, %v1117
      %v1158 = vadd.f32 %v960, %v1119
      %v1159 = vadd.f32 %v963, %v1121
      %v1160 = vadd.f32 %v968, %v1123
      %v1161 = vadd.f32 %v971, %v1125
      %v1162 = vadd.f32 %v976, %v1127
      %v1163 = vadd.f32 %v979, %v1129
      %v1164 = vadd.f32 %v984, %v1131
      %v1165 = vadd.f32 %v987, %v1133
      %v1166 = vmax.f32 %v1150, 0.0
      %v1167 = vmax.f32 %v1151, 0.0
      %v1168 = vmax.f32 %v1152, 0.0
      %v1169 = vmax.f32 %v1153, 0.0
      %v1170 = vmax.f32 %v1154, 0.0
      %v1171 = vmax.f32 %v1155, 0.0
      %v1172 = vmax.f32 %v1156, 0.0
      %v1173 = vmax.f32 %v1157, 0.0
      %v1174 = vmax.f32 %v1158, 0.0
      %v1175 = vmax.f32 %v1159, 0.0
      %v1176 = vmax.f32 %v1160, 0.0
      %v1177 = vmax.f32 %v1161, 0.0
      %v1178 = vmax.f32 %v1162, 0.0
      %v1179 = vmax.f32 %v1163, 0.0
      %v1180 = vmax.f32 %v1164, 0.0
      %v1181 = vmax.f32 %v1165, 0.0
      %1182 = vset.pattern.permute.xlu0 1
      %1183 = vperm.xlu0 %1182, %v336
      %v1184 = vpop.permute.xlu0 %1183
      %1186 = vset.pattern.permute.xlu0 1
      %1187 = vperm.xlu0 %1186, %v337
      %v1188 = vpop.permute.xlu0 %1187
      %1190 = vset.pattern.permute.xlu0 1
      %1191 = vperm.xlu0 %1190, %v338
      %v1192 = vpop.permute.xlu0 %1191
      %1194 = vset.pattern.permute.xlu0 1
      %1195 = vperm.xlu0 %1194, %v339
      %v1196 = vpop.permute.xlu0 %1195
      %1198 = vset.pattern.permute.xlu0 1
      %1199 = vperm.xlu0 %1198, %v340
      %v1200 = vpop.permute.xlu0 %1199
      %1202 = vset.pattern.permute.xlu0 1
      %1203 = vperm.xlu0 %1202, %v341
      %v1204 = vpop.permute.xlu0 %1203
      %1206 = vset.pattern.permute.xlu0 1
      %1207 = vperm.xlu0 %1206, %v342
      %v1208 = vpop.permute.xlu0 %1207
      %1210 = vset.pattern.permute.xlu0 1
      %1211 = vperm.xlu0 %1210, %v343
      %v1212 = vpop.permute.xlu0 %1211
      %1214 = vset.pattern.permute.xlu0 1
      %1215 = vperm.xlu0 %1214, %v344
      %v1216 = vpop.permute.xlu0 %1215
      %1218 = vset.pattern.permute.xlu0 1
      %1219 = vperm.xlu0 %1218, %v345
      %v1220 = vpop.permute.xlu0 %1219
      %1222 = vset.pattern.permute.xlu0 1
      %1223 = vperm.xlu0 %1222, %v346
      %v1224 = vpop.permute.xlu0 %1223
      %1226 = vset.pattern.permute.xlu0 1
      %1227 = vperm.xlu0 %1226, %v347
      %v1228 = vpop.permute.xlu0 %1227
      %1230 = vset.pattern.permute.xlu0 1
      %1231 = vperm.xlu0 %1230, %v348
      %v1232 = vpop.permute.xlu0 %1231
      %1234 = vset.pattern.permute.xlu0 1
      %1235 = vperm.xlu0 %1234, %v349
      %v1236 = vpop.permute.xlu0 %1235
      %1238 = vset.pattern.permute.xlu0 1
      %1239 = vperm.xlu0 %1238, %v350
      %v1240 = vpop.permute.xlu0 %1239
      %1242 = vset.pattern.permute.xlu0 1
      %1243 = vperm.xlu0 %1242, %v351
      %v1244 = vpop.permute.xlu0 %1243
      %v1246 = vmul.f32 %v1184, %v694
      %v1247 = vmul.f32 %v1188, %v694
      %v1248 = vmul.f32 %v1192, %v694
      %v1249 = vmul.f32 %v1196, %v694
      %v1250 = vmul.f32 %v1200, %v694
      %v1251 = vmul.f32 %v1204, %v694
      %v1252 = vmul.f32 %v1208, %v694
      %v1253 = vmul.f32 %v1212, %v694
      %v1254 = vmul.f32 %v1216, %v694
      %v1255 = vmul.f32 %v1220, %v694
      %v1256 = vmul.f32 %v1224, %v694
      %v1257 = vmul.f32 %v1228, %v694
      %v1258 = vmul.f32 %v1232, %v694
      %v1259 = vmul.f32 %v1236, %v694
      %v1260 = vmul.f32 %v1240, %v694
      %v1261 = vmul.f32 %v1244, %v694
      %1278 = vrot.lane.b32.xlu0 %v1246, 64
      %v1279 = vpop.permute.xlu0 %1278
      %1280 = vrot.lane.b32.xlu0 %v1247, 64
      %v1281 = vpop.permute.xlu0 %1280
      %1282 = vrot.lane.b32.xlu0 %v1248, 64
      %v1283 = vpop.permute.xlu0 %1282
      %1284 = vrot.lane.b32.xlu0 %v1249, 64
      %v1285 = vpop.permute.xlu0 %1284
      %1286 = vrot.lane.b32.xlu0 %v1250, 64
      %v1287 = vpop.permute.xlu0 %1286
      %1288 = vrot.lane.b32.xlu0 %v1251, 64
      %v1289 = vpop.permute.xlu0 %1288
      %1290 = vrot.lane.b32.xlu0 %v1252, 64
      %v1291 = vpop.permute.xlu0 %1290
      %1292 = vrot.lane.b32.xlu0 %v1253, 64
      %v1293 = vpop.permute.xlu0 %1292
      %1294 = vrot.lane.b32.xlu0 %v1254, 64
      %v1295 = vpop.permute.xlu0 %1294
      %1296 = vrot.lane.b32.xlu0 %v1255, 64
      %v1297 = vpop.permute.xlu0 %1296
      %1298 = vrot.lane.b32.xlu0 %v1256, 64
      %v1299 = vpop.permute.xlu0 %1298
      %1300 = vrot.lane.b32.xlu0 %v1257, 64
      %v1301 = vpop.permute.xlu0 %1300
      %1302 = vrot.lane.b32.xlu0 %v1258, 64
      %v1303 = vpop.permute.xlu0 %1302
      %1304 = vrot.lane.b32.xlu0 %v1259, 64
      %v1305 = vpop.permute.xlu0 %1304
      %1306 = vrot.lane.b32.xlu0 %v1260, 64
      %v1307 = vpop.permute.xlu0 %1306
      %1308 = vrot.lane.b32.xlu0 %v1261, 64
      %v1309 = vpop.permute.xlu0 %1308
      %v1326 = vadd.f32 %v928, %v1279
      %v1327 = vadd.f32 %v931, %v1281
      %v1328 = vadd.f32 %v936, %v1283
      %v1329 = vadd.f32 %v939, %v1285
      %v1330 = vadd.f32 %v944, %v1287
      %v1331 = vadd.f32 %v947, %v1289
      %v1332 = vadd.f32 %v952, %v1291
      %v1333 = vadd.f32 %v955, %v1293
      %v1334 = vadd.f32 %v960, %v1295
      %v1335 = vadd.f32 %v963, %v1297
      %v1336 = vadd.f32 %v968, %v1299
      %v1337 = vadd.f32 %v971, %v1301
      %v1338 = vadd.f32 %v976, %v1303
      %v1339 = vadd.f32 %v979, %v1305
      %v1340 = vadd.f32 %v984, %v1307
      %v1341 = vadd.f32 %v987, %v1309
      %v1342 = vmax.f32 %v1326, 0.0
      %v1343 = vmax.f32 %v1327, 0.0
      %v1344 = vmax.f32 %v1328, 0.0
      %v1345 = vmax.f32 %v1329, 0.0
      %v1346 = vmax.f32 %v1330, 0.0
      %v1347 = vmax.f32 %v1331, 0.0
      %v1348 = vmax.f32 %v1332, 0.0
      %v1349 = vmax.f32 %v1333, 0.0
      %v1350 = vmax.f32 %v1334, 0.0
      %v1351 = vmax.f32 %v1335, 0.0
      %v1352 = vmax.f32 %v1336, 0.0
      %v1353 = vmax.f32 %v1337, 0.0
      %v1354 = vmax.f32 %v1338, 0.0
      %v1355 = vmax.f32 %v1339, 0.0
      %v1356 = vmax.f32 %v1340, 0.0
      %v1357 = vmax.f32 %v1341, 0.0
      %1358 = vset.pattern.permute.xlu0 2
      %1359 = vperm.xlu0 %1358, %v336
      %v1360 = vpop.permute.xlu0 %1359
      %1362 = vset.pattern.permute.xlu0 2
      %1363 = vperm.xlu0 %1362, %v337
      %v1364 = vpop.permute.xlu0 %1363
      %1366 = vset.pattern.permute.xlu0 2
      %1367 = vperm.xlu0 %1366, %v338
      %v1368 = vpop.permute.xlu0 %1367
      %1370 = vset.pattern.permute.xlu0 2
      %1371 = vperm.xlu0 %1370, %v339
      %v1372 = vpop.permute.xlu0 %1371
      %1374 = vset.pattern.permute.xlu0 2
      %1375 = vperm.xlu0 %1374, %v340
      %v1376 = vpop.permute.xlu0 %1375
      %1378 = vset.pattern.permute.xlu0 2
      %1379 = vperm.xlu0 %1378, %v341
      %v1380 = vpop.permute.xlu0 %1379
      %1382 = vset.pattern.permute.xlu0 2
      %1383 = vperm.xlu0 %1382, %v342
      %v1384 = vpop.permute.xlu0 %1383
      %1386 = vset.pattern.permute.xlu0 2
      %1387 = vperm.xlu0 %1386, %v343
      %v1388 = vpop.permute.xlu0 %1387
      %1390 = vset.pattern.permute.xlu0 2
      %1391 = vperm.xlu0 %1390, %v344
      %v1392 = vpop.permute.xlu0 %1391
      %1394 = vset.pattern.permute.xlu0 2
      %1395 = vperm.xlu0 %1394, %v345
      %v1396 = vpop.permute.xlu0 %1395
      %1398 = vset.pattern.permute.xlu0 2
      %1399 = vperm.xlu0 %1398, %v346
      %v1400 = vpop.permute.xlu0 %1399
      %1402 = vset.pattern.permute.xlu0 2
      %1403 = vperm.xlu0 %1402, %v347
      %v1404 = vpop.permute.xlu0 %1403
      %1406 = vset.pattern.permute.xlu0 2
      %1407 = vperm.xlu0 %1406, %v348
      %v1408 = vpop.permute.xlu0 %1407
      %1410 = vset.pattern.permute.xlu0 2
      %1411 = vperm.xlu0 %1410, %v349
      %v1412 = vpop.permute.xlu0 %1411
      %1414 = vset.pattern.permute.xlu0 2
      %1415 = vperm.xlu0 %1414, %v350
      %v1416 = vpop.permute.xlu0 %1415
      %1418 = vset.pattern.permute.xlu0 2
      %1419 = vperm.xlu0 %1418, %v351
      %v1420 = vpop.permute.xlu0 %1419
      %v1422 = vmul.f32 %v1360, %v694
      %v1423 = vmul.f32 %v1364, %v694
      %v1424 = vmul.f32 %v1368, %v694
      %v1425 = vmul.f32 %v1372, %v694
      %v1426 = vmul.f32 %v1376, %v694
      %v1427 = vmul.f32 %v1380, %v694
      %v1428 = vmul.f32 %v1384, %v694
      %v1429 = vmul.f32 %v1388, %v694
      %v1430 = vmul.f32 %v1392, %v694
      %v1431 = vmul.f32 %v1396, %v694
      %v1432 = vmul.f32 %v1400, %v694
      %v1433 = vmul.f32 %v1404, %v694
      %v1434 = vmul.f32 %v1408, %v694
      %v1435 = vmul.f32 %v1412, %v694
      %v1436 = vmul.f32 %v1416, %v694
      %v1437 = vmul.f32 %v1420, %v694
      %1454 = vrot.lane.b32.xlu0 %v1422, 64
      %v1455 = vpop.permute.xlu0 %1454
      %1456 = vrot.lane.b32.xlu0 %v1423, 64
      %v1457 = vpop.permute.xlu0 %1456
      %1458 = vrot.lane.b32.xlu0 %v1424, 64
      %v1459 = vpop.permute.xlu0 %1458
      %1460 = vrot.lane.b32.xlu0 %v1425, 64
      %v1461 = vpop.permute.xlu0 %1460
      %1462 = vrot.lane.b32.xlu0 %v1426, 64
      %v1463 = vpop.permute.xlu0 %1462
      %1464 = vrot.lane.b32.xlu0 %v1427, 64
      %v1465 = vpop.permute.xlu0 %1464
      %1466 = vrot.lane.b32.xlu0 %v1428, 64
      %v1467 = vpop.permute.xlu0 %1466
      %1468 = vrot.lane.b32.xlu0 %v1429, 64
      %v1469 = vpop.permute.xlu0 %1468
      %1470 = vrot.lane.b32.xlu0 %v1430, 64
      %v1471 = vpop.permute.xlu0 %1470
      %1472 = vrot.lane.b32.xlu0 %v1431, 64
      %v1473 = vpop.permute.xlu0 %1472
      %1474 = vrot.lane.b32.xlu0 %v1432, 64
      %v1475 = vpop.permute.xlu0 %1474
      %1476 = vrot.lane.b32.xlu0 %v1433, 64
      %v1477 = vpop.permute.xlu0 %1476
      %1478 = vrot.lane.b32.xlu0 %v1434, 64
      %v1479 = vpop.permute.xlu0 %1478
      %1480 = vrot.lane.b32.xlu0 %v1435, 64
      %v1481 = vpop.permute.xlu0 %1480
      %1482 = vrot.lane.b32.xlu0 %v1436, 64
      %v1483 = vpop.permute.xlu0 %1482
      %1484 = vrot.lane.b32.xlu0 %v1437, 64
      %v1485 = vpop.permute.xlu0 %1484
      %v1502 = vadd.f32 %v928, %v1455
      %v1503 = vadd.f32 %v931, %v1457
      %v1504 = vadd.f32 %v936, %v1459
      %v1505 = vadd.f32 %v939, %v1461
      %v1506 = vadd.f32 %v944, %v1463
      %v1507 = vadd.f32 %v947, %v1465
      %v1508 = vadd.f32 %v952, %v1467
      %v1509 = vadd.f32 %v955, %v1469
      %v1510 = vadd.f32 %v960, %v1471
      %v1511 = vadd.f32 %v963, %v1473
      %v1512 = vadd.f32 %v968, %v1475
      %v1513 = vadd.f32 %v971, %v1477
      %v1514 = vadd.f32 %v976, %v1479
      %v1515 = vadd.f32 %v979, %v1481
      %v1516 = vadd.f32 %v984, %v1483
      %v1517 = vadd.f32 %v987, %v1485
      %v1518 = vmax.f32 %v1502, 0.0
      %v1519 = vmax.f32 %v1503, 0.0
      %v1520 = vmax.f32 %v1504, 0.0
      %v1521 = vmax.f32 %v1505, 0.0
      %v1522 = vmax.f32 %v1506, 0.0
      %v1523 = vmax.f32 %v1507, 0.0
      %v1524 = vmax.f32 %v1508, 0.0
      %v1525 = vmax.f32 %v1509, 0.0
      %v1526 = vmax.f32 %v1510, 0.0
      %v1527 = vmax.f32 %v1511, 0.0
      %v1528 = vmax.f32 %v1512, 0.0
      %v1529 = vmax.f32 %v1513, 0.0
      %v1530 = vmax.f32 %v1514, 0.0
      %v1531 = vmax.f32 %v1515, 0.0
      %v1532 = vmax.f32 %v1516, 0.0
      %v1533 = vmax.f32 %v1517, 0.0
      %1534 = vset.pattern.permute.xlu0 3
      %1535 = vperm.xlu0 %1534, %v336
      %v1536 = vpop.permute.xlu0 %1535
      %1538 = vset.pattern.permute.xlu0 3
      %1539 = vperm.xlu0 %1538, %v337
      %v1540 = vpop.permute.xlu0 %1539
      %1542 = vset.pattern.permute.xlu0 3
      %1543 = vperm.xlu0 %1542, %v338
      %v1544 = vpop.permute.xlu0 %1543
      %1546 = vset.pattern.permute.xlu0 3
      %1547 = vperm.xlu0 %1546, %v339
      %v1548 = vpop.permute.xlu0 %1547
      %1550 = vset.pattern.permute.xlu0 3
      %1551 = vperm.xlu0 %1550, %v340
      %v1552 = vpop.permute.xlu0 %1551
      %1554 = vset.pattern.permute.xlu0 3
      %1555 = vperm.xlu0 %1554, %v341
      %v1556 = vpop.permute.xlu0 %1555
      %1558 = vset.pattern.permute.xlu0 3
      %1559 = vperm.xlu0 %1558, %v342
      %v1560 = vpop.permute.xlu0 %1559
      %1562 = vset.pattern.permute.xlu0 3
      %1563 = vperm.xlu0 %1562, %v343
      %v1564 = vpop.permute.xlu0 %1563
      %1566 = vset.pattern.permute.xlu0 3
      %1567 = vperm.xlu0 %1566, %v344
      %v1568 = vpop.permute.xlu0 %1567
      %1570 = vset.pattern.permute.xlu0 3
      %1571 = vperm.xlu0 %1570, %v345
      %v1572 = vpop.permute.xlu0 %1571
      %1574 = vset.pattern.permute.xlu0 3
      %1575 = vperm.xlu0 %1574, %v346
      %v1576 = vpop.permute.xlu0 %1575
      %1578 = vset.pattern.permute.xlu0 3
      %1579 = vperm.xlu0 %1578, %v347
      %v1580 = vpop.permute.xlu0 %1579
      %1582 = vset.pattern.permute.xlu0 3
      %1583 = vperm.xlu0 %1582, %v348
      %v1584 = vpop.permute.xlu0 %1583
      %1586 = vset.pattern.permute.xlu0 3
      %1587 = vperm.xlu0 %1586, %v349
      %v1588 = vpop.permute.xlu0 %1587
      %1590 = vset.pattern.permute.xlu0 3
      %1591 = vperm.xlu0 %1590, %v350
      %v1592 = vpop.permute.xlu0 %1591
      %1594 = vset.pattern.permute.xlu0 3
      %1595 = vperm.xlu0 %1594, %v351
      %v1596 = vpop.permute.xlu0 %1595
      %v1598 = vmul.f32 %v1536, %v694
      %v1599 = vmul.f32 %v1540, %v694
      %v1600 = vmul.f32 %v1544, %v694
      %v1601 = vmul.f32 %v1548, %v694
      %v1602 = vmul.f32 %v1552, %v694
      %v1603 = vmul.f32 %v1556, %v694
      %v1604 = vmul.f32 %v1560, %v694
      %v1605 = vmul.f32 %v1564, %v694
      %v1606 = vmul.f32 %v1568, %v694
      %v1607 = vmul.f32 %v1572, %v694
      %v1608 = vmul.f32 %v1576, %v694
      %v1609 = vmul.f32 %v1580, %v694
      %v1610 = vmul.f32 %v1584, %v694
      %v1611 = vmul.f32 %v1588, %v694
      %v1612 = vmul.f32 %v1592, %v694
      %v1613 = vmul.f32 %v1596, %v694
      %1630 = vrot.lane.b32.xlu0 %v1598, 64
      %v1631 = vpop.permute.xlu0 %1630
      %1632 = vrot.lane.b32.xlu0 %v1599, 64
      %v1633 = vpop.permute.xlu0 %1632
      %1634 = vrot.lane.b32.xlu0 %v1600, 64
      %v1635 = vpop.permute.xlu0 %1634
      %1636 = vrot.lane.b32.xlu0 %v1601, 64
      %v1637 = vpop.permute.xlu0 %1636
      %1638 = vrot.lane.b32.xlu0 %v1602, 64
      %v1639 = vpop.permute.xlu0 %1638
      %1640 = vrot.lane.b32.xlu0 %v1603, 64
      %v1641 = vpop.permute.xlu0 %1640
      %1642 = vrot.lane.b32.xlu0 %v1604, 64
      %v1643 = vpop.permute.xlu0 %1642
      %1644 = vrot.lane.b32.xlu0 %v1605, 64
      %v1645 = vpop.permute.xlu0 %1644
      %1646 = vrot.lane.b32.xlu0 %v1606, 64
      %v1647 = vpop.permute.xlu0 %1646
      %1648 = vrot.lane.b32.xlu0 %v1607, 64
      %v1649 = vpop.permute.xlu0 %1648
      %1650 = vrot.lane.b32.xlu0 %v1608, 64
      %v1651 = vpop.permute.xlu0 %1650
      %1652 = vrot.lane.b32.xlu0 %v1609, 64
      %v1653 = vpop.permute.xlu0 %1652
      %1654 = vrot.lane.b32.xlu0 %v1610, 64
      %v1655 = vpop.permute.xlu0 %1654
      %1656 = vrot.lane.b32.xlu0 %v1611, 64
      %v1657 = vpop.permute.xlu0 %1656
      %1658 = vrot.lane.b32.xlu0 %v1612, 64
      %v1659 = vpop.permute.xlu0 %1658
      %1660 = vrot.lane.b32.xlu0 %v1613, 64
      %v1661 = vpop.permute.xlu0 %1660
      %v1678 = vadd.f32 %v928, %v1631
      %v1679 = vadd.f32 %v931, %v1633
      %v1680 = vadd.f32 %v936, %v1635
      %v1681 = vadd.f32 %v939, %v1637
      %v1682 = vadd.f32 %v944, %v1639
      %v1683 = vadd.f32 %v947, %v1641
      %v1684 = vadd.f32 %v952, %v1643
      %v1685 = vadd.f32 %v955, %v1645
      %v1686 = vadd.f32 %v960, %v1647
      %v1687 = vadd.f32 %v963, %v1649
      %v1688 = vadd.f32 %v968, %v1651
      %v1689 = vadd.f32 %v971, %v1653
      %v1690 = vadd.f32 %v976, %v1655
      %v1691 = vadd.f32 %v979, %v1657
      %v1692 = vadd.f32 %v984, %v1659
      %v1693 = vadd.f32 %v987, %v1661
      %v1694 = vmax.f32 %v1678, 0.0
      %v1695 = vmax.f32 %v1679, 0.0
      %v1696 = vmax.f32 %v1680, 0.0
      %v1697 = vmax.f32 %v1681, 0.0
      %v1698 = vmax.f32 %v1682, 0.0
      %v1699 = vmax.f32 %v1683, 0.0
      %v1700 = vmax.f32 %v1684, 0.0
      %v1701 = vmax.f32 %v1685, 0.0
      %v1702 = vmax.f32 %v1686, 0.0
      %v1703 = vmax.f32 %v1687, 0.0
      %v1704 = vmax.f32 %v1688, 0.0
      %v1705 = vmax.f32 %v1689, 0.0
      %v1706 = vmax.f32 %v1690, 0.0
      %v1707 = vmax.f32 %v1691, 0.0
      %v1708 = vmax.f32 %v1692, 0.0
      %v1709 = vmax.f32 %v1693, 0.0
      %1710 = vset.pattern.permute.xlu0 4
      %1711 = vperm.xlu0 %1710, %v336
      %v1712 = vpop.permute.xlu0 %1711
      %1714 = vset.pattern.permute.xlu0 4
      %1715 = vperm.xlu0 %1714, %v337
      %v1716 = vpop.permute.xlu0 %1715
      %1718 = vset.pattern.permute.xlu0 4
      %1719 = vperm.xlu0 %1718, %v338
      %v1720 = vpop.permute.xlu0 %1719
      %1722 = vset.pattern.permute.xlu0 4
      %1723 = vperm.xlu0 %1722, %v339
      %v1724 = vpop.permute.xlu0 %1723
      %1726 = vset.pattern.permute.xlu0 4
      %1727 = vperm.xlu0 %1726, %v340
      %v1728 = vpop.permute.xlu0 %1727
      %1730 = vset.pattern.permute.xlu0 4
      %1731 = vperm.xlu0 %1730, %v341
      %v1732 = vpop.permute.xlu0 %1731
      %1734 = vset.pattern.permute.xlu0 4
      %1735 = vperm.xlu0 %1734, %v342
      %v1736 = vpop.permute.xlu0 %1735
      %1738 = vset.pattern.permute.xlu0 4
      %1739 = vperm.xlu0 %1738, %v343
      %v1740 = vpop.permute.xlu0 %1739
      %1742 = vset.pattern.permute.xlu0 4
      %1743 = vperm.xlu0 %1742, %v344
      %v1744 = vpop.permute.xlu0 %1743
      %1746 = vset.pattern.permute.xlu0 4
      %1747 = vperm.xlu0 %1746, %v345
      %v1748 = vpop.permute.xlu0 %1747
      %1750 = vset.pattern.permute.xlu0 4
      %1751 = vperm.xlu0 %1750, %v346
      %v1752 = vpop.permute.xlu0 %1751
      %1754 = vset.pattern.permute.xlu0 4
      %1755 = vperm.xlu0 %1754, %v347
      %v1756 = vpop.permute.xlu0 %1755
      %1758 = vset.pattern.permute.xlu0 4
      %1759 = vperm.xlu0 %1758, %v348
      %v1760 = vpop.permute.xlu0 %1759
      %1762 = vset.pattern.permute.xlu0 4
      %1763 = vperm.xlu0 %1762, %v349
      %v1764 = vpop.permute.xlu0 %1763
      %1766 = vset.pattern.permute.xlu0 4
      %1767 = vperm.xlu0 %1766, %v350
      %v1768 = vpop.permute.xlu0 %1767
      %1770 = vset.pattern.permute.xlu0 4
      %1771 = vperm.xlu0 %1770, %v351
      %v1772 = vpop.permute.xlu0 %1771
      %v1774 = vmul.f32 %v1712, %v694
      %v1775 = vmul.f32 %v1716, %v694
      %v1776 = vmul.f32 %v1720, %v694
      %v1777 = vmul.f32 %v1724, %v694
      %v1778 = vmul.f32 %v1728, %v694
      %v1779 = vmul.f32 %v1732, %v694
      %v1780 = vmul.f32 %v1736, %v694
      %v1781 = vmul.f32 %v1740, %v694
      %v1782 = vmul.f32 %v1744, %v694
      %v1783 = vmul.f32 %v1748, %v694
      %v1784 = vmul.f32 %v1752, %v694
      %v1785 = vmul.f32 %v1756, %v694
      %v1786 = vmul.f32 %v1760, %v694
      %v1787 = vmul.f32 %v1764, %v694
      %v1788 = vmul.f32 %v1768, %v694
      %v1789 = vmul.f32 %v1772, %v694
      %1806 = vrot.lane.b32.xlu0 %v1774, 64
      %v1807 = vpop.permute.xlu0 %1806
      %1808 = vrot.lane.b32.xlu0 %v1775, 64
      %v1809 = vpop.permute.xlu0 %1808
      %1810 = vrot.lane.b32.xlu0 %v1776, 64
      %v1811 = vpop.permute.xlu0 %1810
      %1812 = vrot.lane.b32.xlu0 %v1777, 64
      %v1813 = vpop.permute.xlu0 %1812
      %1814 = vrot.lane.b32.xlu0 %v1778, 64
      %v1815 = vpop.permute.xlu0 %1814
      %1816 = vrot.lane.b32.xlu0 %v1779, 64
      %v1817 = vpop.permute.xlu0 %1816
      %1818 = vrot.lane.b32.xlu0 %v1780, 64
      %v1819 = vpop.permute.xlu0 %1818
      %1820 = vrot.lane.b32.xlu0 %v1781, 64
      %v1821 = vpop.permute.xlu0 %1820
      %1822 = vrot.lane.b32.xlu0 %v1782, 64
      %v1823 = vpop.permute.xlu0 %1822
      %1824 = vrot.lane.b32.xlu0 %v1783, 64
      %v1825 = vpop.permute.xlu0 %1824
      %1826 = vrot.lane.b32.xlu0 %v1784, 64
      %v1827 = vpop.permute.xlu0 %1826
      %1828 = vrot.lane.b32.xlu0 %v1785, 64
      %v1829 = vpop.permute.xlu0 %1828
      %1830 = vrot.lane.b32.xlu0 %v1786, 64
      %v1831 = vpop.permute.xlu0 %1830
      %1832 = vrot.lane.b32.xlu0 %v1787, 64
      %v1833 = vpop.permute.xlu0 %1832
      %1834 = vrot.lane.b32.xlu0 %v1788, 64
      %v1835 = vpop.permute.xlu0 %1834
      %1836 = vrot.lane.b32.xlu0 %v1789, 64
      %v1837 = vpop.permute.xlu0 %1836
      %v1854 = vadd.f32 %v928, %v1807
      %v1855 = vadd.f32 %v931, %v1809
      %v1856 = vadd.f32 %v936, %v1811
      %v1857 = vadd.f32 %v939, %v1813
      %v1858 = vadd.f32 %v944, %v1815
      %v1859 = vadd.f32 %v947, %v1817
      %v1860 = vadd.f32 %v952, %v1819
      %v1861 = vadd.f32 %v955, %v1821
      %v1862 = vadd.f32 %v960, %v1823
      %v1863 = vadd.f32 %v963, %v1825
      %v1864 = vadd.f32 %v968, %v1827
      %v1865 = vadd.f32 %v971, %v1829
      %v1866 = vadd.f32 %v976, %v1831
      %v1867 = vadd.f32 %v979, %v1833
      %v1868 = vadd.f32 %v984, %v1835
      %v1869 = vadd.f32 %v987, %v1837
      %v1870 = vmax.f32 %v1854, 0.0
      %v1871 = vmax.f32 %v1855, 0.0
      %v1872 = vmax.f32 %v1856, 0.0
      %v1873 = vmax.f32 %v1857, 0.0
      %v1874 = vmax.f32 %v1858, 0.0
      %v1875 = vmax.f32 %v1859, 0.0
      %v1876 = vmax.f32 %v1860, 0.0
      %v1877 = vmax.f32 %v1861, 0.0
      %v1878 = vmax.f32 %v1862, 0.0
      %v1879 = vmax.f32 %v1863, 0.0
      %v1880 = vmax.f32 %v1864, 0.0
      %v1881 = vmax.f32 %v1865, 0.0
      %v1882 = vmax.f32 %v1866, 0.0
      %v1883 = vmax.f32 %v1867, 0.0
      %v1884 = vmax.f32 %v1868, 0.0
      %v1885 = vmax.f32 %v1869, 0.0
      %1886 = vset.pattern.permute.xlu0 5
      %1887 = vperm.xlu0 %1886, %v336
      %v1888 = vpop.permute.xlu0 %1887
      %1890 = vset.pattern.permute.xlu0 5
      %1891 = vperm.xlu0 %1890, %v337
      %v1892 = vpop.permute.xlu0 %1891
      %1894 = vset.pattern.permute.xlu0 5
      %1895 = vperm.xlu0 %1894, %v338
      %v1896 = vpop.permute.xlu0 %1895
      %1898 = vset.pattern.permute.xlu0 5
      %1899 = vperm.xlu0 %1898, %v339
      %v1900 = vpop.permute.xlu0 %1899
      %1902 = vset.pattern.permute.xlu0 5
      %1903 = vperm.xlu0 %1902, %v340
      %v1904 = vpop.permute.xlu0 %1903
      %1906 = vset.pattern.permute.xlu0 5
      %1907 = vperm.xlu0 %1906, %v341
      %v1908 = vpop.permute.xlu0 %1907
      %1910 = vset.pattern.permute.xlu0 5
      %1911 = vperm.xlu0 %1910, %v342
      %v1912 = vpop.permute.xlu0 %1911
      %1914 = vset.pattern.permute.xlu0 5
      %1915 = vperm.xlu0 %1914, %v343
      %v1916 = vpop.permute.xlu0 %1915
      %1918 = vset.pattern.permute.xlu0 5
      %1919 = vperm.xlu0 %1918, %v344
      %v1920 = vpop.permute.xlu0 %1919
      %1922 = vset.pattern.permute.xlu0 5
      %1923 = vperm.xlu0 %1922, %v345
      %v1924 = vpop.permute.xlu0 %1923
      %1926 = vset.pattern.permute.xlu0 5
      %1927 = vperm.xlu0 %1926, %v346
      %v1928 = vpop.permute.xlu0 %1927
      %1930 = vset.pattern.permute.xlu0 5
      %1931 = vperm.xlu0 %1930, %v347
      %v1932 = vpop.permute.xlu0 %1931
      %1934 = vset.pattern.permute.xlu0 5
      %1935 = vperm.xlu0 %1934, %v348
      %v1936 = vpop.permute.xlu0 %1935
      %1938 = vset.pattern.permute.xlu0 5
      %1939 = vperm.xlu0 %1938, %v349
      %v1940 = vpop.permute.xlu0 %1939
      %1942 = vset.pattern.permute.xlu0 5
      %1943 = vperm.xlu0 %1942, %v350
      %v1944 = vpop.permute.xlu0 %1943
      %1946 = vset.pattern.permute.xlu0 5
      %1947 = vperm.xlu0 %1946, %v351
      %v1948 = vpop.permute.xlu0 %1947
      %v1950 = vmul.f32 %v1888, %v694
      %v1951 = vmul.f32 %v1892, %v694
      %v1952 = vmul.f32 %v1896, %v694
      %v1953 = vmul.f32 %v1900, %v694
      %v1954 = vmul.f32 %v1904, %v694
      %v1955 = vmul.f32 %v1908, %v694
      %v1956 = vmul.f32 %v1912, %v694
      %v1957 = vmul.f32 %v1916, %v694
      %v1958 = vmul.f32 %v1920, %v694
      %v1959 = vmul.f32 %v1924, %v694
      %v1960 = vmul.f32 %v1928, %v694
      %v1961 = vmul.f32 %v1932, %v694
      %v1962 = vmul.f32 %v1936, %v694
      %v1963 = vmul.f32 %v1940, %v694
      %v1964 = vmul.f32 %v1944, %v694
      %v1965 = vmul.f32 %v1948, %v694
      %1982 = vrot.lane.b32.xlu0 %v1950, 64
      %v1983 = vpop.permute.xlu0 %1982
      %1984 = vrot.lane.b32.xlu0 %v1951, 64
      %v1985 = vpop.permute.xlu0 %1984
      %1986 = vrot.lane.b32.xlu0 %v1952, 64
      %v1987 = vpop.permute.xlu0 %1986
      %1988 = vrot.lane.b32.xlu0 %v1953, 64
      %v1989 = vpop.permute.xlu0 %1988
      %1990 = vrot.lane.b32.xlu0 %v1954, 64
      %v1991 = vpop.permute.xlu0 %1990
      %1992 = vrot.lane.b32.xlu0 %v1955, 64
      %v1993 = vpop.permute.xlu0 %1992
      %1994 = vrot.lane.b32.xlu0 %v1956, 64
      %v1995 = vpop.permute.xlu0 %1994
      %1996 = vrot.lane.b32.xlu0 %v1957, 64
      %v1997 = vpop.permute.xlu0 %1996
      %1998 = vrot.lane.b32.xlu0 %v1958, 64
      %v1999 = vpop.permute.xlu0 %1998
      %2000 = vrot.lane.b32.xlu0 %v1959, 64
      %v2001 = vpop.permute.xlu0 %2000
      %2002 = vrot.lane.b32.xlu0 %v1960, 64
      %v2003 = vpop.permute.xlu0 %2002
      %2004 = vrot.lane.b32.xlu0 %v1961, 64
      %v2005 = vpop.permute.xlu0 %2004
      %2006 = vrot.lane.b32.xlu0 %v1962, 64
      %v2007 = vpop.permute.xlu0 %2006
      %2008 = vrot.lane.b32.xlu0 %v1963, 64
      %v2009 = vpop.permute.xlu0 %2008
      %2010 = vrot.lane.b32.xlu0 %v1964, 64
      %v2011 = vpop.permute.xlu0 %2010
      %2012 = vrot.lane.b32.xlu0 %v1965, 64
      %v2013 = vpop.permute.xlu0 %2012
      %v2030 = vadd.f32 %v928, %v1983
      %v2031 = vadd.f32 %v931, %v1985
      %v2032 = vadd.f32 %v936, %v1987
      %v2033 = vadd.f32 %v939, %v1989
      %v2034 = vadd.f32 %v944, %v1991
      %v2035 = vadd.f32 %v947, %v1993
      %v2036 = vadd.f32 %v952, %v1995
      %v2037 = vadd.f32 %v955, %v1997
      %v2038 = vadd.f32 %v960, %v1999
      %v2039 = vadd.f32 %v963, %v2001
      %v2040 = vadd.f32 %v968, %v2003
      %v2041 = vadd.f32 %v971, %v2005
      %v2042 = vadd.f32 %v976, %v2007
      %v2043 = vadd.f32 %v979, %v2009
      %v2044 = vadd.f32 %v984, %v2011
      %v2045 = vadd.f32 %v987, %v2013
      %v2046 = vmax.f32 %v2030, 0.0
      %v2047 = vmax.f32 %v2031, 0.0
      %v2048 = vmax.f32 %v2032, 0.0
      %v2049 = vmax.f32 %v2033, 0.0
      %v2050 = vmax.f32 %v2034, 0.0
      %v2051 = vmax.f32 %v2035, 0.0
      %v2052 = vmax.f32 %v2036, 0.0
      %v2053 = vmax.f32 %v2037, 0.0
      %v2054 = vmax.f32 %v2038, 0.0
      %v2055 = vmax.f32 %v2039, 0.0
      %v2056 = vmax.f32 %v2040, 0.0
      %v2057 = vmax.f32 %v2041, 0.0
      %v2058 = vmax.f32 %v2042, 0.0
      %v2059 = vmax.f32 %v2043, 0.0
      %v2060 = vmax.f32 %v2044, 0.0
      %v2061 = vmax.f32 %v2045, 0.0
      %2062 = vset.pattern.permute.xlu0 6
      %2063 = vperm.xlu0 %2062, %v336
      %v2064 = vpop.permute.xlu0 %2063
      %2066 = vset.pattern.permute.xlu0 6
      %2067 = vperm.xlu0 %2066, %v337
      %v2068 = vpop.permute.xlu0 %2067
      %2070 = vset.pattern.permute.xlu0 6
      %2071 = vperm.xlu0 %2070, %v338
      %v2072 = vpop.permute.xlu0 %2071
      %2074 = vset.pattern.permute.xlu0 6
      %2075 = vperm.xlu0 %2074, %v339
      %v2076 = vpop.permute.xlu0 %2075
      %2078 = vset.pattern.permute.xlu0 6
      %2079 = vperm.xlu0 %2078, %v340
      %v2080 = vpop.permute.xlu0 %2079
      %2082 = vset.pattern.permute.xlu0 6
      %2083 = vperm.xlu0 %2082, %v341
      %v2084 = vpop.permute.xlu0 %2083
      %2086 = vset.pattern.permute.xlu0 6
      %2087 = vperm.xlu0 %2086, %v342
      %v2088 = vpop.permute.xlu0 %2087
      %2090 = vset.pattern.permute.xlu0 6
      %2091 = vperm.xlu0 %2090, %v343
      %v2092 = vpop.permute.xlu0 %2091
      %2094 = vset.pattern.permute.xlu0 6
      %2095 = vperm.xlu0 %2094, %v344
      %v2096 = vpop.permute.xlu0 %2095
      %2098 = vset.pattern.permute.xlu0 6
      %2099 = vperm.xlu0 %2098, %v345
      %v2100 = vpop.permute.xlu0 %2099
      %2102 = vset.pattern.permute.xlu0 6
      %2103 = vperm.xlu0 %2102, %v346
      %v2104 = vpop.permute.xlu0 %2103
      %2106 = vset.pattern.permute.xlu0 6
      %2107 = vperm.xlu0 %2106, %v347
      %v2108 = vpop.permute.xlu0 %2107
      %2110 = vset.pattern.permute.xlu0 6
      %2111 = vperm.xlu0 %2110, %v348
      %v2112 = vpop.permute.xlu0 %2111
      %2114 = vset.pattern.permute.xlu0 6
      %2115 = vperm.xlu0 %2114, %v349
      %v2116 = vpop.permute.xlu0 %2115
      %2118 = vset.pattern.permute.xlu0 6
      %2119 = vperm.xlu0 %2118, %v350
      %v2120 = vpop.permute.xlu0 %2119
      %2122 = vset.pattern.permute.xlu0 6
      %2123 = vperm.xlu0 %2122, %v351
      %v2124 = vpop.permute.xlu0 %2123
      %v2126 = vmul.f32 %v2064, %v694
      %v2127 = vmul.f32 %v2068, %v694
      %v2128 = vmul.f32 %v2072, %v694
      %v2129 = vmul.f32 %v2076, %v694
      %v2130 = vmul.f32 %v2080, %v694
      %v2131 = vmul.f32 %v2084, %v694
      %v2132 = vmul.f32 %v2088, %v694
      %v2133 = vmul.f32 %v2092, %v694
      %v2134 = vmul.f32 %v2096, %v694
      %v2135 = vmul.f32 %v2100, %v694
      %v2136 = vmul.f32 %v2104, %v694
      %v2137 = vmul.f32 %v2108, %v694
      %v2138 = vmul.f32 %v2112, %v694
      %v2139 = vmul.f32 %v2116, %v694
      %v2140 = vmul.f32 %v2120, %v694
      %v2141 = vmul.f32 %v2124, %v694
      %2158 = vrot.lane.b32.xlu0 %v2126, 64
      %v2159 = vpop.permute.xlu0 %2158
      %2160 = vrot.lane.b32.xlu0 %v2127, 64
      %v2161 = vpop.permute.xlu0 %2160
      %2162 = vrot.lane.b32.xlu0 %v2128, 64
      %v2163 = vpop.permute.xlu0 %2162
      %2164 = vrot.lane.b32.xlu0 %v2129, 64
      %v2165 = vpop.permute.xlu0 %2164
      %2166 = vrot.lane.b32.xlu0 %v2130, 64
      %v2167 = vpop.permute.xlu0 %2166
      %2168 = vrot.lane.b32.xlu0 %v2131, 64
      %v2169 = vpop.permute.xlu0 %2168
      %2170 = vrot.lane.b32.xlu0 %v2132, 64
      %v2171 = vpop.permute.xlu0 %2170
      %2172 = vrot.lane.b32.xlu0 %v2133, 64
      %v2173 = vpop.permute.xlu0 %2172
      %2174 = vrot.lane.b32.xlu0 %v2134, 64
      %v2175 = vpop.permute.xlu0 %2174
      %2176 = vrot.lane.b32.xlu0 %v2135, 64
      %v2177 = vpop.permute.xlu0 %2176
      %2178 = vrot.lane.b32.xlu0 %v2136, 64
      %v2179 = vpop.permute.xlu0 %2178
      %2180 = vrot.lane.b32.xlu0 %v2137, 64
      %v2181 = vpop.permute.xlu0 %2180
      %2182 = vrot.lane.b32.xlu0 %v2138, 64
      %v2183 = vpop.permute.xlu0 %2182
      %2184 = vrot.lane.b32.xlu0 %v2139, 64
      %v2185 = vpop.permute.xlu0 %2184
      %2186 = vrot.lane.b32.xlu0 %v2140, 64
      %v2187 = vpop.permute.xlu0 %2186
      %2188 = vrot.lane.b32.xlu0 %v2141, 64
      %v2189 = vpop.permute.xlu0 %2188
      %v2206 = vadd.f32 %v928, %v2159
      %v2207 = vadd.f32 %v931, %v2161
      %v2208 = vadd.f32 %v936, %v2163
      %v2209 = vadd.f32 %v939, %v2165
      %v2210 = vadd.f32 %v944, %v2167
      %v2211 = vadd.f32 %v947, %v2169
      %v2212 = vadd.f32 %v952, %v2171
      %v2213 = vadd.f32 %v955, %v2173
      %v2214 = vadd.f32 %v960, %v2175
      %v2215 = vadd.f32 %v963, %v2177
      %v2216 = vadd.f32 %v968, %v2179
      %v2217 = vadd.f32 %v971, %v2181
      %v2218 = vadd.f32 %v976, %v2183
      %v2219 = vadd.f32 %v979, %v2185
      %v2220 = vadd.f32 %v984, %v2187
      %v2221 = vadd.f32 %v987, %v2189
      %v2222 = vmax.f32 %v2206, 0.0
      %v2223 = vmax.f32 %v2207, 0.0
      %v2224 = vmax.f32 %v2208, 0.0
      %v2225 = vmax.f32 %v2209, 0.0
      %v2226 = vmax.f32 %v2210, 0.0
      %v2227 = vmax.f32 %v2211, 0.0
      %v2228 = vmax.f32 %v2212, 0.0
      %v2229 = vmax.f32 %v2213, 0.0
      %v2230 = vmax.f32 %v2214, 0.0
      %v2231 = vmax.f32 %v2215, 0.0
      %v2232 = vmax.f32 %v2216, 0.0
      %v2233 = vmax.f32 %v2217, 0.0
      %v2234 = vmax.f32 %v2218, 0.0
      %v2235 = vmax.f32 %v2219, 0.0
      %v2236 = vmax.f32 %v2220, 0.0
      %v2237 = vmax.f32 %v2221, 0.0
      %2238 = vset.pattern.permute.xlu0 7
      %2239 = vperm.xlu0 %2238, %v336
      %v2240 = vpop.permute.xlu0 %2239
      %2242 = vset.pattern.permute.xlu0 7
      %2243 = vperm.xlu0 %2242, %v337
      %v2244 = vpop.permute.xlu0 %2243
      %2246 = vset.pattern.permute.xlu0 7
      %2247 = vperm.xlu0 %2246, %v338
      %v2248 = vpop.permute.xlu0 %2247
      %2250 = vset.pattern.permute.xlu0 7
      %2251 = vperm.xlu0 %2250, %v339
      %v2252 = vpop.permute.xlu0 %2251
      %2254 = vset.pattern.permute.xlu0 7
      %2255 = vperm.xlu0 %2254, %v340
      %v2256 = vpop.permute.xlu0 %2255
      %2258 = vset.pattern.permute.xlu0 7
      %2259 = vperm.xlu0 %2258, %v341
      %v2260 = vpop.permute.xlu0 %2259
      %2262 = vset.pattern.permute.xlu0 7
      %2263 = vperm.xlu0 %2262, %v342
      %v2264 = vpop.permute.xlu0 %2263
      %2266 = vset.pattern.permute.xlu0 7
      %2267 = vperm.xlu0 %2266, %v343
      %v2268 = vpop.permute.xlu0 %2267
      %2270 = vset.pattern.permute.xlu0 7
      %2271 = vperm.xlu0 %2270, %v344
      %v2272 = vpop.permute.xlu0 %2271
      %2274 = vset.pattern.permute.xlu0 7
      %2275 = vperm.xlu0 %2274, %v345
      %v2276 = vpop.permute.xlu0 %2275
      %2278 = vset.pattern.permute.xlu0 7
      %2279 = vperm.xlu0 %2278, %v346
      %v2280 = vpop.permute.xlu0 %2279
      %2282 = vset.pattern.permute.xlu0 7
      %2283 = vperm.xlu0 %2282, %v347
      %v2284 = vpop.permute.xlu0 %2283
      %2286 = vset.pattern.permute.xlu0 7
      %2287 = vperm.xlu0 %2286, %v348
      %v2288 = vpop.permute.xlu0 %2287
      %2290 = vset.pattern.permute.xlu0 7
      %2291 = vperm.xlu0 %2290, %v349
      %v2292 = vpop.permute.xlu0 %2291
      %2294 = vset.pattern.permute.xlu0 7
      %2295 = vperm.xlu0 %2294, %v350
      %v2296 = vpop.permute.xlu0 %2295
      %2298 = vset.pattern.permute.xlu0 7
      %2299 = vperm.xlu0 %2298, %v351
      %v2300 = vpop.permute.xlu0 %2299
      %v2302 = vmul.f32 %v2240, %v694
      %v2303 = vmul.f32 %v2244, %v694
      %v2304 = vmul.f32 %v2248, %v694
      %v2305 = vmul.f32 %v2252, %v694
      %v2306 = vmul.f32 %v2256, %v694
      %v2307 = vmul.f32 %v2260, %v694
      %v2308 = vmul.f32 %v2264, %v694
      %v2309 = vmul.f32 %v2268, %v694
      %v2310 = vmul.f32 %v2272, %v694
      %v2311 = vmul.f32 %v2276, %v694
      %v2312 = vmul.f32 %v2280, %v694
      %v2313 = vmul.f32 %v2284, %v694
      %v2314 = vmul.f32 %v2288, %v694
      %v2315 = vmul.f32 %v2292, %v694
      %v2316 = vmul.f32 %v2296, %v694
      %v2317 = vmul.f32 %v2300, %v694
      %2334 = vrot.lane.b32.xlu0 %v2302, 64
      %v2335 = vpop.permute.xlu0 %2334
      %2336 = vrot.lane.b32.xlu0 %v2303, 64
      %v2337 = vpop.permute.xlu0 %2336
      %2338 = vrot.lane.b32.xlu0 %v2304, 64
      %v2339 = vpop.permute.xlu0 %2338
      %2340 = vrot.lane.b32.xlu0 %v2305, 64
      %v2341 = vpop.permute.xlu0 %2340
      %2342 = vrot.lane.b32.xlu0 %v2306, 64
      %v2343 = vpop.permute.xlu0 %2342
      %2344 = vrot.lane.b32.xlu0 %v2307, 64
      %v2345 = vpop.permute.xlu0 %2344
      %2346 = vrot.lane.b32.xlu0 %v2308, 64
      %v2347 = vpop.permute.xlu0 %2346
      %2348 = vrot.lane.b32.xlu0 %v2309, 64
      %v2349 = vpop.permute.xlu0 %2348
      %2350 = vrot.lane.b32.xlu0 %v2310, 64
      %v2351 = vpop.permute.xlu0 %2350
      %2352 = vrot.lane.b32.xlu0 %v2311, 64
      %v2353 = vpop.permute.xlu0 %2352
      %2354 = vrot.lane.b32.xlu0 %v2312, 64
      %v2355 = vpop.permute.xlu0 %2354
      %2356 = vrot.lane.b32.xlu0 %v2313, 64
      %v2357 = vpop.permute.xlu0 %2356
      %2358 = vrot.lane.b32.xlu0 %v2314, 64
      %v2359 = vpop.permute.xlu0 %2358
      %2360 = vrot.lane.b32.xlu0 %v2315, 64
      %v2361 = vpop.permute.xlu0 %2360
      %2362 = vrot.lane.b32.xlu0 %v2316, 64
      %v2363 = vpop.permute.xlu0 %2362
      %2364 = vrot.lane.b32.xlu0 %v2317, 64
      %v2365 = vpop.permute.xlu0 %2364
      %v2382 = vadd.f32 %v928, %v2335
      %v2383 = vadd.f32 %v931, %v2337
      %v2384 = vadd.f32 %v936, %v2339
      %v2385 = vadd.f32 %v939, %v2341
      %v2386 = vadd.f32 %v944, %v2343
      %v2387 = vadd.f32 %v947, %v2345
      %v2388 = vadd.f32 %v952, %v2347
      %v2389 = vadd.f32 %v955, %v2349
      %v2390 = vadd.f32 %v960, %v2351
      %v2391 = vadd.f32 %v963, %v2353
      %v2392 = vadd.f32 %v968, %v2355
      %v2393 = vadd.f32 %v971, %v2357
      %v2394 = vadd.f32 %v976, %v2359
      %v2395 = vadd.f32 %v979, %v2361
      %v2396 = vadd.f32 %v984, %v2363
      %v2397 = vadd.f32 %v987, %v2365
      %v2398 = vmax.f32 %v2382, 0.0
      %v2399 = vmax.f32 %v2383, 0.0
      %v2400 = vmax.f32 %v2384, 0.0
      %v2401 = vmax.f32 %v2385, 0.0
      %v2402 = vmax.f32 %v2386, 0.0
      %v2403 = vmax.f32 %v2387, 0.0
      %v2404 = vmax.f32 %v2388, 0.0
      %v2405 = vmax.f32 %v2389, 0.0
      %v2406 = vmax.f32 %v2390, 0.0
      %v2407 = vmax.f32 %v2391, 0.0
      %v2408 = vmax.f32 %v2392, 0.0
      %v2409 = vmax.f32 %v2393, 0.0
      %v2410 = vmax.f32 %v2394, 0.0
      %v2411 = vmax.f32 %v2395, 0.0
      %v2412 = vmax.f32 %v2396, 0.0
      %v2413 = vmax.f32 %v2397, 0.0
      %v2414 = vpack.c.bf16 %v1167, %v1166
      %v2415 = vpack.c.bf16 %v1169, %v1168
      %v2416 = vpack.c.bf16 %v1171, %v1170
      %v2417 = vpack.c.bf16 %v1173, %v1172
      %v2418 = vpack.c.bf16 %v1175, %v1174
      %v2419 = vpack.c.bf16 %v1177, %v1176
      %v2420 = vpack.c.bf16 %v1179, %v1178
      %v2421 = vpack.c.bf16 %v1181, %v1180
      %v2422 = vpack.c.bf16 %v1343, %v1342
      %v2423 = vpack.c.bf16 %v1345, %v1344
      %v2424 = vpack.c.bf16 %v1347, %v1346
      %v2425 = vpack.c.bf16 %v1349, %v1348
      %v2426 = vpack.c.bf16 %v1351, %v1350
      %v2427 = vpack.c.bf16 %v1353, %v1352
      %v2428 = vpack.c.bf16 %v1355, %v1354
      %v2429 = vpack.c.bf16 %v1357, %v1356
      %v2430 = vpack.c.bf16 %v1519, %v1518
      %v2431 = vpack.c.bf16 %v1521, %v1520
      %v2432 = vpack.c.bf16 %v1523, %v1522
      %v2433 = vpack.c.bf16 %v1525, %v1524
      %v2434 = vpack.c.bf16 %v1527, %v1526
      %v2435 = vpack.c.bf16 %v1529, %v1528
      %v2436 = vpack.c.bf16 %v1531, %v1530
      %v2437 = vpack.c.bf16 %v1533, %v1532
      %v2438 = vpack.c.bf16 %v1695, %v1694
      %v2439 = vpack.c.bf16 %v1697, %v1696
      %v2440 = vpack.c.bf16 %v1699, %v1698
      %v2441 = vpack.c.bf16 %v1701, %v1700
      %v2442 = vpack.c.bf16 %v1703, %v1702
      %v2443 = vpack.c.bf16 %v1705, %v1704
      %v2444 = vpack.c.bf16 %v1707, %v1706
      %v2445 = vpack.c.bf16 %v1709, %v1708
      %v2446 = vpack.c.bf16 %v1871, %v1870
      %v2447 = vpack.c.bf16 %v1873, %v1872
      %v2448 = vpack.c.bf16 %v1875, %v1874
      %v2449 = vpack.c.bf16 %v1877, %v1876
      %v2450 = vpack.c.bf16 %v1879, %v1878
      %v2451 = vpack.c.bf16 %v1881, %v1880
      %v2452 = vpack.c.bf16 %v1883, %v1882
      %v2453 = vpack.c.bf16 %v1885, %v1884
      %v2454 = vpack.c.bf16 %v2047, %v2046
      %v2455 = vpack.c.bf16 %v2049, %v2048
      %v2456 = vpack.c.bf16 %v2051, %v2050
      %v2457 = vpack.c.bf16 %v2053, %v2052
      %v2458 = vpack.c.bf16 %v2055, %v2054
      %v2459 = vpack.c.bf16 %v2057, %v2056
      %v2460 = vpack.c.bf16 %v2059, %v2058
      %v2461 = vpack.c.bf16 %v2061, %v2060
      %v2462 = vpack.c.bf16 %v2223, %v2222
      %v2463 = vpack.c.bf16 %v2225, %v2224
      %v2464 = vpack.c.bf16 %v2227, %v2226
      %v2465 = vpack.c.bf16 %v2229, %v2228
      %v2466 = vpack.c.bf16 %v2231, %v2230
      %v2467 = vpack.c.bf16 %v2233, %v2232
      %v2468 = vpack.c.bf16 %v2235, %v2234
      %v2469 = vpack.c.bf16 %v2237, %v2236
      %v2470 = vpack.c.bf16 %v2399, %v2398
      %v2471 = vpack.c.bf16 %v2401, %v2400
      %v2472 = vpack.c.bf16 %v2403, %v2402
      %v2473 = vpack.c.bf16 %v2405, %v2404
      %v2474 = vpack.c.bf16 %v2407, %v2406
      %v2475 = vpack.c.bf16 %v2409, %v2408
      %v2476 = vpack.c.bf16 %v2411, %v2410
      %v2477 = vpack.c.bf16 %v2413, %v2412
      %v2478 = vlaneseq
      %v2479 = vshrl.u32 %v2478, 7
      %v2480 = vsub.s32 0, %v2479
      %v2481 = vrot.slane %v319, %v2480
      %v2486 = vunpack.c.l.b16 %v251
      %v2487 = vunpack.c.l.b16 %v252
      %v2488 = vunpack.c.l.b16 %v253
      %v2489 = vunpack.c.l.b16 %v254
      %v2490 = vpack.c.b16 %v2487, %v2486
      %v2491 = vpack.c.b16 %v2489, %v2488
      %v2495 = vsel %vm707, %v2414, 0
      %v2498 = vsel %vm707, %v2415, 0
      %v2501 = vsel %vm707, %v2416, 0
      %v2504 = vsel %vm707, %v2417, 0
      %v2507 = vsel %vm707, %v2418, 0
      %v2510 = vsel %vm707, %v2419, 0
      %v2513 = vsel %vm707, %v2420, 0
      %v2516 = vsel %vm707, %v2421, 0
      %v2519 = vsel %vm707, %v2422, 0
      %v2522 = vsel %vm707, %v2423, 0
      %v2525 = vsel %vm707, %v2424, 0
      %v2528 = vsel %vm707, %v2425, 0
      %v2531 = vsel %vm707, %v2426, 0
      %v2534 = vsel %vm707, %v2427, 0
      %v2537 = vsel %vm707, %v2428, 0
      %v2540 = vsel %vm707, %v2429, 0
      %v2543 = vsel %vm707, %v2430, 0
      %v2546 = vsel %vm707, %v2431, 0
      %v2549 = vsel %vm707, %v2432, 0
      %v2552 = vsel %vm707, %v2433, 0
      %v2555 = vsel %vm707, %v2434, 0
      %v2558 = vsel %vm707, %v2435, 0
      %v2561 = vsel %vm707, %v2436, 0
      %v2564 = vsel %vm707, %v2437, 0
      %v2567 = vsel %vm707, %v2438, 0
      %v2570 = vsel %vm707, %v2439, 0
      %v2573 = vsel %vm707, %v2440, 0
      %v2576 = vsel %vm707, %v2441, 0
      %v2579 = vsel %vm707, %v2442, 0
      %v2582 = vsel %vm707, %v2443, 0
      %v2585 = vsel %vm707, %v2444, 0
      %v2588 = vsel %vm707, %v2445, 0
      %v2591 = vsel %vm707, %v2446, 0
      %v2594 = vsel %vm707, %v2447, 0
      %v2597 = vsel %vm707, %v2448, 0
      %v2600 = vsel %vm707, %v2449, 0
      %v2603 = vsel %vm707, %v2450, 0
      %v2606 = vsel %vm707, %v2451, 0
      %v2609 = vsel %vm707, %v2452, 0
      %v2612 = vsel %vm707, %v2453, 0
      %v2615 = vsel %vm707, %v2454, 0
      %v2618 = vsel %vm707, %v2455, 0
      %v2621 = vsel %vm707, %v2456, 0
      %v2624 = vsel %vm707, %v2457, 0
      %v2627 = vsel %vm707, %v2458, 0
      %v2630 = vsel %vm707, %v2459, 0
      %v2633 = vsel %vm707, %v2460, 0
      %v2636 = vsel %vm707, %v2461, 0
      %v2639 = vsel %vm707, %v2462, 0
      %v2642 = vsel %vm707, %v2463, 0
      %v2645 = vsel %vm707, %v2464, 0
      %v2648 = vsel %vm707, %v2465, 0
      %v2651 = vsel %vm707, %v2466, 0
      %v2654 = vsel %vm707, %v2467, 0
      %v2657 = vsel %vm707, %v2468, 0
      %v2660 = vsel %vm707, %v2469, 0
      %v2663 = vsel %vm707, %v2470, 0
      %v2666 = vsel %vm707, %v2471, 0
      %v2669 = vsel %vm707, %v2472, 0
      %v2672 = vsel %vm707, %v2473, 0
      %v2675 = vsel %vm707, %v2474, 0
      %v2678 = vsel %vm707, %v2475, 0
      %v2681 = vsel %vm707, %v2476, 0
      %v2684 = vsel %vm707, %v2477, 0
      %2686 = vmatprep.subr.bf16.mxu0 0
      %2687 = vmatpush1.bf16.msra.mxu0 0
      %2688 = vmatprep.subr.bf16.mxu0 0
      %2689 = vmatpush1.bf16.msra.mxu0 0
      %2690 = vmatprep.subr.bf16.mxu0 0
      %2691 = vmatpush1.bf16.msra.mxu0 0
      %2692 = vmatprep.subr.bf16.mxu0 0
      %2693 = vmatpush1.bf16.msra.mxu0 0
      %2694 = vmatprep.subr.bf16.mxu0 0
      %2695 = vmatpush1.bf16.msra.mxu0 0
      %2696 = vmatprep.subr.bf16.mxu0 0
      %2697 = vmatpush1.bf16.msra.mxu0 0
      %2698 = vmatprep.subr.bf16.mxu0 0
      %2699 = vmatpush1.bf16.msra.mxu0 %v2491
      %2700 = vmatprep.subr.bf16.mxu0 0
      %2701 = vmatpush1.bf16.msra.mxu0 %v2490
      %2702 = vmatprep.subr.bf16.mxu0 0
      %2703 = vmatpush2.bf16.msra.mxu0 0
      %2704 = vmatprep.subr.bf16.mxu0 0
      %2705 = vmatpush2.bf16.msra.mxu0 0
      %2706 = vmatprep.subr.bf16.mxu0 0
      %2707 = vmatpush2.bf16.msra.mxu0 0
      %2708 = vmatprep.subr.bf16.mxu0 0
      %2709 = vmatpush2.bf16.msra.mxu0 0
      %2710 = vmatprep.subr.bf16.mxu0 0
      %2711 = vmatpush2.bf16.msra.mxu0 0
      %2712 = vmatprep.subr.bf16.mxu0 0
      %2713 = vmatpush2.bf16.msra.mxu0 0
      %2714 = vmatprep.subr.bf16.mxu0 0
      %2715 = vmatpush2.bf16.msra.mxu0 0
      %2716 = vmatprep.subr.bf16.mxu0 0
      %2717 = vmatpush2.bf16.msra.mxu0 0
      %2718 = vmatprep.mubr.bf16.mxu0 0
      %2719 = vmatmul.mubr.bf16.gmra.mxu0 %v2495
      %v2720 = vpop.f32.mrf.mxu0
      %v2721 = vadd.f32 %v2481, %v2720
      %v2722 = vpop.f32.mrf.mxu0
      %v2723 = vpop.f32.mrf.mxu0
      %v2724 = vadd.f32 %v2481, %v2723
      %v2725 = vpop.f32.mrf.mxu0
      %2726 = vmatprep.mubr.bf16.mxu0 0
      %2727 = vmatmul.mubr.bf16.gmra.mxu0 %v2498
      %v2728 = vpop.f32.mrf.mxu0
      %v2729 = vadd.f32 %v2481, %v2728
      %v2730 = vpop.f32.mrf.mxu0
      %v2731 = vpop.f32.mrf.mxu0
      %v2732 = vadd.f32 %v2481, %v2731
      %v2733 = vpop.f32.mrf.mxu0
      %2734 = vmatprep.mubr.bf16.mxu0 0
      %2735 = vmatmul.mubr.bf16.gmra.mxu0 %v2501
      %v2736 = vpop.f32.mrf.mxu0
      %v2737 = vadd.f32 %v2481, %v2736
      %v2738 = vpop.f32.mrf.mxu0
      %v2739 = vpop.f32.mrf.mxu0
      %v2740 = vadd.f32 %v2481, %v2739
      %v2741 = vpop.f32.mrf.mxu0
      %2742 = vmatprep.mubr.bf16.mxu0 0
      %2743 = vmatmul.mubr.bf16.gmra.mxu0 %v2504
      %v2744 = vpop.f32.mrf.mxu0
      %v2745 = vadd.f32 %v2481, %v2744
      %v2746 = vpop.f32.mrf.mxu0
      %v2747 = vpop.f32.mrf.mxu0
      %v2748 = vadd.f32 %v2481, %v2747
      %v2749 = vpop.f32.mrf.mxu0
      %2750 = vmatprep.mubr.bf16.mxu0 0
      %2751 = vmatmul.mubr.bf16.gmra.mxu0 %v2507
      %v2752 = vpop.f32.mrf.mxu0
      %v2753 = vadd.f32 %v2481, %v2752
      %v2754 = vpop.f32.mrf.mxu0
      %v2755 = vpop.f32.mrf.mxu0
      %v2756 = vadd.f32 %v2481, %v2755
      %v2757 = vpop.f32.mrf.mxu0
      %2758 = vmatprep.mubr.bf16.mxu0 0
      %2759 = vmatmul.mubr.bf16.gmra.mxu0 %v2510
      %v2760 = vpop.f32.mrf.mxu0
      %v2761 = vadd.f32 %v2481, %v2760
      %v2762 = vpop.f32.mrf.mxu0
      %v2763 = vpop.f32.mrf.mxu0
      %v2764 = vadd.f32 %v2481, %v2763
      %v2765 = vpop.f32.mrf.mxu0
      %2766 = vmatprep.mubr.bf16.mxu0 0
      %2767 = vmatmul.mubr.bf16.gmra.mxu0 %v2513
      %v2768 = vpop.f32.mrf.mxu0
      %v2769 = vadd.f32 %v2481, %v2768
      %v2770 = vpop.f32.mrf.mxu0
      %v2771 = vpop.f32.mrf.mxu0
      %v2772 = vadd.f32 %v2481, %v2771
      %v2773 = vpop.f32.mrf.mxu0
      %2774 = vmatprep.mubr.bf16.mxu0 0
      %2775 = vmatmul.mubr.bf16.gmra.mxu0 %v2516
      %v2776 = vpop.f32.mrf.mxu0
      %v2777 = vadd.f32 %v2481, %v2776
      %v2778 = vpop.f32.mrf.mxu0
      %v2779 = vpop.f32.mrf.mxu0
      %v2780 = vadd.f32 %v2481, %v2779
      %v2781 = vpop.f32.mrf.mxu0
      %2782 = vmatprep.mubr.bf16.mxu0 0
      %2783 = vmatmul.mubr.bf16.gmra.mxu0 %v2519
      %v2784 = vpop.f32.mrf.mxu0
      %v2785 = vadd.f32 %v2481, %v2784
      %v2786 = vpop.f32.mrf.mxu0
      %v2787 = vpop.f32.mrf.mxu0
      %v2788 = vadd.f32 %v2481, %v2787
      %v2789 = vpop.f32.mrf.mxu0
      %2790 = vmatprep.mubr.bf16.mxu0 0
      %2791 = vmatmul.mubr.bf16.gmra.mxu0 %v2522
      %v2792 = vpop.f32.mrf.mxu0
      %v2793 = vadd.f32 %v2481, %v2792
      %v2794 = vpop.f32.mrf.mxu0
      %v2795 = vpop.f32.mrf.mxu0
      %v2796 = vadd.f32 %v2481, %v2795
      %v2797 = vpop.f32.mrf.mxu0
      %2798 = vmatprep.mubr.bf16.mxu0 0
      %2799 = vmatmul.mubr.bf16.gmra.mxu0 %v2525
      %v2800 = vpop.f32.mrf.mxu0
      %v2801 = vadd.f32 %v2481, %v2800
      %v2802 = vpop.f32.mrf.mxu0
      %v2803 = vpop.f32.mrf.mxu0
      %v2804 = vadd.f32 %v2481, %v2803
      %v2805 = vpop.f32.mrf.mxu0
      %2806 = vmatprep.mubr.bf16.mxu0 0
      %2807 = vmatmul.mubr.bf16.gmra.mxu0 %v2528
      %v2808 = vpop.f32.mrf.mxu0
      %v2809 = vadd.f32 %v2481, %v2808
      %v2810 = vpop.f32.mrf.mxu0
      %v2811 = vpop.f32.mrf.mxu0
      %v2812 = vadd.f32 %v2481, %v2811
      %v2813 = vpop.f32.mrf.mxu0
      %2814 = vmatprep.mubr.bf16.mxu0 0
      %2815 = vmatmul.mubr.bf16.gmra.mxu0 %v2531
      %v2816 = vpop.f32.mrf.mxu0
      %v2817 = vadd.f32 %v2481, %v2816
      %v2818 = vpop.f32.mrf.mxu0
      %v2819 = vpop.f32.mrf.mxu0
      %v2820 = vadd.f32 %v2481, %v2819
      %v2821 = vpop.f32.mrf.mxu0
      %2822 = vmatprep.mubr.bf16.mxu0 0
      %2823 = vmatmul.mubr.bf16.gmra.mxu0 %v2534
      %v2824 = vpop.f32.mrf.mxu0
      %v2825 = vadd.f32 %v2481, %v2824
      %v2826 = vpop.f32.mrf.mxu0
      %v2827 = vpop.f32.mrf.mxu0
      %v2828 = vadd.f32 %v2481, %v2827
      %v2829 = vpop.f32.mrf.mxu0
      %2830 = vmatprep.mubr.bf16.mxu0 0
      %2831 = vmatmul.mubr.bf16.gmra.mxu0 %v2537
      %v2832 = vpop.f32.mrf.mxu0
      %v2833 = vadd.f32 %v2481, %v2832
      %v2834 = vpop.f32.mrf.mxu0
      %v2835 = vpop.f32.mrf.mxu0
      %v2836 = vadd.f32 %v2481, %v2835
      %v2837 = vpop.f32.mrf.mxu0
      %2838 = vmatprep.mubr.bf16.mxu0 0
      %2839 = vmatmul.mubr.bf16.gmra.mxu0 %v2540
      %v2840 = vpop.f32.mrf.mxu0
      %v2841 = vadd.f32 %v2481, %v2840
      %v2842 = vpop.f32.mrf.mxu0
      %v2843 = vpop.f32.mrf.mxu0
      %v2844 = vadd.f32 %v2481, %v2843
      %v2845 = vpop.f32.mrf.mxu0
      %2846 = vmatprep.mubr.bf16.mxu0 0
      %2847 = vmatmul.mubr.bf16.gmra.mxu0 %v2543
      %v2848 = vpop.f32.mrf.mxu0
      %v2849 = vadd.f32 %v2481, %v2848
      %v2850 = vpop.f32.mrf.mxu0
      %v2851 = vpop.f32.mrf.mxu0
      %v2852 = vadd.f32 %v2481, %v2851
      %v2853 = vpop.f32.mrf.mxu0
      %2854 = vmatprep.mubr.bf16.mxu0 0
      %2855 = vmatmul.mubr.bf16.gmra.mxu0 %v2546
      %v2856 = vpop.f32.mrf.mxu0
      %v2857 = vadd.f32 %v2481, %v2856
      %v2858 = vpop.f32.mrf.mxu0
      %v2859 = vpop.f32.mrf.mxu0
      %v2860 = vadd.f32 %v2481, %v2859
      %v2861 = vpop.f32.mrf.mxu0
      %2862 = vmatprep.mubr.bf16.mxu0 0
      %2863 = vmatmul.mubr.bf16.gmra.mxu0 %v2549
      %v2864 = vpop.f32.mrf.mxu0
      %v2865 = vadd.f32 %v2481, %v2864
      %v2866 = vpop.f32.mrf.mxu0
      %v2867 = vpop.f32.mrf.mxu0
      %v2868 = vadd.f32 %v2481, %v2867
      %v2869 = vpop.f32.mrf.mxu0
      %2870 = vmatprep.mubr.bf16.mxu0 0
      %2871 = vmatmul.mubr.bf16.gmra.mxu0 %v2552
      %v2872 = vpop.f32.mrf.mxu0
      %v2873 = vadd.f32 %v2481, %v2872
      %v2874 = vpop.f32.mrf.mxu0
      %v2875 = vpop.f32.mrf.mxu0
      %v2876 = vadd.f32 %v2481, %v2875
      %v2877 = vpop.f32.mrf.mxu0
      %2878 = vmatprep.mubr.bf16.mxu0 0
      %2879 = vmatmul.mubr.bf16.gmra.mxu0 %v2555
      %v2880 = vpop.f32.mrf.mxu0
      %v2881 = vadd.f32 %v2481, %v2880
      %v2882 = vpop.f32.mrf.mxu0
      %v2883 = vpop.f32.mrf.mxu0
      %v2884 = vadd.f32 %v2481, %v2883
      %v2885 = vpop.f32.mrf.mxu0
      %2886 = vmatprep.mubr.bf16.mxu0 0
      %2887 = vmatmul.mubr.bf16.gmra.mxu0 %v2558
      %v2888 = vpop.f32.mrf.mxu0
      %v2889 = vadd.f32 %v2481, %v2888
      %v2890 = vpop.f32.mrf.mxu0
      %v2891 = vpop.f32.mrf.mxu0
      %v2892 = vadd.f32 %v2481, %v2891
      %v2893 = vpop.f32.mrf.mxu0
      %2894 = vmatprep.mubr.bf16.mxu0 0
      %2895 = vmatmul.mubr.bf16.gmra.mxu0 %v2561
      %v2896 = vpop.f32.mrf.mxu0
      %v2897 = vadd.f32 %v2481, %v2896
      %v2898 = vpop.f32.mrf.mxu0
      %v2899 = vpop.f32.mrf.mxu0
      %v2900 = vadd.f32 %v2481, %v2899
      %v2901 = vpop.f32.mrf.mxu0
      %2902 = vmatprep.mubr.bf16.mxu0 0
      %2903 = vmatmul.mubr.bf16.gmra.mxu0 %v2564
      %v2904 = vpop.f32.mrf.mxu0
      %v2905 = vadd.f32 %v2481, %v2904
      %v2906 = vpop.f32.mrf.mxu0
      %v2907 = vpop.f32.mrf.mxu0
      %v2908 = vadd.f32 %v2481, %v2907
      %v2909 = vpop.f32.mrf.mxu0
      %2910 = vmatprep.mubr.bf16.mxu0 0
      %2911 = vmatmul.mubr.bf16.gmra.mxu0 %v2567
      %v2912 = vpop.f32.mrf.mxu0
      %v2913 = vadd.f32 %v2481, %v2912
      %v2914 = vpop.f32.mrf.mxu0
      %v2915 = vpop.f32.mrf.mxu0
      %v2916 = vadd.f32 %v2481, %v2915
      %v2917 = vpop.f32.mrf.mxu0
      %2918 = vmatprep.mubr.bf16.mxu0 0
      %2919 = vmatmul.mubr.bf16.gmra.mxu0 %v2570
      %v2920 = vpop.f32.mrf.mxu0
      %v2921 = vadd.f32 %v2481, %v2920
      %v2922 = vpop.f32.mrf.mxu0
      %v2923 = vpop.f32.mrf.mxu0
      %v2924 = vadd.f32 %v2481, %v2923
      %v2925 = vpop.f32.mrf.mxu0
      %2926 = vmatprep.mubr.bf16.mxu0 0
      %2927 = vmatmul.mubr.bf16.gmra.mxu0 %v2573
      %v2928 = vpop.f32.mrf.mxu0
      %v2929 = vadd.f32 %v2481, %v2928
      %v2930 = vpop.f32.mrf.mxu0
      %v2931 = vpop.f32.mrf.mxu0
      %v2932 = vadd.f32 %v2481, %v2931
      %v2933 = vpop.f32.mrf.mxu0
      %2934 = vmatprep.mubr.bf16.mxu0 0
      %2935 = vmatmul.mubr.bf16.gmra.mxu0 %v2576
      %v2936 = vpop.f32.mrf.mxu0
      %v2937 = vadd.f32 %v2481, %v2936
      %v2938 = vpop.f32.mrf.mxu0
      %v2939 = vpop.f32.mrf.mxu0
      %v2940 = vadd.f32 %v2481, %v2939
      %v2941 = vpop.f32.mrf.mxu0
      %2942 = vmatprep.mubr.bf16.mxu0 0
      %2943 = vmatmul.mubr.bf16.gmra.mxu0 %v2579
      %v2944 = vpop.f32.mrf.mxu0
      %v2945 = vadd.f32 %v2481, %v2944
      %v2946 = vpop.f32.mrf.mxu0
      %v2947 = vpop.f32.mrf.mxu0
      %v2948 = vadd.f32 %v2481, %v2947
      %v2949 = vpop.f32.mrf.mxu0
      %2950 = vmatprep.mubr.bf16.mxu0 0
      %2951 = vmatmul.mubr.bf16.gmra.mxu0 %v2582
      %v2952 = vpop.f32.mrf.mxu0
      %v2953 = vadd.f32 %v2481, %v2952
      %v2954 = vpop.f32.mrf.mxu0
      %v2955 = vpop.f32.mrf.mxu0
      %v2956 = vadd.f32 %v2481, %v2955
      %v2957 = vpop.f32.mrf.mxu0
      %2958 = vmatprep.mubr.bf16.mxu0 0
      %2959 = vmatmul.mubr.bf16.gmra.mxu0 %v2585
      %v2960 = vpop.f32.mrf.mxu0
      %v2961 = vadd.f32 %v2481, %v2960
      %v2962 = vpop.f32.mrf.mxu0
      %v2963 = vpop.f32.mrf.mxu0
      %v2964 = vadd.f32 %v2481, %v2963
      %v2965 = vpop.f32.mrf.mxu0
      %2966 = vmatprep.mubr.bf16.mxu0 0
      %2967 = vmatmul.mubr.bf16.gmra.mxu0 %v2588
      %v2968 = vpop.f32.mrf.mxu0
      %v2969 = vadd.f32 %v2481, %v2968
      %v2970 = vpop.f32.mrf.mxu0
      %v2971 = vpop.f32.mrf.mxu0
      %v2972 = vadd.f32 %v2481, %v2971
      %v2973 = vpop.f32.mrf.mxu0
      %2974 = vmatprep.mubr.bf16.mxu0 0
      %2975 = vmatmul.mubr.bf16.gmra.mxu0 %v2591
      %v2976 = vpop.f32.mrf.mxu0
      %v2977 = vadd.f32 %v2481, %v2976
      %v2978 = vpop.f32.mrf.mxu0
      %v2979 = vpop.f32.mrf.mxu0
      %v2980 = vadd.f32 %v2481, %v2979
      %v2981 = vpop.f32.mrf.mxu0
      %2982 = vmatprep.mubr.bf16.mxu0 0
      %2983 = vmatmul.mubr.bf16.gmra.mxu0 %v2594
      %v2984 = vpop.f32.mrf.mxu0
      %v2985 = vadd.f32 %v2481, %v2984
      %v2986 = vpop.f32.mrf.mxu0
      %v2987 = vpop.f32.mrf.mxu0
      %v2988 = vadd.f32 %v2481, %v2987
      %v2989 = vpop.f32.mrf.mxu0
      %2990 = vmatprep.mubr.bf16.mxu0 0
      %2991 = vmatmul.mubr.bf16.gmra.mxu0 %v2597
      %v2992 = vpop.f32.mrf.mxu0
      %v2993 = vadd.f32 %v2481, %v2992
      %v2994 = vpop.f32.mrf.mxu0
      %v2995 = vpop.f32.mrf.mxu0
      %v2996 = vadd.f32 %v2481, %v2995
      %v2997 = vpop.f32.mrf.mxu0
      %2998 = vmatprep.mubr.bf16.mxu0 0
      %2999 = vmatmul.mubr.bf16.gmra.mxu0 %v2600
      %v3000 = vpop.f32.mrf.mxu0
      %v3001 = vadd.f32 %v2481, %v3000
      %v3002 = vpop.f32.mrf.mxu0
      %v3003 = vpop.f32.mrf.mxu0
      %v3004 = vadd.f32 %v2481, %v3003
      %v3005 = vpop.f32.mrf.mxu0
      %3006 = vmatprep.mubr.bf16.mxu0 0
      %3007 = vmatmul.mubr.bf16.gmra.mxu0 %v2603
      %v3008 = vpop.f32.mrf.mxu0
      %v3009 = vadd.f32 %v2481, %v3008
      %v3010 = vpop.f32.mrf.mxu0
      %v3011 = vpop.f32.mrf.mxu0
      %v3012 = vadd.f32 %v2481, %v3011
      %v3013 = vpop.f32.mrf.mxu0
      %3014 = vmatprep.mubr.bf16.mxu0 0
      %3015 = vmatmul.mubr.bf16.gmra.mxu0 %v2606
      %v3016 = vpop.f32.mrf.mxu0
      %v3017 = vadd.f32 %v2481, %v3016
      %v3018 = vpop.f32.mrf.mxu0
      %v3019 = vpop.f32.mrf.mxu0
      %v3020 = vadd.f32 %v2481, %v3019
      %v3021 = vpop.f32.mrf.mxu0
      %3022 = vmatprep.mubr.bf16.mxu0 0
      %3023 = vmatmul.mubr.bf16.gmra.mxu0 %v2609
      %v3024 = vpop.f32.mrf.mxu0
      %v3025 = vadd.f32 %v2481, %v3024
      %v3026 = vpop.f32.mrf.mxu0
      %v3027 = vpop.f32.mrf.mxu0
      %v3028 = vadd.f32 %v2481, %v3027
      %v3029 = vpop.f32.mrf.mxu0
      %3030 = vmatprep.mubr.bf16.mxu0 0
      %3031 = vmatmul.mubr.bf16.gmra.mxu0 %v2612
      %v3032 = vpop.f32.mrf.mxu0
      %v3033 = vadd.f32 %v2481, %v3032
      %v3034 = vpop.f32.mrf.mxu0
      %v3035 = vpop.f32.mrf.mxu0
      %v3036 = vadd.f32 %v2481, %v3035
      %v3037 = vpop.f32.mrf.mxu0
      %3038 = vmatprep.mubr.bf16.mxu0 0
      %3039 = vmatmul.mubr.bf16.gmra.mxu0 %v2615
      %v3040 = vpop.f32.mrf.mxu0
      %v3041 = vadd.f32 %v2481, %v3040
      %v3042 = vpop.f32.mrf.mxu0
      %v3043 = vpop.f32.mrf.mxu0
      %v3044 = vadd.f32 %v2481, %v3043
      %v3045 = vpop.f32.mrf.mxu0
      %3046 = vmatprep.mubr.bf16.mxu0 0
      %3047 = vmatmul.mubr.bf16.gmra.mxu0 %v2618
      %v3048 = vpop.f32.mrf.mxu0
      %v3049 = vadd.f32 %v2481, %v3048
      %v3050 = vpop.f32.mrf.mxu0
      %v3051 = vpop.f32.mrf.mxu0
      %v3052 = vadd.f32 %v2481, %v3051
      %v3053 = vpop.f32.mrf.mxu0
      %3054 = vmatprep.mubr.bf16.mxu0 0
      %3055 = vmatmul.mubr.bf16.gmra.mxu0 %v2621
      %v3056 = vpop.f32.mrf.mxu0
      %v3057 = vadd.f32 %v2481, %v3056
      %v3058 = vpop.f32.mrf.mxu0
      %v3059 = vpop.f32.mrf.mxu0
      %v3060 = vadd.f32 %v2481, %v3059
      %v3061 = vpop.f32.mrf.mxu0
      %3062 = vmatprep.mubr.bf16.mxu0 0
      %3063 = vmatmul.mubr.bf16.gmra.mxu0 %v2624
      %v3064 = vpop.f32.mrf.mxu0
      %v3065 = vadd.f32 %v2481, %v3064
      %v3066 = vpop.f32.mrf.mxu0
      %v3067 = vpop.f32.mrf.mxu0
      %v3068 = vadd.f32 %v2481, %v3067
      %v3069 = vpop.f32.mrf.mxu0
      %3070 = vmatprep.mubr.bf16.mxu0 0
      %3071 = vmatmul.mubr.bf16.gmra.mxu0 %v2627
      %v3072 = vpop.f32.mrf.mxu0
      %v3073 = vadd.f32 %v2481, %v3072
      %v3074 = vpop.f32.mrf.mxu0
      %v3075 = vpop.f32.mrf.mxu0
      %v3076 = vadd.f32 %v2481, %v3075
      %v3077 = vpop.f32.mrf.mxu0
      %3078 = vmatprep.mubr.bf16.mxu0 0
      %3079 = vmatmul.mubr.bf16.gmra.mxu0 %v2630
      %v3080 = vpop.f32.mrf.mxu0
      %v3081 = vadd.f32 %v2481, %v3080
      %v3082 = vpop.f32.mrf.mxu0
      %v3083 = vpop.f32.mrf.mxu0
      %v3084 = vadd.f32 %v2481, %v3083
      %v3085 = vpop.f32.mrf.mxu0
      %3086 = vmatprep.mubr.bf16.mxu0 0
      %3087 = vmatmul.mubr.bf16.gmra.mxu0 %v2633
      %v3088 = vpop.f32.mrf.mxu0
      %v3089 = vadd.f32 %v2481, %v3088
      %v3090 = vpop.f32.mrf.mxu0
      %v3091 = vpop.f32.mrf.mxu0
      %v3092 = vadd.f32 %v2481, %v3091
      %v3093 = vpop.f32.mrf.mxu0
      %3094 = vmatprep.mubr.bf16.mxu0 0
      %3095 = vmatmul.mubr.bf16.gmra.mxu0 %v2636
      %v3096 = vpop.f32.mrf.mxu0
      %v3097 = vadd.f32 %v2481, %v3096
      %v3098 = vpop.f32.mrf.mxu0
      %v3099 = vpop.f32.mrf.mxu0
      %v3100 = vadd.f32 %v2481, %v3099
      %v3101 = vpop.f32.mrf.mxu0
      %3102 = vmatprep.mubr.bf16.mxu0 0
      %3103 = vmatmul.mubr.bf16.gmra.mxu0 %v2639
      %v3104 = vpop.f32.mrf.mxu0
      %v3105 = vadd.f32 %v2481, %v3104
      %v3106 = vpop.f32.mrf.mxu0
      %v3107 = vpop.f32.mrf.mxu0
      %v3108 = vadd.f32 %v2481, %v3107
      %v3109 = vpop.f32.mrf.mxu0
      %3110 = vmatprep.mubr.bf16.mxu0 0
      %3111 = vmatmul.mubr.bf16.gmra.mxu0 %v2642
      %v3112 = vpop.f32.mrf.mxu0
      %v3113 = vadd.f32 %v2481, %v3112
      %v3114 = vpop.f32.mrf.mxu0
      %v3115 = vpop.f32.mrf.mxu0
      %v3116 = vadd.f32 %v2481, %v3115
      %v3117 = vpop.f32.mrf.mxu0
      %3118 = vmatprep.mubr.bf16.mxu0 0
      %3119 = vmatmul.mubr.bf16.gmra.mxu0 %v2645
      %v3120 = vpop.f32.mrf.mxu0
      %v3121 = vadd.f32 %v2481, %v3120
      %v3122 = vpop.f32.mrf.mxu0
      %v3123 = vpop.f32.mrf.mxu0
      %v3124 = vadd.f32 %v2481, %v3123
      %v3125 = vpop.f32.mrf.mxu0
      %3126 = vmatprep.mubr.bf16.mxu0 0
      %3127 = vmatmul.mubr.bf16.gmra.mxu0 %v2648
      %v3128 = vpop.f32.mrf.mxu0
      %v3129 = vadd.f32 %v2481, %v3128
      %v3130 = vpop.f32.mrf.mxu0
      %v3131 = vpop.f32.mrf.mxu0
      %v3132 = vadd.f32 %v2481, %v3131
      %v3133 = vpop.f32.mrf.mxu0
      %3134 = vmatprep.mubr.bf16.mxu0 0
      %3135 = vmatmul.mubr.bf16.gmra.mxu0 %v2651
      %v3136 = vpop.f32.mrf.mxu0
      %v3137 = vadd.f32 %v2481, %v3136
      %v3138 = vpop.f32.mrf.mxu0
      %v3139 = vpop.f32.mrf.mxu0
      %v3140 = vadd.f32 %v2481, %v3139
      %v3141 = vpop.f32.mrf.mxu0
      %3142 = vmatprep.mubr.bf16.mxu0 0
      %3143 = vmatmul.mubr.bf16.gmra.mxu0 %v2654
      %v3144 = vpop.f32.mrf.mxu0
      %v3145 = vadd.f32 %v2481, %v3144
      %v3146 = vpop.f32.mrf.mxu0
      %v3147 = vpop.f32.mrf.mxu0
      %v3148 = vadd.f32 %v2481, %v3147
      %v3149 = vpop.f32.mrf.mxu0
      %3150 = vmatprep.mubr.bf16.mxu0 0
      %3151 = vmatmul.mubr.bf16.gmra.mxu0 %v2657
      %v3152 = vpop.f32.mrf.mxu0
      %v3153 = vadd.f32 %v2481, %v3152
      %v3154 = vpop.f32.mrf.mxu0
      %v3155 = vpop.f32.mrf.mxu0
      %v3156 = vadd.f32 %v2481, %v3155
      %v3157 = vpop.f32.mrf.mxu0
      %3158 = vmatprep.mubr.bf16.mxu0 0
      %3159 = vmatmul.mubr.bf16.gmra.mxu0 %v2660
      %v3160 = vpop.f32.mrf.mxu0
      %v3161 = vadd.f32 %v2481, %v3160
      %v3162 = vpop.f32.mrf.mxu0
      %v3163 = vpop.f32.mrf.mxu0
      %v3164 = vadd.f32 %v2481, %v3163
      %v3165 = vpop.f32.mrf.mxu0
      %3166 = vmatprep.mubr.bf16.mxu0 0
      %3167 = vmatmul.mubr.bf16.gmra.mxu0 %v2663
      %v3168 = vpop.f32.mrf.mxu0
      %v3169 = vadd.f32 %v2481, %v3168
      %v3170 = vpop.f32.mrf.mxu0
      %v3171 = vpop.f32.mrf.mxu0
      %v3172 = vadd.f32 %v2481, %v3171
      %v3173 = vpop.f32.mrf.mxu0
      %3174 = vmatprep.mubr.bf16.mxu0 0
      %3175 = vmatmul.mubr.bf16.gmra.mxu0 %v2666
      %v3176 = vpop.f32.mrf.mxu0
      %v3177 = vadd.f32 %v2481, %v3176
      %v3178 = vpop.f32.mrf.mxu0
      %v3179 = vpop.f32.mrf.mxu0
      %v3180 = vadd.f32 %v2481, %v3179
      %v3181 = vpop.f32.mrf.mxu0
      %3182 = vmatprep.mubr.bf16.mxu0 0
      %3183 = vmatmul.mubr.bf16.gmra.mxu0 %v2669
      %v3184 = vpop.f32.mrf.mxu0
      %v3185 = vadd.f32 %v2481, %v3184
      %v3186 = vpop.f32.mrf.mxu0
      %v3187 = vpop.f32.mrf.mxu0
      %v3188 = vadd.f32 %v2481, %v3187
      %v3189 = vpop.f32.mrf.mxu0
      %3190 = vmatprep.mubr.bf16.mxu0 0
      %3191 = vmatmul.mubr.bf16.gmra.mxu0 %v2672
      %v3192 = vpop.f32.mrf.mxu0
      %v3193 = vadd.f32 %v2481, %v3192
      %v3194 = vpop.f32.mrf.mxu0
      %v3195 = vpop.f32.mrf.mxu0
      %v3196 = vadd.f32 %v2481, %v3195
      %v3197 = vpop.f32.mrf.mxu0
      %3198 = vmatprep.mubr.bf16.mxu0 0
      %3199 = vmatmul.mubr.bf16.gmra.mxu0 %v2675
      %v3200 = vpop.f32.mrf.mxu0
      %v3201 = vadd.f32 %v2481, %v3200
      %v3202 = vpop.f32.mrf.mxu0
      %v3203 = vpop.f32.mrf.mxu0
      %v3204 = vadd.f32 %v2481, %v3203
      %v3205 = vpop.f32.mrf.mxu0
      %3206 = vmatprep.mubr.bf16.mxu0 0
      %3207 = vmatmul.mubr.bf16.gmra.mxu0 %v2678
      %v3208 = vpop.f32.mrf.mxu0
      %v3209 = vadd.f32 %v2481, %v3208
      %v3210 = vpop.f32.mrf.mxu0
      %v3211 = vpop.f32.mrf.mxu0
      %v3212 = vadd.f32 %v2481, %v3211
      %v3213 = vpop.f32.mrf.mxu0
      %3214 = vmatprep.mubr.bf16.mxu0 0
      %3215 = vmatmul.mubr.bf16.gmra.mxu0 %v2681
      %v3216 = vpop.f32.mrf.mxu0
      %v3217 = vadd.f32 %v2481, %v3216
      %v3218 = vpop.f32.mrf.mxu0
      %v3219 = vpop.f32.mrf.mxu0
      %v3220 = vadd.f32 %v2481, %v3219
      %v3221 = vpop.f32.mrf.mxu0
      %3222 = vmatprep.mubr.bf16.mxu0 0
      %3223 = vmatmul.mubr.bf16.gmra.mxu0 %v2684
      %v3224 = vpop.f32.mrf.mxu0
      %v3225 = vadd.f32 %v2481, %v3224
      %v3226 = vpop.f32.mrf.mxu0
      %v3227 = vpop.f32.mrf.mxu0
      %v3228 = vadd.f32 %v2481, %v3227
      %v3229 = vpop.f32.mrf.mxu0
      %3230 = vdwg.mxu0
      %v3231 = vlaneseq
      %v3232 = vshrl.u32 %v3231, 7
      %v3233 = vsub.s32 1, %v3232
      %v3234 = vrot.slane %v319, %v3233
      %vm3235 = vcmp.lt.s32.totalorder %v353, 32
      %v3252 = vunpack.c.l.b16 %v255
      %v3253 = vunpack.c.l.b16 %v256
      %v3254 = vunpack.c.l.b16 %v257
      %v3255 = vunpack.c.l.b16 %v258
      %v3256 = vunpack.c.l.b16 %v259
      %v3257 = vunpack.c.l.b16 %v260
      %v3258 = vunpack.c.l.b16 %v261
      %v3259 = vunpack.c.l.b16 %v262
      %v3260 = vunpack.c.l.b16 %v263
      %v3261 = vunpack.c.l.b16 %v264
      %v3262 = vunpack.c.l.b16 %v265
      %v3263 = vunpack.c.l.b16 %v266
      %v3264 = vunpack.c.l.b16 %v267
      %v3265 = vunpack.c.l.b16 %v268
      %v3266 = vunpack.c.l.b16 %v269
      %v3267 = vunpack.c.l.b16 %v270
      %v3268 = vpack.c.b16 %v3253, %v3252
      %v3269 = vpack.c.b16 %v3255, %v3254
      %v3270 = vpack.c.b16 %v3257, %v3256
      %v3271 = vpack.c.b16 %v3259, %v3258
      %v3272 = vpack.c.b16 %v3261, %v3260
      %v3273 = vpack.c.b16 %v3263, %v3262
      %v3274 = vpack.c.b16 %v3265, %v3264
      %v3275 = vpack.c.b16 %v3267, %v3266
      %3284 = vmatprep.subr.bf16.mxu0 0
      %3285 = vmatpush1.bf16.msra.mxu0 %v3275
      %3286 = vmatprep.subr.bf16.mxu0 0
      %3287 = vmatpush1.bf16.msra.mxu0 %v3274
      %3288 = vmatprep.subr.bf16.mxu0 0
      %3289 = vmatpush1.bf16.msra.mxu0 %v3273
      %3290 = vmatprep.subr.bf16.mxu0 0
      %3291 = vmatpush1.bf16.msra.mxu0 %v3272
      %3292 = vmatprep.subr.bf16.mxu0 0
      %3293 = vmatpush1.bf16.msra.mxu0 %v3271
      %3294 = vmatprep.subr.bf16.mxu0 0
      %3295 = vmatpush1.bf16.msra.mxu0 %v3270
      %3296 = vmatprep.subr.bf16.mxu0 0
      %3297 = vmatpush1.bf16.msra.mxu0 %v3269
      %3298 = vmatprep.subr.bf16.mxu0 0
      %3299 = vmatpush1.bf16.msra.mxu0 %v3268
      %3300 = vmatprep.subr.bf16.mxu0 0
      %3301 = vmatpush2.bf16.msra.mxu0 0
      %3302 = vmatprep.subr.bf16.mxu0 0
      %3303 = vmatpush2.bf16.msra.mxu0 0
      %3304 = vmatprep.subr.bf16.mxu0 0
      %3305 = vmatpush2.bf16.msra.mxu0 0
      %3306 = vmatprep.subr.bf16.mxu0 0
      %3307 = vmatpush2.bf16.msra.mxu0 0
      %3308 = vmatprep.subr.bf16.mxu0 0
      %3309 = vmatpush2.bf16.msra.mxu0 0
      %3310 = vmatprep.subr.bf16.mxu0 0
      %3311 = vmatpush2.bf16.msra.mxu0 0
      %3312 = vmatprep.subr.bf16.mxu0 0
      %3313 = vmatpush2.bf16.msra.mxu0 0
      %3314 = vmatprep.subr.bf16.mxu0 0
      %3315 = vmatpush2.bf16.msra.mxu0 0
      %3316 = vmatprep.mubr.bf16.mxu0 0
      %3317 = vmatmul.mubr.bf16.gmra.mxu0 0
      %v3318 = vpop.f32.mrf.mxu0
      %v3319 = vadd.f32 0.0, %v3318
      %v3320 = vpop.f32.mrf.mxu0
      %v3321 = vpop.f32.mrf.mxu0
      %v3322 = vadd.f32 0.0, %v3321
      %v3323 = vpop.f32.mrf.mxu0
      %3324 = vmatprep.mubr.bf16.mxu0 0
      %3325 = vmatmul.mubr.bf16.gmra.mxu0 0
      %v3326 = vpop.f32.mrf.mxu0
      %v3327 = vadd.f32 0.0, %v3326
      %v3328 = vpop.f32.mrf.mxu0
      %v3329 = vpop.f32.mrf.mxu0
      %v3330 = vadd.f32 0.0, %v3329
      %v3331 = vpop.f32.mrf.mxu0
      %3332 = vmatprep.mubr.bf16.mxu0 0
      %3333 = vmatmul.mubr.bf16.gmra.mxu0 0
      %v3334 = vpop.f32.mrf.mxu0
      %v3335 = vadd.f32 0.0, %v3334
      %v3336 = vpop.f32.mrf.mxu0
      %v3337 = vpop.f32.mrf.mxu0
      %v3338 = vadd.f32 0.0, %v3337
      %v3339 = vpop.f32.mrf.mxu0
      %3340 = vmatprep.mubr.bf16.mxu0 0
      %3341 = vmatmul.mubr.bf16.gmra.mxu0 0
      %v3342 = vpop.f32.mrf.mxu0
      %v3343 = vadd.f32 0.0, %v3342
      %v3344 = vpop.f32.mrf.mxu0
      %v3345 = vpop.f32.mrf.mxu0
      %v3346 = vadd.f32 0.0, %v3345
      %v3347 = vpop.f32.mrf.mxu0
      %3348 = vmatprep.mubr.bf16.mxu0 0
      %3349 = vmatmul.mubr.bf16.gmra.mxu0 0
      %v3350 = vpop.f32.mrf.mxu0
      %v3351 = vadd.f32 0.0, %v3350
      %v3352 = vpop.f32.mrf.mxu0
      %v3353 = vpop.f32.mrf.mxu0
      %v3354 = vadd.f32 0.0, %v3353
      %v3355 = vpop.f32.mrf.mxu0
      %3356 = vmatprep.mubr.bf16.mxu0 0
      %3357 = vmatmul.mubr.bf16.gmra.mxu0 0
      %v3358 = vpop.f32.mrf.mxu0
      %v3359 = vadd.f32 0.0, %v3358
      %v3360 = vpop.f32.mrf.mxu0
      %v3361 = vpop.f32.mrf.mxu0
      %v3362 = vadd.f32 0.0, %v3361
      %v3363 = vpop.f32.mrf.mxu0
      %3364 = vmatprep.mubr.bf16.mxu0 0
      %3365 = vmatmul.mubr.bf16.gmra.mxu0 0
      %v3366 = vpop.f32.mrf.mxu0
      %v3367 = vadd.f32 0.0, %v3366
      %v3368 = vpop.f32.mrf.mxu0
      %v3369 = vpop.f32.mrf.mxu0
      %v3370 = vadd.f32 0.0, %v3369
      %v3371 = vpop.f32.mrf.mxu0
      %3372 = vmatprep.mubr.bf16.mxu0 0
      %3373 = vmatmul.mubr.bf16.gmra.mxu0 0
      %v3374 = vpop.f32.mrf.mxu0
      %v3375 = vadd.f32 0.0, %v3374
      %v3376 = vpop.f32.mrf.mxu0
      %v3377 = vpop.f32.mrf.mxu0
      %v3378 = vadd.f32 0.0, %v3377
      %v3379 = vpop.f32.mrf.mxu0
      %3380 = vdwg.mxu0
      %v3381 = vadd.f32 %v2721, %v3319
      %v3382 = vadd.f32 %v2724, %v3322
      %v3383 = vadd.f32 %v2729, %v3327
      %v3384 = vadd.f32 %v2732, %v3330
      %v3385 = vadd.f32 %v2737, %v3335
      %v3386 = vadd.f32 %v2740, %v3338
      %v3387 = vadd.f32 %v2745, %v3343
      %v3388 = vadd.f32 %v2748, %v3346
      %v3389 = vadd.f32 %v2753, %v3351
      %v3390 = vadd.f32 %v2756, %v3354
      %v3391 = vadd.f32 %v2761, %v3359
      %v3392 = vadd.f32 %v2764, %v3362
      %v3393 = vadd.f32 %v2769, %v3367
      %v3394 = vadd.f32 %v2772, %v3370
      %v3395 = vadd.f32 %v2777, %v3375
      %v3396 = vadd.f32 %v2780, %v3378
      %v3397 = vsub.f32 0.0, %v3381
      %v3398 = vsub.f32 0.0, %v3382
      %v3399 = vsub.f32 0.0, %v3383
      %v3400 = vsub.f32 0.0, %v3384
      %v3401 = vsub.f32 0.0, %v3385
      %v3402 = vsub.f32 0.0, %v3386
      %v3403 = vsub.f32 0.0, %v3387
      %v3404 = vsub.f32 0.0, %v3388
      %v3405 = vsub.f32 0.0, %v3389
      %v3406 = vsub.f32 0.0, %v3390
      %v3407 = vsub.f32 0.0, %v3391
      %v3408 = vsub.f32 0.0, %v3392
      %v3409 = vsub.f32 0.0, %v3393
      %v3410 = vsub.f32 0.0, %v3394
      %v3411 = vsub.f32 0.0, %v3395
      %v3412 = vsub.f32 0.0, %v3396
      %v3413 = vmul.f32 %v3397, 1.442695
      %v3414 = vpow.pop %v3413
      %v3415 = vmul.f32 %v3398, 1.442695
      %v3416 = vpow.pop %v3415
      %v3417 = vmul.f32 %v3399, 1.442695
      %v3418 = vpow.pop %v3417
      %v3419 = vmul.f32 %v3400, 1.442695
      %v3420 = vpow.pop %v3419
      %v3421 = vmul.f32 %v3401, 1.442695
      %v3422 = vpow.pop %v3421
      %v3423 = vmul.f32 %v3402, 1.442695
      %v3424 = vpow.pop %v3423
      %v3425 = vmul.f32 %v3403, 1.442695
      %v3426 = vpow.pop %v3425
      %v3427 = vmul.f32 %v3404, 1.442695
      %v3428 = vpow.pop %v3427
      %v3429 = vmul.f32 %v3405, 1.442695
      %v3430 = vpow.pop %v3429
      %v3431 = vmul.f32 %v3406, 1.442695
      %v3432 = vpow.pop %v3431
      %v3433 = vmul.f32 %v3407, 1.442695
      %v3434 = vpow.pop %v3433
      %v3435 = vmul.f32 %v3408, 1.442695
      %v3436 = vpow.pop %v3435
      %v3437 = vmul.f32 %v3409, 1.442695
      %v3438 = vpow.pop %v3437
      %v3439 = vmul.f32 %v3410, 1.442695
      %v3440 = vpow.pop %v3439
      %v3441 = vmul.f32 %v3411, 1.442695
      %v3442 = vpow.pop %v3441
      %v3443 = vmul.f32 %v3412, 1.442695
      %v3444 = vpow.pop %v3443
      %v3445 = vadd.f32 %v3414, 1.0
      %v3446 = vadd.f32 %v3416, 1.0
      %v3447 = vadd.f32 %v3418, 1.0
      %v3448 = vadd.f32 %v3420, 1.0
      %v3449 = vadd.f32 %v3422, 1.0
      %v3450 = vadd.f32 %v3424, 1.0
      %v3451 = vadd.f32 %v3426, 1.0
      %v3452 = vadd.f32 %v3428, 1.0
      %v3453 = vadd.f32 %v3430, 1.0
      %v3454 = vadd.f32 %v3432, 1.0
      %v3455 = vadd.f32 %v3434, 1.0
      %v3456 = vadd.f32 %v3436, 1.0
      %v3457 = vadd.f32 %v3438, 1.0
      %v3458 = vadd.f32 %v3440, 1.0
      %v3459 = vadd.f32 %v3442, 1.0
      %v3460 = vadd.f32 %v3444, 1.0
      %v3461 = vrcp.pop %v3445
      %v3462 = vrcp.pop %v3446
      %v3463 = vrcp.pop %v3447
      %v3464 = vrcp.pop %v3448
      %v3465 = vrcp.pop %v3449
      %v3466 = vrcp.pop %v3450
      %v3467 = vrcp.pop %v3451
      %v3468 = vrcp.pop %v3452
      %v3469 = vrcp.pop %v3453
      %v3470 = vrcp.pop %v3454
      %v3471 = vrcp.pop %v3455
      %v3472 = vrcp.pop %v3456
      %v3473 = vrcp.pop %v3457
      %v3474 = vrcp.pop %v3458
      %v3475 = vrcp.pop %v3459
      %v3476 = vrcp.pop %v3460
      %v3477 = vtanh.pop %v3381
      %v3478 = vtanh.pop %v3382
      %v3479 = vtanh.pop %v3383
      %v3480 = vtanh.pop %v3384
      %v3481 = vtanh.pop %v3385
      %v3482 = vtanh.pop %v3386
      %v3483 = vtanh.pop %v3387
      %v3484 = vtanh.pop %v3388
      %v3485 = vtanh.pop %v3389
      %v3486 = vtanh.pop %v3390
      %v3487 = vtanh.pop %v3391
      %v3488 = vtanh.pop %v3392
      %v3489 = vtanh.pop %v3393
      %v3490 = vtanh.pop %v3394
      %v3491 = vtanh.pop %v3395
      %v3492 = vtanh.pop %v3396
      %3493 = vrot.lane.b32.xlu0 %v3477, 64
      %v3494 = vpop.permute.xlu0 %3493
      %3495 = vrot.lane.b32.xlu0 %v3478, 64
      %v3496 = vpop.permute.xlu0 %3495
      %3497 = vrot.lane.b32.xlu0 %v3479, 64
      %v3498 = vpop.permute.xlu0 %3497
      %3499 = vrot.lane.b32.xlu0 %v3480, 64
      %v3500 = vpop.permute.xlu0 %3499
      %3501 = vrot.lane.b32.xlu0 %v3481, 64
      %v3502 = vpop.permute.xlu0 %3501
      %3503 = vrot.lane.b32.xlu0 %v3482, 64
      %v3504 = vpop.permute.xlu0 %3503
      %3505 = vrot.lane.b32.xlu0 %v3483, 64
      %v3506 = vpop.permute.xlu0 %3505
      %3507 = vrot.lane.b32.xlu0 %v3484, 64
      %v3508 = vpop.permute.xlu0 %3507
      %3509 = vrot.lane.b32.xlu0 %v3485, 64
      %v3510 = vpop.permute.xlu0 %3509
      %3511 = vrot.lane.b32.xlu0 %v3486, 64
      %v3512 = vpop.permute.xlu0 %3511
      %3513 = vrot.lane.b32.xlu0 %v3487, 64
      %v3514 = vpop.permute.xlu0 %3513
      %3515 = vrot.lane.b32.xlu0 %v3488, 64
      %v3516 = vpop.permute.xlu0 %3515
      %3517 = vrot.lane.b32.xlu0 %v3489, 64
      %v3518 = vpop.permute.xlu0 %3517
      %3519 = vrot.lane.b32.xlu0 %v3490, 64
      %v3520 = vpop.permute.xlu0 %3519
      %3521 = vrot.lane.b32.xlu0 %v3491, 64
      %v3522 = vpop.permute.xlu0 %3521
      %3523 = vrot.lane.b32.xlu0 %v3492, 64
      %v3524 = vpop.permute.xlu0 %3523
      %v3525 = vmul.f32 %v3461, %v3494
      %v3526 = vmul.f32 %v3462, %v3496
      %v3527 = vmul.f32 %v3463, %v3498
      %v3528 = vmul.f32 %v3464, %v3500
      %v3529 = vmul.f32 %v3465, %v3502
      %v3530 = vmul.f32 %v3466, %v3504
      %v3531 = vmul.f32 %v3467, %v3506
      %v3532 = vmul.f32 %v3468, %v3508
      %v3533 = vmul.f32 %v3469, %v3510
      %v3534 = vmul.f32 %v3470, %v3512
      %v3535 = vmul.f32 %v3471, %v3514
      %v3536 = vmul.f32 %v3472, %v3516
      %v3537 = vmul.f32 %v3473, %v3518
      %v3538 = vmul.f32 %v3474, %v3520
      %v3539 = vmul.f32 %v3475, %v3522
      %v3540 = vmul.f32 %v3476, %v3524
      %3541 = vrot.lane.b32.xlu0 0.0, 32
      %v3542 = vpop.permute.xlu0 %3541
      %v3543 = vmul.f32 %v3461, %v3542
      %v3544 = vmul.f32 %v3462, %v3542
      %v3545 = vmul.f32 %v3463, %v3542
      %v3546 = vmul.f32 %v3464, %v3542
      %v3547 = vmul.f32 %v3465, %v3542
      %v3548 = vmul.f32 %v3466, %v3542
      %v3549 = vmul.f32 %v3467, %v3542
      %v3550 = vmul.f32 %v3468, %v3542
      %v3551 = vmul.f32 %v3469, %v3542
      %v3552 = vmul.f32 %v3470, %v3542
      %v3553 = vmul.f32 %v3471, %v3542
      %v3554 = vmul.f32 %v3472, %v3542
      %v3555 = vmul.f32 %v3473, %v3542
      %v3556 = vmul.f32 %v3474, %v3542
      %v3557 = vmul.f32 %v3475, %v3542
      %v3558 = vmul.f32 %v3476, %v3542
      %3559 = vrot.lane.b32.xlu0 %v3543, 96
      %v3560 = vpop.permute.xlu0 %3559
      %3561 = vrot.lane.b32.xlu0 %v3544, 96
      %v3562 = vpop.permute.xlu0 %3561
      %3563 = vrot.lane.b32.xlu0 %v3545, 96
      %v3564 = vpop.permute.xlu0 %3563
      %3565 = vrot.lane.b32.xlu0 %v3546, 96
      %v3566 = vpop.permute.xlu0 %3565
      %3567 = vrot.lane.b32.xlu0 %v3547, 96
      %v3568 = vpop.permute.xlu0 %3567
      %3569 = vrot.lane.b32.xlu0 %v3548, 96
      %v3570 = vpop.permute.xlu0 %3569
      %3571 = vrot.lane.b32.xlu0 %v3549, 96
      %v3572 = vpop.permute.xlu0 %3571
      %3573 = vrot.lane.b32.xlu0 %v3550, 96
      %v3574 = vpop.permute.xlu0 %3573
      %3575 = vrot.lane.b32.xlu0 %v3551, 96
      %v3576 = vpop.permute.xlu0 %3575
      %3577 = vrot.lane.b32.xlu0 %v3552, 96
      %v3578 = vpop.permute.xlu0 %3577
      %3579 = vrot.lane.b32.xlu0 %v3553, 96
      %v3580 = vpop.permute.xlu0 %3579
      %3581 = vrot.lane.b32.xlu0 %v3554, 96
      %v3582 = vpop.permute.xlu0 %3581
      %3583 = vrot.lane.b32.xlu0 %v3555, 96
      %v3584 = vpop.permute.xlu0 %3583
      %3585 = vrot.lane.b32.xlu0 %v3556, 96
      %v3586 = vpop.permute.xlu0 %3585
      %3587 = vrot.lane.b32.xlu0 %v3557, 96
      %v3588 = vpop.permute.xlu0 %3587
      %3589 = vrot.lane.b32.xlu0 %v3558, 96
      %v3590 = vpop.permute.xlu0 %3589
      %v3591 = vadd.f32 %v3525, %v3560
      %v3592 = vadd.f32 %v3526, %v3562
      %v3593 = vadd.f32 %v3527, %v3564
      %v3594 = vadd.f32 %v3528, %v3566
      %v3595 = vadd.f32 %v3529, %v3568
      %v3596 = vadd.f32 %v3530, %v3570
      %v3597 = vadd.f32 %v3531, %v3572
      %v3598 = vadd.f32 %v3532, %v3574
      %v3599 = vadd.f32 %v3533, %v3576
      %v3600 = vadd.f32 %v3534, %v3578
      %v3601 = vadd.f32 %v3535, %v3580
      %v3602 = vadd.f32 %v3536, %v3582
      %v3603 = vadd.f32 %v3537, %v3584
      %v3604 = vadd.f32 %v3538, %v3586
      %v3605 = vadd.f32 %v3539, %v3588
      %v3606 = vadd.f32 %v3540, %v3590
      %v3607 = vsel %vm3235, %v3591, 0.0
      %v3608 = vsel %vm3235, %v3592, 0.0
      %v3609 = vsel %vm3235, %v3593, 0.0
      %v3610 = vsel %vm3235, %v3594, 0.0
      %v3611 = vsel %vm3235, %v3595, 0.0
      %v3612 = vsel %vm3235, %v3596, 0.0
      %v3613 = vsel %vm3235, %v3597, 0.0
      %v3614 = vsel %vm3235, %v3598, 0.0
      %v3615 = vsel %vm3235, %v3599, 0.0
      %v3616 = vsel %vm3235, %v3600, 0.0
      %v3617 = vsel %vm3235, %v3601, 0.0
      %v3618 = vsel %vm3235, %v3602, 0.0
      %v3619 = vsel %vm3235, %v3603, 0.0
      %v3620 = vsel %vm3235, %v3604, 0.0
      %v3621 = vsel %vm3235, %v3605, 0.0
      %v3622 = vsel %vm3235, %v3606, 0.0
      %3623 = vrot.lane.b32.xlu0 %v3461, 32
      %v3624 = vpop.permute.xlu0 %3623
      %3625 = vrot.lane.b32.xlu0 %v3462, 32
      %v3626 = vpop.permute.xlu0 %3625
      %3627 = vrot.lane.b32.xlu0 %v3463, 32
      %v3628 = vpop.permute.xlu0 %3627
      %3629 = vrot.lane.b32.xlu0 %v3464, 32
      %v3630 = vpop.permute.xlu0 %3629
      %3631 = vrot.lane.b32.xlu0 %v3465, 32
      %v3632 = vpop.permute.xlu0 %3631
      %3633 = vrot.lane.b32.xlu0 %v3466, 32
      %v3634 = vpop.permute.xlu0 %3633
      %3635 = vrot.lane.b32.xlu0 %v3467, 32
      %v3636 = vpop.permute.xlu0 %3635
      %3637 = vrot.lane.b32.xlu0 %v3468, 32
      %v3638 = vpop.permute.xlu0 %3637
      %3639 = vrot.lane.b32.xlu0 %v3469, 32
      %v3640 = vpop.permute.xlu0 %3639
      %3641 = vrot.lane.b32.xlu0 %v3470, 32
      %v3642 = vpop.permute.xlu0 %3641
      %3643 = vrot.lane.b32.xlu0 %v3471, 32
      %v3644 = vpop.permute.xlu0 %3643
      %3645 = vrot.lane.b32.xlu0 %v3472, 32
      %v3646 = vpop.permute.xlu0 %3645
      %3647 = vrot.lane.b32.xlu0 %v3473, 32
      %v3648 = vpop.permute.xlu0 %3647
      %3649 = vrot.lane.b32.xlu0 %v3474, 32
      %v3650 = vpop.permute.xlu0 %3649
      %3651 = vrot.lane.b32.xlu0 %v3475, 32
      %v3652 = vpop.permute.xlu0 %3651
      %3653 = vrot.lane.b32.xlu0 %v3476, 32
      %v3654 = vpop.permute.xlu0 %3653
      %v3655 = vtanh.pop %v3607
      %v3656 = vtanh.pop %v3608
      %v3657 = vtanh.pop %v3609
      %v3658 = vtanh.pop %v3610
      %v3659 = vtanh.pop %v3611
      %v3660 = vtanh.pop %v3612
      %v3661 = vtanh.pop %v3613
      %v3662 = vtanh.pop %v3614
      %v3663 = vtanh.pop %v3615
      %v3664 = vtanh.pop %v3616
      %v3665 = vtanh.pop %v3617
      %v3666 = vtanh.pop %v3618
      %v3667 = vtanh.pop %v3619
      %v3668 = vtanh.pop %v3620
      %v3669 = vtanh.pop %v3621
      %v3670 = vtanh.pop %v3622
      %v3671 = vmul.f32 %v3624, %v3655
      %v3672 = vmul.f32 %v3626, %v3656
      %v3673 = vmul.f32 %v3628, %v3657
      %v3674 = vmul.f32 %v3630, %v3658
      %v3675 = vmul.f32 %v3632, %v3659
      %v3676 = vmul.f32 %v3634, %v3660
      %v3677 = vmul.f32 %v3636, %v3661
      %v3678 = vmul.f32 %v3638, %v3662
      %v3679 = vmul.f32 %v3640, %v3663
      %v3680 = vmul.f32 %v3642, %v3664
      %v3681 = vmul.f32 %v3644, %v3665
      %v3682 = vmul.f32 %v3646, %v3666
      %v3683 = vmul.f32 %v3648, %v3667
      %v3684 = vmul.f32 %v3650, %v3668
      %v3685 = vmul.f32 %v3652, %v3669
      %v3686 = vmul.f32 %v3654, %v3670
      %v3687 = vadd.f32 %v3671, %v3542
      %v3688 = vadd.f32 %v3672, %v3542
      %v3689 = vadd.f32 %v3673, %v3542
      %v3690 = vadd.f32 %v3674, %v3542
      %v3691 = vadd.f32 %v3675, %v3542
      %v3692 = vadd.f32 %v3676, %v3542
      %v3693 = vadd.f32 %v3677, %v3542
      %v3694 = vadd.f32 %v3678, %v3542
      %v3695 = vadd.f32 %v3679, %v3542
      %v3696 = vadd.f32 %v3680, %v3542
      %v3697 = vadd.f32 %v3681, %v3542
      %v3698 = vadd.f32 %v3682, %v3542
      %v3699 = vadd.f32 %v3683, %v3542
      %v3700 = vadd.f32 %v3684, %v3542
      %v3701 = vadd.f32 %v3685, %v3542
      %v3702 = vadd.f32 %v3686, %v3542
      %v3703 = vpack.c.bf16 %v3688, %v3687
      %v3704 = vpack.c.bf16 %v3690, %v3689
      %v3705 = vpack.c.bf16 %v3692, %v3691
      %v3706 = vpack.c.bf16 %v3694, %v3693
      %v3707 = vpack.c.bf16 %v3696, %v3695
      %v3708 = vpack.c.bf16 %v3698, %v3697
      %v3709 = vpack.c.bf16 %v3700, %v3699
      %v3710 = vpack.c.bf16 %v3702, %v3701
      %v3727 = vunpack.c.l.b16 %v271
      %v3728 = vunpack.c.l.b16 %v272
      %v3729 = vunpack.c.l.b16 %v273
      %v3730 = vunpack.c.l.b16 %v274
      %v3731 = vunpack.c.l.b16 %v275
      %v3732 = vunpack.c.l.b16 %v276
      %v3733 = vunpack.c.l.b16 %v277
      %v3734 = vunpack.c.l.b16 %v278
      %v3735 = vunpack.c.l.b16 %v279
      %v3736 = vunpack.c.l.b16 %v280
      %v3737 = vunpack.c.l.b16 %v281
      %v3738 = vunpack.c.l.b16 %v282
      %v3739 = vunpack.c.l.b16 %v283
      %v3740 = vunpack.c.l.b16 %v284
      %v3741 = vunpack.c.l.b16 %v285
      %v3742 = vunpack.c.l.b16 %v286
      %v3743 = vpack.c.b16 %v3728, %v3727
      %v3744 = vpack.c.b16 %v3730, %v3729
      %v3745 = vpack.c.b16 %v3732, %v3731
      %v3746 = vpack.c.b16 %v3734, %v3733
      %v3747 = vpack.c.b16 %v3736, %v3735
      %v3748 = vpack.c.b16 %v3738, %v3737
      %v3749 = vpack.c.b16 %v3740, %v3739
      %v3750 = vpack.c.b16 %v3742, %v3741
      %3759 = vmatprep.subr.bf16.mxu0 0
      %3760 = vmatpush1.bf16.msra.mxu0 %v3750
      %3761 = vmatprep.subr.bf16.mxu0 0
      %3762 = vmatpush1.bf16.msra.mxu0 %v3749
      %3763 = vmatprep.subr.bf16.mxu0 0
      %3764 = vmatpush1.bf16.msra.mxu0 %v3748
      %3765 = vmatprep.subr.bf16.mxu0 0
      %3766 = vmatpush1.bf16.msra.mxu0 %v3747
      %3767 = vmatprep.subr.bf16.mxu0 0
      %3768 = vmatpush1.bf16.msra.mxu0 %v3746
      %3769 = vmatprep.subr.bf16.mxu0 0
      %3770 = vmatpush1.bf16.msra.mxu0 %v3745
      %3771 = vmatprep.subr.bf16.mxu0 0
      %3772 = vmatpush1.bf16.msra.mxu0 %v3744
      %3773 = vmatprep.subr.bf16.mxu0 0
      %3774 = vmatpush1.bf16.msra.mxu0 %v3743
      %3775 = vmatprep.subr.bf16.mxu0 0
      %3776 = vmatpush2.bf16.msra.mxu0 0
      %3777 = vmatprep.subr.bf16.mxu0 0
      %3778 = vmatpush2.bf16.msra.mxu0 0
      %3779 = vmatprep.subr.bf16.mxu0 0
      %3780 = vmatpush2.bf16.msra.mxu0 0
      %3781 = vmatprep.subr.bf16.mxu0 0
      %3782 = vmatpush2.bf16.msra.mxu0 0
      %3783 = vmatprep.subr.bf16.mxu0 0
      %3784 = vmatpush2.bf16.msra.mxu0 0
      %3785 = vmatprep.subr.bf16.mxu0 0
      %3786 = vmatpush2.bf16.msra.mxu0 0
      %3787 = vmatprep.subr.bf16.mxu0 0
      %3788 = vmatpush2.bf16.msra.mxu0 0
      %3789 = vmatprep.subr.bf16.mxu0 0
      %3790 = vmatpush2.bf16.msra.mxu0 0
      %3791 = vmatprep.mubr.bf16.mxu0 0
      %3792 = vmatmul.mubr.bf16.gmra.mxu0 %v3703
      %v3793 = vpop.f32.mrf.mxu0
      %v3794 = vadd.f32 0.0, %v3793
      %v3795 = vpop.f32.mrf.mxu0
      %v3796 = vpop.f32.mrf.mxu0
      %v3797 = vadd.f32 0.0, %v3796
      %v3798 = vpop.f32.mrf.mxu0
      %3799 = vmatprep.mubr.bf16.mxu0 0
      %3800 = vmatmul.mubr.bf16.gmra.mxu0 %v3704
      %v3801 = vpop.f32.mrf.mxu0
      %v3802 = vadd.f32 0.0, %v3801
      %v3803 = vpop.f32.mrf.mxu0
      %v3804 = vpop.f32.mrf.mxu0
      %v3805 = vadd.f32 0.0, %v3804
      %v3806 = vpop.f32.mrf.mxu0
      %3807 = vmatprep.mubr.bf16.mxu0 0
      %3808 = vmatmul.mubr.bf16.gmra.mxu0 %v3705
      %v3809 = vpop.f32.mrf.mxu0
      %v3810 = vadd.f32 0.0, %v3809
      %v3811 = vpop.f32.mrf.mxu0
      %v3812 = vpop.f32.mrf.mxu0
      %v3813 = vadd.f32 0.0, %v3812
      %v3814 = vpop.f32.mrf.mxu0
      %3815 = vmatprep.mubr.bf16.mxu0 0
      %3816 = vmatmul.mubr.bf16.gmra.mxu0 %v3706
      %v3817 = vpop.f32.mrf.mxu0
      %v3818 = vadd.f32 0.0, %v3817
      %v3819 = vpop.f32.mrf.mxu0
      %v3820 = vpop.f32.mrf.mxu0
      %v3821 = vadd.f32 0.0, %v3820
      %v3822 = vpop.f32.mrf.mxu0
      %3823 = vmatprep.mubr.bf16.mxu0 0
      %3824 = vmatmul.mubr.bf16.gmra.mxu0 %v3707
      %v3825 = vpop.f32.mrf.mxu0
      %v3826 = vadd.f32 0.0, %v3825
      %v3827 = vpop.f32.mrf.mxu0
      %v3828 = vpop.f32.mrf.mxu0
      %v3829 = vadd.f32 0.0, %v3828
      %v3830 = vpop.f32.mrf.mxu0
      %3831 = vmatprep.mubr.bf16.mxu0 0
      %3832 = vmatmul.mubr.bf16.gmra.mxu0 %v3708
      %v3833 = vpop.f32.mrf.mxu0
      %v3834 = vadd.f32 0.0, %v3833
      %v3835 = vpop.f32.mrf.mxu0
      %v3836 = vpop.f32.mrf.mxu0
      %v3837 = vadd.f32 0.0, %v3836
      %v3838 = vpop.f32.mrf.mxu0
      %3839 = vmatprep.mubr.bf16.mxu0 0
      %3840 = vmatmul.mubr.bf16.gmra.mxu0 %v3709
      %v3841 = vpop.f32.mrf.mxu0
      %v3842 = vadd.f32 0.0, %v3841
      %v3843 = vpop.f32.mrf.mxu0
      %v3844 = vpop.f32.mrf.mxu0
      %v3845 = vadd.f32 0.0, %v3844
      %v3846 = vpop.f32.mrf.mxu0
      %3847 = vmatprep.mubr.bf16.mxu0 0
      %3848 = vmatmul.mubr.bf16.gmra.mxu0 %v3710
      %v3849 = vpop.f32.mrf.mxu0
      %v3850 = vadd.f32 0.0, %v3849
      %v3851 = vpop.f32.mrf.mxu0
      %v3852 = vpop.f32.mrf.mxu0
      %v3853 = vadd.f32 0.0, %v3852
      %v3854 = vpop.f32.mrf.mxu0
      %3855 = vdwg.mxu0
      %v3856 = vadd.f32 %v3234, %v3794
      %v3857 = vadd.f32 %v3234, %v3797
      %v3858 = vadd.f32 %v3234, %v3802
      %v3859 = vadd.f32 %v3234, %v3805
      %v3860 = vadd.f32 %v3234, %v3810
      %v3861 = vadd.f32 %v3234, %v3813
      %v3862 = vadd.f32 %v3234, %v3818
      %v3863 = vadd.f32 %v3234, %v3821
      %v3864 = vadd.f32 %v3234, %v3826
      %v3865 = vadd.f32 %v3234, %v3829
      %v3866 = vadd.f32 %v3234, %v3834
      %v3867 = vadd.f32 %v3234, %v3837
      %v3868 = vadd.f32 %v3234, %v3842
      %v3869 = vadd.f32 %v3234, %v3845
      %v3870 = vadd.f32 %v3234, %v3850
      %v3871 = vadd.f32 %v3234, %v3853
      %v3872 = vsub.f32 0.0, %v3856
      %v3873 = vsub.f32 0.0, %v3857
      %v3874 = vsub.f32 0.0, %v3858
      %v3875 = vsub.f32 0.0, %v3859
      %v3876 = vsub.f32 0.0, %v3860
      %v3877 = vsub.f32 0.0, %v3861
      %v3878 = vsub.f32 0.0, %v3862
      %v3879 = vsub.f32 0.0, %v3863
      %v3880 = vsub.f32 0.0, %v3864
      %v3881 = vsub.f32 0.0, %v3865
      %v3882 = vsub.f32 0.0, %v3866
      %v3883 = vsub.f32 0.0, %v3867
      %v3884 = vsub.f32 0.0, %v3868
      %v3885 = vsub.f32 0.0, %v3869
      %v3886 = vsub.f32 0.0, %v3870
      %v3887 = vsub.f32 0.0, %v3871
      %v3888 = vmul.f32 %v3872, 1.442695
      %v3889 = vpow.pop %v3888
      %v3890 = vmul.f32 %v3873, 1.442695
      %v3891 = vpow.pop %v3890
      %v3892 = vmul.f32 %v3874, 1.442695
      %v3893 = vpow.pop %v3892
      %v3894 = vmul.f32 %v3875, 1.442695
      %v3895 = vpow.pop %v3894
      %v3896 = vmul.f32 %v3876, 1.442695
      %v3897 = vpow.pop %v3896
      %v3898 = vmul.f32 %v3877, 1.442695
      %v3899 = vpow.pop %v3898
      %v3900 = vmul.f32 %v3878, 1.442695
      %v3901 = vpow.pop %v3900
      %v3902 = vmul.f32 %v3879, 1.442695
      %v3903 = vpow.pop %v3902
      %v3904 = vmul.f32 %v3880, 1.442695
      %v3905 = vpow.pop %v3904
      %v3906 = vmul.f32 %v3881, 1.442695
      %v3907 = vpow.pop %v3906
      %v3908 = vmul.f32 %v3882, 1.442695
      %v3909 = vpow.pop %v3908
      %v3910 = vmul.f32 %v3883, 1.442695
      %v3911 = vpow.pop %v3910
      %v3912 = vmul.f32 %v3884, 1.442695
      %v3913 = vpow.pop %v3912
      %v3914 = vmul.f32 %v3885, 1.442695
      %v3915 = vpow.pop %v3914
      %v3916 = vmul.f32 %v3886, 1.442695
      %v3917 = vpow.pop %v3916
      %v3918 = vmul.f32 %v3887, 1.442695
      %v3919 = vpow.pop %v3918
      %v3920 = vadd.f32 %v3889, 1.0
      %v3921 = vadd.f32 %v3891, 1.0
      %v3922 = vadd.f32 %v3893, 1.0
      %v3923 = vadd.f32 %v3895, 1.0
      %v3924 = vadd.f32 %v3897, 1.0
      %v3925 = vadd.f32 %v3899, 1.0
      %v3926 = vadd.f32 %v3901, 1.0
      %v3927 = vadd.f32 %v3903, 1.0
      %v3928 = vadd.f32 %v3905, 1.0
      %v3929 = vadd.f32 %v3907, 1.0
      %v3930 = vadd.f32 %v3909, 1.0
      %v3931 = vadd.f32 %v3911, 1.0
      %v3932 = vadd.f32 %v3913, 1.0
      %v3933 = vadd.f32 %v3915, 1.0
      %v3934 = vadd.f32 %v3917, 1.0
      %v3935 = vadd.f32 %v3919, 1.0
      %v3936 = vrcp.pop %v3920
      %v3937 = vrcp.pop %v3921
      %v3938 = vrcp.pop %v3922
      %v3939 = vrcp.pop %v3923
      %v3940 = vrcp.pop %v3924
      %v3941 = vrcp.pop %v3925
      %v3942 = vrcp.pop %v3926
      %v3943 = vrcp.pop %v3927
      %v3944 = vrcp.pop %v3928
      %v3945 = vrcp.pop %v3929
      %v3946 = vrcp.pop %v3930
      %v3947 = vrcp.pop %v3931
      %v3948 = vrcp.pop %v3932
      %v3949 = vrcp.pop %v3933
      %v3950 = vrcp.pop %v3934
      %v3951 = vrcp.pop %v3935
      %v3952 = vtanh.pop %v3856
      %v3953 = vtanh.pop %v3857
      %v3954 = vtanh.pop %v3858
      %v3955 = vtanh.pop %v3859
      %v3956 = vtanh.pop %v3860
      %v3957 = vtanh.pop %v3861
      %v3958 = vtanh.pop %v3862
      %v3959 = vtanh.pop %v3863
      %v3960 = vtanh.pop %v3864
      %v3961 = vtanh.pop %v3865
      %v3962 = vtanh.pop %v3866
      %v3963 = vtanh.pop %v3867
      %v3964 = vtanh.pop %v3868
      %v3965 = vtanh.pop %v3869
      %v3966 = vtanh.pop %v3870
      %v3967 = vtanh.pop %v3871
      %3968 = vrot.lane.b32.xlu0 %v3952, 64
      %v3969 = vpop.permute.xlu0 %3968
      %3970 = vrot.lane.b32.xlu0 %v3953, 64
      %v3971 = vpop.permute.xlu0 %3970
      %3972 = vrot.lane.b32.xlu0 %v3954, 64
      %v3973 = vpop.permute.xlu0 %3972
      %3974 = vrot.lane.b32.xlu0 %v3955, 64
      %v3975 = vpop.permute.xlu0 %3974
      %3976 = vrot.lane.b32.xlu0 %v3956, 64
      %v3977 = vpop.permute.xlu0 %3976
      %3978 = vrot.lane.b32.xlu0 %v3957, 64
      %v3979 = vpop.permute.xlu0 %3978
      %3980 = vrot.lane.b32.xlu0 %v3958, 64
      %v3981 = vpop.permute.xlu0 %3980
      %3982 = vrot.lane.b32.xlu0 %v3959, 64
      %v3983 = vpop.permute.xlu0 %3982
      %3984 = vrot.lane.b32.xlu0 %v3960, 64
      %v3985 = vpop.permute.xlu0 %3984
      %3986 = vrot.lane.b32.xlu0 %v3961, 64
      %v3987 = vpop.permute.xlu0 %3986
      %3988 = vrot.lane.b32.xlu0 %v3962, 64
      %v3989 = vpop.permute.xlu0 %3988
      %3990 = vrot.lane.b32.xlu0 %v3963, 64
      %v3991 = vpop.permute.xlu0 %3990
      %3992 = vrot.lane.b32.xlu0 %v3964, 64
      %v3993 = vpop.permute.xlu0 %3992
      %3994 = vrot.lane.b32.xlu0 %v3965, 64
      %v3995 = vpop.permute.xlu0 %3994
      %3996 = vrot.lane.b32.xlu0 %v3966, 64
      %v3997 = vpop.permute.xlu0 %3996
      %3998 = vrot.lane.b32.xlu0 %v3967, 64
      %v3999 = vpop.permute.xlu0 %3998
      %v4000 = vmul.f32 %v3936, %v3969
      %v4001 = vmul.f32 %v3937, %v3971
      %v4002 = vmul.f32 %v3938, %v3973
      %v4003 = vmul.f32 %v3939, %v3975
      %v4004 = vmul.f32 %v3940, %v3977
      %v4005 = vmul.f32 %v3941, %v3979
      %v4006 = vmul.f32 %v3942, %v3981
      %v4007 = vmul.f32 %v3943, %v3983
      %v4008 = vmul.f32 %v3944, %v3985
      %v4009 = vmul.f32 %v3945, %v3987
      %v4010 = vmul.f32 %v3946, %v3989
      %v4011 = vmul.f32 %v3947, %v3991
      %v4012 = vmul.f32 %v3948, %v3993
      %v4013 = vmul.f32 %v3949, %v3995
      %v4014 = vmul.f32 %v3950, %v3997
      %v4015 = vmul.f32 %v3951, %v3999
      %v4016 = vmul.f32 %v3936, %v3542
      %v4017 = vmul.f32 %v3937, %v3542
      %v4018 = vmul.f32 %v3938, %v3542
      %v4019 = vmul.f32 %v3939, %v3542
      %v4020 = vmul.f32 %v3940, %v3542
      %v4021 = vmul.f32 %v3941, %v3542
      %v4022 = vmul.f32 %v3942, %v3542
      %v4023 = vmul.f32 %v3943, %v3542
      %v4024 = vmul.f32 %v3944, %v3542
      %v4025 = vmul.f32 %v3945, %v3542
      %v4026 = vmul.f32 %v3946, %v3542
      %v4027 = vmul.f32 %v3947, %v3542
      %v4028 = vmul.f32 %v3948, %v3542
      %v4029 = vmul.f32 %v3949, %v3542
      %v4030 = vmul.f32 %v3950, %v3542
      %v4031 = vmul.f32 %v3951, %v3542
      %4032 = vrot.lane.b32.xlu0 %v4016, 96
      %v4033 = vpop.permute.xlu0 %4032
      %4034 = vrot.lane.b32.xlu0 %v4017, 96
      %v4035 = vpop.permute.xlu0 %4034
      %4036 = vrot.lane.b32.xlu0 %v4018, 96
      %v4037 = vpop.permute.xlu0 %4036
      %4038 = vrot.lane.b32.xlu0 %v4019, 96
      %v4039 = vpop.permute.xlu0 %4038
      %4040 = vrot.lane.b32.xlu0 %v4020, 96
      %v4041 = vpop.permute.xlu0 %4040
      %4042 = vrot.lane.b32.xlu0 %v4021, 96
      %v4043 = vpop.permute.xlu0 %4042
      %4044 = vrot.lane.b32.xlu0 %v4022, 96
      %v4045 = vpop.permute.xlu0 %4044
      %4046 = vrot.lane.b32.xlu0 %v4023, 96
      %v4047 = vpop.permute.xlu0 %4046
      %4048 = vrot.lane.b32.xlu0 %v4024, 96
      %v4049 = vpop.permute.xlu0 %4048
      %4050 = vrot.lane.b32.xlu0 %v4025, 96
      %v4051 = vpop.permute.xlu0 %4050
      %4052 = vrot.lane.b32.xlu0 %v4026, 96
      %v4053 = vpop.permute.xlu0 %4052
      %4054 = vrot.lane.b32.xlu0 %v4027, 96
      %v4055 = vpop.permute.xlu0 %4054
      %4056 = vrot.lane.b32.xlu0 %v4028, 96
      %v4057 = vpop.permute.xlu0 %4056
      %4058 = vrot.lane.b32.xlu0 %v4029, 96
      %v4059 = vpop.permute.xlu0 %4058
      %4060 = vrot.lane.b32.xlu0 %v4030, 96
      %v4061 = vpop.permute.xlu0 %4060
      %4062 = vrot.lane.b32.xlu0 %v4031, 96
      %v4063 = vpop.permute.xlu0 %4062
      %v4064 = vadd.f32 %v4000, %v4033
      %v4065 = vadd.f32 %v4001, %v4035
      %v4066 = vadd.f32 %v4002, %v4037
      %v4067 = vadd.f32 %v4003, %v4039
      %v4068 = vadd.f32 %v4004, %v4041
      %v4069 = vadd.f32 %v4005, %v4043
      %v4070 = vadd.f32 %v4006, %v4045
      %v4071 = vadd.f32 %v4007, %v4047
      %v4072 = vadd.f32 %v4008, %v4049
      %v4073 = vadd.f32 %v4009, %v4051
      %v4074 = vadd.f32 %v4010, %v4053
      %v4075 = vadd.f32 %v4011, %v4055
      %v4076 = vadd.f32 %v4012, %v4057
      %v4077 = vadd.f32 %v4013, %v4059
      %v4078 = vadd.f32 %v4014, %v4061
      %v4079 = vadd.f32 %v4015, %v4063
      %v4080 = vsel %vm3235, %v4064, 0.0
      %v4081 = vsel %vm3235, %v4065, 0.0
      %v4082 = vsel %vm3235, %v4066, 0.0
      %v4083 = vsel %vm3235, %v4067, 0.0
      %v4084 = vsel %vm3235, %v4068, 0.0
      %v4085 = vsel %vm3235, %v4069, 0.0
      %v4086 = vsel %vm3235, %v4070, 0.0
      %v4087 = vsel %vm3235, %v4071, 0.0
      %v4088 = vsel %vm3235, %v4072, 0.0
      %v4089 = vsel %vm3235, %v4073, 0.0
      %v4090 = vsel %vm3235, %v4074, 0.0
      %v4091 = vsel %vm3235, %v4075, 0.0
      %v4092 = vsel %vm3235, %v4076, 0.0
      %v4093 = vsel %vm3235, %v4077, 0.0
      %v4094 = vsel %vm3235, %v4078, 0.0
      %v4095 = vsel %vm3235, %v4079, 0.0
      %4096 = vrot.lane.b32.xlu0 %v3936, 32
      %v4097 = vpop.permute.xlu0 %4096
      %4098 = vrot.lane.b32.xlu0 %v3937, 32
      %v4099 = vpop.permute.xlu0 %4098
      %4100 = vrot.lane.b32.xlu0 %v3938, 32
      %v4101 = vpop.permute.xlu0 %4100
      %4102 = vrot.lane.b32.xlu0 %v3939, 32
      %v4103 = vpop.permute.xlu0 %4102
      %4104 = vrot.lane.b32.xlu0 %v3940, 32
      %v4105 = vpop.permute.xlu0 %4104
      %4106 = vrot.lane.b32.xlu0 %v3941, 32
      %v4107 = vpop.permute.xlu0 %4106
      %4108 = vrot.lane.b32.xlu0 %v3942, 32
      %v4109 = vpop.permute.xlu0 %4108
      %4110 = vrot.lane.b32.xlu0 %v3943, 32
      %v4111 = vpop.permute.xlu0 %4110
      %4112 = vrot.lane.b32.xlu0 %v3944, 32
      %v4113 = vpop.permute.xlu0 %4112
      %4114 = vrot.lane.b32.xlu0 %v3945, 32
      %v4115 = vpop.permute.xlu0 %4114
      %4116 = vrot.lane.b32.xlu0 %v3946, 32
      %v4117 = vpop.permute.xlu0 %4116
      %4118 = vrot.lane.b32.xlu0 %v3947, 32
      %v4119 = vpop.permute.xlu0 %4118
      %4120 = vrot.lane.b32.xlu0 %v3948, 32
      %v4121 = vpop.permute.xlu0 %4120
      %4122 = vrot.lane.b32.xlu0 %v3949, 32
      %v4123 = vpop.permute.xlu0 %4122
      %4124 = vrot.lane.b32.xlu0 %v3950, 32
      %v4125 = vpop.permute.xlu0 %4124
      %4126 = vrot.lane.b32.xlu0 %v3951, 32
      %v4127 = vpop.permute.xlu0 %4126
      %v4128 = vtanh.pop %v4080
      %v4129 = vtanh.pop %v4081
      %v4130 = vtanh.pop %v4082
      %v4131 = vtanh.pop %v4083
      %v4132 = vtanh.pop %v4084
      %v4133 = vtanh.pop %v4085
      %v4134 = vtanh.pop %v4086
      %v4135 = vtanh.pop %v4087
      %v4136 = vtanh.pop %v4088
      %v4137 = vtanh.pop %v4089
      %v4138 = vtanh.pop %v4090
      %v4139 = vtanh.pop %v4091
      %v4140 = vtanh.pop %v4092
      %v4141 = vtanh.pop %v4093
      %v4142 = vtanh.pop %v4094
      %v4143 = vtanh.pop %v4095
      %v4144 = vmul.f32 %v4097, %v4128
      %v4145 = vmul.f32 %v4099, %v4129
      %v4146 = vmul.f32 %v4101, %v4130
      %v4147 = vmul.f32 %v4103, %v4131
      %v4148 = vmul.f32 %v4105, %v4132
      %v4149 = vmul.f32 %v4107, %v4133
      %v4150 = vmul.f32 %v4109, %v4134
      %v4151 = vmul.f32 %v4111, %v4135
      %v4152 = vmul.f32 %v4113, %v4136
      %v4153 = vmul.f32 %v4115, %v4137
      %v4154 = vmul.f32 %v4117, %v4138
      %v4155 = vmul.f32 %v4119, %v4139
      %v4156 = vmul.f32 %v4121, %v4140
      %v4157 = vmul.f32 %v4123, %v4141
      %v4158 = vmul.f32 %v4125, %v4142
      %v4159 = vmul.f32 %v4127, %v4143
      %v4160 = vpack.c.bf16 %v3672, %v3671
      %v4161 = vpack.c.bf16 %v3674, %v3673
      %v4162 = vpack.c.bf16 %v3676, %v3675
      %v4163 = vpack.c.bf16 %v3678, %v3677
      %v4164 = vpack.c.bf16 %v3680, %v3679
      %v4165 = vpack.c.bf16 %v3682, %v3681
      %v4166 = vpack.c.bf16 %v3684, %v3683
      %v4167 = vpack.c.bf16 %v3686, %v3685
      %4168 = vmatprep.subr.bf16.mxu0 0
      %4169 = vmatpush1.bf16.msra.mxu0 %v3275
      %4170 = vmatprep.subr.bf16.mxu0 0
      %4171 = vmatpush1.bf16.msra.mxu0 %v3274
      %4172 = vmatprep.subr.bf16.mxu0 0
      %4173 = vmatpush1.bf16.msra.mxu0 %v3273
      %4174 = vmatprep.subr.bf16.mxu0 0
      %4175 = vmatpush1.bf16.msra.mxu0 %v3272
      %4176 = vmatprep.subr.bf16.mxu0 0
      %4177 = vmatpush1.bf16.msra.mxu0 %v3271
      %4178 = vmatprep.subr.bf16.mxu0 0
      %4179 = vmatpush1.bf16.msra.mxu0 %v3270
      %4180 = vmatprep.subr.bf16.mxu0 0
      %4181 = vmatpush1.bf16.msra.mxu0 %v3269
      %4182 = vmatprep.subr.bf16.mxu0 0
      %4183 = vmatpush1.bf16.msra.mxu0 %v3268
      %4184 = vmatprep.subr.bf16.mxu0 0
      %4185 = vmatpush2.bf16.msra.mxu0 0
      %4186 = vmatprep.subr.bf16.mxu0 0
      %4187 = vmatpush2.bf16.msra.mxu0 0
      %4188 = vmatprep.subr.bf16.mxu0 0
      %4189 = vmatpush2.bf16.msra.mxu0 0
      %4190 = vmatprep.subr.bf16.mxu0 0
      %4191 = vmatpush2.bf16.msra.mxu0 0
      %4192 = vmatprep.subr.bf16.mxu0 0
      %4193 = vmatpush2.bf16.msra.mxu0 0
      %4194 = vmatprep.subr.bf16.mxu0 0
      %4195 = vmatpush2.bf16.msra.mxu0 0
      %4196 = vmatprep.subr.bf16.mxu0 0
      %4197 = vmatpush2.bf16.msra.mxu0 0
      %4198 = vmatprep.subr.bf16.mxu0 0
      %4199 = vmatpush2.bf16.msra.mxu0 0
      %4200 = vmatprep.mubr.bf16.mxu0 0
      %4201 = vmatmul.mubr.bf16.gmra.mxu0 %v4160
      %v4202 = vpop.f32.mrf.mxu0
      %v4203 = vadd.f32 0.0, %v4202
      %v4204 = vpop.f32.mrf.mxu0
      %v4205 = vpop.f32.mrf.mxu0
      %v4206 = vadd.f32 0.0, %v4205
      %v4207 = vpop.f32.mrf.mxu0
      %4208 = vmatprep.mubr.bf16.mxu0 0
      %4209 = vmatmul.mubr.bf16.gmra.mxu0 %v4161
      %v4210 = vpop.f32.mrf.mxu0
      %v4211 = vadd.f32 0.0, %v4210
      %v4212 = vpop.f32.mrf.mxu0
      %v4213 = vpop.f32.mrf.mxu0
      %v4214 = vadd.f32 0.0, %v4213
      %v4215 = vpop.f32.mrf.mxu0
      %4216 = vmatprep.mubr.bf16.mxu0 0
      %4217 = vmatmul.mubr.bf16.gmra.mxu0 %v4162
      %v4218 = vpop.f32.mrf.mxu0
      %v4219 = vadd.f32 0.0, %v4218
      %v4220 = vpop.f32.mrf.mxu0
      %v4221 = vpop.f32.mrf.mxu0
      %v4222 = vadd.f32 0.0, %v4221
      %v4223 = vpop.f32.mrf.mxu0
      %4224 = vmatprep.mubr.bf16.mxu0 0
      %4225 = vmatmul.mubr.bf16.gmra.mxu0 %v4163
      %v4226 = vpop.f32.mrf.mxu0
      %v4227 = vadd.f32 0.0, %v4226
      %v4228 = vpop.f32.mrf.mxu0
      %v4229 = vpop.f32.mrf.mxu0
      %v4230 = vadd.f32 0.0, %v4229
      %v4231 = vpop.f32.mrf.mxu0
      %4232 = vmatprep.mubr.bf16.mxu0 0
      %4233 = vmatmul.mubr.bf16.gmra.mxu0 %v4164
      %v4234 = vpop.f32.mrf.mxu0
      %v4235 = vadd.f32 0.0, %v4234
      %v4236 = vpop.f32.mrf.mxu0
      %v4237 = vpop.f32.mrf.mxu0
      %v4238 = vadd.f32 0.0, %v4237
      %v4239 = vpop.f32.mrf.mxu0
      %4240 = vmatprep.mubr.bf16.mxu0 0
      %4241 = vmatmul.mubr.bf16.gmra.mxu0 %v4165
      %v4242 = vpop.f32.mrf.mxu0
      %v4243 = vadd.f32 0.0, %v4242
      %v4244 = vpop.f32.mrf.mxu0
      %v4245 = vpop.f32.mrf.mxu0
      %v4246 = vadd.f32 0.0, %v4245
      %v4247 = vpop.f32.mrf.mxu0
      %4248 = vmatprep.mubr.bf16.mxu0 0
      %4249 = vmatmul.mubr.bf16.gmra.mxu0 %v4166
      %v4250 = vpop.f32.mrf.mxu0
      %v4251 = vadd.f32 0.0, %v4250
      %v4252 = vpop.f32.mrf.mxu0
      %v4253 = vpop.f32.mrf.mxu0
      %v4254 = vadd.f32 0.0, %v4253
      %v4255 = vpop.f32.mrf.mxu0
      %4256 = vmatprep.mubr.bf16.mxu0 0
      %4257 = vmatmul.mubr.bf16.gmra.mxu0 %v4167
      %v4258 = vpop.f32.mrf.mxu0
      %v4259 = vadd.f32 0.0, %v4258
      %v4260 = vpop.f32.mrf.mxu0
      %v4261 = vpop.f32.mrf.mxu0
      %v4262 = vadd.f32 0.0, %v4261
      %v4263 = vpop.f32.mrf.mxu0
      %4264 = vdwg.mxu0
      %v4265 = vadd.f32 %v2785, %v4203
      %v4266 = vadd.f32 %v2788, %v4206
      %v4267 = vadd.f32 %v2793, %v4211
      %v4268 = vadd.f32 %v2796, %v4214
      %v4269 = vadd.f32 %v2801, %v4219
      %v4270 = vadd.f32 %v2804, %v4222
      %v4271 = vadd.f32 %v2809, %v4227
      %v4272 = vadd.f32 %v2812, %v4230
      %v4273 = vadd.f32 %v2817, %v4235
      %v4274 = vadd.f32 %v2820, %v4238
      %v4275 = vadd.f32 %v2825, %v4243
      %v4276 = vadd.f32 %v2828, %v4246
      %v4277 = vadd.f32 %v2833, %v4251
      %v4278 = vadd.f32 %v2836, %v4254
      %v4279 = vadd.f32 %v2841, %v4259
      %v4280 = vadd.f32 %v2844, %v4262
      %v4281 = vsub.f32 0.0, %v4265
      %v4282 = vsub.f32 0.0, %v4266
      %v4283 = vsub.f32 0.0, %v4267
      %v4284 = vsub.f32 0.0, %v4268
      %v4285 = vsub.f32 0.0, %v4269
      %v4286 = vsub.f32 0.0, %v4270
      %v4287 = vsub.f32 0.0, %v4271
      %v4288 = vsub.f32 0.0, %v4272
      %v4289 = vsub.f32 0.0, %v4273
      %v4290 = vsub.f32 0.0, %v4274
      %v4291 = vsub.f32 0.0, %v4275
      %v4292 = vsub.f32 0.0, %v4276
      %v4293 = vsub.f32 0.0, %v4277
      %v4294 = vsub.f32 0.0, %v4278
      %v4295 = vsub.f32 0.0, %v4279
      %v4296 = vsub.f32 0.0, %v4280
      %v4297 = vmul.f32 %v4281, 1.442695
      %v4298 = vpow.pop %v4297
      %v4299 = vmul.f32 %v4282, 1.442695
      %v4300 = vpow.pop %v4299
      %v4301 = vmul.f32 %v4283, 1.442695
      %v4302 = vpow.pop %v4301
      %v4303 = vmul.f32 %v4284, 1.442695
      %v4304 = vpow.pop %v4303
      %v4305 = vmul.f32 %v4285, 1.442695
      %v4306 = vpow.pop %v4305
      %v4307 = vmul.f32 %v4286, 1.442695
      %v4308 = vpow.pop %v4307
      %v4309 = vmul.f32 %v4287, 1.442695
      %v4310 = vpow.pop %v4309
      %v4311 = vmul.f32 %v4288, 1.442695
      %v4312 = vpow.pop %v4311
      %v4313 = vmul.f32 %v4289, 1.442695
      %v4314 = vpow.pop %v4313
      %v4315 = vmul.f32 %v4290, 1.442695
      %v4316 = vpow.pop %v4315
      %v4317 = vmul.f32 %v4291, 1.442695
      %v4318 = vpow.pop %v4317
      %v4319 = vmul.f32 %v4292, 1.442695
      %v4320 = vpow.pop %v4319
      %v4321 = vmul.f32 %v4293, 1.442695
      %v4322 = vpow.pop %v4321
      %v4323 = vmul.f32 %v4294, 1.442695
      %v4324 = vpow.pop %v4323
      %v4325 = vmul.f32 %v4295, 1.442695
      %v4326 = vpow.pop %v4325
      %v4327 = vmul.f32 %v4296, 1.442695
      %v4328 = vpow.pop %v4327
      %v4329 = vadd.f32 %v4298, 1.0
      %v4330 = vadd.f32 %v4300, 1.0
      %v4331 = vadd.f32 %v4302, 1.0
      %v4332 = vadd.f32 %v4304, 1.0
      %v4333 = vadd.f32 %v4306, 1.0
      %v4334 = vadd.f32 %v4308, 1.0
      %v4335 = vadd.f32 %v4310, 1.0
      %v4336 = vadd.f32 %v4312, 1.0
      %v4337 = vadd.f32 %v4314, 1.0
      %v4338 = vadd.f32 %v4316, 1.0
      %v4339 = vadd.f32 %v4318, 1.0
      %v4340 = vadd.f32 %v4320, 1.0
      %v4341 = vadd.f32 %v4322, 1.0
      %v4342 = vadd.f32 %v4324, 1.0
      %v4343 = vadd.f32 %v4326, 1.0
      %v4344 = vadd.f32 %v4328, 1.0
      %v4345 = vrcp.pop %v4329
      %v4346 = vrcp.pop %v4330
      %v4347 = vrcp.pop %v4331
      %v4348 = vrcp.pop %v4332
      %v4349 = vrcp.pop %v4333
      %v4350 = vrcp.pop %v4334
      %v4351 = vrcp.pop %v4335
      %v4352 = vrcp.pop %v4336
      %v4353 = vrcp.pop %v4337
      %v4354 = vrcp.pop %v4338
      %v4355 = vrcp.pop %v4339
      %v4356 = vrcp.pop %v4340
      %v4357 = vrcp.pop %v4341
      %v4358 = vrcp.pop %v4342
      %v4359 = vrcp.pop %v4343
      %v4360 = vrcp.pop %v4344
      %v4361 = vtanh.pop %v4265
      %v4362 = vtanh.pop %v4266
      %v4363 = vtanh.pop %v4267
      %v4364 = vtanh.pop %v4268
      %v4365 = vtanh.pop %v4269
      %v4366 = vtanh.pop %v4270
      %v4367 = vtanh.pop %v4271
      %v4368 = vtanh.pop %v4272
      %v4369 = vtanh.pop %v4273
      %v4370 = vtanh.pop %v4274
      %v4371 = vtanh.pop %v4275
      %v4372 = vtanh.pop %v4276
      %v4373 = vtanh.pop %v4277
      %v4374 = vtanh.pop %v4278
      %v4375 = vtanh.pop %v4279
      %v4376 = vtanh.pop %v4280
      %4377 = vrot.lane.b32.xlu0 %v4361, 64
      %v4378 = vpop.permute.xlu0 %4377
      %4379 = vrot.lane.b32.xlu0 %v4362, 64
      %v4380 = vpop.permute.xlu0 %4379
      %4381 = vrot.lane.b32.xlu0 %v4363, 64
      %v4382 = vpop.permute.xlu0 %4381
      %4383 = vrot.lane.b32.xlu0 %v4364, 64
      %v4384 = vpop.permute.xlu0 %4383
      %4385 = vrot.lane.b32.xlu0 %v4365, 64
      %v4386 = vpop.permute.xlu0 %4385
      %4387 = vrot.lane.b32.xlu0 %v4366, 64
      %v4388 = vpop.permute.xlu0 %4387
      %4389 = vrot.lane.b32.xlu0 %v4367, 64
      %v4390 = vpop.permute.xlu0 %4389
      %4391 = vrot.lane.b32.xlu0 %v4368, 64
      %v4392 = vpop.permute.xlu0 %4391
      %4393 = vrot.lane.b32.xlu0 %v4369, 64
      %v4394 = vpop.permute.xlu0 %4393
      %4395 = vrot.lane.b32.xlu0 %v4370, 64
      %v4396 = vpop.permute.xlu0 %4395
      %4397 = vrot.lane.b32.xlu0 %v4371, 64
      %v4398 = vpop.permute.xlu0 %4397
      %4399 = vrot.lane.b32.xlu0 %v4372, 64
      %v4400 = vpop.permute.xlu0 %4399
      %4401 = vrot.lane.b32.xlu0 %v4373, 64
      %v4402 = vpop.permute.xlu0 %4401
      %4403 = vrot.lane.b32.xlu0 %v4374, 64
      %v4404 = vpop.permute.xlu0 %4403
      %4405 = vrot.lane.b32.xlu0 %v4375, 64
      %v4406 = vpop.permute.xlu0 %4405
      %4407 = vrot.lane.b32.xlu0 %v4376, 64
      %v4408 = vpop.permute.xlu0 %4407
      %v4409 = vmul.f32 %v4345, %v4378
      %v4410 = vmul.f32 %v4346, %v4380
      %v4411 = vmul.f32 %v4347, %v4382
      %v4412 = vmul.f32 %v4348, %v4384
      %v4413 = vmul.f32 %v4349, %v4386
      %v4414 = vmul.f32 %v4350, %v4388
      %v4415 = vmul.f32 %v4351, %v4390
      %v4416 = vmul.f32 %v4352, %v4392
      %v4417 = vmul.f32 %v4353, %v4394
      %v4418 = vmul.f32 %v4354, %v4396
      %v4419 = vmul.f32 %v4355, %v4398
      %v4420 = vmul.f32 %v4356, %v4400
      %v4421 = vmul.f32 %v4357, %v4402
      %v4422 = vmul.f32 %v4358, %v4404
      %v4423 = vmul.f32 %v4359, %v4406
      %v4424 = vmul.f32 %v4360, %v4408
      %4425 = vrot.lane.b32.xlu0 %v3607, 32
      %v4426 = vpop.permute.xlu0 %4425
      %4427 = vrot.lane.b32.xlu0 %v3608, 32
      %v4428 = vpop.permute.xlu0 %4427
      %4429 = vrot.lane.b32.xlu0 %v3609, 32
      %v4430 = vpop.permute.xlu0 %4429
      %4431 = vrot.lane.b32.xlu0 %v3610, 32
      %v4432 = vpop.permute.xlu0 %4431
      %4433 = vrot.lane.b32.xlu0 %v3611, 32
      %v4434 = vpop.permute.xlu0 %4433
      %4435 = vrot.lane.b32.xlu0 %v3612, 32
      %v4436 = vpop.permute.xlu0 %4435
      %4437 = vrot.lane.b32.xlu0 %v3613, 32
      %v4438 = vpop.permute.xlu0 %4437
      %4439 = vrot.lane.b32.xlu0 %v3614, 32
      %v4440 = vpop.permute.xlu0 %4439
      %4441 = vrot.lane.b32.xlu0 %v3615, 32
      %v4442 = vpop.permute.xlu0 %4441
      %4443 = vrot.lane.b32.xlu0 %v3616, 32
      %v4444 = vpop.permute.xlu0 %4443
      %4445 = vrot.lane.b32.xlu0 %v3617, 32
      %v4446 = vpop.permute.xlu0 %4445
      %4447 = vrot.lane.b32.xlu0 %v3618, 32
      %v4448 = vpop.permute.xlu0 %4447
      %4449 = vrot.lane.b32.xlu0 %v3619, 32
      %v4450 = vpop.permute.xlu0 %4449
      %4451 = vrot.lane.b32.xlu0 %v3620, 32
      %v4452 = vpop.permute.xlu0 %4451
      %4453 = vrot.lane.b32.xlu0 %v3621, 32
      %v4454 = vpop.permute.xlu0 %4453
      %4455 = vrot.lane.b32.xlu0 %v3622, 32
      %v4456 = vpop.permute.xlu0 %4455
      %v4457 = vmul.f32 %v4345, %v4426
      %v4458 = vmul.f32 %v4346, %v4428
      %v4459 = vmul.f32 %v4347, %v4430
      %v4460 = vmul.f32 %v4348, %v4432
      %v4461 = vmul.f32 %v4349, %v4434
      %v4462 = vmul.f32 %v4350, %v4436
      %v4463 = vmul.f32 %v4351, %v4438
      %v4464 = vmul.f32 %v4352, %v4440
      %v4465 = vmul.f32 %v4353, %v4442
      %v4466 = vmul.f32 %v4354, %v4444
      %v4467 = vmul.f32 %v4355, %v4446
      %v4468 = vmul.f32 %v4356, %v4448
      %v4469 = vmul.f32 %v4357, %v4450
      %v4470 = vmul.f32 %v4358, %v4452
      %v4471 = vmul.f32 %v4359, %v4454
      %v4472 = vmul.f32 %v4360, %v4456
      %4473 = vrot.lane.b32.xlu0 %v4457, 96
      %v4474 = vpop.permute.xlu0 %4473
      %4475 = vrot.lane.b32.xlu0 %v4458, 96
      %v4476 = vpop.permute.xlu0 %4475
      %4477 = vrot.lane.b32.xlu0 %v4459, 96
      %v4478 = vpop.permute.xlu0 %4477
      %4479 = vrot.lane.b32.xlu0 %v4460, 96
      %v4480 = vpop.permute.xlu0 %4479
      %4481 = vrot.lane.b32.xlu0 %v4461, 96
      %v4482 = vpop.permute.xlu0 %4481
      %4483 = vrot.lane.b32.xlu0 %v4462, 96
      %v4484 = vpop.permute.xlu0 %4483
      %4485 = vrot.lane.b32.xlu0 %v4463, 96
      %v4486 = vpop.permute.xlu0 %4485
      %4487 = vrot.lane.b32.xlu0 %v4464, 96
      %v4488 = vpop.permute.xlu0 %4487
      %4489 = vrot.lane.b32.xlu0 %v4465, 96
      %v4490 = vpop.permute.xlu0 %4489
      %4491 = vrot.lane.b32.xlu0 %v4466, 96
      %v4492 = vpop.permute.xlu0 %4491
      %4493 = vrot.lane.b32.xlu0 %v4467, 96
      %v4494 = vpop.permute.xlu0 %4493
      %4495 = vrot.lane.b32.xlu0 %v4468, 96
      %v4496 = vpop.permute.xlu0 %4495
      %4497 = vrot.lane.b32.xlu0 %v4469, 96
      %v4498 = vpop.permute.xlu0 %4497
      %4499 = vrot.lane.b32.xlu0 %v4470, 96
      %v4500 = vpop.permute.xlu0 %4499
      %4501 = vrot.lane.b32.xlu0 %v4471, 96
      %v4502 = vpop.permute.xlu0 %4501
      %4503 = vrot.lane.b32.xlu0 %v4472, 96
      %v4504 = vpop.permute.xlu0 %4503
      %v4505 = vadd.f32 %v4409, %v4474
      %v4506 = vadd.f32 %v4410, %v4476
      %v4507 = vadd.f32 %v4411, %v4478
      %v4508 = vadd.f32 %v4412, %v4480
      %v4509 = vadd.f32 %v4413, %v4482
      %v4510 = vadd.f32 %v4414, %v4484
      %v4511 = vadd.f32 %v4415, %v4486
      %v4512 = vadd.f32 %v4416, %v4488
      %v4513 = vadd.f32 %v4417, %v4490
      %v4514 = vadd.f32 %v4418, %v4492
      %v4515 = vadd.f32 %v4419, %v4494
      %v4516 = vadd.f32 %v4420, %v4496
      %v4517 = vadd.f32 %v4421, %v4498
      %v4518 = vadd.f32 %v4422, %v4500
      %v4519 = vadd.f32 %v4423, %v4502
      %v4520 = vadd.f32 %v4424, %v4504
      %v4521 = vsel %vm3235, %v4505, 0.0
      %v4522 = vsel %vm3235, %v4506, 0.0
      %v4523 = vsel %vm3235, %v4507, 0.0
      %v4524 = vsel %vm3235, %v4508, 0.0
      %v4525 = vsel %vm3235, %v4509, 0.0
      %v4526 = vsel %vm3235, %v4510, 0.0
      %v4527 = vsel %vm3235, %v4511, 0.0
      %v4528 = vsel %vm3235, %v4512, 0.0
      %v4529 = vsel %vm3235, %v4513, 0.0
      %v4530 = vsel %vm3235, %v4514, 0.0
      %v4531 = vsel %vm3235, %v4515, 0.0
      %v4532 = vsel %vm3235, %v4516, 0.0
      %v4533 = vsel %vm3235, %v4517, 0.0
      %v4534 = vsel %vm3235, %v4518, 0.0
      %v4535 = vsel %vm3235, %v4519, 0.0
      %v4536 = vsel %vm3235, %v4520, 0.0
      %4537 = vrot.lane.b32.xlu0 %v4345, 32
      %v4538 = vpop.permute.xlu0 %4537
      %4539 = vrot.lane.b32.xlu0 %v4346, 32
      %v4540 = vpop.permute.xlu0 %4539
      %4541 = vrot.lane.b32.xlu0 %v4347, 32
      %v4542 = vpop.permute.xlu0 %4541
      %4543 = vrot.lane.b32.xlu0 %v4348, 32
      %v4544 = vpop.permute.xlu0 %4543
      %4545 = vrot.lane.b32.xlu0 %v4349, 32
      %v4546 = vpop.permute.xlu0 %4545
      %4547 = vrot.lane.b32.xlu0 %v4350, 32
      %v4548 = vpop.permute.xlu0 %4547
      %4549 = vrot.lane.b32.xlu0 %v4351, 32
      %v4550 = vpop.permute.xlu0 %4549
      %4551 = vrot.lane.b32.xlu0 %v4352, 32
      %v4552 = vpop.permute.xlu0 %4551
      %4553 = vrot.lane.b32.xlu0 %v4353, 32
      %v4554 = vpop.permute.xlu0 %4553
      %4555 = vrot.lane.b32.xlu0 %v4354, 32
      %v4556 = vpop.permute.xlu0 %4555
      %4557 = vrot.lane.b32.xlu0 %v4355, 32
      %v4558 = vpop.permute.xlu0 %4557
      %4559 = vrot.lane.b32.xlu0 %v4356, 32
      %v4560 = vpop.permute.xlu0 %4559
      %4561 = vrot.lane.b32.xlu0 %v4357, 32
      %v4562 = vpop.permute.xlu0 %4561
      %4563 = vrot.lane.b32.xlu0 %v4358, 32
      %v4564 = vpop.permute.xlu0 %4563
      %4565 = vrot.lane.b32.xlu0 %v4359, 32
      %v4566 = vpop.permute.xlu0 %4565
      %4567 = vrot.lane.b32.xlu0 %v4360, 32
      %v4568 = vpop.permute.xlu0 %4567
      %v4569 = vtanh.pop %v4521
      %v4570 = vtanh.pop %v4522
      %v4571 = vtanh.pop %v4523
      %v4572 = vtanh.pop %v4524
      %v4573 = vtanh.pop %v4525
      %v4574 = vtanh.pop %v4526
      %v4575 = vtanh.pop %v4527
      %v4576 = vtanh.pop %v4528
      %v4577 = vtanh.pop %v4529
      %v4578 = vtanh.pop %v4530
      %v4579 = vtanh.pop %v4531
      %v4580 = vtanh.pop %v4532
      %v4581 = vtanh.pop %v4533
      %v4582 = vtanh.pop %v4534
      %v4583 = vtanh.pop %v4535
      %v4584 = vtanh.pop %v4536
      %v4585 = vmul.f32 %v4538, %v4569
      %v4586 = vmul.f32 %v4540, %v4570
      %v4587 = vmul.f32 %v4542, %v4571
      %v4588 = vmul.f32 %v4544, %v4572
      %v4589 = vmul.f32 %v4546, %v4573
      %v4590 = vmul.f32 %v4548, %v4574
      %v4591 = vmul.f32 %v4550, %v4575
      %v4592 = vmul.f32 %v4552, %v4576
      %v4593 = vmul.f32 %v4554, %v4577
      %v4594 = vmul.f32 %v4556, %v4578
      %v4595 = vmul.f32 %v4558, %v4579
      %v4596 = vmul.f32 %v4560, %v4580
      %v4597 = vmul.f32 %v4562, %v4581
      %v4598 = vmul.f32 %v4564, %v4582
      %v4599 = vmul.f32 %v4566, %v4583
      %v4600 = vmul.f32 %v4568, %v4584
      %4601 = vrot.lane.b32.xlu0 %v4144, 32
      %v4602 = vpop.permute.xlu0 %4601
      %4603 = vrot.lane.b32.xlu0 %v4145, 32
      %v4604 = vpop.permute.xlu0 %4603
      %4605 = vrot.lane.b32.xlu0 %v4146, 32
      %v4606 = vpop.permute.xlu0 %4605
      %4607 = vrot.lane.b32.xlu0 %v4147, 32
      %v4608 = vpop.permute.xlu0 %4607
      %4609 = vrot.lane.b32.xlu0 %v4148, 32
      %v4610 = vpop.permute.xlu0 %4609
      %4611 = vrot.lane.b32.xlu0 %v4149, 32
      %v4612 = vpop.permute.xlu0 %4611
      %4613 = vrot.lane.b32.xlu0 %v4150, 32
      %v4614 = vpop.permute.xlu0 %4613
      %4615 = vrot.lane.b32.xlu0 %v4151, 32
      %v4616 = vpop.permute.xlu0 %4615
      %4617 = vrot.lane.b32.xlu0 %v4152, 32
      %v4618 = vpop.permute.xlu0 %4617
      %4619 = vrot.lane.b32.xlu0 %v4153, 32
      %v4620 = vpop.permute.xlu0 %4619
      %4621 = vrot.lane.b32.xlu0 %v4154, 32
      %v4622 = vpop.permute.xlu0 %4621
      %4623 = vrot.lane.b32.xlu0 %v4155, 32
      %v4624 = vpop.permute.xlu0 %4623
      %4625 = vrot.lane.b32.xlu0 %v4156, 32
      %v4626 = vpop.permute.xlu0 %4625
      %4627 = vrot.lane.b32.xlu0 %v4157, 32
      %v4628 = vpop.permute.xlu0 %4627
      %4629 = vrot.lane.b32.xlu0 %v4158, 32
      %v4630 = vpop.permute.xlu0 %4629
      %4631 = vrot.lane.b32.xlu0 %v4159, 32
      %v4632 = vpop.permute.xlu0 %4631
      %v4633 = vadd.f32 %v4585, %v4602
      %v4634 = vadd.f32 %v4586, %v4604
      %v4635 = vadd.f32 %v4587, %v4606
      %v4636 = vadd.f32 %v4588, %v4608
      %v4637 = vadd.f32 %v4589, %v4610
      %v4638 = vadd.f32 %v4590, %v4612
      %v4639 = vadd.f32 %v4591, %v4614
      %v4640 = vadd.f32 %v4592, %v4616
      %v4641 = vadd.f32 %v4593, %v4618
      %v4642 = vadd.f32 %v4594, %v4620
      %v4643 = vadd.f32 %v4595, %v4622
      %v4644 = vadd.f32 %v4596, %v4624
      %v4645 = vadd.f32 %v4597, %v4626
      %v4646 = vadd.f32 %v4598, %v4628
      %v4647 = vadd.f32 %v4599, %v4630
      %v4648 = vadd.f32 %v4600, %v4632
      %v4649 = vpack.c.bf16 %v4634, %v4633
      %v4650 = vpack.c.bf16 %v4636, %v4635
      %v4651 = vpack.c.bf16 %v4638, %v4637
      %v4652 = vpack.c.bf16 %v4640, %v4639
      %v4653 = vpack.c.bf16 %v4642, %v4641
      %v4654 = vpack.c.bf16 %v4644, %v4643
      %v4655 = vpack.c.bf16 %v4646, %v4645
      %v4656 = vpack.c.bf16 %v4648, %v4647
      %4657 = vmatprep.subr.bf16.mxu0 0
      %4658 = vmatpush1.bf16.msra.mxu0 %v3750
      %4659 = vmatprep.subr.bf16.mxu0 0
      %4660 = vmatpush1.bf16.msra.mxu0 %v3749
      %4661 = vmatprep.subr.bf16.mxu0 0
      %4662 = vmatpush1.bf16.msra.mxu0 %v3748
      %4663 = vmatprep.subr.bf16.mxu0 0
      %4664 = vmatpush1.bf16.msra.mxu0 %v3747
      %4665 = vmatprep.subr.bf16.mxu0 0
      %4666 = vmatpush1.bf16.msra.mxu0 %v3746
      %4667 = vmatprep.subr.bf16.mxu0 0
      %4668 = vmatpush1.bf16.msra.mxu0 %v3745
      %4669 = vmatprep.subr.bf16.mxu0 0
      %4670 = vmatpush1.bf16.msra.mxu0 %v3744
      %4671 = vmatprep.subr.bf16.mxu0 0
      %4672 = vmatpush1.bf16.msra.mxu0 %v3743
      %4673 = vmatprep.subr.bf16.mxu0 0
      %4674 = vmatpush2.bf16.msra.mxu0 0
      %4675 = vmatprep.subr.bf16.mxu0 0
      %4676 = vmatpush2.bf16.msra.mxu0 0
      %4677 = vmatprep.subr.bf16.mxu0 0
      %4678 = vmatpush2.bf16.msra.mxu0 0
      %4679 = vmatprep.subr.bf16.mxu0 0
      %4680 = vmatpush2.bf16.msra.mxu0 0
      %4681 = vmatprep.subr.bf16.mxu0 0
      %4682 = vmatpush2.bf16.msra.mxu0 0
      %4683 = vmatprep.subr.bf16.mxu0 0
      %4684 = vmatpush2.bf16.msra.mxu0 0
      %4685 = vmatprep.subr.bf16.mxu0 0
      %4686 = vmatpush2.bf16.msra.mxu0 0
      %4687 = vmatprep.subr.bf16.mxu0 0
      %4688 = vmatpush2.bf16.msra.mxu0 0
      %4689 = vmatprep.mubr.bf16.mxu0 0
      %4690 = vmatmul.mubr.bf16.gmra.mxu0 %v4649
      %v4691 = vpop.f32.mrf.mxu0
      %v4692 = vadd.f32 0.0, %v4691
      %v4693 = vpop.f32.mrf.mxu0
      %v4694 = vpop.f32.mrf.mxu0
      %v4695 = vadd.f32 0.0, %v4694
      %v4696 = vpop.f32.mrf.mxu0
      %4697 = vmatprep.mubr.bf16.mxu0 0
      %4698 = vmatmul.mubr.bf16.gmra.mxu0 %v4650
      %v4699 = vpop.f32.mrf.mxu0
      %v4700 = vadd.f32 0.0, %v4699
      %v4701 = vpop.f32.mrf.mxu0
      %v4702 = vpop.f32.mrf.mxu0
      %v4703 = vadd.f32 0.0, %v4702
      %v4704 = vpop.f32.mrf.mxu0
      %4705 = vmatprep.mubr.bf16.mxu0 0
      %4706 = vmatmul.mubr.bf16.gmra.mxu0 %v4651
      %v4707 = vpop.f32.mrf.mxu0
      %v4708 = vadd.f32 0.0, %v4707
      %v4709 = vpop.f32.mrf.mxu0
      %v4710 = vpop.f32.mrf.mxu0
      %v4711 = vadd.f32 0.0, %v4710
      %v4712 = vpop.f32.mrf.mxu0
      %4713 = vmatprep.mubr.bf16.mxu0 0
      %4714 = vmatmul.mubr.bf16.gmra.mxu0 %v4652
      %v4715 = vpop.f32.mrf.mxu0
      %v4716 = vadd.f32 0.0, %v4715
      %v4717 = vpop.f32.mrf.mxu0
      %v4718 = vpop.f32.mrf.mxu0
      %v4719 = vadd.f32 0.0, %v4718
      %v4720 = vpop.f32.mrf.mxu0
      %4721 = vmatprep.mubr.bf16.mxu0 0
      %4722 = vmatmul.mubr.bf16.gmra.mxu0 %v4653
      %v4723 = vpop.f32.mrf.mxu0
      %v4724 = vadd.f32 0.0, %v4723
      %v4725 = vpop.f32.mrf.mxu0
      %v4726 = vpop.f32.mrf.mxu0
      %v4727 = vadd.f32 0.0, %v4726
      %v4728 = vpop.f32.mrf.mxu0
      %4729 = vmatprep.mubr.bf16.mxu0 0
      %4730 = vmatmul.mubr.bf16.gmra.mxu0 %v4654
      %v4731 = vpop.f32.mrf.mxu0
      %v4732 = vadd.f32 0.0, %v4731
      %v4733 = vpop.f32.mrf.mxu0
      %v4734 = vpop.f32.mrf.mxu0
      %v4735 = vadd.f32 0.0, %v4734
      %v4736 = vpop.f32.mrf.mxu0
      %4737 = vmatprep.mubr.bf16.mxu0 0
      %4738 = vmatmul.mubr.bf16.gmra.mxu0 %v4655
      %v4739 = vpop.f32.mrf.mxu0
      %v4740 = vadd.f32 0.0, %v4739
      %v4741 = vpop.f32.mrf.mxu0
      %v4742 = vpop.f32.mrf.mxu0
      %v4743 = vadd.f32 0.0, %v4742
      %v4744 = vpop.f32.mrf.mxu0
      %4745 = vmatprep.mubr.bf16.mxu0 0
      %4746 = vmatmul.mubr.bf16.gmra.mxu0 %v4656
      %v4747 = vpop.f32.mrf.mxu0
      %v4748 = vadd.f32 0.0, %v4747
      %v4749 = vpop.f32.mrf.mxu0
      %v4750 = vpop.f32.mrf.mxu0
      %v4751 = vadd.f32 0.0, %v4750
      %v4752 = vpop.f32.mrf.mxu0
      %4753 = vdwg.mxu0
      %v4754 = vadd.f32 %v3234, %v4692
      %v4755 = vadd.f32 %v3234, %v4695
      %v4756 = vadd.f32 %v3234, %v4700
      %v4757 = vadd.f32 %v3234, %v4703
      %v4758 = vadd.f32 %v3234, %v4708
      %v4759 = vadd.f32 %v3234, %v4711
      %v4760 = vadd.f32 %v3234, %v4716
      %v4761 = vadd.f32 %v3234, %v4719
      %v4762 = vadd.f32 %v3234, %v4724
      %v4763 = vadd.f32 %v3234, %v4727
      %v4764 = vadd.f32 %v3234, %v4732
      %v4765 = vadd.f32 %v3234, %v4735
      %v4766 = vadd.f32 %v3234, %v4740
      %v4767 = vadd.f32 %v3234, %v4743
      %v4768 = vadd.f32 %v3234, %v4748
      %v4769 = vadd.f32 %v3234, %v4751
      %v4770 = vsub.f32 0.0, %v4754
      %v4771 = vsub.f32 0.0, %v4755
      %v4772 = vsub.f32 0.0, %v4756
      %v4773 = vsub.f32 0.0, %v4757
      %v4774 = vsub.f32 0.0, %v4758
      %v4775 = vsub.f32 0.0, %v4759
      %v4776 = vsub.f32 0.0, %v4760
      %v4777 = vsub.f32 0.0, %v4761
      %v4778 = vsub.f32 0.0, %v4762
      %v4779 = vsub.f32 0.0, %v4763
      %v4780 = vsub.f32 0.0, %v4764
      %v4781 = vsub.f32 0.0, %v4765
      %v4782 = vsub.f32 0.0, %v4766
      %v4783 = vsub.f32 0.0, %v4767
      %v4784 = vsub.f32 0.0, %v4768
      %v4785 = vsub.f32 0.0, %v4769
      %v4786 = vmul.f32 %v4770, 1.442695
      %v4787 = vpow.pop %v4786
      %v4788 = vmul.f32 %v4771, 1.442695
      %v4789 = vpow.pop %v4788
      %v4790 = vmul.f32 %v4772, 1.442695
      %v4791 = vpow.pop %v4790
      %v4792 = vmul.f32 %v4773, 1.442695
      %v4793 = vpow.pop %v4792
      %v4794 = vmul.f32 %v4774, 1.442695
      %v4795 = vpow.pop %v4794
      %v4796 = vmul.f32 %v4775, 1.442695
      %v4797 = vpow.pop %v4796
      %v4798 = vmul.f32 %v4776, 1.442695
      %v4799 = vpow.pop %v4798
      %v4800 = vmul.f32 %v4777, 1.442695
      %v4801 = vpow.pop %v4800
      %v4802 = vmul.f32 %v4778, 1.442695
      %v4803 = vpow.pop %v4802
      %v4804 = vmul.f32 %v4779, 1.442695
      %v4805 = vpow.pop %v4804
      %v4806 = vmul.f32 %v4780, 1.442695
      %v4807 = vpow.pop %v4806
      %v4808 = vmul.f32 %v4781, 1.442695
      %v4809 = vpow.pop %v4808
      %v4810 = vmul.f32 %v4782, 1.442695
      %v4811 = vpow.pop %v4810
      %v4812 = vmul.f32 %v4783, 1.442695
      %v4813 = vpow.pop %v4812
      %v4814 = vmul.f32 %v4784, 1.442695
      %v4815 = vpow.pop %v4814
      %v4816 = vmul.f32 %v4785, 1.442695
      %v4817 = vpow.pop %v4816
      %v4818 = vadd.f32 %v4787, 1.0
      %v4819 = vadd.f32 %v4789, 1.0
      %v4820 = vadd.f32 %v4791, 1.0
      %v4821 = vadd.f32 %v4793, 1.0
      %v4822 = vadd.f32 %v4795, 1.0
      %v4823 = vadd.f32 %v4797, 1.0
      %v4824 = vadd.f32 %v4799, 1.0
      %v4825 = vadd.f32 %v4801, 1.0
      %v4826 = vadd.f32 %v4803, 1.0
      %v4827 = vadd.f32 %v4805, 1.0
      %v4828 = vadd.f32 %v4807, 1.0
      %v4829 = vadd.f32 %v4809, 1.0
      %v4830 = vadd.f32 %v4811, 1.0
      %v4831 = vadd.f32 %v4813, 1.0
      %v4832 = vadd.f32 %v4815, 1.0
      %v4833 = vadd.f32 %v4817, 1.0
      %v4834 = vrcp.pop %v4818
      %v4835 = vrcp.pop %v4819
      %v4836 = vrcp.pop %v4820
      %v4837 = vrcp.pop %v4821
      %v4838 = vrcp.pop %v4822
      %v4839 = vrcp.pop %v4823
      %v4840 = vrcp.pop %v4824
      %v4841 = vrcp.pop %v4825
      %v4842 = vrcp.pop %v4826
      %v4843 = vrcp.pop %v4827
      %v4844 = vrcp.pop %v4828
      %v4845 = vrcp.pop %v4829
      %v4846 = vrcp.pop %v4830
      %v4847 = vrcp.pop %v4831
      %v4848 = vrcp.pop %v4832
      %v4849 = vrcp.pop %v4833
      %v4850 = vtanh.pop %v4754
      %v4851 = vtanh.pop %v4755
      %v4852 = vtanh.pop %v4756
      %v4853 = vtanh.pop %v4757
      %v4854 = vtanh.pop %v4758
      %v4855 = vtanh.pop %v4759
      %v4856 = vtanh.pop %v4760
      %v4857 = vtanh.pop %v4761
      %v4858 = vtanh.pop %v4762
      %v4859 = vtanh.pop %v4763
      %v4860 = vtanh.pop %v4764
      %v4861 = vtanh.pop %v4765
      %v4862 = vtanh.pop %v4766
      %v4863 = vtanh.pop %v4767
      %v4864 = vtanh.pop %v4768
      %v4865 = vtanh.pop %v4769
      %4866 = vrot.lane.b32.xlu0 %v4850, 64
      %v4867 = vpop.permute.xlu0 %4866
      %4868 = vrot.lane.b32.xlu0 %v4851, 64
      %v4869 = vpop.permute.xlu0 %4868
      %4870 = vrot.lane.b32.xlu0 %v4852, 64
      %v4871 = vpop.permute.xlu0 %4870
      %4872 = vrot.lane.b32.xlu0 %v4853, 64
      %v4873 = vpop.permute.xlu0 %4872
      %4874 = vrot.lane.b32.xlu0 %v4854, 64
      %v4875 = vpop.permute.xlu0 %4874
      %4876 = vrot.lane.b32.xlu0 %v4855, 64
      %v4877 = vpop.permute.xlu0 %4876
      %4878 = vrot.lane.b32.xlu0 %v4856, 64
      %v4879 = vpop.permute.xlu0 %4878
      %4880 = vrot.lane.b32.xlu0 %v4857, 64
      %v4881 = vpop.permute.xlu0 %4880
      %4882 = vrot.lane.b32.xlu0 %v4858, 64
      %v4883 = vpop.permute.xlu0 %4882
      %4884 = vrot.lane.b32.xlu0 %v4859, 64
      %v4885 = vpop.permute.xlu0 %4884
      %4886 = vrot.lane.b32.xlu0 %v4860, 64
      %v4887 = vpop.permute.xlu0 %4886
      %4888 = vrot.lane.b32.xlu0 %v4861, 64
      %v4889 = vpop.permute.xlu0 %4888
      %4890 = vrot.lane.b32.xlu0 %v4862, 64
      %v4891 = vpop.permute.xlu0 %4890
      %4892 = vrot.lane.b32.xlu0 %v4863, 64
      %v4893 = vpop.permute.xlu0 %4892
      %4894 = vrot.lane.b32.xlu0 %v4864, 64
      %v4895 = vpop.permute.xlu0 %4894
      %4896 = vrot.lane.b32.xlu0 %v4865, 64
      %v4897 = vpop.permute.xlu0 %4896
      %v4898 = vmul.f32 %v4834, %v4867
      %v4899 = vmul.f32 %v4835, %v4869
      %v4900 = vmul.f32 %v4836, %v4871
      %v4901 = vmul.f32 %v4837, %v4873
      %v4902 = vmul.f32 %v4838, %v4875
      %v4903 = vmul.f32 %v4839, %v4877
      %v4904 = vmul.f32 %v4840, %v4879
      %v4905 = vmul.f32 %v4841, %v4881
      %v4906 = vmul.f32 %v4842, %v4883
      %v4907 = vmul.f32 %v4843, %v4885
      %v4908 = vmul.f32 %v4844, %v4887
      %v4909 = vmul.f32 %v4845, %v4889
      %v4910 = vmul.f32 %v4846, %v4891
      %v4911 = vmul.f32 %v4847, %v4893
      %v4912 = vmul.f32 %v4848, %v4895
      %v4913 = vmul.f32 %v4849, %v4897
      %4914 = vrot.lane.b32.xlu0 %v4080, 32
      %v4915 = vpop.permute.xlu0 %4914
      %4916 = vrot.lane.b32.xlu0 %v4081, 32
      %v4917 = vpop.permute.xlu0 %4916
      %4918 = vrot.lane.b32.xlu0 %v4082, 32
      %v4919 = vpop.permute.xlu0 %4918
      %4920 = vrot.lane.b32.xlu0 %v4083, 32
      %v4921 = vpop.permute.xlu0 %4920
      %4922 = vrot.lane.b32.xlu0 %v4084, 32
      %v4923 = vpop.permute.xlu0 %4922
      %4924 = vrot.lane.b32.xlu0 %v4085, 32
      %v4925 = vpop.permute.xlu0 %4924
      %4926 = vrot.lane.b32.xlu0 %v4086, 32
      %v4927 = vpop.permute.xlu0 %4926
      %4928 = vrot.lane.b32.xlu0 %v4087, 32
      %v4929 = vpop.permute.xlu0 %4928
      %4930 = vrot.lane.b32.xlu0 %v4088, 32
      %v4931 = vpop.permute.xlu0 %4930
      %4932 = vrot.lane.b32.xlu0 %v4089, 32
      %v4933 = vpop.permute.xlu0 %4932
      %4934 = vrot.lane.b32.xlu0 %v4090, 32
      %v4935 = vpop.permute.xlu0 %4934
      %4936 = vrot.lane.b32.xlu0 %v4091, 32
      %v4937 = vpop.permute.xlu0 %4936
      %4938 = vrot.lane.b32.xlu0 %v4092, 32
      %v4939 = vpop.permute.xlu0 %4938
      %4940 = vrot.lane.b32.xlu0 %v4093, 32
      %v4941 = vpop.permute.xlu0 %4940
      %4942 = vrot.lane.b32.xlu0 %v4094, 32
      %v4943 = vpop.permute.xlu0 %4942
      %4944 = vrot.lane.b32.xlu0 %v4095, 32
      %v4945 = vpop.permute.xlu0 %4944
      %v4946 = vmul.f32 %v4834, %v4915
      %v4947 = vmul.f32 %v4835, %v4917
      %v4948 = vmul.f32 %v4836, %v4919
      %v4949 = vmul.f32 %v4837, %v4921
      %v4950 = vmul.f32 %v4838, %v4923
      %v4951 = vmul.f32 %v4839, %v4925
      %v4952 = vmul.f32 %v4840, %v4927
      %v4953 = vmul.f32 %v4841, %v4929
      %v4954 = vmul.f32 %v4842, %v4931
      %v4955 = vmul.f32 %v4843, %v4933
      %v4956 = vmul.f32 %v4844, %v4935
      %v4957 = vmul.f32 %v4845, %v4937
      %v4958 = vmul.f32 %v4846, %v4939
      %v4959 = vmul.f32 %v4847, %v4941
      %v4960 = vmul.f32 %v4848, %v4943
      %v4961 = vmul.f32 %v4849, %v4945
      %4962 = vrot.lane.b32.xlu0 %v4946, 96
      %v4963 = vpop.permute.xlu0 %4962
      %4964 = vrot.lane.b32.xlu0 %v4947, 96
      %v4965 = vpop.permute.xlu0 %4964
      %4966 = vrot.lane.b32.xlu0 %v4948, 96
      %v4967 = vpop.permute.xlu0 %4966
      %4968 = vrot.lane.b32.xlu0 %v4949, 96
      %v4969 = vpop.permute.xlu0 %4968
      %4970 = vrot.lane.b32.xlu0 %v4950, 96
      %v4971 = vpop.permute.xlu0 %4970
      %4972 = vrot.lane.b32.xlu0 %v4951, 96
      %v4973 = vpop.permute.xlu0 %4972
      %4974 = vrot.lane.b32.xlu0 %v4952, 96
      %v4975 = vpop.permute.xlu0 %4974
      %4976 = vrot.lane.b32.xlu0 %v4953, 96
      %v4977 = vpop.permute.xlu0 %4976
      %4978 = vrot.lane.b32.xlu0 %v4954, 96
      %v4979 = vpop.permute.xlu0 %4978
      %4980 = vrot.lane.b32.xlu0 %v4955, 96
      %v4981 = vpop.permute.xlu0 %4980
      %4982 = vrot.lane.b32.xlu0 %v4956, 96
      %v4983 = vpop.permute.xlu0 %4982
      %4984 = vrot.lane.b32.xlu0 %v4957, 96
      %v4985 = vpop.permute.xlu0 %4984
      %4986 = vrot.lane.b32.xlu0 %v4958, 96
      %v4987 = vpop.permute.xlu0 %4986
      %4988 = vrot.lane.b32.xlu0 %v4959, 96
      %v4989 = vpop.permute.xlu0 %4988
      %4990 = vrot.lane.b32.xlu0 %v4960, 96
      %v4991 = vpop.permute.xlu0 %4990
      %4992 = vrot.lane.b32.xlu0 %v4961, 96
      %v4993 = vpop.permute.xlu0 %4992
      %v4994 = vadd.f32 %v4898, %v4963
      %v4995 = vadd.f32 %v4899, %v4965
      %v4996 = vadd.f32 %v4900, %v4967
      %v4997 = vadd.f32 %v4901, %v4969
      %v4998 = vadd.f32 %v4902, %v4971
      %v4999 = vadd.f32 %v4903, %v4973
      %v5000 = vadd.f32 %v4904, %v4975
      %v5001 = vadd.f32 %v4905, %v4977
      %v5002 = vadd.f32 %v4906, %v4979
      %v5003 = vadd.f32 %v4907, %v4981
      %v5004 = vadd.f32 %v4908, %v4983
      %v5005 = vadd.f32 %v4909, %v4985
      %v5006 = vadd.f32 %v4910, %v4987
      %v5007 = vadd.f32 %v4911, %v4989
      %v5008 = vadd.f32 %v4912, %v4991
      %v5009 = vadd.f32 %v4913, %v4993
      %v5010 = vsel %vm3235, %v4994, 0.0
      %v5011 = vsel %vm3235, %v4995, 0.0
      %v5012 = vsel %vm3235, %v4996, 0.0
      %v5013 = vsel %vm3235, %v4997, 0.0
      %v5014 = vsel %vm3235, %v4998, 0.0
      %v5015 = vsel %vm3235, %v4999, 0.0
      %v5016 = vsel %vm3235, %v5000, 0.0
      %v5017 = vsel %vm3235, %v5001, 0.0
      %v5018 = vsel %vm3235, %v5002, 0.0
      %v5019 = vsel %vm3235, %v5003, 0.0
      %v5020 = vsel %vm3235, %v5004, 0.0
      %v5021 = vsel %vm3235, %v5005, 0.0
      %v5022 = vsel %vm3235, %v5006, 0.0
      %v5023 = vsel %vm3235, %v5007, 0.0
      %v5024 = vsel %vm3235, %v5008, 0.0
      %v5025 = vsel %vm3235, %v5009, 0.0
      %5026 = vrot.lane.b32.xlu0 %v4834, 32
      %v5027 = vpop.permute.xlu0 %5026
      %5028 = vrot.lane.b32.xlu0 %v4835, 32
      %v5029 = vpop.permute.xlu0 %5028
      %5030 = vrot.lane.b32.xlu0 %v4836, 32
      %v5031 = vpop.permute.xlu0 %5030
      %5032 = vrot.lane.b32.xlu0 %v4837, 32
      %v5033 = vpop.permute.xlu0 %5032
      %5034 = vrot.lane.b32.xlu0 %v4838, 32
      %v5035 = vpop.permute.xlu0 %5034
      %5036 = vrot.lane.b32.xlu0 %v4839, 32
      %v5037 = vpop.permute.xlu0 %5036
      %5038 = vrot.lane.b32.xlu0 %v4840, 32
      %v5039 = vpop.permute.xlu0 %5038
      %5040 = vrot.lane.b32.xlu0 %v4841, 32
      %v5041 = vpop.permute.xlu0 %5040
      %5042 = vrot.lane.b32.xlu0 %v4842, 32
      %v5043 = vpop.permute.xlu0 %5042
      %5044 = vrot.lane.b32.xlu0 %v4843, 32
      %v5045 = vpop.permute.xlu0 %5044
      %5046 = vrot.lane.b32.xlu0 %v4844, 32
      %v5047 = vpop.permute.xlu0 %5046
      %5048 = vrot.lane.b32.xlu0 %v4845, 32
      %v5049 = vpop.permute.xlu0 %5048
      %5050 = vrot.lane.b32.xlu0 %v4846, 32
      %v5051 = vpop.permute.xlu0 %5050
      %5052 = vrot.lane.b32.xlu0 %v4847, 32
      %v5053 = vpop.permute.xlu0 %5052
      %5054 = vrot.lane.b32.xlu0 %v4848, 32
      %v5055 = vpop.permute.xlu0 %5054
      %5056 = vrot.lane.b32.xlu0 %v4849, 32
      %v5057 = vpop.permute.xlu0 %5056
      %v5058 = vtanh.pop %v5010
      %v5059 = vtanh.pop %v5011
      %v5060 = vtanh.pop %v5012
      %v5061 = vtanh.pop %v5013
      %v5062 = vtanh.pop %v5014
      %v5063 = vtanh.pop %v5015
      %v5064 = vtanh.pop %v5016
      %v5065 = vtanh.pop %v5017
      %v5066 = vtanh.pop %v5018
      %v5067 = vtanh.pop %v5019
      %v5068 = vtanh.pop %v5020
      %v5069 = vtanh.pop %v5021
      %v5070 = vtanh.pop %v5022
      %v5071 = vtanh.pop %v5023
      %v5072 = vtanh.pop %v5024
      %v5073 = vtanh.pop %v5025
      %v5074 = vmul.f32 %v5027, %v5058
      %v5075 = vmul.f32 %v5029, %v5059
      %v5076 = vmul.f32 %v5031, %v5060
      %v5077 = vmul.f32 %v5033, %v5061
      %v5078 = vmul.f32 %v5035, %v5062
      %v5079 = vmul.f32 %v5037, %v5063
      %v5080 = vmul.f32 %v5039, %v5064
      %v5081 = vmul.f32 %v5041, %v5065
      %v5082 = vmul.f32 %v5043, %v5066
      %v5083 = vmul.f32 %v5045, %v5067
      %v5084 = vmul.f32 %v5047, %v5068
      %v5085 = vmul.f32 %v5049, %v5069
      %v5086 = vmul.f32 %v5051, %v5070
      %v5087 = vmul.f32 %v5053, %v5071
      %v5088 = vmul.f32 %v5055, %v5072
      %v5089 = vmul.f32 %v5057, %v5073
      %v5090 = vpack.c.bf16 %v4586, %v4585
      %v5091 = vpack.c.bf16 %v4588, %v4587
      %v5092 = vpack.c.bf16 %v4590, %v4589
      %v5093 = vpack.c.bf16 %v4592, %v4591
      %v5094 = vpack.c.bf16 %v4594, %v4593
      %v5095 = vpack.c.bf16 %v4596, %v4595
      %v5096 = vpack.c.bf16 %v4598, %v4597
      %v5097 = vpack.c.bf16 %v4600, %v4599
      %5098 = vmatprep.subr.bf16.mxu0 0
      %5099 = vmatpush1.bf16.msra.mxu0 %v3275
      %5100 = vmatprep.subr.bf16.mxu0 0
      %5101 = vmatpush1.bf16.msra.mxu0 %v3274
      %5102 = vmatprep.subr.bf16.mxu0 0
      %5103 = vmatpush1.bf16.msra.mxu0 %v3273
      %5104 = vmatprep.subr.bf16.mxu0 0
      %5105 = vmatpush1.bf16.msra.mxu0 %v3272
      %5106 = vmatprep.subr.bf16.mxu0 0
      %5107 = vmatpush1.bf16.msra.mxu0 %v3271
      %5108 = vmatprep.subr.bf16.mxu0 0
      %5109 = vmatpush1.bf16.msra.mxu0 %v3270
      %5110 = vmatprep.subr.bf16.mxu0 0
      %5111 = vmatpush1.bf16.msra.mxu0 %v3269
      %5112 = vmatprep.subr.bf16.mxu0 0
      %5113 = vmatpush1.bf16.msra.mxu0 %v3268
      %5114 = vmatprep.subr.bf16.mxu0 0
      %5115 = vmatpush2.bf16.msra.mxu0 0
      %5116 = vmatprep.subr.bf16.mxu0 0
      %5117 = vmatpush2.bf16.msra.mxu0 0
      %5118 = vmatprep.subr.bf16.mxu0 0
      %5119 = vmatpush2.bf16.msra.mxu0 0
      %5120 = vmatprep.subr.bf16.mxu0 0
      %5121 = vmatpush2.bf16.msra.mxu0 0
      %5122 = vmatprep.subr.bf16.mxu0 0
      %5123 = vmatpush2.bf16.msra.mxu0 0
      %5124 = vmatprep.subr.bf16.mxu0 0
      %5125 = vmatpush2.bf16.msra.mxu0 0
      %5126 = vmatprep.subr.bf16.mxu0 0
      %5127 = vmatpush2.bf16.msra.mxu0 0
      %5128 = vmatprep.subr.bf16.mxu0 0
      %5129 = vmatpush2.bf16.msra.mxu0 0
      %5130 = vmatprep.mubr.bf16.mxu0 0
      %5131 = vmatmul.mubr.bf16.gmra.mxu0 %v5090
      %v5132 = vpop.f32.mrf.mxu0
      %v5133 = vadd.f32 0.0, %v5132
      %v5134 = vpop.f32.mrf.mxu0
      %v5135 = vpop.f32.mrf.mxu0
      %v5136 = vadd.f32 0.0, %v5135
      %v5137 = vpop.f32.mrf.mxu0
      %5138 = vmatprep.mubr.bf16.mxu0 0
      %5139 = vmatmul.mubr.bf16.gmra.mxu0 %v5091
      %v5140 = vpop.f32.mrf.mxu0
      %v5141 = vadd.f32 0.0, %v5140
      %v5142 = vpop.f32.mrf.mxu0
      %v5143 = vpop.f32.mrf.mxu0
      %v5144 = vadd.f32 0.0, %v5143
      %v5145 = vpop.f32.mrf.mxu0
      %5146 = vmatprep.mubr.bf16.mxu0 0
      %5147 = vmatmul.mubr.bf16.gmra.mxu0 %v5092
      %v5148 = vpop.f32.mrf.mxu0
      %v5149 = vadd.f32 0.0, %v5148
      %v5150 = vpop.f32.mrf.mxu0
      %v5151 = vpop.f32.mrf.mxu0
      %v5152 = vadd.f32 0.0, %v5151
      %v5153 = vpop.f32.mrf.mxu0
      %5154 = vmatprep.mubr.bf16.mxu0 0
      %5155 = vmatmul.mubr.bf16.gmra.mxu0 %v5093
      %v5156 = vpop.f32.mrf.mxu0
      %v5157 = vadd.f32 0.0, %v5156
      %v5158 = vpop.f32.mrf.mxu0
      %v5159 = vpop.f32.mrf.mxu0
      %v5160 = vadd.f32 0.0, %v5159
      %v5161 = vpop.f32.mrf.mxu0
      %5162 = vmatprep.mubr.bf16.mxu0 0
      %5163 = vmatmul.mubr.bf16.gmra.mxu0 %v5094
      %v5164 = vpop.f32.mrf.mxu0
      %v5165 = vadd.f32 0.0, %v5164
      %v5166 = vpop.f32.mrf.mxu0
      %v5167 = vpop.f32.mrf.mxu0
      %v5168 = vadd.f32 0.0, %v5167
      %v5169 = vpop.f32.mrf.mxu0
      %5170 = vmatprep.mubr.bf16.mxu0 0
      %5171 = vmatmul.mubr.bf16.gmra.mxu0 %v5095
      %v5172 = vpop.f32.mrf.mxu0
      %v5173 = vadd.f32 0.0, %v5172
      %v5174 = vpop.f32.mrf.mxu0
      %v5175 = vpop.f32.mrf.mxu0
      %v5176 = vadd.f32 0.0, %v5175
      %v5177 = vpop.f32.mrf.mxu0
      %5178 = vmatprep.mubr.bf16.mxu0 0
      %5179 = vmatmul.mubr.bf16.gmra.mxu0 %v5096
      %v5180 = vpop.f32.mrf.mxu0
      %v5181 = vadd.f32 0.0, %v5180
      %v5182 = vpop.f32.mrf.mxu0
      %v5183 = vpop.f32.mrf.mxu0
      %v5184 = vadd.f32 0.0, %v5183
      %v5185 = vpop.f32.mrf.mxu0
      %5186 = vmatprep.mubr.bf16.mxu0 0
      %5187 = vmatmul.mubr.bf16.gmra.mxu0 %v5097
      %v5188 = vpop.f32.mrf.mxu0
      %v5189 = vadd.f32 0.0, %v5188
      %v5190 = vpop.f32.mrf.mxu0
      %v5191 = vpop.f32.mrf.mxu0
      %v5192 = vadd.f32 0.0, %v5191
      %v5193 = vpop.f32.mrf.mxu0
      %5194 = vdwg.mxu0
      %v5195 = vadd.f32 %v2849, %v5133
      %v5196 = vadd.f32 %v2852, %v5136
      %v5197 = vadd.f32 %v2857, %v5141
      %v5198 = vadd.f32 %v2860, %v5144
      %v5199 = vadd.f32 %v2865, %v5149
      %v5200 = vadd.f32 %v2868, %v5152
      %v5201 = vadd.f32 %v2873, %v5157
      %v5202 = vadd.f32 %v2876, %v5160
      %v5203 = vadd.f32 %v2881, %v5165
      %v5204 = vadd.f32 %v2884, %v5168
      %v5205 = vadd.f32 %v2889, %v5173
      %v5206 = vadd.f32 %v2892, %v5176
      %v5207 = vadd.f32 %v2897, %v5181
      %v5208 = vadd.f32 %v2900, %v5184
      %v5209 = vadd.f32 %v2905, %v5189
      %v5210 = vadd.f32 %v2908, %v5192
      %v5211 = vsub.f32 0.0, %v5195
      %v5212 = vsub.f32 0.0, %v5196
      %v5213 = vsub.f32 0.0, %v5197
      %v5214 = vsub.f32 0.0, %v5198
      %v5215 = vsub.f32 0.0, %v5199
      %v5216 = vsub.f32 0.0, %v5200
      %v5217 = vsub.f32 0.0, %v5201
      %v5218 = vsub.f32 0.0, %v5202
      %v5219 = vsub.f32 0.0, %v5203
      %v5220 = vsub.f32 0.0, %v5204
      %v5221 = vsub.f32 0.0, %v5205
      %v5222 = vsub.f32 0.0, %v5206
      %v5223 = vsub.f32 0.0, %v5207
      %v5224 = vsub.f32 0.0, %v5208
      %v5225 = vsub.f32 0.0, %v5209
      %v5226 = vsub.f32 0.0, %v5210
      %v5227 = vmul.f32 %v5211, 1.442695
      %v5228 = vpow.pop %v5227
      %v5229 = vmul.f32 %v5212, 1.442695
      %v5230 = vpow.pop %v5229
      %v5231 = vmul.f32 %v5213, 1.442695
      %v5232 = vpow.pop %v5231
      %v5233 = vmul.f32 %v5214, 1.442695
      %v5234 = vpow.pop %v5233
      %v5235 = vmul.f32 %v5215, 1.442695
      %v5236 = vpow.pop %v5235
      %v5237 = vmul.f32 %v5216, 1.442695
      %v5238 = vpow.pop %v5237
      %v5239 = vmul.f32 %v5217, 1.442695
      %v5240 = vpow.pop %v5239
      %v5241 = vmul.f32 %v5218, 1.442695
      %v5242 = vpow.pop %v5241
      %v5243 = vmul.f32 %v5219, 1.442695
      %v5244 = vpow.pop %v5243
      %v5245 = vmul.f32 %v5220, 1.442695
      %v5246 = vpow.pop %v5245
      %v5247 = vmul.f32 %v5221, 1.442695
      %v5248 = vpow.pop %v5247
      %v5249 = vmul.f32 %v5222, 1.442695
      %v5250 = vpow.pop %v5249
      %v5251 = vmul.f32 %v5223, 1.442695
      %v5252 = vpow.pop %v5251
      %v5253 = vmul.f32 %v5224, 1.442695
      %v5254 = vpow.pop %v5253
      %v5255 = vmul.f32 %v5225, 1.442695
      %v5256 = vpow.pop %v5255
      %v5257 = vmul.f32 %v5226, 1.442695
      %v5258 = vpow.pop %v5257
      %v5259 = vadd.f32 %v5228, 1.0
      %v5260 = vadd.f32 %v5230, 1.0
      %v5261 = vadd.f32 %v5232, 1.0
      %v5262 = vadd.f32 %v5234, 1.0
      %v5263 = vadd.f32 %v5236, 1.0
      %v5264 = vadd.f32 %v5238, 1.0
      %v5265 = vadd.f32 %v5240, 1.0
      %v5266 = vadd.f32 %v5242, 1.0
      %v5267 = vadd.f32 %v5244, 1.0
      %v5268 = vadd.f32 %v5246, 1.0
      %v5269 = vadd.f32 %v5248, 1.0
      %v5270 = vadd.f32 %v5250, 1.0
      %v5271 = vadd.f32 %v5252, 1.0
      %v5272 = vadd.f32 %v5254, 1.0
      %v5273 = vadd.f32 %v5256, 1.0
      %v5274 = vadd.f32 %v5258, 1.0
      %v5275 = vrcp.pop %v5259
      %v5276 = vrcp.pop %v5260
      %v5277 = vrcp.pop %v5261
      %v5278 = vrcp.pop %v5262
      %v5279 = vrcp.pop %v5263
      %v5280 = vrcp.pop %v5264
      %v5281 = vrcp.pop %v5265
      %v5282 = vrcp.pop %v5266
      %v5283 = vrcp.pop %v5267
      %v5284 = vrcp.pop %v5268
      %v5285 = vrcp.pop %v5269
      %v5286 = vrcp.pop %v5270
      %v5287 = vrcp.pop %v5271
      %v5288 = vrcp.pop %v5272
      %v5289 = vrcp.pop %v5273
      %v5290 = vrcp.pop %v5274
      %v5291 = vtanh.pop %v5195
      %v5292 = vtanh.pop %v5196
      %v5293 = vtanh.pop %v5197
      %v5294 = vtanh.pop %v5198
      %v5295 = vtanh.pop %v5199
      %v5296 = vtanh.pop %v5200
      %v5297 = vtanh.pop %v5201
      %v5298 = vtanh.pop %v5202
      %v5299 = vtanh.pop %v5203
      %v5300 = vtanh.pop %v5204
      %v5301 = vtanh.pop %v5205
      %v5302 = vtanh.pop %v5206
      %v5303 = vtanh.pop %v5207
      %v5304 = vtanh.pop %v5208
      %v5305 = vtanh.pop %v5209
      %v5306 = vtanh.pop %v5210
      %5307 = vrot.lane.b32.xlu0 %v5291, 64
      %v5308 = vpop.permute.xlu0 %5307
      %5309 = vrot.lane.b32.xlu0 %v5292, 64
      %v5310 = vpop.permute.xlu0 %5309
      %5311 = vrot.lane.b32.xlu0 %v5293, 64
      %v5312 = vpop.permute.xlu0 %5311
      %5313 = vrot.lane.b32.xlu0 %v5294, 64
      %v5314 = vpop.permute.xlu0 %5313
      %5315 = vrot.lane.b32.xlu0 %v5295, 64
      %v5316 = vpop.permute.xlu0 %5315
      %5317 = vrot.lane.b32.xlu0 %v5296, 64
      %v5318 = vpop.permute.xlu0 %5317
      %5319 = vrot.lane.b32.xlu0 %v5297, 64
      %v5320 = vpop.permute.xlu0 %5319
      %5321 = vrot.lane.b32.xlu0 %v5298, 64
      %v5322 = vpop.permute.xlu0 %5321
      %5323 = vrot.lane.b32.xlu0 %v5299, 64
      %v5324 = vpop.permute.xlu0 %5323
      %5325 = vrot.lane.b32.xlu0 %v5300, 64
      %v5326 = vpop.permute.xlu0 %5325
      %5327 = vrot.lane.b32.xlu0 %v5301, 64
      %v5328 = vpop.permute.xlu0 %5327
      %5329 = vrot.lane.b32.xlu0 %v5302, 64
      %v5330 = vpop.permute.xlu0 %5329
      %5331 = vrot.lane.b32.xlu0 %v5303, 64
      %v5332 = vpop.permute.xlu0 %5331
      %5333 = vrot.lane.b32.xlu0 %v5304, 64
      %v5334 = vpop.permute.xlu0 %5333
      %5335 = vrot.lane.b32.xlu0 %v5305, 64
      %v5336 = vpop.permute.xlu0 %5335
      %5337 = vrot.lane.b32.xlu0 %v5306, 64
      %v5338 = vpop.permute.xlu0 %5337
      %v5339 = vmul.f32 %v5275, %v5308
      %v5340 = vmul.f32 %v5276, %v5310
      %v5341 = vmul.f32 %v5277, %v5312
      %v5342 = vmul.f32 %v5278, %v5314
      %v5343 = vmul.f32 %v5279, %v5316
      %v5344 = vmul.f32 %v5280, %v5318
      %v5345 = vmul.f32 %v5281, %v5320
      %v5346 = vmul.f32 %v5282, %v5322
      %v5347 = vmul.f32 %v5283, %v5324
      %v5348 = vmul.f32 %v5284, %v5326
      %v5349 = vmul.f32 %v5285, %v5328
      %v5350 = vmul.f32 %v5286, %v5330
      %v5351 = vmul.f32 %v5287, %v5332
      %v5352 = vmul.f32 %v5288, %v5334
      %v5353 = vmul.f32 %v5289, %v5336
      %v5354 = vmul.f32 %v5290, %v5338
      %5355 = vrot.lane.b32.xlu0 %v4521, 32
      %v5356 = vpop.permute.xlu0 %5355
      %5357 = vrot.lane.b32.xlu0 %v4522, 32
      %v5358 = vpop.permute.xlu0 %5357
      %5359 = vrot.lane.b32.xlu0 %v4523, 32
      %v5360 = vpop.permute.xlu0 %5359
      %5361 = vrot.lane.b32.xlu0 %v4524, 32
      %v5362 = vpop.permute.xlu0 %5361
      %5363 = vrot.lane.b32.xlu0 %v4525, 32
      %v5364 = vpop.permute.xlu0 %5363
      %5365 = vrot.lane.b32.xlu0 %v4526, 32
      %v5366 = vpop.permute.xlu0 %5365
      %5367 = vrot.lane.b32.xlu0 %v4527, 32
      %v5368 = vpop.permute.xlu0 %5367
      %5369 = vrot.lane.b32.xlu0 %v4528, 32
      %v5370 = vpop.permute.xlu0 %5369
      %5371 = vrot.lane.b32.xlu0 %v4529, 32
      %v5372 = vpop.permute.xlu0 %5371
      %5373 = vrot.lane.b32.xlu0 %v4530, 32
      %v5374 = vpop.permute.xlu0 %5373
      %5375 = vrot.lane.b32.xlu0 %v4531, 32
      %v5376 = vpop.permute.xlu0 %5375
      %5377 = vrot.lane.b32.xlu0 %v4532, 32
      %v5378 = vpop.permute.xlu0 %5377
      %5379 = vrot.lane.b32.xlu0 %v4533, 32
      %v5380 = vpop.permute.xlu0 %5379
      %5381 = vrot.lane.b32.xlu0 %v4534, 32
      %v5382 = vpop.permute.xlu0 %5381
      %5383 = vrot.lane.b32.xlu0 %v4535, 32
      %v5384 = vpop.permute.xlu0 %5383
      %5385 = vrot.lane.b32.xlu0 %v4536, 32
      %v5386 = vpop.permute.xlu0 %5385
      %v5387 = vmul.f32 %v5275, %v5356
      %v5388 = vmul.f32 %v5276, %v5358
      %v5389 = vmul.f32 %v5277, %v5360
      %v5390 = vmul.f32 %v5278, %v5362
      %v5391 = vmul.f32 %v5279, %v5364
      %v5392 = vmul.f32 %v5280, %v5366
      %v5393 = vmul.f32 %v5281, %v5368
      %v5394 = vmul.f32 %v5282, %v5370
      %v5395 = vmul.f32 %v5283, %v5372
      %v5396 = vmul.f32 %v5284, %v5374
      %v5397 = vmul.f32 %v5285, %v5376
      %v5398 = vmul.f32 %v5286, %v5378
      %v5399 = vmul.f32 %v5287, %v5380
      %v5400 = vmul.f32 %v5288, %v5382
      %v5401 = vmul.f32 %v5289, %v5384
      %v5402 = vmul.f32 %v5290, %v5386
      %5403 = vrot.lane.b32.xlu0 %v5387, 96
      %v5404 = vpop.permute.xlu0 %5403
      %5405 = vrot.lane.b32.xlu0 %v5388, 96
      %v5406 = vpop.permute.xlu0 %5405
      %5407 = vrot.lane.b32.xlu0 %v5389, 96
      %v5408 = vpop.permute.xlu0 %5407
      %5409 = vrot.lane.b32.xlu0 %v5390, 96
      %v5410 = vpop.permute.xlu0 %5409
      %5411 = vrot.lane.b32.xlu0 %v5391, 96
      %v5412 = vpop.permute.xlu0 %5411
      %5413 = vrot.lane.b32.xlu0 %v5392, 96
      %v5414 = vpop.permute.xlu0 %5413
      %5415 = vrot.lane.b32.xlu0 %v5393, 96
      %v5416 = vpop.permute.xlu0 %5415
      %5417 = vrot.lane.b32.xlu0 %v5394, 96
      %v5418 = vpop.permute.xlu0 %5417
      %5419 = vrot.lane.b32.xlu0 %v5395, 96
      %v5420 = vpop.permute.xlu0 %5419
      %5421 = vrot.lane.b32.xlu0 %v5396, 96
      %v5422 = vpop.permute.xlu0 %5421
      %5423 = vrot.lane.b32.xlu0 %v5397, 96
      %v5424 = vpop.permute.xlu0 %5423
      %5425 = vrot.lane.b32.xlu0 %v5398, 96
      %v5426 = vpop.permute.xlu0 %5425
      %5427 = vrot.lane.b32.xlu0 %v5399, 96
      %v5428 = vpop.permute.xlu0 %5427
      %5429 = vrot.lane.b32.xlu0 %v5400, 96
      %v5430 = vpop.permute.xlu0 %5429
      %5431 = vrot.lane.b32.xlu0 %v5401, 96
      %v5432 = vpop.permute.xlu0 %5431
      %5433 = vrot.lane.b32.xlu0 %v5402, 96
      %v5434 = vpop.permute.xlu0 %5433
      %v5435 = vadd.f32 %v5339, %v5404
      %v5436 = vadd.f32 %v5340, %v5406
      %v5437 = vadd.f32 %v5341, %v5408
      %v5438 = vadd.f32 %v5342, %v5410
      %v5439 = vadd.f32 %v5343, %v5412
      %v5440 = vadd.f32 %v5344, %v5414
      %v5441 = vadd.f32 %v5345, %v5416
      %v5442 = vadd.f32 %v5346, %v5418
      %v5443 = vadd.f32 %v5347, %v5420
      %v5444 = vadd.f32 %v5348, %v5422
      %v5445 = vadd.f32 %v5349, %v5424
      %v5446 = vadd.f32 %v5350, %v5426
      %v5447 = vadd.f32 %v5351, %v5428
      %v5448 = vadd.f32 %v5352, %v5430
      %v5449 = vadd.f32 %v5353, %v5432
      %v5450 = vadd.f32 %v5354, %v5434
      %v5451 = vsel %vm3235, %v5435, 0.0
      %v5452 = vsel %vm3235, %v5436, 0.0
      %v5453 = vsel %vm3235, %v5437, 0.0
      %v5454 = vsel %vm3235, %v5438, 0.0
      %v5455 = vsel %vm3235, %v5439, 0.0
      %v5456 = vsel %vm3235, %v5440, 0.0
      %v5457 = vsel %vm3235, %v5441, 0.0
      %v5458 = vsel %vm3235, %v5442, 0.0
      %v5459 = vsel %vm3235, %v5443, 0.0
      %v5460 = vsel %vm3235, %v5444, 0.0
      %v5461 = vsel %vm3235, %v5445, 0.0
      %v5462 = vsel %vm3235, %v5446, 0.0
      %v5463 = vsel %vm3235, %v5447, 0.0
      %v5464 = vsel %vm3235, %v5448, 0.0
      %v5465 = vsel %vm3235, %v5449, 0.0
      %v5466 = vsel %vm3235, %v5450, 0.0
      %5467 = vrot.lane.b32.xlu0 %v5275, 32
      %v5468 = vpop.permute.xlu0 %5467
      %5469 = vrot.lane.b32.xlu0 %v5276, 32
      %v5470 = vpop.permute.xlu0 %5469
      %5471 = vrot.lane.b32.xlu0 %v5277, 32
      %v5472 = vpop.permute.xlu0 %5471
      %5473 = vrot.lane.b32.xlu0 %v5278, 32
      %v5474 = vpop.permute.xlu0 %5473
      %5475 = vrot.lane.b32.xlu0 %v5279, 32
      %v5476 = vpop.permute.xlu0 %5475
      %5477 = vrot.lane.b32.xlu0 %v5280, 32
      %v5478 = vpop.permute.xlu0 %5477
      %5479 = vrot.lane.b32.xlu0 %v5281, 32
      %v5480 = vpop.permute.xlu0 %5479
      %5481 = vrot.lane.b32.xlu0 %v5282, 32
      %v5482 = vpop.permute.xlu0 %5481
      %5483 = vrot.lane.b32.xlu0 %v5283, 32
      %v5484 = vpop.permute.xlu0 %5483
      %5485 = vrot.lane.b32.xlu0 %v5284, 32
      %v5486 = vpop.permute.xlu0 %5485
      %5487 = vrot.lane.b32.xlu0 %v5285, 32
      %v5488 = vpop.permute.xlu0 %5487
      %5489 = vrot.lane.b32.xlu0 %v5286, 32
      %v5490 = vpop.permute.xlu0 %5489
      %5491 = vrot.lane.b32.xlu0 %v5287, 32
      %v5492 = vpop.permute.xlu0 %5491
      %5493 = vrot.lane.b32.xlu0 %v5288, 32
      %v5494 = vpop.permute.xlu0 %5493
      %5495 = vrot.lane.b32.xlu0 %v5289, 32
      %v5496 = vpop.permute.xlu0 %5495
      %5497 = vrot.lane.b32.xlu0 %v5290, 32
      %v5498 = vpop.permute.xlu0 %5497
      %v5499 = vtanh.pop %v5451
      %v5500 = vtanh.pop %v5452
      %v5501 = vtanh.pop %v5453
      %v5502 = vtanh.pop %v5454
      %v5503 = vtanh.pop %v5455
      %v5504 = vtanh.pop %v5456
      %v5505 = vtanh.pop %v5457
      %v5506 = vtanh.pop %v5458
      %v5507 = vtanh.pop %v5459
      %v5508 = vtanh.pop %v5460
      %v5509 = vtanh.pop %v5461
      %v5510 = vtanh.pop %v5462
      %v5511 = vtanh.pop %v5463
      %v5512 = vtanh.pop %v5464
      %v5513 = vtanh.pop %v5465
      %v5514 = vtanh.pop %v5466
      %v5515 = vmul.f32 %v5468, %v5499
      %v5516 = vmul.f32 %v5470, %v5500
      %v5517 = vmul.f32 %v5472, %v5501
      %v5518 = vmul.f32 %v5474, %v5502
      %v5519 = vmul.f32 %v5476, %v5503
      %v5520 = vmul.f32 %v5478, %v5504
      %v5521 = vmul.f32 %v5480, %v5505
      %v5522 = vmul.f32 %v5482, %v5506
      %v5523 = vmul.f32 %v5484, %v5507
      %v5524 = vmul.f32 %v5486, %v5508
      %v5525 = vmul.f32 %v5488, %v5509
      %v5526 = vmul.f32 %v5490, %v5510
      %v5527 = vmul.f32 %v5492, %v5511
      %v5528 = vmul.f32 %v5494, %v5512
      %v5529 = vmul.f32 %v5496, %v5513
      %v5530 = vmul.f32 %v5498, %v5514
      %5531 = vrot.lane.b32.xlu0 %v5074, 32
      %v5532 = vpop.permute.xlu0 %5531
      %5533 = vrot.lane.b32.xlu0 %v5075, 32
      %v5534 = vpop.permute.xlu0 %5533
      %5535 = vrot.lane.b32.xlu0 %v5076, 32
      %v5536 = vpop.permute.xlu0 %5535
      %5537 = vrot.lane.b32.xlu0 %v5077, 32
      %v5538 = vpop.permute.xlu0 %5537
      %5539 = vrot.lane.b32.xlu0 %v5078, 32
      %v5540 = vpop.permute.xlu0 %5539
      %5541 = vrot.lane.b32.xlu0 %v5079, 32
      %v5542 = vpop.permute.xlu0 %5541
      %5543 = vrot.lane.b32.xlu0 %v5080, 32
      %v5544 = vpop.permute.xlu0 %5543
      %5545 = vrot.lane.b32.xlu0 %v5081, 32
      %v5546 = vpop.permute.xlu0 %5545
      %5547 = vrot.lane.b32.xlu0 %v5082, 32
      %v5548 = vpop.permute.xlu0 %5547
      %5549 = vrot.lane.b32.xlu0 %v5083, 32
      %v5550 = vpop.permute.xlu0 %5549
      %5551 = vrot.lane.b32.xlu0 %v5084, 32
      %v5552 = vpop.permute.xlu0 %5551
      %5553 = vrot.lane.b32.xlu0 %v5085, 32
      %v5554 = vpop.permute.xlu0 %5553
      %5555 = vrot.lane.b32.xlu0 %v5086, 32
      %v5556 = vpop.permute.xlu0 %5555
      %5557 = vrot.lane.b32.xlu0 %v5087, 32
      %v5558 = vpop.permute.xlu0 %5557
      %5559 = vrot.lane.b32.xlu0 %v5088, 32
      %v5560 = vpop.permute.xlu0 %5559
      %5561 = vrot.lane.b32.xlu0 %v5089, 32
      %v5562 = vpop.permute.xlu0 %5561
      %v5563 = vadd.f32 %v5515, %v5532
      %v5564 = vadd.f32 %v5516, %v5534
      %v5565 = vadd.f32 %v5517, %v5536
      %v5566 = vadd.f32 %v5518, %v5538
      %v5567 = vadd.f32 %v5519, %v5540
      %v5568 = vadd.f32 %v5520, %v5542
      %v5569 = vadd.f32 %v5521, %v5544
      %v5570 = vadd.f32 %v5522, %v5546
      %v5571 = vadd.f32 %v5523, %v5548
      %v5572 = vadd.f32 %v5524, %v5550
      %v5573 = vadd.f32 %v5525, %v5552
      %v5574 = vadd.f32 %v5526, %v5554
      %v5575 = vadd.f32 %v5527, %v5556
      %v5576 = vadd.f32 %v5528, %v5558
      %v5577 = vadd.f32 %v5529, %v5560
      %v5578 = vadd.f32 %v5530, %v5562
      %v5579 = vpack.c.bf16 %v5564, %v5563
      %v5580 = vpack.c.bf16 %v5566, %v5565
      %v5581 = vpack.c.bf16 %v5568, %v5567
      %v5582 = vpack.c.bf16 %v5570, %v5569
      %v5583 = vpack.c.bf16 %v5572, %v5571
      %v5584 = vpack.c.bf16 %v5574, %v5573
      %v5585 = vpack.c.bf16 %v5576, %v5575
      %v5586 = vpack.c.bf16 %v5578, %v5577
      %5587 = vmatprep.subr.bf16.mxu0 0
      %5588 = vmatpush1.bf16.msra.mxu0 %v3750
      %5589 = vmatprep.subr.bf16.mxu0 0
      %5590 = vmatpush1.bf16.msra.mxu0 %v3749
      %5591 = vmatprep.subr.bf16.mxu0 0
      %5592 = vmatpush1.bf16.msra.mxu0 %v3748
      %5593 = vmatprep.subr.bf16.mxu0 0
      %5594 = vmatpush1.bf16.msra.mxu0 %v3747
      %5595 = vmatprep.subr.bf16.mxu0 0
      %5596 = vmatpush1.bf16.msra.mxu0 %v3746
      %5597 = vmatprep.subr.bf16.mxu0 0
      %5598 = vmatpush1.bf16.msra.mxu0 %v3745
      %5599 = vmatprep.subr.bf16.mxu0 0
      %5600 = vmatpush1.bf16.msra.mxu0 %v3744
      %5601 = vmatprep.subr.bf16.mxu0 0
      %5602 = vmatpush1.bf16.msra.mxu0 %v3743
      %5603 = vmatprep.subr.bf16.mxu0 0
      %5604 = vmatpush2.bf16.msra.mxu0 0
      %5605 = vmatprep.subr.bf16.mxu0 0
      %5606 = vmatpush2.bf16.msra.mxu0 0
      %5607 = vmatprep.subr.bf16.mxu0 0
      %5608 = vmatpush2.bf16.msra.mxu0 0
      %5609 = vmatprep.subr.bf16.mxu0 0
      %5610 = vmatpush2.bf16.msra.mxu0 0
      %5611 = vmatprep.subr.bf16.mxu0 0
      %5612 = vmatpush2.bf16.msra.mxu0 0
      %5613 = vmatprep.subr.bf16.mxu0 0
      %5614 = vmatpush2.bf16.msra.mxu0 0
      %5615 = vmatprep.subr.bf16.mxu0 0
      %5616 = vmatpush2.bf16.msra.mxu0 0
      %5617 = vmatprep.subr.bf16.mxu0 0
      %5618 = vmatpush2.bf16.msra.mxu0 0
      %5619 = vmatprep.mubr.bf16.mxu0 0
      %5620 = vmatmul.mubr.bf16.gmra.mxu0 %v5579
      %v5621 = vpop.f32.mrf.mxu0
      %v5622 = vadd.f32 0.0, %v5621
      %v5623 = vpop.f32.mrf.mxu0
      %v5624 = vpop.f32.mrf.mxu0
      %v5625 = vadd.f32 0.0, %v5624
      %v5626 = vpop.f32.mrf.mxu0
      %5627 = vmatprep.mubr.bf16.mxu0 0
      %5628 = vmatmul.mubr.bf16.gmra.mxu0 %v5580
      %v5629 = vpop.f32.mrf.mxu0
      %v5630 = vadd.f32 0.0, %v5629
      %v5631 = vpop.f32.mrf.mxu0
      %v5632 = vpop.f32.mrf.mxu0
      %v5633 = vadd.f32 0.0, %v5632
      %v5634 = vpop.f32.mrf.mxu0
      %5635 = vmatprep.mubr.bf16.mxu0 0
      %5636 = vmatmul.mubr.bf16.gmra.mxu0 %v5581
      %v5637 = vpop.f32.mrf.mxu0
      %v5638 = vadd.f32 0.0, %v5637
      %v5639 = vpop.f32.mrf.mxu0
      %v5640 = vpop.f32.mrf.mxu0
      %v5641 = vadd.f32 0.0, %v5640
      %v5642 = vpop.f32.mrf.mxu0
      %5643 = vmatprep.mubr.bf16.mxu0 0
      %5644 = vmatmul.mubr.bf16.gmra.mxu0 %v5582
      %v5645 = vpop.f32.mrf.mxu0
      %v5646 = vadd.f32 0.0, %v5645
      %v5647 = vpop.f32.mrf.mxu0
      %v5648 = vpop.f32.mrf.mxu0
      %v5649 = vadd.f32 0.0, %v5648
      %v5650 = vpop.f32.mrf.mxu0
      %5651 = vmatprep.mubr.bf16.mxu0 0
      %5652 = vmatmul.mubr.bf16.gmra.mxu0 %v5583
      %v5653 = vpop.f32.mrf.mxu0
      %v5654 = vadd.f32 0.0, %v5653
      %v5655 = vpop.f32.mrf.mxu0
      %v5656 = vpop.f32.mrf.mxu0
      %v5657 = vadd.f32 0.0, %v5656
      %v5658 = vpop.f32.mrf.mxu0
      %5659 = vmatprep.mubr.bf16.mxu0 0
      %5660 = vmatmul.mubr.bf16.gmra.mxu0 %v5584
      %v5661 = vpop.f32.mrf.mxu0
      %v5662 = vadd.f32 0.0, %v5661
      %v5663 = vpop.f32.mrf.mxu0
      %v5664 = vpop.f32.mrf.mxu0
      %v5665 = vadd.f32 0.0, %v5664
      %v5666 = vpop.f32.mrf.mxu0
      %5667 = vmatprep.mubr.bf16.mxu0 0
      %5668 = vmatmul.mubr.bf16.gmra.mxu0 %v5585
      %v5669 = vpop.f32.mrf.mxu0
      %v5670 = vadd.f32 0.0, %v5669
      %v5671 = vpop.f32.mrf.mxu0
      %v5672 = vpop.f32.mrf.mxu0
      %v5673 = vadd.f32 0.0, %v5672
      %v5674 = vpop.f32.mrf.mxu0
      %5675 = vmatprep.mubr.bf16.mxu0 0
      %5676 = vmatmul.mubr.bf16.gmra.mxu0 %v5586
      %v5677 = vpop.f32.mrf.mxu0
      %v5678 = vadd.f32 0.0, %v5677
      %v5679 = vpop.f32.mrf.mxu0
      %v5680 = vpop.f32.mrf.mxu0
      %v5681 = vadd.f32 0.0, %v5680
      %v5682 = vpop.f32.mrf.mxu0
      %5683 = vdwg.mxu0
      %v5684 = vadd.f32 %v3234, %v5622
      %v5685 = vadd.f32 %v3234, %v5625
      %v5686 = vadd.f32 %v3234, %v5630
      %v5687 = vadd.f32 %v3234, %v5633
      %v5688 = vadd.f32 %v3234, %v5638
      %v5689 = vadd.f32 %v3234, %v5641
      %v5690 = vadd.f32 %v3234, %v5646
      %v5691 = vadd.f32 %v3234, %v5649
      %v5692 = vadd.f32 %v3234, %v5654
      %v5693 = vadd.f32 %v3234, %v5657
      %v5694 = vadd.f32 %v3234, %v5662
      %v5695 = vadd.f32 %v3234, %v5665
      %v5696 = vadd.f32 %v3234, %v5670
      %v5697 = vadd.f32 %v3234, %v5673
      %v5698 = vadd.f32 %v3234, %v5678
      %v5699 = vadd.f32 %v3234, %v5681
      %v5700 = vsub.f32 0.0, %v5684
      %v5701 = vsub.f32 0.0, %v5685
      %v5702 = vsub.f32 0.0, %v5686
      %v5703 = vsub.f32 0.0, %v5687
      %v5704 = vsub.f32 0.0, %v5688
      %v5705 = vsub.f32 0.0, %v5689
      %v5706 = vsub.f32 0.0, %v5690
      %v5707 = vsub.f32 0.0, %v5691
      %v5708 = vsub.f32 0.0, %v5692
      %v5709 = vsub.f32 0.0, %v5693
      %v5710 = vsub.f32 0.0, %v5694
      %v5711 = vsub.f32 0.0, %v5695
      %v5712 = vsub.f32 0.0, %v5696
      %v5713 = vsub.f32 0.0, %v5697
      %v5714 = vsub.f32 0.0, %v5698
      %v5715 = vsub.f32 0.0, %v5699
      %v5716 = vmul.f32 %v5700, 1.442695
      %v5717 = vpow.pop %v5716
      %v5718 = vmul.f32 %v5701, 1.442695
      %v5719 = vpow.pop %v5718
      %v5720 = vmul.f32 %v5702, 1.442695
      %v5721 = vpow.pop %v5720
      %v5722 = vmul.f32 %v5703, 1.442695
      %v5723 = vpow.pop %v5722
      %v5724 = vmul.f32 %v5704, 1.442695
      %v5725 = vpow.pop %v5724
      %v5726 = vmul.f32 %v5705, 1.442695
      %v5727 = vpow.pop %v5726
      %v5728 = vmul.f32 %v5706, 1.442695
      %v5729 = vpow.pop %v5728
      %v5730 = vmul.f32 %v5707, 1.442695
      %v5731 = vpow.pop %v5730
      %v5732 = vmul.f32 %v5708, 1.442695
      %v5733 = vpow.pop %v5732
      %v5734 = vmul.f32 %v5709, 1.442695
      %v5735 = vpow.pop %v5734
      %v5736 = vmul.f32 %v5710, 1.442695
      %v5737 = vpow.pop %v5736
      %v5738 = vmul.f32 %v5711, 1.442695
      %v5739 = vpow.pop %v5738
      %v5740 = vmul.f32 %v5712, 1.442695
      %v5741 = vpow.pop %v5740
      %v5742 = vmul.f32 %v5713, 1.442695
      %v5743 = vpow.pop %v5742
      %v5744 = vmul.f32 %v5714, 1.442695
      %v5745 = vpow.pop %v5744
      %v5746 = vmul.f32 %v5715, 1.442695
      %v5747 = vpow.pop %v5746
      %v5748 = vadd.f32 %v5717, 1.0
      %v5749 = vadd.f32 %v5719, 1.0
      %v5750 = vadd.f32 %v5721, 1.0
      %v5751 = vadd.f32 %v5723, 1.0
      %v5752 = vadd.f32 %v5725, 1.0
      %v5753 = vadd.f32 %v5727, 1.0
      %v5754 = vadd.f32 %v5729, 1.0
      %v5755 = vadd.f32 %v5731, 1.0
      %v5756 = vadd.f32 %v5733, 1.0
      %v5757 = vadd.f32 %v5735, 1.0
      %v5758 = vadd.f32 %v5737, 1.0
      %v5759 = vadd.f32 %v5739, 1.0
      %v5760 = vadd.f32 %v5741, 1.0
      %v5761 = vadd.f32 %v5743, 1.0
      %v5762 = vadd.f32 %v5745, 1.0
      %v5763 = vadd.f32 %v5747, 1.0
      %v5764 = vrcp.pop %v5748
      %v5765 = vrcp.pop %v5749
      %v5766 = vrcp.pop %v5750
      %v5767 = vrcp.pop %v5751
      %v5768 = vrcp.pop %v5752
      %v5769 = vrcp.pop %v5753
      %v5770 = vrcp.pop %v5754
      %v5771 = vrcp.pop %v5755
      %v5772 = vrcp.pop %v5756
      %v5773 = vrcp.pop %v5757
      %v5774 = vrcp.pop %v5758
      %v5775 = vrcp.pop %v5759
      %v5776 = vrcp.pop %v5760
      %v5777 = vrcp.pop %v5761
      %v5778 = vrcp.pop %v5762
      %v5779 = vrcp.pop %v5763
      %v5780 = vtanh.pop %v5684
      %v5781 = vtanh.pop %v5685
      %v5782 = vtanh.pop %v5686
      %v5783 = vtanh.pop %v5687
      %v5784 = vtanh.pop %v5688
      %v5785 = vtanh.pop %v5689
      %v5786 = vtanh.pop %v5690
      %v5787 = vtanh.pop %v5691
      %v5788 = vtanh.pop %v5692
      %v5789 = vtanh.pop %v5693
      %v5790 = vtanh.pop %v5694
      %v5791 = vtanh.pop %v5695
      %v5792 = vtanh.pop %v5696
      %v5793 = vtanh.pop %v5697
      %v5794 = vtanh.pop %v5698
      %v5795 = vtanh.pop %v5699
      %5796 = vrot.lane.b32.xlu0 %v5780, 64
      %v5797 = vpop.permute.xlu0 %5796
      %5798 = vrot.lane.b32.xlu0 %v5781, 64
      %v5799 = vpop.permute.xlu0 %5798
      %5800 = vrot.lane.b32.xlu0 %v5782, 64
      %v5801 = vpop.permute.xlu0 %5800
      %5802 = vrot.lane.b32.xlu0 %v5783, 64
      %v5803 = vpop.permute.xlu0 %5802
      %5804 = vrot.lane.b32.xlu0 %v5784, 64
      %v5805 = vpop.permute.xlu0 %5804
      %5806 = vrot.lane.b32.xlu0 %v5785, 64
      %v5807 = vpop.permute.xlu0 %5806
      %5808 = vrot.lane.b32.xlu0 %v5786, 64
      %v5809 = vpop.permute.xlu0 %5808
      %5810 = vrot.lane.b32.xlu0 %v5787, 64
      %v5811 = vpop.permute.xlu0 %5810
      %5812 = vrot.lane.b32.xlu0 %v5788, 64
      %v5813 = vpop.permute.xlu0 %5812
      %5814 = vrot.lane.b32.xlu0 %v5789, 64
      %v5815 = vpop.permute.xlu0 %5814
      %5816 = vrot.lane.b32.xlu0 %v5790, 64
      %v5817 = vpop.permute.xlu0 %5816
      %5818 = vrot.lane.b32.xlu0 %v5791, 64
      %v5819 = vpop.permute.xlu0 %5818
      %5820 = vrot.lane.b32.xlu0 %v5792, 64
      %v5821 = vpop.permute.xlu0 %5820
      %5822 = vrot.lane.b32.xlu0 %v5793, 64
      %v5823 = vpop.permute.xlu0 %5822
      %5824 = vrot.lane.b32.xlu0 %v5794, 64
      %v5825 = vpop.permute.xlu0 %5824
      %5826 = vrot.lane.b32.xlu0 %v5795, 64
      %v5827 = vpop.permute.xlu0 %5826
      %v5828 = vmul.f32 %v5764, %v5797
      %v5829 = vmul.f32 %v5765, %v5799
      %v5830 = vmul.f32 %v5766, %v5801
      %v5831 = vmul.f32 %v5767, %v5803
      %v5832 = vmul.f32 %v5768, %v5805
      %v5833 = vmul.f32 %v5769, %v5807
      %v5834 = vmul.f32 %v5770, %v5809
      %v5835 = vmul.f32 %v5771, %v5811
      %v5836 = vmul.f32 %v5772, %v5813
      %v5837 = vmul.f32 %v5773, %v5815
      %v5838 = vmul.f32 %v5774, %v5817
      %v5839 = vmul.f32 %v5775, %v5819
      %v5840 = vmul.f32 %v5776, %v5821
      %v5841 = vmul.f32 %v5777, %v5823
      %v5842 = vmul.f32 %v5778, %v5825
      %v5843 = vmul.f32 %v5779, %v5827
      %5844 = vrot.lane.b32.xlu0 %v5010, 32
      %v5845 = vpop.permute.xlu0 %5844
      %5846 = vrot.lane.b32.xlu0 %v5011, 32
      %v5847 = vpop.permute.xlu0 %5846
      %5848 = vrot.lane.b32.xlu0 %v5012, 32
      %v5849 = vpop.permute.xlu0 %5848
      %5850 = vrot.lane.b32.xlu0 %v5013, 32
      %v5851 = vpop.permute.xlu0 %5850
      %5852 = vrot.lane.b32.xlu0 %v5014, 32
      %v5853 = vpop.permute.xlu0 %5852
      %5854 = vrot.lane.b32.xlu0 %v5015, 32
      %v5855 = vpop.permute.xlu0 %5854
      %5856 = vrot.lane.b32.xlu0 %v5016, 32
      %v5857 = vpop.permute.xlu0 %5856
      %5858 = vrot.lane.b32.xlu0 %v5017, 32
      %v5859 = vpop.permute.xlu0 %5858
      %5860 = vrot.lane.b32.xlu0 %v5018, 32
      %v5861 = vpop.permute.xlu0 %5860
      %5862 = vrot.lane.b32.xlu0 %v5019, 32
      %v5863 = vpop.permute.xlu0 %5862
      %5864 = vrot.lane.b32.xlu0 %v5020, 32
      %v5865 = vpop.permute.xlu0 %5864
      %5866 = vrot.lane.b32.xlu0 %v5021, 32
      %v5867 = vpop.permute.xlu0 %5866
      %5868 = vrot.lane.b32.xlu0 %v5022, 32
      %v5869 = vpop.permute.xlu0 %5868
      %5870 = vrot.lane.b32.xlu0 %v5023, 32
      %v5871 = vpop.permute.xlu0 %5870
      %5872 = vrot.lane.b32.xlu0 %v5024, 32
      %v5873 = vpop.permute.xlu0 %5872
      %5874 = vrot.lane.b32.xlu0 %v5025, 32
      %v5875 = vpop.permute.xlu0 %5874
      %v5876 = vmul.f32 %v5764, %v5845
      %v5877 = vmul.f32 %v5765, %v5847
      %v5878 = vmul.f32 %v5766, %v5849
      %v5879 = vmul.f32 %v5767, %v5851
      %v5880 = vmul.f32 %v5768, %v5853
      %v5881 = vmul.f32 %v5769, %v5855
      %v5882 = vmul.f32 %v5770, %v5857
      %v5883 = vmul.f32 %v5771, %v5859
      %v5884 = vmul.f32 %v5772, %v5861
      %v5885 = vmul.f32 %v5773, %v5863
      %v5886 = vmul.f32 %v5774, %v5865
      %v5887 = vmul.f32 %v5775, %v5867
      %v5888 = vmul.f32 %v5776, %v5869
      %v5889 = vmul.f32 %v5777, %v5871
      %v5890 = vmul.f32 %v5778, %v5873
      %v5891 = vmul.f32 %v5779, %v5875
      %5892 = vrot.lane.b32.xlu0 %v5876, 96
      %v5893 = vpop.permute.xlu0 %5892
      %5894 = vrot.lane.b32.xlu0 %v5877, 96
      %v5895 = vpop.permute.xlu0 %5894
      %5896 = vrot.lane.b32.xlu0 %v5878, 96
      %v5897 = vpop.permute.xlu0 %5896
      %5898 = vrot.lane.b32.xlu0 %v5879, 96
      %v5899 = vpop.permute.xlu0 %5898
      %5900 = vrot.lane.b32.xlu0 %v5880, 96
      %v5901 = vpop.permute.xlu0 %5900
      %5902 = vrot.lane.b32.xlu0 %v5881, 96
      %v5903 = vpop.permute.xlu0 %5902
      %5904 = vrot.lane.b32.xlu0 %v5882, 96
      %v5905 = vpop.permute.xlu0 %5904
      %5906 = vrot.lane.b32.xlu0 %v5883, 96
      %v5907 = vpop.permute.xlu0 %5906
      %5908 = vrot.lane.b32.xlu0 %v5884, 96
      %v5909 = vpop.permute.xlu0 %5908
      %5910 = vrot.lane.b32.xlu0 %v5885, 96
      %v5911 = vpop.permute.xlu0 %5910
      %5912 = vrot.lane.b32.xlu0 %v5886, 96
      %v5913 = vpop.permute.xlu0 %5912
      %5914 = vrot.lane.b32.xlu0 %v5887, 96
      %v5915 = vpop.permute.xlu0 %5914
      %5916 = vrot.lane.b32.xlu0 %v5888, 96
      %v5917 = vpop.permute.xlu0 %5916
      %5918 = vrot.lane.b32.xlu0 %v5889, 96
      %v5919 = vpop.permute.xlu0 %5918
      %5920 = vrot.lane.b32.xlu0 %v5890, 96
      %v5921 = vpop.permute.xlu0 %5920
      %5922 = vrot.lane.b32.xlu0 %v5891, 96
      %v5923 = vpop.permute.xlu0 %5922
      %v5924 = vadd.f32 %v5828, %v5893
      %v5925 = vadd.f32 %v5829, %v5895
      %v5926 = vadd.f32 %v5830, %v5897
      %v5927 = vadd.f32 %v5831, %v5899
      %v5928 = vadd.f32 %v5832, %v5901
      %v5929 = vadd.f32 %v5833, %v5903
      %v5930 = vadd.f32 %v5834, %v5905
      %v5931 = vadd.f32 %v5835, %v5907
      %v5932 = vadd.f32 %v5836, %v5909
      %v5933 = vadd.f32 %v5837, %v5911
      %v5934 = vadd.f32 %v5838, %v5913
      %v5935 = vadd.f32 %v5839, %v5915
      %v5936 = vadd.f32 %v5840, %v5917
      %v5937 = vadd.f32 %v5841, %v5919
      %v5938 = vadd.f32 %v5842, %v5921
      %v5939 = vadd.f32 %v5843, %v5923
      %v5940 = vsel %vm3235, %v5924, 0.0
      %v5941 = vsel %vm3235, %v5925, 0.0
      %v5942 = vsel %vm3235, %v5926, 0.0
      %v5943 = vsel %vm3235, %v5927, 0.0
      %v5944 = vsel %vm3235, %v5928, 0.0
      %v5945 = vsel %vm3235, %v5929, 0.0
      %v5946 = vsel %vm3235, %v5930, 0.0
      %v5947 = vsel %vm3235, %v5931, 0.0
      %v5948 = vsel %vm3235, %v5932, 0.0
      %v5949 = vsel %vm3235, %v5933, 0.0
      %v5950 = vsel %vm3235, %v5934, 0.0
      %v5951 = vsel %vm3235, %v5935, 0.0
      %v5952 = vsel %vm3235, %v5936, 0.0
      %v5953 = vsel %vm3235, %v5937, 0.0
      %v5954 = vsel %vm3235, %v5938, 0.0
      %v5955 = vsel %vm3235, %v5939, 0.0
      %5956 = vrot.lane.b32.xlu0 %v5764, 32
      %v5957 = vpop.permute.xlu0 %5956
      %5958 = vrot.lane.b32.xlu0 %v5765, 32
      %v5959 = vpop.permute.xlu0 %5958
      %5960 = vrot.lane.b32.xlu0 %v5766, 32
      %v5961 = vpop.permute.xlu0 %5960
      %5962 = vrot.lane.b32.xlu0 %v5767, 32
      %v5963 = vpop.permute.xlu0 %5962
      %5964 = vrot.lane.b32.xlu0 %v5768, 32
      %v5965 = vpop.permute.xlu0 %5964
      %5966 = vrot.lane.b32.xlu0 %v5769, 32
      %v5967 = vpop.permute.xlu0 %5966
      %5968 = vrot.lane.b32.xlu0 %v5770, 32
      %v5969 = vpop.permute.xlu0 %5968
      %5970 = vrot.lane.b32.xlu0 %v5771, 32
      %v5971 = vpop.permute.xlu0 %5970
      %5972 = vrot.lane.b32.xlu0 %v5772, 32
      %v5973 = vpop.permute.xlu0 %5972
      %5974 = vrot.lane.b32.xlu0 %v5773, 32
      %v5975 = vpop.permute.xlu0 %5974
      %5976 = vrot.lane.b32.xlu0 %v5774, 32
      %v5977 = vpop.permute.xlu0 %5976
      %5978 = vrot.lane.b32.xlu0 %v5775, 32
      %v5979 = vpop.permute.xlu0 %5978
      %5980 = vrot.lane.b32.xlu0 %v5776, 32
      %v5981 = vpop.permute.xlu0 %5980
      %5982 = vrot.lane.b32.xlu0 %v5777, 32
      %v5983 = vpop.permute.xlu0 %5982
      %5984 = vrot.lane.b32.xlu0 %v5778, 32
      %v5985 = vpop.permute.xlu0 %5984
      %5986 = vrot.lane.b32.xlu0 %v5779, 32
      %v5987 = vpop.permute.xlu0 %5986
      %v5988 = vtanh.pop %v5940
      %v5989 = vtanh.pop %v5941
      %v5990 = vtanh.pop %v5942
      %v5991 = vtanh.pop %v5943
      %v5992 = vtanh.pop %v5944
      %v5993 = vtanh.pop %v5945
      %v5994 = vtanh.pop %v5946
      %v5995 = vtanh.pop %v5947
      %v5996 = vtanh.pop %v5948
      %v5997 = vtanh.pop %v5949
      %v5998 = vtanh.pop %v5950
      %v5999 = vtanh.pop %v5951
      %v6000 = vtanh.pop %v5952
      %v6001 = vtanh.pop %v5953
      %v6002 = vtanh.pop %v5954
      %v6003 = vtanh.pop %v5955
      %v6004 = vmul.f32 %v5957, %v5988
      %v6005 = vmul.f32 %v5959, %v5989
      %v6006 = vmul.f32 %v5961, %v5990
      %v6007 = vmul.f32 %v5963, %v5991
      %v6008 = vmul.f32 %v5965, %v5992
      %v6009 = vmul.f32 %v5967, %v5993
      %v6010 = vmul.f32 %v5969, %v5994
      %v6011 = vmul.f32 %v5971, %v5995
      %v6012 = vmul.f32 %v5973, %v5996
      %v6013 = vmul.f32 %v5975, %v5997
      %v6014 = vmul.f32 %v5977, %v5998
      %v6015 = vmul.f32 %v5979, %v5999
      %v6016 = vmul.f32 %v5981, %v6000
      %v6017 = vmul.f32 %v5983, %v6001
      %v6018 = vmul.f32 %v5985, %v6002
      %v6019 = vmul.f32 %v5987, %v6003
      %v6020 = vpack.c.bf16 %v5516, %v5515
      %v6021 = vpack.c.bf16 %v5518, %v5517
      %v6022 = vpack.c.bf16 %v5520, %v5519
      %v6023 = vpack.c.bf16 %v5522, %v5521
      %v6024 = vpack.c.bf16 %v5524, %v5523
      %v6025 = vpack.c.bf16 %v5526, %v5525
      %v6026 = vpack.c.bf16 %v5528, %v5527
      %v6027 = vpack.c.bf16 %v5530, %v5529
      %6028 = vmatprep.subr.bf16.mxu0 0
      %6029 = vmatpush1.bf16.msra.mxu0 %v3275
      %6030 = vmatprep.subr.bf16.mxu0 0
      %6031 = vmatpush1.bf16.msra.mxu0 %v3274
      %6032 = vmatprep.subr.bf16.mxu0 0
      %6033 = vmatpush1.bf16.msra.mxu0 %v3273
      %6034 = vmatprep.subr.bf16.mxu0 0
      %6035 = vmatpush1.bf16.msra.mxu0 %v3272
      %6036 = vmatprep.subr.bf16.mxu0 0
      %6037 = vmatpush1.bf16.msra.mxu0 %v3271
      %6038 = vmatprep.subr.bf16.mxu0 0
      %6039 = vmatpush1.bf16.msra.mxu0 %v3270
      %6040 = vmatprep.subr.bf16.mxu0 0
      %6041 = vmatpush1.bf16.msra.mxu0 %v3269
      %6042 = vmatprep.subr.bf16.mxu0 0
      %6043 = vmatpush1.bf16.msra.mxu0 %v3268
      %6044 = vmatprep.subr.bf16.mxu0 0
      %6045 = vmatpush2.bf16.msra.mxu0 0
      %6046 = vmatprep.subr.bf16.mxu0 0
      %6047 = vmatpush2.bf16.msra.mxu0 0
      %6048 = vmatprep.subr.bf16.mxu0 0
      %6049 = vmatpush2.bf16.msra.mxu0 0
      %6050 = vmatprep.subr.bf16.mxu0 0
      %6051 = vmatpush2.bf16.msra.mxu0 0
      %6052 = vmatprep.subr.bf16.mxu0 0
      %6053 = vmatpush2.bf16.msra.mxu0 0
      %6054 = vmatprep.subr.bf16.mxu0 0
      %6055 = vmatpush2.bf16.msra.mxu0 0
      %6056 = vmatprep.subr.bf16.mxu0 0
      %6057 = vmatpush2.bf16.msra.mxu0 0
      %6058 = vmatprep.subr.bf16.mxu0 0
      %6059 = vmatpush2.bf16.msra.mxu0 0
      %6060 = vmatprep.mubr.bf16.mxu0 0
      %6061 = vmatmul.mubr.bf16.gmra.mxu0 %v6020
      %v6062 = vpop.f32.mrf.mxu0
      %v6063 = vadd.f32 0.0, %v6062
      %v6064 = vpop.f32.mrf.mxu0
      %v6065 = vpop.f32.mrf.mxu0
      %v6066 = vadd.f32 0.0, %v6065
      %v6067 = vpop.f32.mrf.mxu0
      %6068 = vmatprep.mubr.bf16.mxu0 0
      %6069 = vmatmul.mubr.bf16.gmra.mxu0 %v6021
      %v6070 = vpop.f32.mrf.mxu0
      %v6071 = vadd.f32 0.0, %v6070
      %v6072 = vpop.f32.mrf.mxu0
      %v6073 = vpop.f32.mrf.mxu0
      %v6074 = vadd.f32 0.0, %v6073
      %v6075 = vpop.f32.mrf.mxu0
      %6076 = vmatprep.mubr.bf16.mxu0 0
      %6077 = vmatmul.mubr.bf16.gmra.mxu0 %v6022
      %v6078 = vpop.f32.mrf.mxu0
      %v6079 = vadd.f32 0.0, %v6078
      %v6080 = vpop.f32.mrf.mxu0
      %v6081 = vpop.f32.mrf.mxu0
      %v6082 = vadd.f32 0.0, %v6081
      %v6083 = vpop.f32.mrf.mxu0
      %6084 = vmatprep.mubr.bf16.mxu0 0
      %6085 = vmatmul.mubr.bf16.gmra.mxu0 %v6023
      %v6086 = vpop.f32.mrf.mxu0
      %v6087 = vadd.f32 0.0, %v6086
      %v6088 = vpop.f32.mrf.mxu0
      %v6089 = vpop.f32.mrf.mxu0
      %v6090 = vadd.f32 0.0, %v6089
      %v6091 = vpop.f32.mrf.mxu0
      %6092 = vmatprep.mubr.bf16.mxu0 0
      %6093 = vmatmul.mubr.bf16.gmra.mxu0 %v6024
      %v6094 = vpop.f32.mrf.mxu0
      %v6095 = vadd.f32 0.0, %v6094
      %v6096 = vpop.f32.mrf.mxu0
      %v6097 = vpop.f32.mrf.mxu0
      %v6098 = vadd.f32 0.0, %v6097
      %v6099 = vpop.f32.mrf.mxu0
      %6100 = vmatprep.mubr.bf16.mxu0 0
      %6101 = vmatmul.mubr.bf16.gmra.mxu0 %v6025
      %v6102 = vpop.f32.mrf.mxu0
      %v6103 = vadd.f32 0.0, %v6102
      %v6104 = vpop.f32.mrf.mxu0
      %v6105 = vpop.f32.mrf.mxu0
      %v6106 = vadd.f32 0.0, %v6105
      %v6107 = vpop.f32.mrf.mxu0
      %6108 = vmatprep.mubr.bf16.mxu0 0
      %6109 = vmatmul.mubr.bf16.gmra.mxu0 %v6026
      %v6110 = vpop.f32.mrf.mxu0
      %v6111 = vadd.f32 0.0, %v6110
      %v6112 = vpop.f32.mrf.mxu0
      %v6113 = vpop.f32.mrf.mxu0
      %v6114 = vadd.f32 0.0, %v6113
      %v6115 = vpop.f32.mrf.mxu0
      %6116 = vmatprep.mubr.bf16.mxu0 0
      %6117 = vmatmul.mubr.bf16.gmra.mxu0 %v6027
      %v6118 = vpop.f32.mrf.mxu0
      %v6119 = vadd.f32 0.0, %v6118
      %v6120 = vpop.f32.mrf.mxu0
      %v6121 = vpop.f32.mrf.mxu0
      %v6122 = vadd.f32 0.0, %v6121
      %v6123 = vpop.f32.mrf.mxu0
      %6124 = vdwg.mxu0
      %v6125 = vadd.f32 %v2913, %v6063
      %v6126 = vadd.f32 %v2916, %v6066
      %v6127 = vadd.f32 %v2921, %v6071
      %v6128 = vadd.f32 %v2924, %v6074
      %v6129 = vadd.f32 %v2929, %v6079
      %v6130 = vadd.f32 %v2932, %v6082
      %v6131 = vadd.f32 %v2937, %v6087
      %v6132 = vadd.f32 %v2940, %v6090
      %v6133 = vadd.f32 %v2945, %v6095
      %v6134 = vadd.f32 %v2948, %v6098
      %v6135 = vadd.f32 %v2953, %v6103
      %v6136 = vadd.f32 %v2956, %v6106
      %v6137 = vadd.f32 %v2961, %v6111
      %v6138 = vadd.f32 %v2964, %v6114
      %v6139 = vadd.f32 %v2969, %v6119
      %v6140 = vadd.f32 %v2972, %v6122
      %v6141 = vsub.f32 0.0, %v6125
      %v6142 = vsub.f32 0.0, %v6126
      %v6143 = vsub.f32 0.0, %v6127
      %v6144 = vsub.f32 0.0, %v6128
      %v6145 = vsub.f32 0.0, %v6129
      %v6146 = vsub.f32 0.0, %v6130
      %v6147 = vsub.f32 0.0, %v6131
      %v6148 = vsub.f32 0.0, %v6132
      %v6149 = vsub.f32 0.0, %v6133
      %v6150 = vsub.f32 0.0, %v6134
      %v6151 = vsub.f32 0.0, %v6135
      %v6152 = vsub.f32 0.0, %v6136
      %v6153 = vsub.f32 0.0, %v6137
      %v6154 = vsub.f32 0.0, %v6138
      %v6155 = vsub.f32 0.0, %v6139
      %v6156 = vsub.f32 0.0, %v6140
      %v6157 = vmul.f32 %v6141, 1.442695
      %v6158 = vpow.pop %v6157
      %v6159 = vmul.f32 %v6142, 1.442695
      %v6160 = vpow.pop %v6159
      %v6161 = vmul.f32 %v6143, 1.442695
      %v6162 = vpow.pop %v6161
      %v6163 = vmul.f32 %v6144, 1.442695
      %v6164 = vpow.pop %v6163
      %v6165 = vmul.f32 %v6145, 1.442695
      %v6166 = vpow.pop %v6165
      %v6167 = vmul.f32 %v6146, 1.442695
      %v6168 = vpow.pop %v6167
      %v6169 = vmul.f32 %v6147, 1.442695
      %v6170 = vpow.pop %v6169
      %v6171 = vmul.f32 %v6148, 1.442695
      %v6172 = vpow.pop %v6171
      %v6173 = vmul.f32 %v6149, 1.442695
      %v6174 = vpow.pop %v6173
      %v6175 = vmul.f32 %v6150, 1.442695
      %v6176 = vpow.pop %v6175
      %v6177 = vmul.f32 %v6151, 1.442695
      %v6178 = vpow.pop %v6177
      %v6179 = vmul.f32 %v6152, 1.442695
      %v6180 = vpow.pop %v6179
      %v6181 = vmul.f32 %v6153, 1.442695
      %v6182 = vpow.pop %v6181
      %v6183 = vmul.f32 %v6154, 1.442695
      %v6184 = vpow.pop %v6183
      %v6185 = vmul.f32 %v6155, 1.442695
      %v6186 = vpow.pop %v6185
      %v6187 = vmul.f32 %v6156, 1.442695
      %v6188 = vpow.pop %v6187
      %v6189 = vadd.f32 %v6158, 1.0
      %v6190 = vadd.f32 %v6160, 1.0
      %v6191 = vadd.f32 %v6162, 1.0
      %v6192 = vadd.f32 %v6164, 1.0
      %v6193 = vadd.f32 %v6166, 1.0
      %v6194 = vadd.f32 %v6168, 1.0
      %v6195 = vadd.f32 %v6170, 1.0
      %v6196 = vadd.f32 %v6172, 1.0
      %v6197 = vadd.f32 %v6174, 1.0
      %v6198 = vadd.f32 %v6176, 1.0
      %v6199 = vadd.f32 %v6178, 1.0
      %v6200 = vadd.f32 %v6180, 1.0
      %v6201 = vadd.f32 %v6182, 1.0
      %v6202 = vadd.f32 %v6184, 1.0
      %v6203 = vadd.f32 %v6186, 1.0
      %v6204 = vadd.f32 %v6188, 1.0
      %v6205 = vrcp.pop %v6189
      %v6206 = vrcp.pop %v6190
      %v6207 = vrcp.pop %v6191
      %v6208 = vrcp.pop %v6192
      %v6209 = vrcp.pop %v6193
      %v6210 = vrcp.pop %v6194
      %v6211 = vrcp.pop %v6195
      %v6212 = vrcp.pop %v6196
      %v6213 = vrcp.pop %v6197
      %v6214 = vrcp.pop %v6198
      %v6215 = vrcp.pop %v6199
      %v6216 = vrcp.pop %v6200
      %v6217 = vrcp.pop %v6201
      %v6218 = vrcp.pop %v6202
      %v6219 = vrcp.pop %v6203
      %v6220 = vrcp.pop %v6204
      %v6221 = vtanh.pop %v6125
      %v6222 = vtanh.pop %v6126
      %v6223 = vtanh.pop %v6127
      %v6224 = vtanh.pop %v6128
      %v6225 = vtanh.pop %v6129
      %v6226 = vtanh.pop %v6130
      %v6227 = vtanh.pop %v6131
      %v6228 = vtanh.pop %v6132
      %v6229 = vtanh.pop %v6133
      %v6230 = vtanh.pop %v6134
      %v6231 = vtanh.pop %v6135
      %v6232 = vtanh.pop %v6136
      %v6233 = vtanh.pop %v6137
      %v6234 = vtanh.pop %v6138
      %v6235 = vtanh.pop %v6139
      %v6236 = vtanh.pop %v6140
      %6237 = vrot.lane.b32.xlu0 %v6221, 64
      %v6238 = vpop.permute.xlu0 %6237
      %6239 = vrot.lane.b32.xlu0 %v6222, 64
      %v6240 = vpop.permute.xlu0 %6239
      %6241 = vrot.lane.b32.xlu0 %v6223, 64
      %v6242 = vpop.permute.xlu0 %6241
      %6243 = vrot.lane.b32.xlu0 %v6224, 64
      %v6244 = vpop.permute.xlu0 %6243
      %6245 = vrot.lane.b32.xlu0 %v6225, 64
      %v6246 = vpop.permute.xlu0 %6245
      %6247 = vrot.lane.b32.xlu0 %v6226, 64
      %v6248 = vpop.permute.xlu0 %6247
      %6249 = vrot.lane.b32.xlu0 %v6227, 64
      %v6250 = vpop.permute.xlu0 %6249
      %6251 = vrot.lane.b32.xlu0 %v6228, 64
      %v6252 = vpop.permute.xlu0 %6251
      %6253 = vrot.lane.b32.xlu0 %v6229, 64
      %v6254 = vpop.permute.xlu0 %6253
      %6255 = vrot.lane.b32.xlu0 %v6230, 64
      %v6256 = vpop.permute.xlu0 %6255
      %6257 = vrot.lane.b32.xlu0 %v6231, 64
      %v6258 = vpop.permute.xlu0 %6257
      %6259 = vrot.lane.b32.xlu0 %v6232, 64
      %v6260 = vpop.permute.xlu0 %6259
      %6261 = vrot.lane.b32.xlu0 %v6233, 64
      %v6262 = vpop.permute.xlu0 %6261
      %6263 = vrot.lane.b32.xlu0 %v6234, 64
      %v6264 = vpop.permute.xlu0 %6263
      %6265 = vrot.lane.b32.xlu0 %v6235, 64
      %v6266 = vpop.permute.xlu0 %6265
      %6267 = vrot.lane.b32.xlu0 %v6236, 64
      %v6268 = vpop.permute.xlu0 %6267
      %v6269 = vmul.f32 %v6205, %v6238
      %v6270 = vmul.f32 %v6206, %v6240
      %v6271 = vmul.f32 %v6207, %v6242
      %v6272 = vmul.f32 %v6208, %v6244
      %v6273 = vmul.f32 %v6209, %v6246
      %v6274 = vmul.f32 %v6210, %v6248
      %v6275 = vmul.f32 %v6211, %v6250
      %v6276 = vmul.f32 %v6212, %v6252
      %v6277 = vmul.f32 %v6213, %v6254
      %v6278 = vmul.f32 %v6214, %v6256
      %v6279 = vmul.f32 %v6215, %v6258
      %v6280 = vmul.f32 %v6216, %v6260
      %v6281 = vmul.f32 %v6217, %v6262
      %v6282 = vmul.f32 %v6218, %v6264
      %v6283 = vmul.f32 %v6219, %v6266
      %v6284 = vmul.f32 %v6220, %v6268
      %6285 = vrot.lane.b32.xlu0 %v5451, 32
      %v6286 = vpop.permute.xlu0 %6285
      %6287 = vrot.lane.b32.xlu0 %v5452, 32
      %v6288 = vpop.permute.xlu0 %6287
      %6289 = vrot.lane.b32.xlu0 %v5453, 32
      %v6290 = vpop.permute.xlu0 %6289
      %6291 = vrot.lane.b32.xlu0 %v5454, 32
      %v6292 = vpop.permute.xlu0 %6291
      %6293 = vrot.lane.b32.xlu0 %v5455, 32
      %v6294 = vpop.permute.xlu0 %6293
      %6295 = vrot.lane.b32.xlu0 %v5456, 32
      %v6296 = vpop.permute.xlu0 %6295
      %6297 = vrot.lane.b32.xlu0 %v5457, 32
      %v6298 = vpop.permute.xlu0 %6297
      %6299 = vrot.lane.b32.xlu0 %v5458, 32
      %v6300 = vpop.permute.xlu0 %6299
      %6301 = vrot.lane.b32.xlu0 %v5459, 32
      %v6302 = vpop.permute.xlu0 %6301
      %6303 = vrot.lane.b32.xlu0 %v5460, 32
      %v6304 = vpop.permute.xlu0 %6303
      %6305 = vrot.lane.b32.xlu0 %v5461, 32
      %v6306 = vpop.permute.xlu0 %6305
      %6307 = vrot.lane.b32.xlu0 %v5462, 32
      %v6308 = vpop.permute.xlu0 %6307
      %6309 = vrot.lane.b32.xlu0 %v5463, 32
      %v6310 = vpop.permute.xlu0 %6309
      %6311 = vrot.lane.b32.xlu0 %v5464, 32
      %v6312 = vpop.permute.xlu0 %6311
      %6313 = vrot.lane.b32.xlu0 %v5465, 32
      %v6314 = vpop.permute.xlu0 %6313
      %6315 = vrot.lane.b32.xlu0 %v5466, 32
      %v6316 = vpop.permute.xlu0 %6315
      %v6317 = vmul.f32 %v6205, %v6286
      %v6318 = vmul.f32 %v6206, %v6288
      %v6319 = vmul.f32 %v6207, %v6290
      %v6320 = vmul.f32 %v6208, %v6292
      %v6321 = vmul.f32 %v6209, %v6294
      %v6322 = vmul.f32 %v6210, %v6296
      %v6323 = vmul.f32 %v6211, %v6298
      %v6324 = vmul.f32 %v6212, %v6300
      %v6325 = vmul.f32 %v6213, %v6302
      %v6326 = vmul.f32 %v6214, %v6304
      %v6327 = vmul.f32 %v6215, %v6306
      %v6328 = vmul.f32 %v6216, %v6308
      %v6329 = vmul.f32 %v6217, %v6310
      %v6330 = vmul.f32 %v6218, %v6312
      %v6331 = vmul.f32 %v6219, %v6314
      %v6332 = vmul.f32 %v6220, %v6316
      %6333 = vrot.lane.b32.xlu0 %v6317, 96
      %v6334 = vpop.permute.xlu0 %6333
      %6335 = vrot.lane.b32.xlu0 %v6318, 96
      %v6336 = vpop.permute.xlu0 %6335
      %6337 = vrot.lane.b32.xlu0 %v6319, 96
      %v6338 = vpop.permute.xlu0 %6337
      %6339 = vrot.lane.b32.xlu0 %v6320, 96
      %v6340 = vpop.permute.xlu0 %6339
      %6341 = vrot.lane.b32.xlu0 %v6321, 96
      %v6342 = vpop.permute.xlu0 %6341
      %6343 = vrot.lane.b32.xlu0 %v6322, 96
      %v6344 = vpop.permute.xlu0 %6343
      %6345 = vrot.lane.b32.xlu0 %v6323, 96
      %v6346 = vpop.permute.xlu0 %6345
      %6347 = vrot.lane.b32.xlu0 %v6324, 96
      %v6348 = vpop.permute.xlu0 %6347
      %6349 = vrot.lane.b32.xlu0 %v6325, 96
      %v6350 = vpop.permute.xlu0 %6349
      %6351 = vrot.lane.b32.xlu0 %v6326, 96
      %v6352 = vpop.permute.xlu0 %6351
      %6353 = vrot.lane.b32.xlu0 %v6327, 96
      %v6354 = vpop.permute.xlu0 %6353
      %6355 = vrot.lane.b32.xlu0 %v6328, 96
      %v6356 = vpop.permute.xlu0 %6355
      %6357 = vrot.lane.b32.xlu0 %v6329, 96
      %v6358 = vpop.permute.xlu0 %6357
      %6359 = vrot.lane.b32.xlu0 %v6330, 96
      %v6360 = vpop.permute.xlu0 %6359
      %6361 = vrot.lane.b32.xlu0 %v6331, 96
      %v6362 = vpop.permute.xlu0 %6361
      %6363 = vrot.lane.b32.xlu0 %v6332, 96
      %v6364 = vpop.permute.xlu0 %6363
      %v6365 = vadd.f32 %v6269, %v6334
      %v6366 = vadd.f32 %v6270, %v6336
      %v6367 = vadd.f32 %v6271, %v6338
      %v6368 = vadd.f32 %v6272, %v6340
      %v6369 = vadd.f32 %v6273, %v6342
      %v6370 = vadd.f32 %v6274, %v6344
      %v6371 = vadd.f32 %v6275, %v6346
      %v6372 = vadd.f32 %v6276, %v6348
      %v6373 = vadd.f32 %v6277, %v6350
      %v6374 = vadd.f32 %v6278, %v6352
      %v6375 = vadd.f32 %v6279, %v6354
      %v6376 = vadd.f32 %v6280, %v6356
      %v6377 = vadd.f32 %v6281, %v6358
      %v6378 = vadd.f32 %v6282, %v6360
      %v6379 = vadd.f32 %v6283, %v6362
      %v6380 = vadd.f32 %v6284, %v6364
      %v6381 = vsel %vm3235, %v6365, 0.0
      %v6382 = vsel %vm3235, %v6366, 0.0
      %v6383 = vsel %vm3235, %v6367, 0.0
      %v6384 = vsel %vm3235, %v6368, 0.0
      %v6385 = vsel %vm3235, %v6369, 0.0
      %v6386 = vsel %vm3235, %v6370, 0.0
      %v6387 = vsel %vm3235, %v6371, 0.0
      %v6388 = vsel %vm3235, %v6372, 0.0
      %v6389 = vsel %vm3235, %v6373, 0.0
      %v6390 = vsel %vm3235, %v6374, 0.0
      %v6391 = vsel %vm3235, %v6375, 0.0
      %v6392 = vsel %vm3235, %v6376, 0.0
      %v6393 = vsel %vm3235, %v6377, 0.0
      %v6394 = vsel %vm3235, %v6378, 0.0
      %v6395 = vsel %vm3235, %v6379, 0.0
      %v6396 = vsel %vm3235, %v6380, 0.0
      %6397 = vrot.lane.b32.xlu0 %v6205, 32
      %v6398 = vpop.permute.xlu0 %6397
      %6399 = vrot.lane.b32.xlu0 %v6206, 32
      %v6400 = vpop.permute.xlu0 %6399
      %6401 = vrot.lane.b32.xlu0 %v6207, 32
      %v6402 = vpop.permute.xlu0 %6401
      %6403 = vrot.lane.b32.xlu0 %v6208, 32
      %v6404 = vpop.permute.xlu0 %6403
      %6405 = vrot.lane.b32.xlu0 %v6209, 32
      %v6406 = vpop.permute.xlu0 %6405
      %6407 = vrot.lane.b32.xlu0 %v6210, 32
      %v6408 = vpop.permute.xlu0 %6407
      %6409 = vrot.lane.b32.xlu0 %v6211, 32
      %v6410 = vpop.permute.xlu0 %6409
      %6411 = vrot.lane.b32.xlu0 %v6212, 32
      %v6412 = vpop.permute.xlu0 %6411
      %6413 = vrot.lane.b32.xlu0 %v6213, 32
      %v6414 = vpop.permute.xlu0 %6413
      %6415 = vrot.lane.b32.xlu0 %v6214, 32
      %v6416 = vpop.permute.xlu0 %6415
      %6417 = vrot.lane.b32.xlu0 %v6215, 32
      %v6418 = vpop.permute.xlu0 %6417
      %6419 = vrot.lane.b32.xlu0 %v6216, 32
      %v6420 = vpop.permute.xlu0 %6419
      %6421 = vrot.lane.b32.xlu0 %v6217, 32
      %v6422 = vpop.permute.xlu0 %6421
      %6423 = vrot.lane.b32.xlu0 %v6218, 32
      %v6424 = vpop.permute.xlu0 %6423
      %6425 = vrot.lane.b32.xlu0 %v6219, 32
      %v6426 = vpop.permute.xlu0 %6425
      %6427 = vrot.lane.b32.xlu0 %v6220, 32
      %v6428 = vpop.permute.xlu0 %6427
      %v6429 = vtanh.pop %v6381
      %v6430 = vtanh.pop %v6382
      %v6431 = vtanh.pop %v6383
      %v6432 = vtanh.pop %v6384
      %v6433 = vtanh.pop %v6385
      %v6434 = vtanh.pop %v6386
      %v6435 = vtanh.pop %v6387
      %v6436 = vtanh.pop %v6388
      %v6437 = vtanh.pop %v6389
      %v6438 = vtanh.pop %v6390
      %v6439 = vtanh.pop %v6391
      %v6440 = vtanh.pop %v6392
      %v6441 = vtanh.pop %v6393
      %v6442 = vtanh.pop %v6394
      %v6443 = vtanh.pop %v6395
      %v6444 = vtanh.pop %v6396
      %v6445 = vmul.f32 %v6398, %v6429
      %v6446 = vmul.f32 %v6400, %v6430
      %v6447 = vmul.f32 %v6402, %v6431
      %v6448 = vmul.f32 %v6404, %v6432
      %v6449 = vmul.f32 %v6406, %v6433
      %v6450 = vmul.f32 %v6408, %v6434
      %v6451 = vmul.f32 %v6410, %v6435
      %v6452 = vmul.f32 %v6412, %v6436
      %v6453 = vmul.f32 %v6414, %v6437
      %v6454 = vmul.f32 %v6416, %v6438
      %v6455 = vmul.f32 %v6418, %v6439
      %v6456 = vmul.f32 %v6420, %v6440
      %v6457 = vmul.f32 %v6422, %v6441
      %v6458 = vmul.f32 %v6424, %v6442
      %v6459 = vmul.f32 %v6426, %v6443
      %v6460 = vmul.f32 %v6428, %v6444
      %6461 = vrot.lane.b32.xlu0 %v6004, 32
      %v6462 = vpop.permute.xlu0 %6461
      %6463 = vrot.lane.b32.xlu0 %v6005, 32
      %v6464 = vpop.permute.xlu0 %6463
      %6465 = vrot.lane.b32.xlu0 %v6006, 32
      %v6466 = vpop.permute.xlu0 %6465
      %6467 = vrot.lane.b32.xlu0 %v6007, 32
      %v6468 = vpop.permute.xlu0 %6467
      %6469 = vrot.lane.b32.xlu0 %v6008, 32
      %v6470 = vpop.permute.xlu0 %6469
      %6471 = vrot.lane.b32.xlu0 %v6009, 32
      %v6472 = vpop.permute.xlu0 %6471
      %6473 = vrot.lane.b32.xlu0 %v6010, 32
      %v6474 = vpop.permute.xlu0 %6473
      %6475 = vrot.lane.b32.xlu0 %v6011, 32
      %v6476 = vpop.permute.xlu0 %6475
      %6477 = vrot.lane.b32.xlu0 %v6012, 32
      %v6478 = vpop.permute.xlu0 %6477
      %6479 = vrot.lane.b32.xlu0 %v6013, 32
      %v6480 = vpop.permute.xlu0 %6479
      %6481 = vrot.lane.b32.xlu0 %v6014, 32
      %v6482 = vpop.permute.xlu0 %6481
      %6483 = vrot.lane.b32.xlu0 %v6015, 32
      %v6484 = vpop.permute.xlu0 %6483
      %6485 = vrot.lane.b32.xlu0 %v6016, 32
      %v6486 = vpop.permute.xlu0 %6485
      %6487 = vrot.lane.b32.xlu0 %v6017, 32
      %v6488 = vpop.permute.xlu0 %6487
      %6489 = vrot.lane.b32.xlu0 %v6018, 32
      %v6490 = vpop.permute.xlu0 %6489
      %6491 = vrot.lane.b32.xlu0 %v6019, 32
      %v6492 = vpop.permute.xlu0 %6491
      %v6493 = vadd.f32 %v6445, %v6462
      %v6494 = vadd.f32 %v6446, %v6464
      %v6495 = vadd.f32 %v6447, %v6466
      %v6496 = vadd.f32 %v6448, %v6468
      %v6497 = vadd.f32 %v6449, %v6470
      %v6498 = vadd.f32 %v6450, %v6472
      %v6499 = vadd.f32 %v6451, %v6474
      %v6500 = vadd.f32 %v6452, %v6476
      %v6501 = vadd.f32 %v6453, %v6478
      %v6502 = vadd.f32 %v6454, %v6480
      %v6503 = vadd.f32 %v6455, %v6482
      %v6504 = vadd.f32 %v6456, %v6484
      %v6505 = vadd.f32 %v6457, %v6486
      %v6506 = vadd.f32 %v6458, %v6488
      %v6507 = vadd.f32 %v6459, %v6490
      %v6508 = vadd.f32 %v6460, %v6492
      %v6509 = vpack.c.bf16 %v6494, %v6493
      %v6510 = vpack.c.bf16 %v6496, %v6495
      %v6511 = vpack.c.bf16 %v6498, %v6497
      %v6512 = vpack.c.bf16 %v6500, %v6499
      %v6513 = vpack.c.bf16 %v6502, %v6501
      %v6514 = vpack.c.bf16 %v6504, %v6503
      %v6515 = vpack.c.bf16 %v6506, %v6505
      %v6516 = vpack.c.bf16 %v6508, %v6507
      %6517 = vmatprep.subr.bf16.mxu0 0
      %6518 = vmatpush1.bf16.msra.mxu0 %v3750
      %6519 = vmatprep.subr.bf16.mxu0 0
      %6520 = vmatpush1.bf16.msra.mxu0 %v3749
      %6521 = vmatprep.subr.bf16.mxu0 0
      %6522 = vmatpush1.bf16.msra.mxu0 %v3748
      %6523 = vmatprep.subr.bf16.mxu0 0
      %6524 = vmatpush1.bf16.msra.mxu0 %v3747
      %6525 = vmatprep.subr.bf16.mxu0 0
      %6526 = vmatpush1.bf16.msra.mxu0 %v3746
      %6527 = vmatprep.subr.bf16.mxu0 0
      %6528 = vmatpush1.bf16.msra.mxu0 %v3745
      %6529 = vmatprep.subr.bf16.mxu0 0
      %6530 = vmatpush1.bf16.msra.mxu0 %v3744
      %6531 = vmatprep.subr.bf16.mxu0 0
      %6532 = vmatpush1.bf16.msra.mxu0 %v3743
      %6533 = vmatprep.subr.bf16.mxu0 0
      %6534 = vmatpush2.bf16.msra.mxu0 0
      %6535 = vmatprep.subr.bf16.mxu0 0
      %6536 = vmatpush2.bf16.msra.mxu0 0
      %6537 = vmatprep.subr.bf16.mxu0 0
      %6538 = vmatpush2.bf16.msra.mxu0 0
      %6539 = vmatprep.subr.bf16.mxu0 0
      %6540 = vmatpush2.bf16.msra.mxu0 0
      %6541 = vmatprep.subr.bf16.mxu0 0
      %6542 = vmatpush2.bf16.msra.mxu0 0
      %6543 = vmatprep.subr.bf16.mxu0 0
      %6544 = vmatpush2.bf16.msra.mxu0 0
      %6545 = vmatprep.subr.bf16.mxu0 0
      %6546 = vmatpush2.bf16.msra.mxu0 0
      %6547 = vmatprep.subr.bf16.mxu0 0
      %6548 = vmatpush2.bf16.msra.mxu0 0
      %6549 = vmatprep.mubr.bf16.mxu0 0
      %6550 = vmatmul.mubr.bf16.gmra.mxu0 %v6509
      %v6551 = vpop.f32.mrf.mxu0
      %v6552 = vadd.f32 0.0, %v6551
      %v6553 = vpop.f32.mrf.mxu0
      %v6554 = vpop.f32.mrf.mxu0
      %v6555 = vadd.f32 0.0, %v6554
      %v6556 = vpop.f32.mrf.mxu0
      %6557 = vmatprep.mubr.bf16.mxu0 0
      %6558 = vmatmul.mubr.bf16.gmra.mxu0 %v6510
      %v6559 = vpop.f32.mrf.mxu0
      %v6560 = vadd.f32 0.0, %v6559
      %v6561 = vpop.f32.mrf.mxu0
      %v6562 = vpop.f32.mrf.mxu0
      %v6563 = vadd.f32 0.0, %v6562
      %v6564 = vpop.f32.mrf.mxu0
      %6565 = vmatprep.mubr.bf16.mxu0 0
      %6566 = vmatmul.mubr.bf16.gmra.mxu0 %v6511
      %v6567 = vpop.f32.mrf.mxu0
      %v6568 = vadd.f32 0.0, %v6567
      %v6569 = vpop.f32.mrf.mxu0
      %v6570 = vpop.f32.mrf.mxu0
      %v6571 = vadd.f32 0.0, %v6570
      %v6572 = vpop.f32.mrf.mxu0
      %6573 = vmatprep.mubr.bf16.mxu0 0
      %6574 = vmatmul.mubr.bf16.gmra.mxu0 %v6512
      %v6575 = vpop.f32.mrf.mxu0
      %v6576 = vadd.f32 0.0, %v6575
      %v6577 = vpop.f32.mrf.mxu0
      %v6578 = vpop.f32.mrf.mxu0
      %v6579 = vadd.f32 0.0, %v6578
      %v6580 = vpop.f32.mrf.mxu0
      %6581 = vmatprep.mubr.bf16.mxu0 0
      %6582 = vmatmul.mubr.bf16.gmra.mxu0 %v6513
      %v6583 = vpop.f32.mrf.mxu0
      %v6584 = vadd.f32 0.0, %v6583
      %v6585 = vpop.f32.mrf.mxu0
      %v6586 = vpop.f32.mrf.mxu0
      %v6587 = vadd.f32 0.0, %v6586
      %v6588 = vpop.f32.mrf.mxu0
      %6589 = vmatprep.mubr.bf16.mxu0 0
      %6590 = vmatmul.mubr.bf16.gmra.mxu0 %v6514
      %v6591 = vpop.f32.mrf.mxu0
      %v6592 = vadd.f32 0.0, %v6591
      %v6593 = vpop.f32.mrf.mxu0
      %v6594 = vpop.f32.mrf.mxu0
      %v6595 = vadd.f32 0.0, %v6594
      %v6596 = vpop.f32.mrf.mxu0
      %6597 = vmatprep.mubr.bf16.mxu0 0
      %6598 = vmatmul.mubr.bf16.gmra.mxu0 %v6515
      %v6599 = vpop.f32.mrf.mxu0
      %v6600 = vadd.f32 0.0, %v6599
      %v6601 = vpop.f32.mrf.mxu0
      %v6602 = vpop.f32.mrf.mxu0
      %v6603 = vadd.f32 0.0, %v6602
      %v6604 = vpop.f32.mrf.mxu0
      %6605 = vmatprep.mubr.bf16.mxu0 0
      %6606 = vmatmul.mubr.bf16.gmra.mxu0 %v6516
      %v6607 = vpop.f32.mrf.mxu0
      %v6608 = vadd.f32 0.0, %v6607
      %v6609 = vpop.f32.mrf.mxu0
      %v6610 = vpop.f32.mrf.mxu0
      %v6611 = vadd.f32 0.0, %v6610
      %v6612 = vpop.f32.mrf.mxu0
      %6613 = vdwg.mxu0
      %v6614 = vadd.f32 %v3234, %v6552
      %v6615 = vadd.f32 %v3234, %v6555
      %v6616 = vadd.f32 %v3234, %v6560
      %v6617 = vadd.f32 %v3234, %v6563
      %v6618 = vadd.f32 %v3234, %v6568
      %v6619 = vadd.f32 %v3234, %v6571
      %v6620 = vadd.f32 %v3234, %v6576
      %v6621 = vadd.f32 %v3234, %v6579
      %v6622 = vadd.f32 %v3234, %v6584
      %v6623 = vadd.f32 %v3234, %v6587
      %v6624 = vadd.f32 %v3234, %v6592
      %v6625 = vadd.f32 %v3234, %v6595
      %v6626 = vadd.f32 %v3234, %v6600
      %v6627 = vadd.f32 %v3234, %v6603
      %v6628 = vadd.f32 %v3234, %v6608
      %v6629 = vadd.f32 %v3234, %v6611
      %v6630 = vsub.f32 0.0, %v6614
      %v6631 = vsub.f32 0.0, %v6615
      %v6632 = vsub.f32 0.0, %v6616
      %v6633 = vsub.f32 0.0, %v6617
      %v6634 = vsub.f32 0.0, %v6618
      %v6635 = vsub.f32 0.0, %v6619
      %v6636 = vsub.f32 0.0, %v6620
      %v6637 = vsub.f32 0.0, %v6621
      %v6638 = vsub.f32 0.0, %v6622
      %v6639 = vsub.f32 0.0, %v6623
      %v6640 = vsub.f32 0.0, %v6624
      %v6641 = vsub.f32 0.0, %v6625
      %v6642 = vsub.f32 0.0, %v6626
      %v6643 = vsub.f32 0.0, %v6627
      %v6644 = vsub.f32 0.0, %v6628
      %v6645 = vsub.f32 0.0, %v6629
      %v6646 = vmul.f32 %v6630, 1.442695
      %v6647 = vpow.pop %v6646
      %v6648 = vmul.f32 %v6631, 1.442695
      %v6649 = vpow.pop %v6648
      %v6650 = vmul.f32 %v6632, 1.442695
      %v6651 = vpow.pop %v6650
      %v6652 = vmul.f32 %v6633, 1.442695
      %v6653 = vpow.pop %v6652
      %v6654 = vmul.f32 %v6634, 1.442695
      %v6655 = vpow.pop %v6654
      %v6656 = vmul.f32 %v6635, 1.442695
      %v6657 = vpow.pop %v6656
      %v6658 = vmul.f32 %v6636, 1.442695
      %v6659 = vpow.pop %v6658
      %v6660 = vmul.f32 %v6637, 1.442695
      %v6661 = vpow.pop %v6660
      %v6662 = vmul.f32 %v6638, 1.442695
      %v6663 = vpow.pop %v6662
      %v6664 = vmul.f32 %v6639, 1.442695
      %v6665 = vpow.pop %v6664
      %v6666 = vmul.f32 %v6640, 1.442695
      %v6667 = vpow.pop %v6666
      %v6668 = vmul.f32 %v6641, 1.442695
      %v6669 = vpow.pop %v6668
      %v6670 = vmul.f32 %v6642, 1.442695
      %v6671 = vpow.pop %v6670
      %v6672 = vmul.f32 %v6643, 1.442695
      %v6673 = vpow.pop %v6672
      %v6674 = vmul.f32 %v6644, 1.442695
      %v6675 = vpow.pop %v6674
      %v6676 = vmul.f32 %v6645, 1.442695
      %v6677 = vpow.pop %v6676
      %v6678 = vadd.f32 %v6647, 1.0
      %v6679 = vadd.f32 %v6649, 1.0
      %v6680 = vadd.f32 %v6651, 1.0
      %v6681 = vadd.f32 %v6653, 1.0
      %v6682 = vadd.f32 %v6655, 1.0
      %v6683 = vadd.f32 %v6657, 1.0
      %v6684 = vadd.f32 %v6659, 1.0
      %v6685 = vadd.f32 %v6661, 1.0
      %v6686 = vadd.f32 %v6663, 1.0
      %v6687 = vadd.f32 %v6665, 1.0
      %v6688 = vadd.f32 %v6667, 1.0
      %v6689 = vadd.f32 %v6669, 1.0
      %v6690 = vadd.f32 %v6671, 1.0
      %v6691 = vadd.f32 %v6673, 1.0
      %v6692 = vadd.f32 %v6675, 1.0
      %v6693 = vadd.f32 %v6677, 1.0
      %v6694 = vrcp.pop %v6678
      %v6695 = vrcp.pop %v6679
      %v6696 = vrcp.pop %v6680
      %v6697 = vrcp.pop %v6681
      %v6698 = vrcp.pop %v6682
      %v6699 = vrcp.pop %v6683
      %v6700 = vrcp.pop %v6684
      %v6701 = vrcp.pop %v6685
      %v6702 = vrcp.pop %v6686
      %v6703 = vrcp.pop %v6687
      %v6704 = vrcp.pop %v6688
      %v6705 = vrcp.pop %v6689
      %v6706 = vrcp.pop %v6690
      %v6707 = vrcp.pop %v6691
      %v6708 = vrcp.pop %v6692
      %v6709 = vrcp.pop %v6693
      %v6710 = vtanh.pop %v6614
      %v6711 = vtanh.pop %v6615
      %v6712 = vtanh.pop %v6616
      %v6713 = vtanh.pop %v6617
      %v6714 = vtanh.pop %v6618
      %v6715 = vtanh.pop %v6619
      %v6716 = vtanh.pop %v6620
      %v6717 = vtanh.pop %v6621
      %v6718 = vtanh.pop %v6622
      %v6719 = vtanh.pop %v6623
      %v6720 = vtanh.pop %v6624
      %v6721 = vtanh.pop %v6625
      %v6722 = vtanh.pop %v6626
      %v6723 = vtanh.pop %v6627
      %v6724 = vtanh.pop %v6628
      %v6725 = vtanh.pop %v6629
      %6726 = vrot.lane.b32.xlu0 %v6710, 64
      %v6727 = vpop.permute.xlu0 %6726
      %6728 = vrot.lane.b32.xlu0 %v6711, 64
      %v6729 = vpop.permute.xlu0 %6728
      %6730 = vrot.lane.b32.xlu0 %v6712, 64
      %v6731 = vpop.permute.xlu0 %6730
      %6732 = vrot.lane.b32.xlu0 %v6713, 64
      %v6733 = vpop.permute.xlu0 %6732
      %6734 = vrot.lane.b32.xlu0 %v6714, 64
      %v6735 = vpop.permute.xlu0 %6734
      %6736 = vrot.lane.b32.xlu0 %v6715, 64
      %v6737 = vpop.permute.xlu0 %6736
      %6738 = vrot.lane.b32.xlu0 %v6716, 64
      %v6739 = vpop.permute.xlu0 %6738
      %6740 = vrot.lane.b32.xlu0 %v6717, 64
      %v6741 = vpop.permute.xlu0 %6740
      %6742 = vrot.lane.b32.xlu0 %v6718, 64
      %v6743 = vpop.permute.xlu0 %6742
      %6744 = vrot.lane.b32.xlu0 %v6719, 64
      %v6745 = vpop.permute.xlu0 %6744
      %6746 = vrot.lane.b32.xlu0 %v6720, 64
      %v6747 = vpop.permute.xlu0 %6746
      %6748 = vrot.lane.b32.xlu0 %v6721, 64
      %v6749 = vpop.permute.xlu0 %6748
      %6750 = vrot.lane.b32.xlu0 %v6722, 64
      %v6751 = vpop.permute.xlu0 %6750
      %6752 = vrot.lane.b32.xlu0 %v6723, 64
      %v6753 = vpop.permute.xlu0 %6752
      %6754 = vrot.lane.b32.xlu0 %v6724, 64
      %v6755 = vpop.permute.xlu0 %6754
      %6756 = vrot.lane.b32.xlu0 %v6725, 64
      %v6757 = vpop.permute.xlu0 %6756
      %v6758 = vmul.f32 %v6694, %v6727
      %v6759 = vmul.f32 %v6695, %v6729
      %v6760 = vmul.f32 %v6696, %v6731
      %v6761 = vmul.f32 %v6697, %v6733
      %v6762 = vmul.f32 %v6698, %v6735
      %v6763 = vmul.f32 %v6699, %v6737
      %v6764 = vmul.f32 %v6700, %v6739
      %v6765 = vmul.f32 %v6701, %v6741
      %v6766 = vmul.f32 %v6702, %v6743
      %v6767 = vmul.f32 %v6703, %v6745
      %v6768 = vmul.f32 %v6704, %v6747
      %v6769 = vmul.f32 %v6705, %v6749
      %v6770 = vmul.f32 %v6706, %v6751
      %v6771 = vmul.f32 %v6707, %v6753
      %v6772 = vmul.f32 %v6708, %v6755
      %v6773 = vmul.f32 %v6709, %v6757
      %6774 = vrot.lane.b32.xlu0 %v5940, 32
      %v6775 = vpop.permute.xlu0 %6774
      %6776 = vrot.lane.b32.xlu0 %v5941, 32
      %v6777 = vpop.permute.xlu0 %6776
      %6778 = vrot.lane.b32.xlu0 %v5942, 32
      %v6779 = vpop.permute.xlu0 %6778
      %6780 = vrot.lane.b32.xlu0 %v5943, 32
      %v6781 = vpop.permute.xlu0 %6780
      %6782 = vrot.lane.b32.xlu0 %v5944, 32
      %v6783 = vpop.permute.xlu0 %6782
      %6784 = vrot.lane.b32.xlu0 %v5945, 32
      %v6785 = vpop.permute.xlu0 %6784
      %6786 = vrot.lane.b32.xlu0 %v5946, 32
      %v6787 = vpop.permute.xlu0 %6786
      %6788 = vrot.lane.b32.xlu0 %v5947, 32
      %v6789 = vpop.permute.xlu0 %6788
      %6790 = vrot.lane.b32.xlu0 %v5948, 32
      %v6791 = vpop.permute.xlu0 %6790
      %6792 = vrot.lane.b32.xlu0 %v5949, 32
      %v6793 = vpop.permute.xlu0 %6792
      %6794 = vrot.lane.b32.xlu0 %v5950, 32
      %v6795 = vpop.permute.xlu0 %6794
      %6796 = vrot.lane.b32.xlu0 %v5951, 32
      %v6797 = vpop.permute.xlu0 %6796
      %6798 = vrot.lane.b32.xlu0 %v5952, 32
      %v6799 = vpop.permute.xlu0 %6798
      %6800 = vrot.lane.b32.xlu0 %v5953, 32
      %v6801 = vpop.permute.xlu0 %6800
      %6802 = vrot.lane.b32.xlu0 %v5954, 32
      %v6803 = vpop.permute.xlu0 %6802
      %6804 = vrot.lane.b32.xlu0 %v5955, 32
      %v6805 = vpop.permute.xlu0 %6804
      %v6806 = vmul.f32 %v6694, %v6775
      %v6807 = vmul.f32 %v6695, %v6777
      %v6808 = vmul.f32 %v6696, %v6779
      %v6809 = vmul.f32 %v6697, %v6781
      %v6810 = vmul.f32 %v6698, %v6783
      %v6811 = vmul.f32 %v6699, %v6785
      %v6812 = vmul.f32 %v6700, %v6787
      %v6813 = vmul.f32 %v6701, %v6789
      %v6814 = vmul.f32 %v6702, %v6791
      %v6815 = vmul.f32 %v6703, %v6793
      %v6816 = vmul.f32 %v6704, %v6795
      %v6817 = vmul.f32 %v6705, %v6797
      %v6818 = vmul.f32 %v6706, %v6799
      %v6819 = vmul.f32 %v6707, %v6801
      %v6820 = vmul.f32 %v6708, %v6803
      %v6821 = vmul.f32 %v6709, %v6805
      %6822 = vrot.lane.b32.xlu0 %v6806, 96
      %v6823 = vpop.permute.xlu0 %6822
      %6824 = vrot.lane.b32.xlu0 %v6807, 96
      %v6825 = vpop.permute.xlu0 %6824
      %6826 = vrot.lane.b32.xlu0 %v6808, 96
      %v6827 = vpop.permute.xlu0 %6826
      %6828 = vrot.lane.b32.xlu0 %v6809, 96
      %v6829 = vpop.permute.xlu0 %6828
      %6830 = vrot.lane.b32.xlu0 %v6810, 96
      %v6831 = vpop.permute.xlu0 %6830
      %6832 = vrot.lane.b32.xlu0 %v6811, 96
      %v6833 = vpop.permute.xlu0 %6832
      %6834 = vrot.lane.b32.xlu0 %v6812, 96
      %v6835 = vpop.permute.xlu0 %6834
      %6836 = vrot.lane.b32.xlu0 %v6813, 96
      %v6837 = vpop.permute.xlu0 %6836
      %6838 = vrot.lane.b32.xlu0 %v6814, 96
      %v6839 = vpop.permute.xlu0 %6838
      %6840 = vrot.lane.b32.xlu0 %v6815, 96
      %v6841 = vpop.permute.xlu0 %6840
      %6842 = vrot.lane.b32.xlu0 %v6816, 96
      %v6843 = vpop.permute.xlu0 %6842
      %6844 = vrot.lane.b32.xlu0 %v6817, 96
      %v6845 = vpop.permute.xlu0 %6844
      %6846 = vrot.lane.b32.xlu0 %v6818, 96
      %v6847 = vpop.permute.xlu0 %6846
      %6848 = vrot.lane.b32.xlu0 %v6819, 96
      %v6849 = vpop.permute.xlu0 %6848
      %6850 = vrot.lane.b32.xlu0 %v6820, 96
      %v6851 = vpop.permute.xlu0 %6850
      %6852 = vrot.lane.b32.xlu0 %v6821, 96
      %v6853 = vpop.permute.xlu0 %6852
      %v6854 = vadd.f32 %v6758, %v6823
      %v6855 = vadd.f32 %v6759, %v6825
      %v6856 = vadd.f32 %v6760, %v6827
      %v6857 = vadd.f32 %v6761, %v6829
      %v6858 = vadd.f32 %v6762, %v6831
      %v6859 = vadd.f32 %v6763, %v6833
      %v6860 = vadd.f32 %v6764, %v6835
      %v6861 = vadd.f32 %v6765, %v6837
      %v6862 = vadd.f32 %v6766, %v6839
      %v6863 = vadd.f32 %v6767, %v6841
      %v6864 = vadd.f32 %v6768, %v6843
      %v6865 = vadd.f32 %v6769, %v6845
      %v6866 = vadd.f32 %v6770, %v6847
      %v6867 = vadd.f32 %v6771, %v6849
      %v6868 = vadd.f32 %v6772, %v6851
      %v6869 = vadd.f32 %v6773, %v6853
      %v6870 = vsel %vm3235, %v6854, 0.0
      %v6871 = vsel %vm3235, %v6855, 0.0
      %v6872 = vsel %vm3235, %v6856, 0.0
      %v6873 = vsel %vm3235, %v6857, 0.0
      %v6874 = vsel %vm3235, %v6858, 0.0
      %v6875 = vsel %vm3235, %v6859, 0.0
      %v6876 = vsel %vm3235, %v6860, 0.0
      %v6877 = vsel %vm3235, %v6861, 0.0
      %v6878 = vsel %vm3235, %v6862, 0.0
      %v6879 = vsel %vm3235, %v6863, 0.0
      %v6880 = vsel %vm3235, %v6864, 0.0
      %v6881 = vsel %vm3235, %v6865, 0.0
      %v6882 = vsel %vm3235, %v6866, 0.0
      %v6883 = vsel %vm3235, %v6867, 0.0
      %v6884 = vsel %vm3235, %v6868, 0.0
      %v6885 = vsel %vm3235, %v6869, 0.0
      %6886 = vrot.lane.b32.xlu0 %v6694, 32
      %v6887 = vpop.permute.xlu0 %6886
      %6888 = vrot.lane.b32.xlu0 %v6695, 32
      %v6889 = vpop.permute.xlu0 %6888
      %6890 = vrot.lane.b32.xlu0 %v6696, 32
      %v6891 = vpop.permute.xlu0 %6890
      %6892 = vrot.lane.b32.xlu0 %v6697, 32
      %v6893 = vpop.permute.xlu0 %6892
      %6894 = vrot.lane.b32.xlu0 %v6698, 32
      %v6895 = vpop.permute.xlu0 %6894
      %6896 = vrot.lane.b32.xlu0 %v6699, 32
      %v6897 = vpop.permute.xlu0 %6896
      %6898 = vrot.lane.b32.xlu0 %v6700, 32
      %v6899 = vpop.permute.xlu0 %6898
      %6900 = vrot.lane.b32.xlu0 %v6701, 32
      %v6901 = vpop.permute.xlu0 %6900
      %6902 = vrot.lane.b32.xlu0 %v6702, 32
      %v6903 = vpop.permute.xlu0 %6902
      %6904 = vrot.lane.b32.xlu0 %v6703, 32
      %v6905 = vpop.permute.xlu0 %6904
      %6906 = vrot.lane.b32.xlu0 %v6704, 32
      %v6907 = vpop.permute.xlu0 %6906
      %6908 = vrot.lane.b32.xlu0 %v6705, 32
      %v6909 = vpop.permute.xlu0 %6908
      %6910 = vrot.lane.b32.xlu0 %v6706, 32
      %v6911 = vpop.permute.xlu0 %6910
      %6912 = vrot.lane.b32.xlu0 %v6707, 32
      %v6913 = vpop.permute.xlu0 %6912
      %6914 = vrot.lane.b32.xlu0 %v6708, 32
      %v6915 = vpop.permute.xlu0 %6914
      %6916 = vrot.lane.b32.xlu0 %v6709, 32
      %v6917 = vpop.permute.xlu0 %6916
      %v6918 = vtanh.pop %v6870
      %v6919 = vtanh.pop %v6871
      %v6920 = vtanh.pop %v6872
      %v6921 = vtanh.pop %v6873
      %v6922 = vtanh.pop %v6874
      %v6923 = vtanh.pop %v6875
      %v6924 = vtanh.pop %v6876
      %v6925 = vtanh.pop %v6877
      %v6926 = vtanh.pop %v6878
      %v6927 = vtanh.pop %v6879
      %v6928 = vtanh.pop %v6880
      %v6929 = vtanh.pop %v6881
      %v6930 = vtanh.pop %v6882
      %v6931 = vtanh.pop %v6883
      %v6932 = vtanh.pop %v6884
      %v6933 = vtanh.pop %v6885
      %v6934 = vmul.f32 %v6887, %v6918
      %v6935 = vmul.f32 %v6889, %v6919
      %v6936 = vmul.f32 %v6891, %v6920
      %v6937 = vmul.f32 %v6893, %v6921
      %v6938 = vmul.f32 %v6895, %v6922
      %v6939 = vmul.f32 %v6897, %v6923
      %v6940 = vmul.f32 %v6899, %v6924
      %v6941 = vmul.f32 %v6901, %v6925
      %v6942 = vmul.f32 %v6903, %v6926
      %v6943 = vmul.f32 %v6905, %v6927
      %v6944 = vmul.f32 %v6907, %v6928
      %v6945 = vmul.f32 %v6909, %v6929
      %v6946 = vmul.f32 %v6911, %v6930
      %v6947 = vmul.f32 %v6913, %v6931
      %v6948 = vmul.f32 %v6915, %v6932
      %v6949 = vmul.f32 %v6917, %v6933
      %v6950 = vpack.c.bf16 %v6446, %v6445
      %v6951 = vpack.c.bf16 %v6448, %v6447
      %v6952 = vpack.c.bf16 %v6450, %v6449
      %v6953 = vpack.c.bf16 %v6452, %v6451
      %v6954 = vpack.c.bf16 %v6454, %v6453
      %v6955 = vpack.c.bf16 %v6456, %v6455
      %v6956 = vpack.c.bf16 %v6458, %v6457
      %v6957 = vpack.c.bf16 %v6460, %v6459
      %6958 = vmatprep.subr.bf16.mxu0 0
      %6959 = vmatpush1.bf16.msra.mxu0 %v3275
      %6960 = vmatprep.subr.bf16.mxu0 0
      %6961 = vmatpush1.bf16.msra.mxu0 %v3274
      %6962 = vmatprep.subr.bf16.mxu0 0
      %6963 = vmatpush1.bf16.msra.mxu0 %v3273
      %6964 = vmatprep.subr.bf16.mxu0 0
      %6965 = vmatpush1.bf16.msra.mxu0 %v3272
      %6966 = vmatprep.subr.bf16.mxu0 0
      %6967 = vmatpush1.bf16.msra.mxu0 %v3271
      %6968 = vmatprep.subr.bf16.mxu0 0
      %6969 = vmatpush1.bf16.msra.mxu0 %v3270
      %6970 = vmatprep.subr.bf16.mxu0 0
      %6971 = vmatpush1.bf16.msra.mxu0 %v3269
      %6972 = vmatprep.subr.bf16.mxu0 0
      %6973 = vmatpush1.bf16.msra.mxu0 %v3268
      %6974 = vmatprep.subr.bf16.mxu0 0
      %6975 = vmatpush2.bf16.msra.mxu0 0
      %6976 = vmatprep.subr.bf16.mxu0 0
      %6977 = vmatpush2.bf16.msra.mxu0 0
      %6978 = vmatprep.subr.bf16.mxu0 0
      %6979 = vmatpush2.bf16.msra.mxu0 0
      %6980 = vmatprep.subr.bf16.mxu0 0
      %6981 = vmatpush2.bf16.msra.mxu0 0
      %6982 = vmatprep.subr.bf16.mxu0 0
      %6983 = vmatpush2.bf16.msra.mxu0 0
      %6984 = vmatprep.subr.bf16.mxu0 0
      %6985 = vmatpush2.bf16.msra.mxu0 0
      %6986 = vmatprep.subr.bf16.mxu0 0
      %6987 = vmatpush2.bf16.msra.mxu0 0
      %6988 = vmatprep.subr.bf16.mxu0 0
      %6989 = vmatpush2.bf16.msra.mxu0 0
      %6990 = vmatprep.mubr.bf16.mxu0 0
      %6991 = vmatmul.mubr.bf16.gmra.mxu0 %v6950
      %v6992 = vpop.f32.mrf.mxu0
      %v6993 = vadd.f32 0.0, %v6992
      %v6994 = vpop.f32.mrf.mxu0
      %v6995 = vpop.f32.mrf.mxu0
      %v6996 = vadd.f32 0.0, %v6995
      %v6997 = vpop.f32.mrf.mxu0
      %6998 = vmatprep.mubr.bf16.mxu0 0
      %6999 = vmatmul.mubr.bf16.gmra.mxu0 %v6951
      %v7000 = vpop.f32.mrf.mxu0
      %v7001 = vadd.f32 0.0, %v7000
      %v7002 = vpop.f32.mrf.mxu0
      %v7003 = vpop.f32.mrf.mxu0
      %v7004 = vadd.f32 0.0, %v7003
      %v7005 = vpop.f32.mrf.mxu0
      %7006 = vmatprep.mubr.bf16.mxu0 0
      %7007 = vmatmul.mubr.bf16.gmra.mxu0 %v6952
      %v7008 = vpop.f32.mrf.mxu0
      %v7009 = vadd.f32 0.0, %v7008
      %v7010 = vpop.f32.mrf.mxu0
      %v7011 = vpop.f32.mrf.mxu0
      %v7012 = vadd.f32 0.0, %v7011
      %v7013 = vpop.f32.mrf.mxu0
      %7014 = vmatprep.mubr.bf16.mxu0 0
      %7015 = vmatmul.mubr.bf16.gmra.mxu0 %v6953
      %v7016 = vpop.f32.mrf.mxu0
      %v7017 = vadd.f32 0.0, %v7016
      %v7018 = vpop.f32.mrf.mxu0
      %v7019 = vpop.f32.mrf.mxu0
      %v7020 = vadd.f32 0.0, %v7019
      %v7021 = vpop.f32.mrf.mxu0
      %7022 = vmatprep.mubr.bf16.mxu0 0
      %7023 = vmatmul.mubr.bf16.gmra.mxu0 %v6954
      %v7024 = vpop.f32.mrf.mxu0
      %v7025 = vadd.f32 0.0, %v7024
      %v7026 = vpop.f32.mrf.mxu0
      %v7027 = vpop.f32.mrf.mxu0
      %v7028 = vadd.f32 0.0, %v7027
      %v7029 = vpop.f32.mrf.mxu0
      %7030 = vmatprep.mubr.bf16.mxu0 0
      %7031 = vmatmul.mubr.bf16.gmra.mxu0 %v6955
      %v7032 = vpop.f32.mrf.mxu0
      %v7033 = vadd.f32 0.0, %v7032
      %v7034 = vpop.f32.mrf.mxu0
      %v7035 = vpop.f32.mrf.mxu0
      %v7036 = vadd.f32 0.0, %v7035
      %v7037 = vpop.f32.mrf.mxu0
      %7038 = vmatprep.mubr.bf16.mxu0 0
      %7039 = vmatmul.mubr.bf16.gmra.mxu0 %v6956
      %v7040 = vpop.f32.mrf.mxu0
      %v7041 = vadd.f32 0.0, %v7040
      %v7042 = vpop.f32.mrf.mxu0
      %v7043 = vpop.f32.mrf.mxu0
      %v7044 = vadd.f32 0.0, %v7043
      %v7045 = vpop.f32.mrf.mxu0
      %7046 = vmatprep.mubr.bf16.mxu0 0
      %7047 = vmatmul.mubr.bf16.gmra.mxu0 %v6957
      %v7048 = vpop.f32.mrf.mxu0
      %v7049 = vadd.f32 0.0, %v7048
      %v7050 = vpop.f32.mrf.mxu0
      %v7051 = vpop.f32.mrf.mxu0
      %v7052 = vadd.f32 0.0, %v7051
      %v7053 = vpop.f32.mrf.mxu0
      %7054 = vdwg.mxu0
      %v7055 = vadd.f32 %v2977, %v6993
      %v7056 = vadd.f32 %v2980, %v6996
      %v7057 = vadd.f32 %v2985, %v7001
      %v7058 = vadd.f32 %v2988, %v7004
      %v7059 = vadd.f32 %v2993, %v7009
      %v7060 = vadd.f32 %v2996, %v7012
      %v7061 = vadd.f32 %v3001, %v7017
      %v7062 = vadd.f32 %v3004, %v7020
      %v7063 = vadd.f32 %v3009, %v7025
      %v7064 = vadd.f32 %v3012, %v7028
      %v7065 = vadd.f32 %v3017, %v7033
      %v7066 = vadd.f32 %v3020, %v7036
      %v7067 = vadd.f32 %v3025, %v7041
      %v7068 = vadd.f32 %v3028, %v7044
      %v7069 = vadd.f32 %v3033, %v7049
      %v7070 = vadd.f32 %v3036, %v7052
      %v7071 = vsub.f32 0.0, %v7055
      %v7072 = vsub.f32 0.0, %v7056
      %v7073 = vsub.f32 0.0, %v7057
      %v7074 = vsub.f32 0.0, %v7058
      %v7075 = vsub.f32 0.0, %v7059
      %v7076 = vsub.f32 0.0, %v7060
      %v7077 = vsub.f32 0.0, %v7061
      %v7078 = vsub.f32 0.0, %v7062
      %v7079 = vsub.f32 0.0, %v7063
      %v7080 = vsub.f32 0.0, %v7064
      %v7081 = vsub.f32 0.0, %v7065
      %v7082 = vsub.f32 0.0, %v7066
      %v7083 = vsub.f32 0.0, %v7067
      %v7084 = vsub.f32 0.0, %v7068
      %v7085 = vsub.f32 0.0, %v7069
      %v7086 = vsub.f32 0.0, %v7070
      %v7087 = vmul.f32 %v7071, 1.442695
      %v7088 = vpow.pop %v7087
      %v7089 = vmul.f32 %v7072, 1.442695
      %v7090 = vpow.pop %v7089
      %v7091 = vmul.f32 %v7073, 1.442695
      %v7092 = vpow.pop %v7091
      %v7093 = vmul.f32 %v7074, 1.442695
      %v7094 = vpow.pop %v7093
      %v7095 = vmul.f32 %v7075, 1.442695
      %v7096 = vpow.pop %v7095
      %v7097 = vmul.f32 %v7076, 1.442695
      %v7098 = vpow.pop %v7097
      %v7099 = vmul.f32 %v7077, 1.442695
      %v7100 = vpow.pop %v7099
      %v7101 = vmul.f32 %v7078, 1.442695
      %v7102 = vpow.pop %v7101
      %v7103 = vmul.f32 %v7079, 1.442695
      %v7104 = vpow.pop %v7103
      %v7105 = vmul.f32 %v7080, 1.442695
      %v7106 = vpow.pop %v7105
      %v7107 = vmul.f32 %v7081, 1.442695
      %v7108 = vpow.pop %v7107
      %v7109 = vmul.f32 %v7082, 1.442695
      %v7110 = vpow.pop %v7109
      %v7111 = vmul.f32 %v7083, 1.442695
      %v7112 = vpow.pop %v7111
      %v7113 = vmul.f32 %v7084, 1.442695
      %v7114 = vpow.pop %v7113
      %v7115 = vmul.f32 %v7085, 1.442695
      %v7116 = vpow.pop %v7115
      %v7117 = vmul.f32 %v7086, 1.442695
      %v7118 = vpow.pop %v7117
      %v7119 = vadd.f32 %v7088, 1.0
      %v7120 = vadd.f32 %v7090, 1.0
      %v7121 = vadd.f32 %v7092, 1.0
      %v7122 = vadd.f32 %v7094, 1.0
      %v7123 = vadd.f32 %v7096, 1.0
      %v7124 = vadd.f32 %v7098, 1.0
      %v7125 = vadd.f32 %v7100, 1.0
      %v7126 = vadd.f32 %v7102, 1.0
      %v7127 = vadd.f32 %v7104, 1.0
      %v7128 = vadd.f32 %v7106, 1.0
      %v7129 = vadd.f32 %v7108, 1.0
      %v7130 = vadd.f32 %v7110, 1.0
      %v7131 = vadd.f32 %v7112, 1.0
      %v7132 = vadd.f32 %v7114, 1.0
      %v7133 = vadd.f32 %v7116, 1.0
      %v7134 = vadd.f32 %v7118, 1.0
      %v7135 = vrcp.pop %v7119
      %v7136 = vrcp.pop %v7120
      %v7137 = vrcp.pop %v7121
      %v7138 = vrcp.pop %v7122
      %v7139 = vrcp.pop %v7123
      %v7140 = vrcp.pop %v7124
      %v7141 = vrcp.pop %v7125
      %v7142 = vrcp.pop %v7126
      %v7143 = vrcp.pop %v7127
      %v7144 = vrcp.pop %v7128
      %v7145 = vrcp.pop %v7129
      %v7146 = vrcp.pop %v7130
      %v7147 = vrcp.pop %v7131
      %v7148 = vrcp.pop %v7132
      %v7149 = vrcp.pop %v7133
      %v7150 = vrcp.pop %v7134
      %v7151 = vtanh.pop %v7055
      %v7152 = vtanh.pop %v7056
      %v7153 = vtanh.pop %v7057
      %v7154 = vtanh.pop %v7058
      %v7155 = vtanh.pop %v7059
      %v7156 = vtanh.pop %v7060
      %v7157 = vtanh.pop %v7061
      %v7158 = vtanh.pop %v7062
      %v7159 = vtanh.pop %v7063
      %v7160 = vtanh.pop %v7064
      %v7161 = vtanh.pop %v7065
      %v7162 = vtanh.pop %v7066
      %v7163 = vtanh.pop %v7067
      %v7164 = vtanh.pop %v7068
      %v7165 = vtanh.pop %v7069
      %v7166 = vtanh.pop %v7070
      %7167 = vrot.lane.b32.xlu0 %v7151, 64
      %v7168 = vpop.permute.xlu0 %7167
      %7169 = vrot.lane.b32.xlu0 %v7152, 64
      %v7170 = vpop.permute.xlu0 %7169
      %7171 = vrot.lane.b32.xlu0 %v7153, 64
      %v7172 = vpop.permute.xlu0 %7171
      %7173 = vrot.lane.b32.xlu0 %v7154, 64
      %v7174 = vpop.permute.xlu0 %7173
      %7175 = vrot.lane.b32.xlu0 %v7155, 64
      %v7176 = vpop.permute.xlu0 %7175
      %7177 = vrot.lane.b32.xlu0 %v7156, 64
      %v7178 = vpop.permute.xlu0 %7177
      %7179 = vrot.lane.b32.xlu0 %v7157, 64
      %v7180 = vpop.permute.xlu0 %7179
      %7181 = vrot.lane.b32.xlu0 %v7158, 64
      %v7182 = vpop.permute.xlu0 %7181
      %7183 = vrot.lane.b32.xlu0 %v7159, 64
      %v7184 = vpop.permute.xlu0 %7183
      %7185 = vrot.lane.b32.xlu0 %v7160, 64
      %v7186 = vpop.permute.xlu0 %7185
      %7187 = vrot.lane.b32.xlu0 %v7161, 64
      %v7188 = vpop.permute.xlu0 %7187
      %7189 = vrot.lane.b32.xlu0 %v7162, 64
      %v7190 = vpop.permute.xlu0 %7189
      %7191 = vrot.lane.b32.xlu0 %v7163, 64
      %v7192 = vpop.permute.xlu0 %7191
      %7193 = vrot.lane.b32.xlu0 %v7164, 64
      %v7194 = vpop.permute.xlu0 %7193
      %7195 = vrot.lane.b32.xlu0 %v7165, 64
      %v7196 = vpop.permute.xlu0 %7195
      %7197 = vrot.lane.b32.xlu0 %v7166, 64
      %v7198 = vpop.permute.xlu0 %7197
      %v7199 = vmul.f32 %v7135, %v7168
      %v7200 = vmul.f32 %v7136, %v7170
      %v7201 = vmul.f32 %v7137, %v7172
      %v7202 = vmul.f32 %v7138, %v7174
      %v7203 = vmul.f32 %v7139, %v7176
      %v7204 = vmul.f32 %v7140, %v7178
      %v7205 = vmul.f32 %v7141, %v7180
      %v7206 = vmul.f32 %v7142, %v7182
      %v7207 = vmul.f32 %v7143, %v7184
      %v7208 = vmul.f32 %v7144, %v7186
      %v7209 = vmul.f32 %v7145, %v7188
      %v7210 = vmul.f32 %v7146, %v7190
      %v7211 = vmul.f32 %v7147, %v7192
      %v7212 = vmul.f32 %v7148, %v7194
      %v7213 = vmul.f32 %v7149, %v7196
      %v7214 = vmul.f32 %v7150, %v7198
      %7215 = vrot.lane.b32.xlu0 %v6381, 32
      %v7216 = vpop.permute.xlu0 %7215
      %7217 = vrot.lane.b32.xlu0 %v6382, 32
      %v7218 = vpop.permute.xlu0 %7217
      %7219 = vrot.lane.b32.xlu0 %v6383, 32
      %v7220 = vpop.permute.xlu0 %7219
      %7221 = vrot.lane.b32.xlu0 %v6384, 32
      %v7222 = vpop.permute.xlu0 %7221
      %7223 = vrot.lane.b32.xlu0 %v6385, 32
      %v7224 = vpop.permute.xlu0 %7223
      %7225 = vrot.lane.b32.xlu0 %v6386, 32
      %v7226 = vpop.permute.xlu0 %7225
      %7227 = vrot.lane.b32.xlu0 %v6387, 32
      %v7228 = vpop.permute.xlu0 %7227
      %7229 = vrot.lane.b32.xlu0 %v6388, 32
      %v7230 = vpop.permute.xlu0 %7229
      %7231 = vrot.lane.b32.xlu0 %v6389, 32
      %v7232 = vpop.permute.xlu0 %7231
      %7233 = vrot.lane.b32.xlu0 %v6390, 32
      %v7234 = vpop.permute.xlu0 %7233
      %7235 = vrot.lane.b32.xlu0 %v6391, 32
      %v7236 = vpop.permute.xlu0 %7235
      %7237 = vrot.lane.b32.xlu0 %v6392, 32
      %v7238 = vpop.permute.xlu0 %7237
      %7239 = vrot.lane.b32.xlu0 %v6393, 32
      %v7240 = vpop.permute.xlu0 %7239
      %7241 = vrot.lane.b32.xlu0 %v6394, 32
      %v7242 = vpop.permute.xlu0 %7241
      %7243 = vrot.lane.b32.xlu0 %v6395, 32
      %v7244 = vpop.permute.xlu0 %7243
      %7245 = vrot.lane.b32.xlu0 %v6396, 32
      %v7246 = vpop.permute.xlu0 %7245
      %v7247 = vmul.f32 %v7135, %v7216
      %v7248 = vmul.f32 %v7136, %v7218
      %v7249 = vmul.f32 %v7137, %v7220
      %v7250 = vmul.f32 %v7138, %v7222
      %v7251 = vmul.f32 %v7139, %v7224
      %v7252 = vmul.f32 %v7140, %v7226
      %v7253 = vmul.f32 %v7141, %v7228
      %v7254 = vmul.f32 %v7142, %v7230
      %v7255 = vmul.f32 %v7143, %v7232
      %v7256 = vmul.f32 %v7144, %v7234
      %v7257 = vmul.f32 %v7145, %v7236
      %v7258 = vmul.f32 %v7146, %v7238
      %v7259 = vmul.f32 %v7147, %v7240
      %v7260 = vmul.f32 %v7148, %v7242
      %v7261 = vmul.f32 %v7149, %v7244
      %v7262 = vmul.f32 %v7150, %v7246
      %7263 = vrot.lane.b32.xlu0 %v7247, 96
      %v7264 = vpop.permute.xlu0 %7263
      %7265 = vrot.lane.b32.xlu0 %v7248, 96
      %v7266 = vpop.permute.xlu0 %7265
      %7267 = vrot.lane.b32.xlu0 %v7249, 96
      %v7268 = vpop.permute.xlu0 %7267
      %7269 = vrot.lane.b32.xlu0 %v7250, 96
      %v7270 = vpop.permute.xlu0 %7269
      %7271 = vrot.lane.b32.xlu0 %v7251, 96
      %v7272 = vpop.permute.xlu0 %7271
      %7273 = vrot.lane.b32.xlu0 %v7252, 96
      %v7274 = vpop.permute.xlu0 %7273
      %7275 = vrot.lane.b32.xlu0 %v7253, 96
      %v7276 = vpop.permute.xlu0 %7275
      %7277 = vrot.lane.b32.xlu0 %v7254, 96
      %v7278 = vpop.permute.xlu0 %7277
      %7279 = vrot.lane.b32.xlu0 %v7255, 96
      %v7280 = vpop.permute.xlu0 %7279
      %7281 = vrot.lane.b32.xlu0 %v7256, 96
      %v7282 = vpop.permute.xlu0 %7281
      %7283 = vrot.lane.b32.xlu0 %v7257, 96
      %v7284 = vpop.permute.xlu0 %7283
      %7285 = vrot.lane.b32.xlu0 %v7258, 96
      %v7286 = vpop.permute.xlu0 %7285
      %7287 = vrot.lane.b32.xlu0 %v7259, 96
      %v7288 = vpop.permute.xlu0 %7287
      %7289 = vrot.lane.b32.xlu0 %v7260, 96
      %v7290 = vpop.permute.xlu0 %7289
      %7291 = vrot.lane.b32.xlu0 %v7261, 96
      %v7292 = vpop.permute.xlu0 %7291
      %7293 = vrot.lane.b32.xlu0 %v7262, 96
      %v7294 = vpop.permute.xlu0 %7293
      %v7295 = vadd.f32 %v7199, %v7264
      %v7296 = vadd.f32 %v7200, %v7266
      %v7297 = vadd.f32 %v7201, %v7268
      %v7298 = vadd.f32 %v7202, %v7270
      %v7299 = vadd.f32 %v7203, %v7272
      %v7300 = vadd.f32 %v7204, %v7274
      %v7301 = vadd.f32 %v7205, %v7276
      %v7302 = vadd.f32 %v7206, %v7278
      %v7303 = vadd.f32 %v7207, %v7280
      %v7304 = vadd.f32 %v7208, %v7282
      %v7305 = vadd.f32 %v7209, %v7284
      %v7306 = vadd.f32 %v7210, %v7286
      %v7307 = vadd.f32 %v7211, %v7288
      %v7308 = vadd.f32 %v7212, %v7290
      %v7309 = vadd.f32 %v7213, %v7292
      %v7310 = vadd.f32 %v7214, %v7294
      %v7311 = vsel %vm3235, %v7295, 0.0
      %v7312 = vsel %vm3235, %v7296, 0.0
      %v7313 = vsel %vm3235, %v7297, 0.0
      %v7314 = vsel %vm3235, %v7298, 0.0
      %v7315 = vsel %vm3235, %v7299, 0.0
      %v7316 = vsel %vm3235, %v7300, 0.0
      %v7317 = vsel %vm3235, %v7301, 0.0
      %v7318 = vsel %vm3235, %v7302, 0.0
      %v7319 = vsel %vm3235, %v7303, 0.0
      %v7320 = vsel %vm3235, %v7304, 0.0
      %v7321 = vsel %vm3235, %v7305, 0.0
      %v7322 = vsel %vm3235, %v7306, 0.0
      %v7323 = vsel %vm3235, %v7307, 0.0
      %v7324 = vsel %vm3235, %v7308, 0.0
      %v7325 = vsel %vm3235, %v7309, 0.0
      %v7326 = vsel %vm3235, %v7310, 0.0
      %7327 = vrot.lane.b32.xlu0 %v7135, 32
      %v7328 = vpop.permute.xlu0 %7327
      %7329 = vrot.lane.b32.xlu0 %v7136, 32
      %v7330 = vpop.permute.xlu0 %7329
      %7331 = vrot.lane.b32.xlu0 %v7137, 32
      %v7332 = vpop.permute.xlu0 %7331
      %7333 = vrot.lane.b32.xlu0 %v7138, 32
      %v7334 = vpop.permute.xlu0 %7333
      %7335 = vrot.lane.b32.xlu0 %v7139, 32
      %v7336 = vpop.permute.xlu0 %7335
      %7337 = vrot.lane.b32.xlu0 %v7140, 32
      %v7338 = vpop.permute.xlu0 %7337
      %7339 = vrot.lane.b32.xlu0 %v7141, 32
      %v7340 = vpop.permute.xlu0 %7339
      %7341 = vrot.lane.b32.xlu0 %v7142, 32
      %v7342 = vpop.permute.xlu0 %7341
      %7343 = vrot.lane.b32.xlu0 %v7143, 32
      %v7344 = vpop.permute.xlu0 %7343
      %7345 = vrot.lane.b32.xlu0 %v7144, 32
      %v7346 = vpop.permute.xlu0 %7345
      %7347 = vrot.lane.b32.xlu0 %v7145, 32
      %v7348 = vpop.permute.xlu0 %7347
      %7349 = vrot.lane.b32.xlu0 %v7146, 32
      %v7350 = vpop.permute.xlu0 %7349
      %7351 = vrot.lane.b32.xlu0 %v7147, 32
      %v7352 = vpop.permute.xlu0 %7351
      %7353 = vrot.lane.b32.xlu0 %v7148, 32
      %v7354 = vpop.permute.xlu0 %7353
      %7355 = vrot.lane.b32.xlu0 %v7149, 32
      %v7356 = vpop.permute.xlu0 %7355
      %7357 = vrot.lane.b32.xlu0 %v7150, 32
      %v7358 = vpop.permute.xlu0 %7357
      %v7359 = vtanh.pop %v7311
      %v7360 = vtanh.pop %v7312
      %v7361 = vtanh.pop %v7313
      %v7362 = vtanh.pop %v7314
      %v7363 = vtanh.pop %v7315
      %v7364 = vtanh.pop %v7316
      %v7365 = vtanh.pop %v7317
      %v7366 = vtanh.pop %v7318
      %v7367 = vtanh.pop %v7319
      %v7368 = vtanh.pop %v7320
      %v7369 = vtanh.pop %v7321
      %v7370 = vtanh.pop %v7322
      %v7371 = vtanh.pop %v7323
      %v7372 = vtanh.pop %v7324
      %v7373 = vtanh.pop %v7325
      %v7374 = vtanh.pop %v7326
      %v7375 = vmul.f32 %v7328, %v7359
      %v7376 = vmul.f32 %v7330, %v7360
      %v7377 = vmul.f32 %v7332, %v7361
      %v7378 = vmul.f32 %v7334, %v7362
      %v7379 = vmul.f32 %v7336, %v7363
      %v7380 = vmul.f32 %v7338, %v7364
      %v7381 = vmul.f32 %v7340, %v7365
      %v7382 = vmul.f32 %v7342, %v7366
      %v7383 = vmul.f32 %v7344, %v7367
      %v7384 = vmul.f32 %v7346, %v7368
      %v7385 = vmul.f32 %v7348, %v7369
      %v7386 = vmul.f32 %v7350, %v7370
      %v7387 = vmul.f32 %v7352, %v7371
      %v7388 = vmul.f32 %v7354, %v7372
      %v7389 = vmul.f32 %v7356, %v7373
      %v7390 = vmul.f32 %v7358, %v7374
      %7391 = vrot.lane.b32.xlu0 %v6934, 32
      %v7392 = vpop.permute.xlu0 %7391
      %7393 = vrot.lane.b32.xlu0 %v6935, 32
      %v7394 = vpop.permute.xlu0 %7393
      %7395 = vrot.lane.b32.xlu0 %v6936, 32
      %v7396 = vpop.permute.xlu0 %7395
      %7397 = vrot.lane.b32.xlu0 %v6937, 32
      %v7398 = vpop.permute.xlu0 %7397
      %7399 = vrot.lane.b32.xlu0 %v6938, 32
      %v7400 = vpop.permute.xlu0 %7399
      %7401 = vrot.lane.b32.xlu0 %v6939, 32
      %v7402 = vpop.permute.xlu0 %7401
      %7403 = vrot.lane.b32.xlu0 %v6940, 32
      %v7404 = vpop.permute.xlu0 %7403
      %7405 = vrot.lane.b32.xlu0 %v6941, 32
      %v7406 = vpop.permute.xlu0 %7405
      %7407 = vrot.lane.b32.xlu0 %v6942, 32
      %v7408 = vpop.permute.xlu0 %7407
      %7409 = vrot.lane.b32.xlu0 %v6943, 32
      %v7410 = vpop.permute.xlu0 %7409
      %7411 = vrot.lane.b32.xlu0 %v6944, 32
      %v7412 = vpop.permute.xlu0 %7411
      %7413 = vrot.lane.b32.xlu0 %v6945, 32
      %v7414 = vpop.permute.xlu0 %7413
      %7415 = vrot.lane.b32.xlu0 %v6946, 32
      %v7416 = vpop.permute.xlu0 %7415
      %7417 = vrot.lane.b32.xlu0 %v6947, 32
      %v7418 = vpop.permute.xlu0 %7417
      %7419 = vrot.lane.b32.xlu0 %v6948, 32
      %v7420 = vpop.permute.xlu0 %7419
      %7421 = vrot.lane.b32.xlu0 %v6949, 32
      %v7422 = vpop.permute.xlu0 %7421
      %v7423 = vadd.f32 %v7375, %v7392
      %v7424 = vadd.f32 %v7376, %v7394
      %v7425 = vadd.f32 %v7377, %v7396
      %v7426 = vadd.f32 %v7378, %v7398
      %v7427 = vadd.f32 %v7379, %v7400
      %v7428 = vadd.f32 %v7380, %v7402
      %v7429 = vadd.f32 %v7381, %v7404
      %v7430 = vadd.f32 %v7382, %v7406
      %v7431 = vadd.f32 %v7383, %v7408
      %v7432 = vadd.f32 %v7384, %v7410
      %v7433 = vadd.f32 %v7385, %v7412
      %v7434 = vadd.f32 %v7386, %v7414
      %v7435 = vadd.f32 %v7387, %v7416
      %v7436 = vadd.f32 %v7388, %v7418
      %v7437 = vadd.f32 %v7389, %v7420
      %v7438 = vadd.f32 %v7390, %v7422
      %v7439 = vpack.c.bf16 %v7424, %v7423
      %v7440 = vpack.c.bf16 %v7426, %v7425
      %v7441 = vpack.c.bf16 %v7428, %v7427
      %v7442 = vpack.c.bf16 %v7430, %v7429
      %v7443 = vpack.c.bf16 %v7432, %v7431
      %v7444 = vpack.c.bf16 %v7434, %v7433
      %v7445 = vpack.c.bf16 %v7436, %v7435
      %v7446 = vpack.c.bf16 %v7438, %v7437
      %7447 = vmatprep.subr.bf16.mxu0 0
      %7448 = vmatpush1.bf16.msra.mxu0 %v3750
      %7449 = vmatprep.subr.bf16.mxu0 0
      %7450 = vmatpush1.bf16.msra.mxu0 %v3749
      %7451 = vmatprep.subr.bf16.mxu0 0
      %7452 = vmatpush1.bf16.msra.mxu0 %v3748
      %7453 = vmatprep.subr.bf16.mxu0 0
      %7454 = vmatpush1.bf16.msra.mxu0 %v3747
      %7455 = vmatprep.subr.bf16.mxu0 0
      %7456 = vmatpush1.bf16.msra.mxu0 %v3746
      %7457 = vmatprep.subr.bf16.mxu0 0
      %7458 = vmatpush1.bf16.msra.mxu0 %v3745
      %7459 = vmatprep.subr.bf16.mxu0 0
      %7460 = vmatpush1.bf16.msra.mxu0 %v3744
      %7461 = vmatprep.subr.bf16.mxu0 0
      %7462 = vmatpush1.bf16.msra.mxu0 %v3743
      %7463 = vmatprep.subr.bf16.mxu0 0
      %7464 = vmatpush2.bf16.msra.mxu0 0
      %7465 = vmatprep.subr.bf16.mxu0 0
      %7466 = vmatpush2.bf16.msra.mxu0 0
      %7467 = vmatprep.subr.bf16.mxu0 0
      %7468 = vmatpush2.bf16.msra.mxu0 0
      %7469 = vmatprep.subr.bf16.mxu0 0
      %7470 = vmatpush2.bf16.msra.mxu0 0
      %7471 = vmatprep.subr.bf16.mxu0 0
      %7472 = vmatpush2.bf16.msra.mxu0 0
      %7473 = vmatprep.subr.bf16.mxu0 0
      %7474 = vmatpush2.bf16.msra.mxu0 0
      %7475 = vmatprep.subr.bf16.mxu0 0
      %7476 = vmatpush2.bf16.msra.mxu0 0
      %7477 = vmatprep.subr.bf16.mxu0 0
      %7478 = vmatpush2.bf16.msra.mxu0 0
      %7479 = vmatprep.mubr.bf16.mxu0 0
      %7480 = vmatmul.mubr.bf16.gmra.mxu0 %v7439
      %v7481 = vpop.f32.mrf.mxu0
      %v7482 = vadd.f32 0.0, %v7481
      %v7483 = vpop.f32.mrf.mxu0
      %v7484 = vpop.f32.mrf.mxu0
      %v7485 = vadd.f32 0.0, %v7484
      %v7486 = vpop.f32.mrf.mxu0
      %7487 = vmatprep.mubr.bf16.mxu0 0
      %7488 = vmatmul.mubr.bf16.gmra.mxu0 %v7440
      %v7489 = vpop.f32.mrf.mxu0
      %v7490 = vadd.f32 0.0, %v7489
      %v7491 = vpop.f32.mrf.mxu0
      %v7492 = vpop.f32.mrf.mxu0
      %v7493 = vadd.f32 0.0, %v7492
      %v7494 = vpop.f32.mrf.mxu0
      %7495 = vmatprep.mubr.bf16.mxu0 0
      %7496 = vmatmul.mubr.bf16.gmra.mxu0 %v7441
      %v7497 = vpop.f32.mrf.mxu0
      %v7498 = vadd.f32 0.0, %v7497
      %v7499 = vpop.f32.mrf.mxu0
      %v7500 = vpop.f32.mrf.mxu0
      %v7501 = vadd.f32 0.0, %v7500
      %v7502 = vpop.f32.mrf.mxu0
      %7503 = vmatprep.mubr.bf16.mxu0 0
      %7504 = vmatmul.mubr.bf16.gmra.mxu0 %v7442
      %v7505 = vpop.f32.mrf.mxu0
      %v7506 = vadd.f32 0.0, %v7505
      %v7507 = vpop.f32.mrf.mxu0
      %v7508 = vpop.f32.mrf.mxu0
      %v7509 = vadd.f32 0.0, %v7508
      %v7510 = vpop.f32.mrf.mxu0
      %7511 = vmatprep.mubr.bf16.mxu0 0
      %7512 = vmatmul.mubr.bf16.gmra.mxu0 %v7443
      %v7513 = vpop.f32.mrf.mxu0
      %v7514 = vadd.f32 0.0, %v7513
      %v7515 = vpop.f32.mrf.mxu0
      %v7516 = vpop.f32.mrf.mxu0
      %v7517 = vadd.f32 0.0, %v7516
      %v7518 = vpop.f32.mrf.mxu0
      %7519 = vmatprep.mubr.bf16.mxu0 0
      %7520 = vmatmul.mubr.bf16.gmra.mxu0 %v7444
      %v7521 = vpop.f32.mrf.mxu0
      %v7522 = vadd.f32 0.0, %v7521
      %v7523 = vpop.f32.mrf.mxu0
      %v7524 = vpop.f32.mrf.mxu0
      %v7525 = vadd.f32 0.0, %v7524
      %v7526 = vpop.f32.mrf.mxu0
      %7527 = vmatprep.mubr.bf16.mxu0 0
      %7528 = vmatmul.mubr.bf16.gmra.mxu0 %v7445
      %v7529 = vpop.f32.mrf.mxu0
      %v7530 = vadd.f32 0.0, %v7529
      %v7531 = vpop.f32.mrf.mxu0
      %v7532 = vpop.f32.mrf.mxu0
      %v7533 = vadd.f32 0.0, %v7532
      %v7534 = vpop.f32.mrf.mxu0
      %7535 = vmatprep.mubr.bf16.mxu0 0
      %7536 = vmatmul.mubr.bf16.gmra.mxu0 %v7446
      %v7537 = vpop.f32.mrf.mxu0
      %v7538 = vadd.f32 0.0, %v7537
      %v7539 = vpop.f32.mrf.mxu0
      %v7540 = vpop.f32.mrf.mxu0
      %v7541 = vadd.f32 0.0, %v7540
      %v7542 = vpop.f32.mrf.mxu0
      %7543 = vdwg.mxu0
      %v7544 = vadd.f32 %v3234, %v7482
      %v7545 = vadd.f32 %v3234, %v7485
      %v7546 = vadd.f32 %v3234, %v7490
      %v7547 = vadd.f32 %v3234, %v7493
      %v7548 = vadd.f32 %v3234, %v7498
      %v7549 = vadd.f32 %v3234, %v7501
      %v7550 = vadd.f32 %v3234, %v7506
      %v7551 = vadd.f32 %v3234, %v7509
      %v7552 = vadd.f32 %v3234, %v7514
      %v7553 = vadd.f32 %v3234, %v7517
      %v7554 = vadd.f32 %v3234, %v7522
      %v7555 = vadd.f32 %v3234, %v7525
      %v7556 = vadd.f32 %v3234, %v7530
      %v7557 = vadd.f32 %v3234, %v7533
      %v7558 = vadd.f32 %v3234, %v7538
      %v7559 = vadd.f32 %v3234, %v7541
      %v7560 = vsub.f32 0.0, %v7544
      %v7561 = vsub.f32 0.0, %v7545
      %v7562 = vsub.f32 0.0, %v7546
      %v7563 = vsub.f32 0.0, %v7547
      %v7564 = vsub.f32 0.0, %v7548
      %v7565 = vsub.f32 0.0, %v7549
      %v7566 = vsub.f32 0.0, %v7550
      %v7567 = vsub.f32 0.0, %v7551
      %v7568 = vsub.f32 0.0, %v7552
      %v7569 = vsub.f32 0.0, %v7553
      %v7570 = vsub.f32 0.0, %v7554
      %v7571 = vsub.f32 0.0, %v7555
      %v7572 = vsub.f32 0.0, %v7556
      %v7573 = vsub.f32 0.0, %v7557
      %v7574 = vsub.f32 0.0, %v7558
      %v7575 = vsub.f32 0.0, %v7559
      %v7576 = vmul.f32 %v7560, 1.442695
      %v7577 = vpow.pop %v7576
      %v7578 = vmul.f32 %v7561, 1.442695
      %v7579 = vpow.pop %v7578
      %v7580 = vmul.f32 %v7562, 1.442695
      %v7581 = vpow.pop %v7580
      %v7582 = vmul.f32 %v7563, 1.442695
      %v7583 = vpow.pop %v7582
      %v7584 = vmul.f32 %v7564, 1.442695
      %v7585 = vpow.pop %v7584
      %v7586 = vmul.f32 %v7565, 1.442695
      %v7587 = vpow.pop %v7586
      %v7588 = vmul.f32 %v7566, 1.442695
      %v7589 = vpow.pop %v7588
      %v7590 = vmul.f32 %v7567, 1.442695
      %v7591 = vpow.pop %v7590
      %v7592 = vmul.f32 %v7568, 1.442695
      %v7593 = vpow.pop %v7592
      %v7594 = vmul.f32 %v7569, 1.442695
      %v7595 = vpow.pop %v7594
      %v7596 = vmul.f32 %v7570, 1.442695
      %v7597 = vpow.pop %v7596
      %v7598 = vmul.f32 %v7571, 1.442695
      %v7599 = vpow.pop %v7598
      %v7600 = vmul.f32 %v7572, 1.442695
      %v7601 = vpow.pop %v7600
      %v7602 = vmul.f32 %v7573, 1.442695
      %v7603 = vpow.pop %v7602
      %v7604 = vmul.f32 %v7574, 1.442695
      %v7605 = vpow.pop %v7604
      %v7606 = vmul.f32 %v7575, 1.442695
      %v7607 = vpow.pop %v7606
      %v7608 = vadd.f32 %v7577, 1.0
      %v7609 = vadd.f32 %v7579, 1.0
      %v7610 = vadd.f32 %v7581, 1.0
      %v7611 = vadd.f32 %v7583, 1.0
      %v7612 = vadd.f32 %v7585, 1.0
      %v7613 = vadd.f32 %v7587, 1.0
      %v7614 = vadd.f32 %v7589, 1.0
      %v7615 = vadd.f32 %v7591, 1.0
      %v7616 = vadd.f32 %v7593, 1.0
      %v7617 = vadd.f32 %v7595, 1.0
      %v7618 = vadd.f32 %v7597, 1.0
      %v7619 = vadd.f32 %v7599, 1.0
      %v7620 = vadd.f32 %v7601, 1.0
      %v7621 = vadd.f32 %v7603, 1.0
      %v7622 = vadd.f32 %v7605, 1.0
      %v7623 = vadd.f32 %v7607, 1.0
      %v7624 = vrcp.pop %v7608
      %v7625 = vrcp.pop %v7609
      %v7626 = vrcp.pop %v7610
      %v7627 = vrcp.pop %v7611
      %v7628 = vrcp.pop %v7612
      %v7629 = vrcp.pop %v7613
      %v7630 = vrcp.pop %v7614
      %v7631 = vrcp.pop %v7615
      %v7632 = vrcp.pop %v7616
      %v7633 = vrcp.pop %v7617
      %v7634 = vrcp.pop %v7618
      %v7635 = vrcp.pop %v7619
      %v7636 = vrcp.pop %v7620
      %v7637 = vrcp.pop %v7621
      %v7638 = vrcp.pop %v7622
      %v7639 = vrcp.pop %v7623
      %v7640 = vtanh.pop %v7544
      %v7641 = vtanh.pop %v7545
      %v7642 = vtanh.pop %v7546
      %v7643 = vtanh.pop %v7547
      %v7644 = vtanh.pop %v7548
      %v7645 = vtanh.pop %v7549
      %v7646 = vtanh.pop %v7550
      %v7647 = vtanh.pop %v7551
      %v7648 = vtanh.pop %v7552
      %v7649 = vtanh.pop %v7553
      %v7650 = vtanh.pop %v7554
      %v7651 = vtanh.pop %v7555
      %v7652 = vtanh.pop %v7556
      %v7653 = vtanh.pop %v7557
      %v7654 = vtanh.pop %v7558
      %v7655 = vtanh.pop %v7559
      %7656 = vrot.lane.b32.xlu0 %v7640, 64
      %v7657 = vpop.permute.xlu0 %7656
      %7658 = vrot.lane.b32.xlu0 %v7641, 64
      %v7659 = vpop.permute.xlu0 %7658
      %7660 = vrot.lane.b32.xlu0 %v7642, 64
      %v7661 = vpop.permute.xlu0 %7660
      %7662 = vrot.lane.b32.xlu0 %v7643, 64
      %v7663 = vpop.permute.xlu0 %7662
      %7664 = vrot.lane.b32.xlu0 %v7644, 64
      %v7665 = vpop.permute.xlu0 %7664
      %7666 = vrot.lane.b32.xlu0 %v7645, 64
      %v7667 = vpop.permute.xlu0 %7666
      %7668 = vrot.lane.b32.xlu0 %v7646, 64
      %v7669 = vpop.permute.xlu0 %7668
      %7670 = vrot.lane.b32.xlu0 %v7647, 64
      %v7671 = vpop.permute.xlu0 %7670
      %7672 = vrot.lane.b32.xlu0 %v7648, 64
      %v7673 = vpop.permute.xlu0 %7672
      %7674 = vrot.lane.b32.xlu0 %v7649, 64
      %v7675 = vpop.permute.xlu0 %7674
      %7676 = vrot.lane.b32.xlu0 %v7650, 64
      %v7677 = vpop.permute.xlu0 %7676
      %7678 = vrot.lane.b32.xlu0 %v7651, 64
      %v7679 = vpop.permute.xlu0 %7678
      %7680 = vrot.lane.b32.xlu0 %v7652, 64
      %v7681 = vpop.permute.xlu0 %7680
      %7682 = vrot.lane.b32.xlu0 %v7653, 64
      %v7683 = vpop.permute.xlu0 %7682
      %7684 = vrot.lane.b32.xlu0 %v7654, 64
      %v7685 = vpop.permute.xlu0 %7684
      %7686 = vrot.lane.b32.xlu0 %v7655, 64
      %v7687 = vpop.permute.xlu0 %7686
      %v7688 = vmul.f32 %v7624, %v7657
      %v7689 = vmul.f32 %v7625, %v7659
      %v7690 = vmul.f32 %v7626, %v7661
      %v7691 = vmul.f32 %v7627, %v7663
      %v7692 = vmul.f32 %v7628, %v7665
      %v7693 = vmul.f32 %v7629, %v7667
      %v7694 = vmul.f32 %v7630, %v7669
      %v7695 = vmul.f32 %v7631, %v7671
      %v7696 = vmul.f32 %v7632, %v7673
      %v7697 = vmul.f32 %v7633, %v7675
      %v7698 = vmul.f32 %v7634, %v7677
      %v7699 = vmul.f32 %v7635, %v7679
      %v7700 = vmul.f32 %v7636, %v7681
      %v7701 = vmul.f32 %v7637, %v7683
      %v7702 = vmul.f32 %v7638, %v7685
      %v7703 = vmul.f32 %v7639, %v7687
      %7704 = vrot.lane.b32.xlu0 %v6870, 32
      %v7705 = vpop.permute.xlu0 %7704
      %7706 = vrot.lane.b32.xlu0 %v6871, 32
      %v7707 = vpop.permute.xlu0 %7706
      %7708 = vrot.lane.b32.xlu0 %v6872, 32
      %v7709 = vpop.permute.xlu0 %7708
      %7710 = vrot.lane.b32.xlu0 %v6873, 32
      %v7711 = vpop.permute.xlu0 %7710
      %7712 = vrot.lane.b32.xlu0 %v6874, 32
      %v7713 = vpop.permute.xlu0 %7712
      %7714 = vrot.lane.b32.xlu0 %v6875, 32
      %v7715 = vpop.permute.xlu0 %7714
      %7716 = vrot.lane.b32.xlu0 %v6876, 32
      %v7717 = vpop.permute.xlu0 %7716
      %7718 = vrot.lane.b32.xlu0 %v6877, 32
      %v7719 = vpop.permute.xlu0 %7718
      %7720 = vrot.lane.b32.xlu0 %v6878, 32
      %v7721 = vpop.permute.xlu0 %7720
      %7722 = vrot.lane.b32.xlu0 %v6879, 32
      %v7723 = vpop.permute.xlu0 %7722
      %7724 = vrot.lane.b32.xlu0 %v6880, 32
      %v7725 = vpop.permute.xlu0 %7724
      %7726 = vrot.lane.b32.xlu0 %v6881, 32
      %v7727 = vpop.permute.xlu0 %7726
      %7728 = vrot.lane.b32.xlu0 %v6882, 32
      %v7729 = vpop.permute.xlu0 %7728
      %7730 = vrot.lane.b32.xlu0 %v6883, 32
      %v7731 = vpop.permute.xlu0 %7730
      %7732 = vrot.lane.b32.xlu0 %v6884, 32
      %v7733 = vpop.permute.xlu0 %7732
      %7734 = vrot.lane.b32.xlu0 %v6885, 32
      %v7735 = vpop.permute.xlu0 %7734
      %v7736 = vmul.f32 %v7624, %v7705
      %v7737 = vmul.f32 %v7625, %v7707
      %v7738 = vmul.f32 %v7626, %v7709
      %v7739 = vmul.f32 %v7627, %v7711
      %v7740 = vmul.f32 %v7628, %v7713
      %v7741 = vmul.f32 %v7629, %v7715
      %v7742 = vmul.f32 %v7630, %v7717
      %v7743 = vmul.f32 %v7631, %v7719
      %v7744 = vmul.f32 %v7632, %v7721
      %v7745 = vmul.f32 %v7633, %v7723
      %v7746 = vmul.f32 %v7634, %v7725
      %v7747 = vmul.f32 %v7635, %v7727
      %v7748 = vmul.f32 %v7636, %v7729
      %v7749 = vmul.f32 %v7637, %v7731
      %v7750 = vmul.f32 %v7638, %v7733
      %v7751 = vmul.f32 %v7639, %v7735
      %7752 = vrot.lane.b32.xlu0 %v7736, 96
      %v7753 = vpop.permute.xlu0 %7752
      %7754 = vrot.lane.b32.xlu0 %v7737, 96
      %v7755 = vpop.permute.xlu0 %7754
      %7756 = vrot.lane.b32.xlu0 %v7738, 96
      %v7757 = vpop.permute.xlu0 %7756
      %7758 = vrot.lane.b32.xlu0 %v7739, 96
      %v7759 = vpop.permute.xlu0 %7758
      %7760 = vrot.lane.b32.xlu0 %v7740, 96
      %v7761 = vpop.permute.xlu0 %7760
      %7762 = vrot.lane.b32.xlu0 %v7741, 96
      %v7763 = vpop.permute.xlu0 %7762
      %7764 = vrot.lane.b32.xlu0 %v7742, 96
      %v7765 = vpop.permute.xlu0 %7764
      %7766 = vrot.lane.b32.xlu0 %v7743, 96
      %v7767 = vpop.permute.xlu0 %7766
      %7768 = vrot.lane.b32.xlu0 %v7744, 96
      %v7769 = vpop.permute.xlu0 %7768
      %7770 = vrot.lane.b32.xlu0 %v7745, 96
      %v7771 = vpop.permute.xlu0 %7770
      %7772 = vrot.lane.b32.xlu0 %v7746, 96
      %v7773 = vpop.permute.xlu0 %7772
      %7774 = vrot.lane.b32.xlu0 %v7747, 96
      %v7775 = vpop.permute.xlu0 %7774
      %7776 = vrot.lane.b32.xlu0 %v7748, 96
      %v7777 = vpop.permute.xlu0 %7776
      %7778 = vrot.lane.b32.xlu0 %v7749, 96
      %v7779 = vpop.permute.xlu0 %7778
      %7780 = vrot.lane.b32.xlu0 %v7750, 96
      %v7781 = vpop.permute.xlu0 %7780
      %7782 = vrot.lane.b32.xlu0 %v7751, 96
      %v7783 = vpop.permute.xlu0 %7782
      %v7784 = vadd.f32 %v7688, %v7753
      %v7785 = vadd.f32 %v7689, %v7755
      %v7786 = vadd.f32 %v7690, %v7757
      %v7787 = vadd.f32 %v7691, %v7759
      %v7788 = vadd.f32 %v7692, %v7761
      %v7789 = vadd.f32 %v7693, %v7763
      %v7790 = vadd.f32 %v7694, %v7765
      %v7791 = vadd.f32 %v7695, %v7767
      %v7792 = vadd.f32 %v7696, %v7769
      %v7793 = vadd.f32 %v7697, %v7771
      %v7794 = vadd.f32 %v7698, %v7773
      %v7795 = vadd.f32 %v7699, %v7775
      %v7796 = vadd.f32 %v7700, %v7777
      %v7797 = vadd.f32 %v7701, %v7779
      %v7798 = vadd.f32 %v7702, %v7781
      %v7799 = vadd.f32 %v7703, %v7783
      %v7800 = vsel %vm3235, %v7784, 0.0
      %v7801 = vsel %vm3235, %v7785, 0.0
      %v7802 = vsel %vm3235, %v7786, 0.0
      %v7803 = vsel %vm3235, %v7787, 0.0
      %v7804 = vsel %vm3235, %v7788, 0.0
      %v7805 = vsel %vm3235, %v7789, 0.0
      %v7806 = vsel %vm3235, %v7790, 0.0
      %v7807 = vsel %vm3235, %v7791, 0.0
      %v7808 = vsel %vm3235, %v7792, 0.0
      %v7809 = vsel %vm3235, %v7793, 0.0
      %v7810 = vsel %vm3235, %v7794, 0.0
      %v7811 = vsel %vm3235, %v7795, 0.0
      %v7812 = vsel %vm3235, %v7796, 0.0
      %v7813 = vsel %vm3235, %v7797, 0.0
      %v7814 = vsel %vm3235, %v7798, 0.0
      %v7815 = vsel %vm3235, %v7799, 0.0
      %7816 = vrot.lane.b32.xlu0 %v7624, 32
      %v7817 = vpop.permute.xlu0 %7816
      %7818 = vrot.lane.b32.xlu0 %v7625, 32
      %v7819 = vpop.permute.xlu0 %7818
      %7820 = vrot.lane.b32.xlu0 %v7626, 32
      %v7821 = vpop.permute.xlu0 %7820
      %7822 = vrot.lane.b32.xlu0 %v7627, 32
      %v7823 = vpop.permute.xlu0 %7822
      %7824 = vrot.lane.b32.xlu0 %v7628, 32
      %v7825 = vpop.permute.xlu0 %7824
      %7826 = vrot.lane.b32.xlu0 %v7629, 32
      %v7827 = vpop.permute.xlu0 %7826
      %7828 = vrot.lane.b32.xlu0 %v7630, 32
      %v7829 = vpop.permute.xlu0 %7828
      %7830 = vrot.lane.b32.xlu0 %v7631, 32
      %v7831 = vpop.permute.xlu0 %7830
      %7832 = vrot.lane.b32.xlu0 %v7632, 32
      %v7833 = vpop.permute.xlu0 %7832
      %7834 = vrot.lane.b32.xlu0 %v7633, 32
      %v7835 = vpop.permute.xlu0 %7834
      %7836 = vrot.lane.b32.xlu0 %v7634, 32
      %v7837 = vpop.permute.xlu0 %7836
      %7838 = vrot.lane.b32.xlu0 %v7635, 32
      %v7839 = vpop.permute.xlu0 %7838
      %7840 = vrot.lane.b32.xlu0 %v7636, 32
      %v7841 = vpop.permute.xlu0 %7840
      %7842 = vrot.lane.b32.xlu0 %v7637, 32
      %v7843 = vpop.permute.xlu0 %7842
      %7844 = vrot.lane.b32.xlu0 %v7638, 32
      %v7845 = vpop.permute.xlu0 %7844
      %7846 = vrot.lane.b32.xlu0 %v7639, 32
      %v7847 = vpop.permute.xlu0 %7846
      %v7848 = vtanh.pop %v7800
      %v7849 = vtanh.pop %v7801
      %v7850 = vtanh.pop %v7802
      %v7851 = vtanh.pop %v7803
      %v7852 = vtanh.pop %v7804
      %v7853 = vtanh.pop %v7805
      %v7854 = vtanh.pop %v7806
      %v7855 = vtanh.pop %v7807
      %v7856 = vtanh.pop %v7808
      %v7857 = vtanh.pop %v7809
      %v7858 = vtanh.pop %v7810
      %v7859 = vtanh.pop %v7811
      %v7860 = vtanh.pop %v7812
      %v7861 = vtanh.pop %v7813
      %v7862 = vtanh.pop %v7814
      %v7863 = vtanh.pop %v7815
      %v7864 = vmul.f32 %v7817, %v7848
      %v7865 = vmul.f32 %v7819, %v7849
      %v7866 = vmul.f32 %v7821, %v7850
      %v7867 = vmul.f32 %v7823, %v7851
      %v7868 = vmul.f32 %v7825, %v7852
      %v7869 = vmul.f32 %v7827, %v7853
      %v7870 = vmul.f32 %v7829, %v7854
      %v7871 = vmul.f32 %v7831, %v7855
      %v7872 = vmul.f32 %v7833, %v7856
      %v7873 = vmul.f32 %v7835, %v7857
      %v7874 = vmul.f32 %v7837, %v7858
      %v7875 = vmul.f32 %v7839, %v7859
      %v7876 = vmul.f32 %v7841, %v7860
      %v7877 = vmul.f32 %v7843, %v7861
      %v7878 = vmul.f32 %v7845, %v7862
      %v7879 = vmul.f32 %v7847, %v7863
      %v7880 = vpack.c.bf16 %v7376, %v7375
      %v7881 = vpack.c.bf16 %v7378, %v7377
      %v7882 = vpack.c.bf16 %v7380, %v7379
      %v7883 = vpack.c.bf16 %v7382, %v7381
      %v7884 = vpack.c.bf16 %v7384, %v7383
      %v7885 = vpack.c.bf16 %v7386, %v7385
      %v7886 = vpack.c.bf16 %v7388, %v7387
      %v7887 = vpack.c.bf16 %v7390, %v7389
      %7888 = vmatprep.subr.bf16.mxu0 0
      %7889 = vmatpush1.bf16.msra.mxu0 %v3275
      %7890 = vmatprep.subr.bf16.mxu0 0
      %7891 = vmatpush1.bf16.msra.mxu0 %v3274
      %7892 = vmatprep.subr.bf16.mxu0 0
      %7893 = vmatpush1.bf16.msra.mxu0 %v3273
      %7894 = vmatprep.subr.bf16.mxu0 0
      %7895 = vmatpush1.bf16.msra.mxu0 %v3272
      %7896 = vmatprep.subr.bf16.mxu0 0
      %7897 = vmatpush1.bf16.msra.mxu0 %v3271
      %7898 = vmatprep.subr.bf16.mxu0 0
      %7899 = vmatpush1.bf16.msra.mxu0 %v3270
      %7900 = vmatprep.subr.bf16.mxu0 0
      %7901 = vmatpush1.bf16.msra.mxu0 %v3269
      %7902 = vmatprep.subr.bf16.mxu0 0
      %7903 = vmatpush1.bf16.msra.mxu0 %v3268
      %7904 = vmatprep.subr.bf16.mxu0 0
      %7905 = vmatpush2.bf16.msra.mxu0 0
      %7906 = vmatprep.subr.bf16.mxu0 0
      %7907 = vmatpush2.bf16.msra.mxu0 0
      %7908 = vmatprep.subr.bf16.mxu0 0
      %7909 = vmatpush2.bf16.msra.mxu0 0
      %7910 = vmatprep.subr.bf16.mxu0 0
      %7911 = vmatpush2.bf16.msra.mxu0 0
      %7912 = vmatprep.subr.bf16.mxu0 0
      %7913 = vmatpush2.bf16.msra.mxu0 0
      %7914 = vmatprep.subr.bf16.mxu0 0
      %7915 = vmatpush2.bf16.msra.mxu0 0
      %7916 = vmatprep.subr.bf16.mxu0 0
      %7917 = vmatpush2.bf16.msra.mxu0 0
      %7918 = vmatprep.subr.bf16.mxu0 0
      %7919 = vmatpush2.bf16.msra.mxu0 0
      %7920 = vmatprep.mubr.bf16.mxu0 0
      %7921 = vmatmul.mubr.bf16.gmra.mxu0 %v7880
      %v7922 = vpop.f32.mrf.mxu0
      %v7923 = vadd.f32 0.0, %v7922
      %v7924 = vpop.f32.mrf.mxu0
      %v7925 = vpop.f32.mrf.mxu0
      %v7926 = vadd.f32 0.0, %v7925
      %v7927 = vpop.f32.mrf.mxu0
      %7928 = vmatprep.mubr.bf16.mxu0 0
      %7929 = vmatmul.mubr.bf16.gmra.mxu0 %v7881
      %v7930 = vpop.f32.mrf.mxu0
      %v7931 = vadd.f32 0.0, %v7930
      %v7932 = vpop.f32.mrf.mxu0
      %v7933 = vpop.f32.mrf.mxu0
      %v7934 = vadd.f32 0.0, %v7933
      %v7935 = vpop.f32.mrf.mxu0
      %7936 = vmatprep.mubr.bf16.mxu0 0
      %7937 = vmatmul.mubr.bf16.gmra.mxu0 %v7882
      %v7938 = vpop.f32.mrf.mxu0
      %v7939 = vadd.f32 0.0, %v7938
      %v7940 = vpop.f32.mrf.mxu0
      %v7941 = vpop.f32.mrf.mxu0
      %v7942 = vadd.f32 0.0, %v7941
      %v7943 = vpop.f32.mrf.mxu0
      %7944 = vmatprep.mubr.bf16.mxu0 0
      %7945 = vmatmul.mubr.bf16.gmra.mxu0 %v7883
      %v7946 = vpop.f32.mrf.mxu0
      %v7947 = vadd.f32 0.0, %v7946
      %v7948 = vpop.f32.mrf.mxu0
      %v7949 = vpop.f32.mrf.mxu0
      %v7950 = vadd.f32 0.0, %v7949
      %v7951 = vpop.f32.mrf.mxu0
      %7952 = vmatprep.mubr.bf16.mxu0 0
      %7953 = vmatmul.mubr.bf16.gmra.mxu0 %v7884
      %v7954 = vpop.f32.mrf.mxu0
      %v7955 = vadd.f32 0.0, %v7954
      %v7956 = vpop.f32.mrf.mxu0
      %v7957 = vpop.f32.mrf.mxu0
      %v7958 = vadd.f32 0.0, %v7957
      %v7959 = vpop.f32.mrf.mxu0
      %7960 = vmatprep.mubr.bf16.mxu0 0
      %7961 = vmatmul.mubr.bf16.gmra.mxu0 %v7885
      %v7962 = vpop.f32.mrf.mxu0
      %v7963 = vadd.f32 0.0, %v7962
      %v7964 = vpop.f32.mrf.mxu0
      %v7965 = vpop.f32.mrf.mxu0
      %v7966 = vadd.f32 0.0, %v7965
      %v7967 = vpop.f32.mrf.mxu0
      %7968 = vmatprep.mubr.bf16.mxu0 0
      %7969 = vmatmul.mubr.bf16.gmra.mxu0 %v7886
      %v7970 = vpop.f32.mrf.mxu0
      %v7971 = vadd.f32 0.0, %v7970
      %v7972 = vpop.f32.mrf.mxu0
      %v7973 = vpop.f32.mrf.mxu0
      %v7974 = vadd.f32 0.0, %v7973
      %v7975 = vpop.f32.mrf.mxu0
      %7976 = vmatprep.mubr.bf16.mxu0 0
      %7977 = vmatmul.mubr.bf16.gmra.mxu0 %v7887
      %v7978 = vpop.f32.mrf.mxu0
      %v7979 = vadd.f32 0.0, %v7978
      %v7980 = vpop.f32.mrf.mxu0
      %v7981 = vpop.f32.mrf.mxu0
      %v7982 = vadd.f32 0.0, %v7981
      %v7983 = vpop.f32.mrf.mxu0
      %7984 = vdwg.mxu0
      %v7985 = vadd.f32 %v3041, %v7923
      %v7986 = vadd.f32 %v3044, %v7926
      %v7987 = vadd.f32 %v3049, %v7931
      %v7988 = vadd.f32 %v3052, %v7934
      %v7989 = vadd.f32 %v3057, %v7939
      %v7990 = vadd.f32 %v3060, %v7942
      %v7991 = vadd.f32 %v3065, %v7947
      %v7992 = vadd.f32 %v3068, %v7950
      %v7993 = vadd.f32 %v3073, %v7955
      %v7994 = vadd.f32 %v3076, %v7958
      %v7995 = vadd.f32 %v3081, %v7963
      %v7996 = vadd.f32 %v3084, %v7966
      %v7997 = vadd.f32 %v3089, %v7971
      %v7998 = vadd.f32 %v3092, %v7974
      %v7999 = vadd.f32 %v3097, %v7979
      %v8000 = vadd.f32 %v3100, %v7982
      %v8001 = vsub.f32 0.0, %v7985
      %v8002 = vsub.f32 0.0, %v7986
      %v8003 = vsub.f32 0.0, %v7987
      %v8004 = vsub.f32 0.0, %v7988
      %v8005 = vsub.f32 0.0, %v7989
      %v8006 = vsub.f32 0.0, %v7990
      %v8007 = vsub.f32 0.0, %v7991
      %v8008 = vsub.f32 0.0, %v7992
      %v8009 = vsub.f32 0.0, %v7993
      %v8010 = vsub.f32 0.0, %v7994
      %v8011 = vsub.f32 0.0, %v7995
      %v8012 = vsub.f32 0.0, %v7996
      %v8013 = vsub.f32 0.0, %v7997
      %v8014 = vsub.f32 0.0, %v7998
      %v8015 = vsub.f32 0.0, %v7999
      %v8016 = vsub.f32 0.0, %v8000
      %v8017 = vmul.f32 %v8001, 1.442695
      %v8018 = vpow.pop %v8017
      %v8019 = vmul.f32 %v8002, 1.442695
      %v8020 = vpow.pop %v8019
      %v8021 = vmul.f32 %v8003, 1.442695
      %v8022 = vpow.pop %v8021
      %v8023 = vmul.f32 %v8004, 1.442695
      %v8024 = vpow.pop %v8023
      %v8025 = vmul.f32 %v8005, 1.442695
      %v8026 = vpow.pop %v8025
      %v8027 = vmul.f32 %v8006, 1.442695
      %v8028 = vpow.pop %v8027
      %v8029 = vmul.f32 %v8007, 1.442695
      %v8030 = vpow.pop %v8029
      %v8031 = vmul.f32 %v8008, 1.442695
      %v8032 = vpow.pop %v8031
      %v8033 = vmul.f32 %v8009, 1.442695
      %v8034 = vpow.pop %v8033
      %v8035 = vmul.f32 %v8010, 1.442695
      %v8036 = vpow.pop %v8035
      %v8037 = vmul.f32 %v8011, 1.442695
      %v8038 = vpow.pop %v8037
      %v8039 = vmul.f32 %v8012, 1.442695
      %v8040 = vpow.pop %v8039
      %v8041 = vmul.f32 %v8013, 1.442695
      %v8042 = vpow.pop %v8041
      %v8043 = vmul.f32 %v8014, 1.442695
      %v8044 = vpow.pop %v8043
      %v8045 = vmul.f32 %v8015, 1.442695
      %v8046 = vpow.pop %v8045
      %v8047 = vmul.f32 %v8016, 1.442695
      %v8048 = vpow.pop %v8047
      %v8049 = vadd.f32 %v8018, 1.0
      %v8050 = vadd.f32 %v8020, 1.0
      %v8051 = vadd.f32 %v8022, 1.0
      %v8052 = vadd.f32 %v8024, 1.0
      %v8053 = vadd.f32 %v8026, 1.0
      %v8054 = vadd.f32 %v8028, 1.0
      %v8055 = vadd.f32 %v8030, 1.0
      %v8056 = vadd.f32 %v8032, 1.0
      %v8057 = vadd.f32 %v8034, 1.0
      %v8058 = vadd.f32 %v8036, 1.0
      %v8059 = vadd.f32 %v8038, 1.0
      %v8060 = vadd.f32 %v8040, 1.0
      %v8061 = vadd.f32 %v8042, 1.0
      %v8062 = vadd.f32 %v8044, 1.0
      %v8063 = vadd.f32 %v8046, 1.0
      %v8064 = vadd.f32 %v8048, 1.0
      %v8065 = vrcp.pop %v8049
      %v8066 = vrcp.pop %v8050
      %v8067 = vrcp.pop %v8051
      %v8068 = vrcp.pop %v8052
      %v8069 = vrcp.pop %v8053
      %v8070 = vrcp.pop %v8054
      %v8071 = vrcp.pop %v8055
      %v8072 = vrcp.pop %v8056
      %v8073 = vrcp.pop %v8057
      %v8074 = vrcp.pop %v8058
      %v8075 = vrcp.pop %v8059
      %v8076 = vrcp.pop %v8060
      %v8077 = vrcp.pop %v8061
      %v8078 = vrcp.pop %v8062
      %v8079 = vrcp.pop %v8063
      %v8080 = vrcp.pop %v8064
      %v8081 = vtanh.pop %v7985
      %v8082 = vtanh.pop %v7986
      %v8083 = vtanh.pop %v7987
      %v8084 = vtanh.pop %v7988
      %v8085 = vtanh.pop %v7989
      %v8086 = vtanh.pop %v7990
      %v8087 = vtanh.pop %v7991
      %v8088 = vtanh.pop %v7992
      %v8089 = vtanh.pop %v7993
      %v8090 = vtanh.pop %v7994
      %v8091 = vtanh.pop %v7995
      %v8092 = vtanh.pop %v7996
      %v8093 = vtanh.pop %v7997
      %v8094 = vtanh.pop %v7998
      %v8095 = vtanh.pop %v7999
      %v8096 = vtanh.pop %v8000
      %8097 = vrot.lane.b32.xlu0 %v8081, 64
      %v8098 = vpop.permute.xlu0 %8097
      %8099 = vrot.lane.b32.xlu0 %v8082, 64
      %v8100 = vpop.permute.xlu0 %8099
      %8101 = vrot.lane.b32.xlu0 %v8083, 64
      %v8102 = vpop.permute.xlu0 %8101
      %8103 = vrot.lane.b32.xlu0 %v8084, 64
      %v8104 = vpop.permute.xlu0 %8103
      %8105 = vrot.lane.b32.xlu0 %v8085, 64
      %v8106 = vpop.permute.xlu0 %8105
      %8107 = vrot.lane.b32.xlu0 %v8086, 64
      %v8108 = vpop.permute.xlu0 %8107
      %8109 = vrot.lane.b32.xlu0 %v8087, 64
      %v8110 = vpop.permute.xlu0 %8109
      %8111 = vrot.lane.b32.xlu0 %v8088, 64
      %v8112 = vpop.permute.xlu0 %8111
      %8113 = vrot.lane.b32.xlu0 %v8089, 64
      %v8114 = vpop.permute.xlu0 %8113
      %8115 = vrot.lane.b32.xlu0 %v8090, 64
      %v8116 = vpop.permute.xlu0 %8115
      %8117 = vrot.lane.b32.xlu0 %v8091, 64
      %v8118 = vpop.permute.xlu0 %8117
      %8119 = vrot.lane.b32.xlu0 %v8092, 64
      %v8120 = vpop.permute.xlu0 %8119
      %8121 = vrot.lane.b32.xlu0 %v8093, 64
      %v8122 = vpop.permute.xlu0 %8121
      %8123 = vrot.lane.b32.xlu0 %v8094, 64
      %v8124 = vpop.permute.xlu0 %8123
      %8125 = vrot.lane.b32.xlu0 %v8095, 64
      %v8126 = vpop.permute.xlu0 %8125
      %8127 = vrot.lane.b32.xlu0 %v8096, 64
      %v8128 = vpop.permute.xlu0 %8127
      %v8129 = vmul.f32 %v8065, %v8098
      %v8130 = vmul.f32 %v8066, %v8100
      %v8131 = vmul.f32 %v8067, %v8102
      %v8132 = vmul.f32 %v8068, %v8104
      %v8133 = vmul.f32 %v8069, %v8106
      %v8134 = vmul.f32 %v8070, %v8108
      %v8135 = vmul.f32 %v8071, %v8110
      %v8136 = vmul.f32 %v8072, %v8112
      %v8137 = vmul.f32 %v8073, %v8114
      %v8138 = vmul.f32 %v8074, %v8116
      %v8139 = vmul.f32 %v8075, %v8118
      %v8140 = vmul.f32 %v8076, %v8120
      %v8141 = vmul.f32 %v8077, %v8122
      %v8142 = vmul.f32 %v8078, %v8124
      %v8143 = vmul.f32 %v8079, %v8126
      %v8144 = vmul.f32 %v8080, %v8128
      %8145 = vrot.lane.b32.xlu0 %v7311, 32
      %v8146 = vpop.permute.xlu0 %8145
      %8147 = vrot.lane.b32.xlu0 %v7312, 32
      %v8148 = vpop.permute.xlu0 %8147
      %8149 = vrot.lane.b32.xlu0 %v7313, 32
      %v8150 = vpop.permute.xlu0 %8149
      %8151 = vrot.lane.b32.xlu0 %v7314, 32
      %v8152 = vpop.permute.xlu0 %8151
      %8153 = vrot.lane.b32.xlu0 %v7315, 32
      %v8154 = vpop.permute.xlu0 %8153
      %8155 = vrot.lane.b32.xlu0 %v7316, 32
      %v8156 = vpop.permute.xlu0 %8155
      %8157 = vrot.lane.b32.xlu0 %v7317, 32
      %v8158 = vpop.permute.xlu0 %8157
      %8159 = vrot.lane.b32.xlu0 %v7318, 32
      %v8160 = vpop.permute.xlu0 %8159
      %8161 = vrot.lane.b32.xlu0 %v7319, 32
      %v8162 = vpop.permute.xlu0 %8161
      %8163 = vrot.lane.b32.xlu0 %v7320, 32
      %v8164 = vpop.permute.xlu0 %8163
      %8165 = vrot.lane.b32.xlu0 %v7321, 32
      %v8166 = vpop.permute.xlu0 %8165
      %8167 = vrot.lane.b32.xlu0 %v7322, 32
      %v8168 = vpop.permute.xlu0 %8167
      %8169 = vrot.lane.b32.xlu0 %v7323, 32
      %v8170 = vpop.permute.xlu0 %8169
      %8171 = vrot.lane.b32.xlu0 %v7324, 32
      %v8172 = vpop.permute.xlu0 %8171
      %8173 = vrot.lane.b32.xlu0 %v7325, 32
      %v8174 = vpop.permute.xlu0 %8173
      %8175 = vrot.lane.b32.xlu0 %v7326, 32
      %v8176 = vpop.permute.xlu0 %8175
      %v8177 = vmul.f32 %v8065, %v8146
      %v8178 = vmul.f32 %v8066, %v8148
      %v8179 = vmul.f32 %v8067, %v8150
      %v8180 = vmul.f32 %v8068, %v8152
      %v8181 = vmul.f32 %v8069, %v8154
      %v8182 = vmul.f32 %v8070, %v8156
      %v8183 = vmul.f32 %v8071, %v8158
      %v8184 = vmul.f32 %v8072, %v8160
      %v8185 = vmul.f32 %v8073, %v8162
      %v8186 = vmul.f32 %v8074, %v8164
      %v8187 = vmul.f32 %v8075, %v8166
      %v8188 = vmul.f32 %v8076, %v8168
      %v8189 = vmul.f32 %v8077, %v8170
      %v8190 = vmul.f32 %v8078, %v8172
      %v8191 = vmul.f32 %v8079, %v8174
      %v8192 = vmul.f32 %v8080, %v8176
      %8193 = vrot.lane.b32.xlu0 %v8177, 96
      %v8194 = vpop.permute.xlu0 %8193
      %8195 = vrot.lane.b32.xlu0 %v8178, 96
      %v8196 = vpop.permute.xlu0 %8195
      %8197 = vrot.lane.b32.xlu0 %v8179, 96
      %v8198 = vpop.permute.xlu0 %8197
      %8199 = vrot.lane.b32.xlu0 %v8180, 96
      %v8200 = vpop.permute.xlu0 %8199
      %8201 = vrot.lane.b32.xlu0 %v8181, 96
      %v8202 = vpop.permute.xlu0 %8201
      %8203 = vrot.lane.b32.xlu0 %v8182, 96
      %v8204 = vpop.permute.xlu0 %8203
      %8205 = vrot.lane.b32.xlu0 %v8183, 96
      %v8206 = vpop.permute.xlu0 %8205
      %8207 = vrot.lane.b32.xlu0 %v8184, 96
      %v8208 = vpop.permute.xlu0 %8207
      %8209 = vrot.lane.b32.xlu0 %v8185, 96
      %v8210 = vpop.permute.xlu0 %8209
      %8211 = vrot.lane.b32.xlu0 %v8186, 96
      %v8212 = vpop.permute.xlu0 %8211
      %8213 = vrot.lane.b32.xlu0 %v8187, 96
      %v8214 = vpop.permute.xlu0 %8213
      %8215 = vrot.lane.b32.xlu0 %v8188, 96
      %v8216 = vpop.permute.xlu0 %8215
      %8217 = vrot.lane.b32.xlu0 %v8189, 96
      %v8218 = vpop.permute.xlu0 %8217
      %8219 = vrot.lane.b32.xlu0 %v8190, 96
      %v8220 = vpop.permute.xlu0 %8219
      %8221 = vrot.lane.b32.xlu0 %v8191, 96
      %v8222 = vpop.permute.xlu0 %8221
      %8223 = vrot.lane.b32.xlu0 %v8192, 96
      %v8224 = vpop.permute.xlu0 %8223
      %v8225 = vadd.f32 %v8129, %v8194
      %v8226 = vadd.f32 %v8130, %v8196
      %v8227 = vadd.f32 %v8131, %v8198
      %v8228 = vadd.f32 %v8132, %v8200
      %v8229 = vadd.f32 %v8133, %v8202
      %v8230 = vadd.f32 %v8134, %v8204
      %v8231 = vadd.f32 %v8135, %v8206
      %v8232 = vadd.f32 %v8136, %v8208
      %v8233 = vadd.f32 %v8137, %v8210
      %v8234 = vadd.f32 %v8138, %v8212
      %v8235 = vadd.f32 %v8139, %v8214
      %v8236 = vadd.f32 %v8140, %v8216
      %v8237 = vadd.f32 %v8141, %v8218
      %v8238 = vadd.f32 %v8142, %v8220
      %v8239 = vadd.f32 %v8143, %v8222
      %v8240 = vadd.f32 %v8144, %v8224
      %v8241 = vsel %vm3235, %v8225, 0.0
      %v8242 = vsel %vm3235, %v8226, 0.0
      %v8243 = vsel %vm3235, %v8227, 0.0
      %v8244 = vsel %vm3235, %v8228, 0.0
      %v8245 = vsel %vm3235, %v8229, 0.0
      %v8246 = vsel %vm3235, %v8230, 0.0
      %v8247 = vsel %vm3235, %v8231, 0.0
      %v8248 = vsel %vm3235, %v8232, 0.0
      %v8249 = vsel %vm3235, %v8233, 0.0
      %v8250 = vsel %vm3235, %v8234, 0.0
      %v8251 = vsel %vm3235, %v8235, 0.0
      %v8252 = vsel %vm3235, %v8236, 0.0
      %v8253 = vsel %vm3235, %v8237, 0.0
      %v8254 = vsel %vm3235, %v8238, 0.0
      %v8255 = vsel %vm3235, %v8239, 0.0
      %v8256 = vsel %vm3235, %v8240, 0.0
      %8257 = vrot.lane.b32.xlu0 %v8065, 32
      %v8258 = vpop.permute.xlu0 %8257
      %8259 = vrot.lane.b32.xlu0 %v8066, 32
      %v8260 = vpop.permute.xlu0 %8259
      %8261 = vrot.lane.b32.xlu0 %v8067, 32
      %v8262 = vpop.permute.xlu0 %8261
      %8263 = vrot.lane.b32.xlu0 %v8068, 32
      %v8264 = vpop.permute.xlu0 %8263
      %8265 = vrot.lane.b32.xlu0 %v8069, 32
      %v8266 = vpop.permute.xlu0 %8265
      %8267 = vrot.lane.b32.xlu0 %v8070, 32
      %v8268 = vpop.permute.xlu0 %8267
      %8269 = vrot.lane.b32.xlu0 %v8071, 32
      %v8270 = vpop.permute.xlu0 %8269
      %8271 = vrot.lane.b32.xlu0 %v8072, 32
      %v8272 = vpop.permute.xlu0 %8271
      %8273 = vrot.lane.b32.xlu0 %v8073, 32
      %v8274 = vpop.permute.xlu0 %8273
      %8275 = vrot.lane.b32.xlu0 %v8074, 32
      %v8276 = vpop.permute.xlu0 %8275
      %8277 = vrot.lane.b32.xlu0 %v8075, 32
      %v8278 = vpop.permute.xlu0 %8277
      %8279 = vrot.lane.b32.xlu0 %v8076, 32
      %v8280 = vpop.permute.xlu0 %8279
      %8281 = vrot.lane.b32.xlu0 %v8077, 32
      %v8282 = vpop.permute.xlu0 %8281
      %8283 = vrot.lane.b32.xlu0 %v8078, 32
      %v8284 = vpop.permute.xlu0 %8283
      %8285 = vrot.lane.b32.xlu0 %v8079, 32
      %v8286 = vpop.permute.xlu0 %8285
      %8287 = vrot.lane.b32.xlu0 %v8080, 32
      %v8288 = vpop.permute.xlu0 %8287
      %v8289 = vtanh.pop %v8241
      %v8290 = vtanh.pop %v8242
      %v8291 = vtanh.pop %v8243
      %v8292 = vtanh.pop %v8244
      %v8293 = vtanh.pop %v8245
      %v8294 = vtanh.pop %v8246
      %v8295 = vtanh.pop %v8247
      %v8296 = vtanh.pop %v8248
      %v8297 = vtanh.pop %v8249
      %v8298 = vtanh.pop %v8250
      %v8299 = vtanh.pop %v8251
      %v8300 = vtanh.pop %v8252
      %v8301 = vtanh.pop %v8253
      %v8302 = vtanh.pop %v8254
      %v8303 = vtanh.pop %v8255
      %v8304 = vtanh.pop %v8256
      %v8305 = vmul.f32 %v8258, %v8289
      %v8306 = vmul.f32 %v8260, %v8290
      %v8307 = vmul.f32 %v8262, %v8291
      %v8308 = vmul.f32 %v8264, %v8292
      %v8309 = vmul.f32 %v8266, %v8293
      %v8310 = vmul.f32 %v8268, %v8294
      %v8311 = vmul.f32 %v8270, %v8295
      %v8312 = vmul.f32 %v8272, %v8296
      %v8313 = vmul.f32 %v8274, %v8297
      %v8314 = vmul.f32 %v8276, %v8298
      %v8315 = vmul.f32 %v8278, %v8299
      %v8316 = vmul.f32 %v8280, %v8300
      %v8317 = vmul.f32 %v8282, %v8301
      %v8318 = vmul.f32 %v8284, %v8302
      %v8319 = vmul.f32 %v8286, %v8303
      %v8320 = vmul.f32 %v8288, %v8304
      %8321 = vrot.lane.b32.xlu0 %v7864, 32
      %v8322 = vpop.permute.xlu0 %8321
      %8323 = vrot.lane.b32.xlu0 %v7865, 32
      %v8324 = vpop.permute.xlu0 %8323
      %8325 = vrot.lane.b32.xlu0 %v7866, 32
      %v8326 = vpop.permute.xlu0 %8325
      %8327 = vrot.lane.b32.xlu0 %v7867, 32
      %v8328 = vpop.permute.xlu0 %8327
      %8329 = vrot.lane.b32.xlu0 %v7868, 32
      %v8330 = vpop.permute.xlu0 %8329
      %8331 = vrot.lane.b32.xlu0 %v7869, 32
      %v8332 = vpop.permute.xlu0 %8331
      %8333 = vrot.lane.b32.xlu0 %v7870, 32
      %v8334 = vpop.permute.xlu0 %8333
      %8335 = vrot.lane.b32.xlu0 %v7871, 32
      %v8336 = vpop.permute.xlu0 %8335
      %8337 = vrot.lane.b32.xlu0 %v7872, 32
      %v8338 = vpop.permute.xlu0 %8337
      %8339 = vrot.lane.b32.xlu0 %v7873, 32
      %v8340 = vpop.permute.xlu0 %8339
      %8341 = vrot.lane.b32.xlu0 %v7874, 32
      %v8342 = vpop.permute.xlu0 %8341
      %8343 = vrot.lane.b32.xlu0 %v7875, 32
      %v8344 = vpop.permute.xlu0 %8343
      %8345 = vrot.lane.b32.xlu0 %v7876, 32
      %v8346 = vpop.permute.xlu0 %8345
      %8347 = vrot.lane.b32.xlu0 %v7877, 32
      %v8348 = vpop.permute.xlu0 %8347
      %8349 = vrot.lane.b32.xlu0 %v7878, 32
      %v8350 = vpop.permute.xlu0 %8349
      %8351 = vrot.lane.b32.xlu0 %v7879, 32
      %v8352 = vpop.permute.xlu0 %8351
      %v8353 = vadd.f32 %v8305, %v8322
      %v8354 = vadd.f32 %v8306, %v8324
      %v8355 = vadd.f32 %v8307, %v8326
      %v8356 = vadd.f32 %v8308, %v8328
      %v8357 = vadd.f32 %v8309, %v8330
      %v8358 = vadd.f32 %v8310, %v8332
      %v8359 = vadd.f32 %v8311, %v8334
      %v8360 = vadd.f32 %v8312, %v8336
      %v8361 = vadd.f32 %v8313, %v8338
      %v8362 = vadd.f32 %v8314, %v8340
      %v8363 = vadd.f32 %v8315, %v8342
      %v8364 = vadd.f32 %v8316, %v8344
      %v8365 = vadd.f32 %v8317, %v8346
      %v8366 = vadd.f32 %v8318, %v8348
      %v8367 = vadd.f32 %v8319, %v8350
      %v8368 = vadd.f32 %v8320, %v8352
      %v8369 = vpack.c.bf16 %v8354, %v8353
      %v8370 = vpack.c.bf16 %v8356, %v8355
      %v8371 = vpack.c.bf16 %v8358, %v8357
      %v8372 = vpack.c.bf16 %v8360, %v8359
      %v8373 = vpack.c.bf16 %v8362, %v8361
      %v8374 = vpack.c.bf16 %v8364, %v8363
      %v8375 = vpack.c.bf16 %v8366, %v8365
      %v8376 = vpack.c.bf16 %v8368, %v8367
      %8377 = vmatprep.subr.bf16.mxu0 0
      %8378 = vmatpush1.bf16.msra.mxu0 %v3750
      %8379 = vmatprep.subr.bf16.mxu0 0
      %8380 = vmatpush1.bf16.msra.mxu0 %v3749
      %8381 = vmatprep.subr.bf16.mxu0 0
      %8382 = vmatpush1.bf16.msra.mxu0 %v3748
      %8383 = vmatprep.subr.bf16.mxu0 0
      %8384 = vmatpush1.bf16.msra.mxu0 %v3747
      %8385 = vmatprep.subr.bf16.mxu0 0
      %8386 = vmatpush1.bf16.msra.mxu0 %v3746
      %8387 = vmatprep.subr.bf16.mxu0 0
      %8388 = vmatpush1.bf16.msra.mxu0 %v3745
      %8389 = vmatprep.subr.bf16.mxu0 0
      %8390 = vmatpush1.bf16.msra.mxu0 %v3744
      %8391 = vmatprep.subr.bf16.mxu0 0
      %8392 = vmatpush1.bf16.msra.mxu0 %v3743
      %8393 = vmatprep.subr.bf16.mxu0 0
      %8394 = vmatpush2.bf16.msra.mxu0 0
      %8395 = vmatprep.subr.bf16.mxu0 0
      %8396 = vmatpush2.bf16.msra.mxu0 0
      %8397 = vmatprep.subr.bf16.mxu0 0
      %8398 = vmatpush2.bf16.msra.mxu0 0
      %8399 = vmatprep.subr.bf16.mxu0 0
      %8400 = vmatpush2.bf16.msra.mxu0 0
      %8401 = vmatprep.subr.bf16.mxu0 0
      %8402 = vmatpush2.bf16.msra.mxu0 0
      %8403 = vmatprep.subr.bf16.mxu0 0
      %8404 = vmatpush2.bf16.msra.mxu0 0
      %8405 = vmatprep.subr.bf16.mxu0 0
      %8406 = vmatpush2.bf16.msra.mxu0 0
      %8407 = vmatprep.subr.bf16.mxu0 0
      %8408 = vmatpush2.bf16.msra.mxu0 0
      %8409 = vmatprep.mubr.bf16.mxu0 0
      %8410 = vmatmul.mubr.bf16.gmra.mxu0 %v8369
      %v8411 = vpop.f32.mrf.mxu0
      %v8412 = vadd.f32 0.0, %v8411
      %v8413 = vpop.f32.mrf.mxu0
      %v8414 = vpop.f32.mrf.mxu0
      %v8415 = vadd.f32 0.0, %v8414
      %v8416 = vpop.f32.mrf.mxu0
      %8417 = vmatprep.mubr.bf16.mxu0 0
      %8418 = vmatmul.mubr.bf16.gmra.mxu0 %v8370
      %v8419 = vpop.f32.mrf.mxu0
      %v8420 = vadd.f32 0.0, %v8419
      %v8421 = vpop.f32.mrf.mxu0
      %v8422 = vpop.f32.mrf.mxu0
      %v8423 = vadd.f32 0.0, %v8422
      %v8424 = vpop.f32.mrf.mxu0
      %8425 = vmatprep.mubr.bf16.mxu0 0
      %8426 = vmatmul.mubr.bf16.gmra.mxu0 %v8371
      %v8427 = vpop.f32.mrf.mxu0
      %v8428 = vadd.f32 0.0, %v8427
      %v8429 = vpop.f32.mrf.mxu0
      %v8430 = vpop.f32.mrf.mxu0
      %v8431 = vadd.f32 0.0, %v8430
      %v8432 = vpop.f32.mrf.mxu0
      %8433 = vmatprep.mubr.bf16.mxu0 0
      %8434 = vmatmul.mubr.bf16.gmra.mxu0 %v8372
      %v8435 = vpop.f32.mrf.mxu0
      %v8436 = vadd.f32 0.0, %v8435
      %v8437 = vpop.f32.mrf.mxu0
      %v8438 = vpop.f32.mrf.mxu0
      %v8439 = vadd.f32 0.0, %v8438
      %v8440 = vpop.f32.mrf.mxu0
      %8441 = vmatprep.mubr.bf16.mxu0 0
      %8442 = vmatmul.mubr.bf16.gmra.mxu0 %v8373
      %v8443 = vpop.f32.mrf.mxu0
      %v8444 = vadd.f32 0.0, %v8443
      %v8445 = vpop.f32.mrf.mxu0
      %v8446 = vpop.f32.mrf.mxu0
      %v8447 = vadd.f32 0.0, %v8446
      %v8448 = vpop.f32.mrf.mxu0
      %8449 = vmatprep.mubr.bf16.mxu0 0
      %8450 = vmatmul.mubr.bf16.gmra.mxu0 %v8374
      %v8451 = vpop.f32.mrf.mxu0
      %v8452 = vadd.f32 0.0, %v8451
      %v8453 = vpop.f32.mrf.mxu0
      %v8454 = vpop.f32.mrf.mxu0
      %v8455 = vadd.f32 0.0, %v8454
      %v8456 = vpop.f32.mrf.mxu0
      %8457 = vmatprep.mubr.bf16.mxu0 0
      %8458 = vmatmul.mubr.bf16.gmra.mxu0 %v8375
      %v8459 = vpop.f32.mrf.mxu0
      %v8460 = vadd.f32 0.0, %v8459
      %v8461 = vpop.f32.mrf.mxu0
      %v8462 = vpop.f32.mrf.mxu0
      %v8463 = vadd.f32 0.0, %v8462
      %v8464 = vpop.f32.mrf.mxu0
      %8465 = vmatprep.mubr.bf16.mxu0 0
      %8466 = vmatmul.mubr.bf16.gmra.mxu0 %v8376
      %v8467 = vpop.f32.mrf.mxu0
      %v8468 = vadd.f32 0.0, %v8467
      %v8469 = vpop.f32.mrf.mxu0
      %v8470 = vpop.f32.mrf.mxu0
      %v8471 = vadd.f32 0.0, %v8470
      %v8472 = vpop.f32.mrf.mxu0
      %8473 = vdwg.mxu0
      %v8474 = vadd.f32 %v3234, %v8412
      %v8475 = vadd.f32 %v3234, %v8415
      %v8476 = vadd.f32 %v3234, %v8420
      %v8477 = vadd.f32 %v3234, %v8423
      %v8478 = vadd.f32 %v3234, %v8428
      %v8479 = vadd.f32 %v3234, %v8431
      %v8480 = vadd.f32 %v3234, %v8436
      %v8481 = vadd.f32 %v3234, %v8439
      %v8482 = vadd.f32 %v3234, %v8444
      %v8483 = vadd.f32 %v3234, %v8447
      %v8484 = vadd.f32 %v3234, %v8452
      %v8485 = vadd.f32 %v3234, %v8455
      %v8486 = vadd.f32 %v3234, %v8460
      %v8487 = vadd.f32 %v3234, %v8463
      %v8488 = vadd.f32 %v3234, %v8468
      %v8489 = vadd.f32 %v3234, %v8471
      %v8490 = vsub.f32 0.0, %v8474
      %v8491 = vsub.f32 0.0, %v8475
      %v8492 = vsub.f32 0.0, %v8476
      %v8493 = vsub.f32 0.0, %v8477
      %v8494 = vsub.f32 0.0, %v8478
      %v8495 = vsub.f32 0.0, %v8479
      %v8496 = vsub.f32 0.0, %v8480
      %v8497 = vsub.f32 0.0, %v8481
      %v8498 = vsub.f32 0.0, %v8482
      %v8499 = vsub.f32 0.0, %v8483
      %v8500 = vsub.f32 0.0, %v8484
      %v8501 = vsub.f32 0.0, %v8485
      %v8502 = vsub.f32 0.0, %v8486
      %v8503 = vsub.f32 0.0, %v8487
      %v8504 = vsub.f32 0.0, %v8488
      %v8505 = vsub.f32 0.0, %v8489
      %v8506 = vmul.f32 %v8490, 1.442695
      %v8507 = vpow.pop %v8506
      %v8508 = vmul.f32 %v8491, 1.442695
      %v8509 = vpow.pop %v8508
      %v8510 = vmul.f32 %v8492, 1.442695
      %v8511 = vpow.pop %v8510
      %v8512 = vmul.f32 %v8493, 1.442695
      %v8513 = vpow.pop %v8512
      %v8514 = vmul.f32 %v8494, 1.442695
      %v8515 = vpow.pop %v8514
      %v8516 = vmul.f32 %v8495, 1.442695
      %v8517 = vpow.pop %v8516
      %v8518 = vmul.f32 %v8496, 1.442695
      %v8519 = vpow.pop %v8518
      %v8520 = vmul.f32 %v8497, 1.442695
      %v8521 = vpow.pop %v8520
      %v8522 = vmul.f32 %v8498, 1.442695
      %v8523 = vpow.pop %v8522
      %v8524 = vmul.f32 %v8499, 1.442695
      %v8525 = vpow.pop %v8524
      %v8526 = vmul.f32 %v8500, 1.442695
      %v8527 = vpow.pop %v8526
      %v8528 = vmul.f32 %v8501, 1.442695
      %v8529 = vpow.pop %v8528
      %v8530 = vmul.f32 %v8502, 1.442695
      %v8531 = vpow.pop %v8530
      %v8532 = vmul.f32 %v8503, 1.442695
      %v8533 = vpow.pop %v8532
      %v8534 = vmul.f32 %v8504, 1.442695
      %v8535 = vpow.pop %v8534
      %v8536 = vmul.f32 %v8505, 1.442695
      %v8537 = vpow.pop %v8536
      %v8538 = vadd.f32 %v8507, 1.0
      %v8539 = vadd.f32 %v8509, 1.0
      %v8540 = vadd.f32 %v8511, 1.0
      %v8541 = vadd.f32 %v8513, 1.0
      %v8542 = vadd.f32 %v8515, 1.0
      %v8543 = vadd.f32 %v8517, 1.0
      %v8544 = vadd.f32 %v8519, 1.0
      %v8545 = vadd.f32 %v8521, 1.0
      %v8546 = vadd.f32 %v8523, 1.0
      %v8547 = vadd.f32 %v8525, 1.0
      %v8548 = vadd.f32 %v8527, 1.0
      %v8549 = vadd.f32 %v8529, 1.0
      %v8550 = vadd.f32 %v8531, 1.0
      %v8551 = vadd.f32 %v8533, 1.0
      %v8552 = vadd.f32 %v8535, 1.0
      %v8553 = vadd.f32 %v8537, 1.0
      %v8554 = vrcp.pop %v8538
      %v8555 = vrcp.pop %v8539
      %v8556 = vrcp.pop %v8540
      %v8557 = vrcp.pop %v8541
      %v8558 = vrcp.pop %v8542
      %v8559 = vrcp.pop %v8543
      %v8560 = vrcp.pop %v8544
      %v8561 = vrcp.pop %v8545
      %v8562 = vrcp.pop %v8546
      %v8563 = vrcp.pop %v8547
      %v8564 = vrcp.pop %v8548
      %v8565 = vrcp.pop %v8549
      %v8566 = vrcp.pop %v8550
      %v8567 = vrcp.pop %v8551
      %v8568 = vrcp.pop %v8552
      %v8569 = vrcp.pop %v8553
      %v8570 = vtanh.pop %v8474
      %v8571 = vtanh.pop %v8475
      %v8572 = vtanh.pop %v8476
      %v8573 = vtanh.pop %v8477
      %v8574 = vtanh.pop %v8478
      %v8575 = vtanh.pop %v8479
      %v8576 = vtanh.pop %v8480
      %v8577 = vtanh.pop %v8481
      %v8578 = vtanh.pop %v8482
      %v8579 = vtanh.pop %v8483
      %v8580 = vtanh.pop %v8484
      %v8581 = vtanh.pop %v8485
      %v8582 = vtanh.pop %v8486
      %v8583 = vtanh.pop %v8487
      %v8584 = vtanh.pop %v8488
      %v8585 = vtanh.pop %v8489
      %8586 = vrot.lane.b32.xlu0 %v8570, 64
      %v8587 = vpop.permute.xlu0 %8586
      %8588 = vrot.lane.b32.xlu0 %v8571, 64
      %v8589 = vpop.permute.xlu0 %8588
      %8590 = vrot.lane.b32.xlu0 %v8572, 64
      %v8591 = vpop.permute.xlu0 %8590
      %8592 = vrot.lane.b32.xlu0 %v8573, 64
      %v8593 = vpop.permute.xlu0 %8592
      %8594 = vrot.lane.b32.xlu0 %v8574, 64
      %v8595 = vpop.permute.xlu0 %8594
      %8596 = vrot.lane.b32.xlu0 %v8575, 64
      %v8597 = vpop.permute.xlu0 %8596
      %8598 = vrot.lane.b32.xlu0 %v8576, 64
      %v8599 = vpop.permute.xlu0 %8598
      %8600 = vrot.lane.b32.xlu0 %v8577, 64
      %v8601 = vpop.permute.xlu0 %8600
      %8602 = vrot.lane.b32.xlu0 %v8578, 64
      %v8603 = vpop.permute.xlu0 %8602
      %8604 = vrot.lane.b32.xlu0 %v8579, 64
      %v8605 = vpop.permute.xlu0 %8604
      %8606 = vrot.lane.b32.xlu0 %v8580, 64
      %v8607 = vpop.permute.xlu0 %8606
      %8608 = vrot.lane.b32.xlu0 %v8581, 64
      %v8609 = vpop.permute.xlu0 %8608
      %8610 = vrot.lane.b32.xlu0 %v8582, 64
      %v8611 = vpop.permute.xlu0 %8610
      %8612 = vrot.lane.b32.xlu0 %v8583, 64
      %v8613 = vpop.permute.xlu0 %8612
      %8614 = vrot.lane.b32.xlu0 %v8584, 64
      %v8615 = vpop.permute.xlu0 %8614
      %8616 = vrot.lane.b32.xlu0 %v8585, 64
      %v8617 = vpop.permute.xlu0 %8616
      %v8618 = vmul.f32 %v8554, %v8587
      %v8619 = vmul.f32 %v8555, %v8589
      %v8620 = vmul.f32 %v8556, %v8591
      %v8621 = vmul.f32 %v8557, %v8593
      %v8622 = vmul.f32 %v8558, %v8595
      %v8623 = vmul.f32 %v8559, %v8597
      %v8624 = vmul.f32 %v8560, %v8599
      %v8625 = vmul.f32 %v8561, %v8601
      %v8626 = vmul.f32 %v8562, %v8603
      %v8627 = vmul.f32 %v8563, %v8605
      %v8628 = vmul.f32 %v8564, %v8607
      %v8629 = vmul.f32 %v8565, %v8609
      %v8630 = vmul.f32 %v8566, %v8611
      %v8631 = vmul.f32 %v8567, %v8613
      %v8632 = vmul.f32 %v8568, %v8615
      %v8633 = vmul.f32 %v8569, %v8617
      %8634 = vrot.lane.b32.xlu0 %v7800, 32
      %v8635 = vpop.permute.xlu0 %8634
      %8636 = vrot.lane.b32.xlu0 %v7801, 32
      %v8637 = vpop.permute.xlu0 %8636
      %8638 = vrot.lane.b32.xlu0 %v7802, 32
      %v8639 = vpop.permute.xlu0 %8638
      %8640 = vrot.lane.b32.xlu0 %v7803, 32
      %v8641 = vpop.permute.xlu0 %8640
      %8642 = vrot.lane.b32.xlu0 %v7804, 32
      %v8643 = vpop.permute.xlu0 %8642
      %8644 = vrot.lane.b32.xlu0 %v7805, 32
      %v8645 = vpop.permute.xlu0 %8644
      %8646 = vrot.lane.b32.xlu0 %v7806, 32
      %v8647 = vpop.permute.xlu0 %8646
      %8648 = vrot.lane.b32.xlu0 %v7807, 32
      %v8649 = vpop.permute.xlu0 %8648
      %8650 = vrot.lane.b32.xlu0 %v7808, 32
      %v8651 = vpop.permute.xlu0 %8650
      %8652 = vrot.lane.b32.xlu0 %v7809, 32
      %v8653 = vpop.permute.xlu0 %8652
      %8654 = vrot.lane.b32.xlu0 %v7810, 32
      %v8655 = vpop.permute.xlu0 %8654
      %8656 = vrot.lane.b32.xlu0 %v7811, 32
      %v8657 = vpop.permute.xlu0 %8656
      %8658 = vrot.lane.b32.xlu0 %v7812, 32
      %v8659 = vpop.permute.xlu0 %8658
      %8660 = vrot.lane.b32.xlu0 %v7813, 32
      %v8661 = vpop.permute.xlu0 %8660
      %8662 = vrot.lane.b32.xlu0 %v7814, 32
      %v8663 = vpop.permute.xlu0 %8662
      %8664 = vrot.lane.b32.xlu0 %v7815, 32
      %v8665 = vpop.permute.xlu0 %8664
      %v8666 = vmul.f32 %v8554, %v8635
      %v8667 = vmul.f32 %v8555, %v8637
      %v8668 = vmul.f32 %v8556, %v8639
      %v8669 = vmul.f32 %v8557, %v8641
      %v8670 = vmul.f32 %v8558, %v8643
      %v8671 = vmul.f32 %v8559, %v8645
      %v8672 = vmul.f32 %v8560, %v8647
      %v8673 = vmul.f32 %v8561, %v8649
      %v8674 = vmul.f32 %v8562, %v8651
      %v8675 = vmul.f32 %v8563, %v8653
      %v8676 = vmul.f32 %v8564, %v8655
      %v8677 = vmul.f32 %v8565, %v8657
      %v8678 = vmul.f32 %v8566, %v8659
      %v8679 = vmul.f32 %v8567, %v8661
      %v8680 = vmul.f32 %v8568, %v8663
      %v8681 = vmul.f32 %v8569, %v8665
      %8682 = vrot.lane.b32.xlu0 %v8666, 96
      %v8683 = vpop.permute.xlu0 %8682
      %8684 = vrot.lane.b32.xlu0 %v8667, 96
      %v8685 = vpop.permute.xlu0 %8684
      %8686 = vrot.lane.b32.xlu0 %v8668, 96
      %v8687 = vpop.permute.xlu0 %8686
      %8688 = vrot.lane.b32.xlu0 %v8669, 96
      %v8689 = vpop.permute.xlu0 %8688
      %8690 = vrot.lane.b32.xlu0 %v8670, 96
      %v8691 = vpop.permute.xlu0 %8690
      %8692 = vrot.lane.b32.xlu0 %v8671, 96
      %v8693 = vpop.permute.xlu0 %8692
      %8694 = vrot.lane.b32.xlu0 %v8672, 96
      %v8695 = vpop.permute.xlu0 %8694
      %8696 = vrot.lane.b32.xlu0 %v8673, 96
      %v8697 = vpop.permute.xlu0 %8696
      %8698 = vrot.lane.b32.xlu0 %v8674, 96
      %v8699 = vpop.permute.xlu0 %8698
      %8700 = vrot.lane.b32.xlu0 %v8675, 96
      %v8701 = vpop.permute.xlu0 %8700
      %8702 = vrot.lane.b32.xlu0 %v8676, 96
      %v8703 = vpop.permute.xlu0 %8702
      %8704 = vrot.lane.b32.xlu0 %v8677, 96
      %v8705 = vpop.permute.xlu0 %8704
      %8706 = vrot.lane.b32.xlu0 %v8678, 96
      %v8707 = vpop.permute.xlu0 %8706
      %8708 = vrot.lane.b32.xlu0 %v8679, 96
      %v8709 = vpop.permute.xlu0 %8708
      %8710 = vrot.lane.b32.xlu0 %v8680, 96
      %v8711 = vpop.permute.xlu0 %8710
      %8712 = vrot.lane.b32.xlu0 %v8681, 96
      %v8713 = vpop.permute.xlu0 %8712
      %v8714 = vadd.f32 %v8618, %v8683
      %v8715 = vadd.f32 %v8619, %v8685
      %v8716 = vadd.f32 %v8620, %v8687
      %v8717 = vadd.f32 %v8621, %v8689
      %v8718 = vadd.f32 %v8622, %v8691
      %v8719 = vadd.f32 %v8623, %v8693
      %v8720 = vadd.f32 %v8624, %v8695
      %v8721 = vadd.f32 %v8625, %v8697
      %v8722 = vadd.f32 %v8626, %v8699
      %v8723 = vadd.f32 %v8627, %v8701
      %v8724 = vadd.f32 %v8628, %v8703
      %v8725 = vadd.f32 %v8629, %v8705
      %v8726 = vadd.f32 %v8630, %v8707
      %v8727 = vadd.f32 %v8631, %v8709
      %v8728 = vadd.f32 %v8632, %v8711
      %v8729 = vadd.f32 %v8633, %v8713
      %v8730 = vsel %vm3235, %v8714, 0.0
      %v8731 = vsel %vm3235, %v8715, 0.0
      %v8732 = vsel %vm3235, %v8716, 0.0
      %v8733 = vsel %vm3235, %v8717, 0.0
      %v8734 = vsel %vm3235, %v8718, 0.0
      %v8735 = vsel %vm3235, %v8719, 0.0
      %v8736 = vsel %vm3235, %v8720, 0.0
      %v8737 = vsel %vm3235, %v8721, 0.0
      %v8738 = vsel %vm3235, %v8722, 0.0
      %v8739 = vsel %vm3235, %v8723, 0.0
      %v8740 = vsel %vm3235, %v8724, 0.0
      %v8741 = vsel %vm3235, %v8725, 0.0
      %v8742 = vsel %vm3235, %v8726, 0.0
      %v8743 = vsel %vm3235, %v8727, 0.0
      %v8744 = vsel %vm3235, %v8728, 0.0
      %v8745 = vsel %vm3235, %v8729, 0.0
      %8746 = vrot.lane.b32.xlu0 %v8554, 32
      %v8747 = vpop.permute.xlu0 %8746
      %8748 = vrot.lane.b32.xlu0 %v8555, 32
      %v8749 = vpop.permute.xlu0 %8748
      %8750 = vrot.lane.b32.xlu0 %v8556, 32
      %v8751 = vpop.permute.xlu0 %8750
      %8752 = vrot.lane.b32.xlu0 %v8557, 32
      %v8753 = vpop.permute.xlu0 %8752
      %8754 = vrot.lane.b32.xlu0 %v8558, 32
      %v8755 = vpop.permute.xlu0 %8754
      %8756 = vrot.lane.b32.xlu0 %v8559, 32
      %v8757 = vpop.permute.xlu0 %8756
      %8758 = vrot.lane.b32.xlu0 %v8560, 32
      %v8759 = vpop.permute.xlu0 %8758
      %8760 = vrot.lane.b32.xlu0 %v8561, 32
      %v8761 = vpop.permute.xlu0 %8760
      %8762 = vrot.lane.b32.xlu0 %v8562, 32
      %v8763 = vpop.permute.xlu0 %8762
      %8764 = vrot.lane.b32.xlu0 %v8563, 32
      %v8765 = vpop.permute.xlu0 %8764
      %8766 = vrot.lane.b32.xlu0 %v8564, 32
      %v8767 = vpop.permute.xlu0 %8766
      %8768 = vrot.lane.b32.xlu0 %v8565, 32
      %v8769 = vpop.permute.xlu0 %8768
      %8770 = vrot.lane.b32.xlu0 %v8566, 32
      %v8771 = vpop.permute.xlu0 %8770
      %8772 = vrot.lane.b32.xlu0 %v8567, 32
      %v8773 = vpop.permute.xlu0 %8772
      %8774 = vrot.lane.b32.xlu0 %v8568, 32
      %v8775 = vpop.permute.xlu0 %8774
      %8776 = vrot.lane.b32.xlu0 %v8569, 32
      %v8777 = vpop.permute.xlu0 %8776
      %v8778 = vtanh.pop %v8730
      %v8779 = vtanh.pop %v8731
      %v8780 = vtanh.pop %v8732
      %v8781 = vtanh.pop %v8733
      %v8782 = vtanh.pop %v8734
      %v8783 = vtanh.pop %v8735
      %v8784 = vtanh.pop %v8736
      %v8785 = vtanh.pop %v8737
      %v8786 = vtanh.pop %v8738
      %v8787 = vtanh.pop %v8739
      %v8788 = vtanh.pop %v8740
      %v8789 = vtanh.pop %v8741
      %v8790 = vtanh.pop %v8742
      %v8791 = vtanh.pop %v8743
      %v8792 = vtanh.pop %v8744
      %v8793 = vtanh.pop %v8745
      %v8794 = vmul.f32 %v8747, %v8778
      %v8795 = vmul.f32 %v8749, %v8779
      %v8796 = vmul.f32 %v8751, %v8780
      %v8797 = vmul.f32 %v8753, %v8781
      %v8798 = vmul.f32 %v8755, %v8782
      %v8799 = vmul.f32 %v8757, %v8783
      %v8800 = vmul.f32 %v8759, %v8784
      %v8801 = vmul.f32 %v8761, %v8785
      %v8802 = vmul.f32 %v8763, %v8786
      %v8803 = vmul.f32 %v8765, %v8787
      %v8804 = vmul.f32 %v8767, %v8788
      %v8805 = vmul.f32 %v8769, %v8789
      %v8806 = vmul.f32 %v8771, %v8790
      %v8807 = vmul.f32 %v8773, %v8791
      %v8808 = vmul.f32 %v8775, %v8792
      %v8809 = vmul.f32 %v8777, %v8793
      %v8810 = vpack.c.bf16 %v8306, %v8305
      %v8811 = vpack.c.bf16 %v8308, %v8307
      %v8812 = vpack.c.bf16 %v8310, %v8309
      %v8813 = vpack.c.bf16 %v8312, %v8311
      %v8814 = vpack.c.bf16 %v8314, %v8313
      %v8815 = vpack.c.bf16 %v8316, %v8315
      %v8816 = vpack.c.bf16 %v8318, %v8317
      %v8817 = vpack.c.bf16 %v8320, %v8319
      %8818 = vmatprep.subr.bf16.mxu0 0
      %8819 = vmatpush1.bf16.msra.mxu0 %v3275
      %8820 = vmatprep.subr.bf16.mxu0 0
      %8821 = vmatpush1.bf16.msra.mxu0 %v3274
      %8822 = vmatprep.subr.bf16.mxu0 0
      %8823 = vmatpush1.bf16.msra.mxu0 %v3273
      %8824 = vmatprep.subr.bf16.mxu0 0
      %8825 = vmatpush1.bf16.msra.mxu0 %v3272
      %8826 = vmatprep.subr.bf16.mxu0 0
      %8827 = vmatpush1.bf16.msra.mxu0 %v3271
      %8828 = vmatprep.subr.bf16.mxu0 0
      %8829 = vmatpush1.bf16.msra.mxu0 %v3270
      %8830 = vmatprep.subr.bf16.mxu0 0
      %8831 = vmatpush1.bf16.msra.mxu0 %v3269
      %8832 = vmatprep.subr.bf16.mxu0 0
      %8833 = vmatpush1.bf16.msra.mxu0 %v3268
      %8834 = vmatprep.subr.bf16.mxu0 0
      %8835 = vmatpush2.bf16.msra.mxu0 0
      %8836 = vmatprep.subr.bf16.mxu0 0
      %8837 = vmatpush2.bf16.msra.mxu0 0
      %8838 = vmatprep.subr.bf16.mxu0 0
      %8839 = vmatpush2.bf16.msra.mxu0 0
      %8840 = vmatprep.subr.bf16.mxu0 0
      %8841 = vmatpush2.bf16.msra.mxu0 0
      %8842 = vmatprep.subr.bf16.mxu0 0
      %8843 = vmatpush2.bf16.msra.mxu0 0
      %8844 = vmatprep.subr.bf16.mxu0 0
      %8845 = vmatpush2.bf16.msra.mxu0 0
      %8846 = vmatprep.subr.bf16.mxu0 0
      %8847 = vmatpush2.bf16.msra.mxu0 0
      %8848 = vmatprep.subr.bf16.mxu0 0
      %8849 = vmatpush2.bf16.msra.mxu0 0
      %8850 = vmatprep.mubr.bf16.mxu0 0
      %8851 = vmatmul.mubr.bf16.gmra.mxu0 %v8810
      %v8852 = vpop.f32.mrf.mxu0
      %v8853 = vadd.f32 0.0, %v8852
      %v8854 = vpop.f32.mrf.mxu0
      %v8855 = vpop.f32.mrf.mxu0
      %v8856 = vadd.f32 0.0, %v8855
      %v8857 = vpop.f32.mrf.mxu0
      %8858 = vmatprep.mubr.bf16.mxu0 0
      %8859 = vmatmul.mubr.bf16.gmra.mxu0 %v8811
      %v8860 = vpop.f32.mrf.mxu0
      %v8861 = vadd.f32 0.0, %v8860
      %v8862 = vpop.f32.mrf.mxu0
      %v8863 = vpop.f32.mrf.mxu0
      %v8864 = vadd.f32 0.0, %v8863
      %v8865 = vpop.f32.mrf.mxu0
      %8866 = vmatprep.mubr.bf16.mxu0 0
      %8867 = vmatmul.mubr.bf16.gmra.mxu0 %v8812
      %v8868 = vpop.f32.mrf.mxu0
      %v8869 = vadd.f32 0.0, %v8868
      %v8870 = vpop.f32.mrf.mxu0
      %v8871 = vpop.f32.mrf.mxu0
      %v8872 = vadd.f32 0.0, %v8871
      %v8873 = vpop.f32.mrf.mxu0
      %8874 = vmatprep.mubr.bf16.mxu0 0
      %8875 = vmatmul.mubr.bf16.gmra.mxu0 %v8813
      %v8876 = vpop.f32.mrf.mxu0
      %v8877 = vadd.f32 0.0, %v8876
      %v8878 = vpop.f32.mrf.mxu0
      %v8879 = vpop.f32.mrf.mxu0
      %v8880 = vadd.f32 0.0, %v8879
      %v8881 = vpop.f32.mrf.mxu0
      %8882 = vmatprep.mubr.bf16.mxu0 0
      %8883 = vmatmul.mubr.bf16.gmra.mxu0 %v8814
      %v8884 = vpop.f32.mrf.mxu0
      %v8885 = vadd.f32 0.0, %v8884
      %v8886 = vpop.f32.mrf.mxu0
      %v8887 = vpop.f32.mrf.mxu0
      %v8888 = vadd.f32 0.0, %v8887
      %v8889 = vpop.f32.mrf.mxu0
      %8890 = vmatprep.mubr.bf16.mxu0 0
      %8891 = vmatmul.mubr.bf16.gmra.mxu0 %v8815
      %v8892 = vpop.f32.mrf.mxu0
      %v8893 = vadd.f32 0.0, %v8892
      %v8894 = vpop.f32.mrf.mxu0
      %v8895 = vpop.f32.mrf.mxu0
      %v8896 = vadd.f32 0.0, %v8895
      %v8897 = vpop.f32.mrf.mxu0
      %8898 = vmatprep.mubr.bf16.mxu0 0
      %8899 = vmatmul.mubr.bf16.gmra.mxu0 %v8816
      %v8900 = vpop.f32.mrf.mxu0
      %v8901 = vadd.f32 0.0, %v8900
      %v8902 = vpop.f32.mrf.mxu0
      %v8903 = vpop.f32.mrf.mxu0
      %v8904 = vadd.f32 0.0, %v8903
      %v8905 = vpop.f32.mrf.mxu0
      %8906 = vmatprep.mubr.bf16.mxu0 0
      %8907 = vmatmul.mubr.bf16.gmra.mxu0 %v8817
      %v8908 = vpop.f32.mrf.mxu0
      %v8909 = vadd.f32 0.0, %v8908
      %v8910 = vpop.f32.mrf.mxu0
      %v8911 = vpop.f32.mrf.mxu0
      %v8912 = vadd.f32 0.0, %v8911
      %v8913 = vpop.f32.mrf.mxu0
      %8914 = vdwg.mxu0
      %v8915 = vadd.f32 %v3105, %v8853
      %v8916 = vadd.f32 %v3108, %v8856
      %v8917 = vadd.f32 %v3113, %v8861
      %v8918 = vadd.f32 %v3116, %v8864
      %v8919 = vadd.f32 %v3121, %v8869
      %v8920 = vadd.f32 %v3124, %v8872
      %v8921 = vadd.f32 %v3129, %v8877
      %v8922 = vadd.f32 %v3132, %v8880
      %v8923 = vadd.f32 %v3137, %v8885
      %v8924 = vadd.f32 %v3140, %v8888
      %v8925 = vadd.f32 %v3145, %v8893
      %v8926 = vadd.f32 %v3148, %v8896
      %v8927 = vadd.f32 %v3153, %v8901
      %v8928 = vadd.f32 %v3156, %v8904
      %v8929 = vadd.f32 %v3161, %v8909
      %v8930 = vadd.f32 %v3164, %v8912
      %v8931 = vsub.f32 0.0, %v8915
      %v8932 = vsub.f32 0.0, %v8916
      %v8933 = vsub.f32 0.0, %v8917
      %v8934 = vsub.f32 0.0, %v8918
      %v8935 = vsub.f32 0.0, %v8919
      %v8936 = vsub.f32 0.0, %v8920
      %v8937 = vsub.f32 0.0, %v8921
      %v8938 = vsub.f32 0.0, %v8922
      %v8939 = vsub.f32 0.0, %v8923
      %v8940 = vsub.f32 0.0, %v8924
      %v8941 = vsub.f32 0.0, %v8925
      %v8942 = vsub.f32 0.0, %v8926
      %v8943 = vsub.f32 0.0, %v8927
      %v8944 = vsub.f32 0.0, %v8928
      %v8945 = vsub.f32 0.0, %v8929
      %v8946 = vsub.f32 0.0, %v8930
      %v8947 = vmul.f32 %v8931, 1.442695
      %v8948 = vpow.pop %v8947
      %v8949 = vmul.f32 %v8932, 1.442695
      %v8950 = vpow.pop %v8949
      %v8951 = vmul.f32 %v8933, 1.442695
      %v8952 = vpow.pop %v8951
      %v8953 = vmul.f32 %v8934, 1.442695
      %v8954 = vpow.pop %v8953
      %v8955 = vmul.f32 %v8935, 1.442695
      %v8956 = vpow.pop %v8955
      %v8957 = vmul.f32 %v8936, 1.442695
      %v8958 = vpow.pop %v8957
      %v8959 = vmul.f32 %v8937, 1.442695
      %v8960 = vpow.pop %v8959
      %v8961 = vmul.f32 %v8938, 1.442695
      %v8962 = vpow.pop %v8961
      %v8963 = vmul.f32 %v8939, 1.442695
      %v8964 = vpow.pop %v8963
      %v8965 = vmul.f32 %v8940, 1.442695
      %v8966 = vpow.pop %v8965
      %v8967 = vmul.f32 %v8941, 1.442695
      %v8968 = vpow.pop %v8967
      %v8969 = vmul.f32 %v8942, 1.442695
      %v8970 = vpow.pop %v8969
      %v8971 = vmul.f32 %v8943, 1.442695
      %v8972 = vpow.pop %v8971
      %v8973 = vmul.f32 %v8944, 1.442695
      %v8974 = vpow.pop %v8973
      %v8975 = vmul.f32 %v8945, 1.442695
      %v8976 = vpow.pop %v8975
      %v8977 = vmul.f32 %v8946, 1.442695
      %v8978 = vpow.pop %v8977
      %v8979 = vadd.f32 %v8948, 1.0
      %v8980 = vadd.f32 %v8950, 1.0
      %v8981 = vadd.f32 %v8952, 1.0
      %v8982 = vadd.f32 %v8954, 1.0
      %v8983 = vadd.f32 %v8956, 1.0
      %v8984 = vadd.f32 %v8958, 1.0
      %v8985 = vadd.f32 %v8960, 1.0
      %v8986 = vadd.f32 %v8962, 1.0
      %v8987 = vadd.f32 %v8964, 1.0
      %v8988 = vadd.f32 %v8966, 1.0
      %v8989 = vadd.f32 %v8968, 1.0
      %v8990 = vadd.f32 %v8970, 1.0
      %v8991 = vadd.f32 %v8972, 1.0
      %v8992 = vadd.f32 %v8974, 1.0
      %v8993 = vadd.f32 %v8976, 1.0
      %v8994 = vadd.f32 %v8978, 1.0
      %v8995 = vrcp.pop %v8979
      %v8996 = vrcp.pop %v8980
      %v8997 = vrcp.pop %v8981
      %v8998 = vrcp.pop %v8982
      %v8999 = vrcp.pop %v8983
      %v9000 = vrcp.pop %v8984
      %v9001 = vrcp.pop %v8985
      %v9002 = vrcp.pop %v8986
      %v9003 = vrcp.pop %v8987
      %v9004 = vrcp.pop %v8988
      %v9005 = vrcp.pop %v8989
      %v9006 = vrcp.pop %v8990
      %v9007 = vrcp.pop %v8991
      %v9008 = vrcp.pop %v8992
      %v9009 = vrcp.pop %v8993
      %v9010 = vrcp.pop %v8994
      %v9011 = vtanh.pop %v8915
      %v9012 = vtanh.pop %v8916
      %v9013 = vtanh.pop %v8917
      %v9014 = vtanh.pop %v8918
      %v9015 = vtanh.pop %v8919
      %v9016 = vtanh.pop %v8920
      %v9017 = vtanh.pop %v8921
      %v9018 = vtanh.pop %v8922
      %v9019 = vtanh.pop %v8923
      %v9020 = vtanh.pop %v8924
      %v9021 = vtanh.pop %v8925
      %v9022 = vtanh.pop %v8926
      %v9023 = vtanh.pop %v8927
      %v9024 = vtanh.pop %v8928
      %v9025 = vtanh.pop %v8929
      %v9026 = vtanh.pop %v8930
      %9027 = vrot.lane.b32.xlu0 %v9011, 64
      %v9028 = vpop.permute.xlu0 %9027
      %9029 = vrot.lane.b32.xlu0 %v9012, 64
      %v9030 = vpop.permute.xlu0 %9029
      %9031 = vrot.lane.b32.xlu0 %v9013, 64
      %v9032 = vpop.permute.xlu0 %9031
      %9033 = vrot.lane.b32.xlu0 %v9014, 64
      %v9034 = vpop.permute.xlu0 %9033
      %9035 = vrot.lane.b32.xlu0 %v9015, 64
      %v9036 = vpop.permute.xlu0 %9035
      %9037 = vrot.lane.b32.xlu0 %v9016, 64
      %v9038 = vpop.permute.xlu0 %9037
      %9039 = vrot.lane.b32.xlu0 %v9017, 64
      %v9040 = vpop.permute.xlu0 %9039
      %9041 = vrot.lane.b32.xlu0 %v9018, 64
      %v9042 = vpop.permute.xlu0 %9041
      %9043 = vrot.lane.b32.xlu0 %v9019, 64
      %v9044 = vpop.permute.xlu0 %9043
      %9045 = vrot.lane.b32.xlu0 %v9020, 64
      %v9046 = vpop.permute.xlu0 %9045
      %9047 = vrot.lane.b32.xlu0 %v9021, 64
      %v9048 = vpop.permute.xlu0 %9047
      %9049 = vrot.lane.b32.xlu0 %v9022, 64
      %v9050 = vpop.permute.xlu0 %9049
      %9051 = vrot.lane.b32.xlu0 %v9023, 64
      %v9052 = vpop.permute.xlu0 %9051
      %9053 = vrot.lane.b32.xlu0 %v9024, 64
      %v9054 = vpop.permute.xlu0 %9053
      %9055 = vrot.lane.b32.xlu0 %v9025, 64
      %v9056 = vpop.permute.xlu0 %9055
      %9057 = vrot.lane.b32.xlu0 %v9026, 64
      %v9058 = vpop.permute.xlu0 %9057
      %v9059 = vmul.f32 %v8995, %v9028
      %v9060 = vmul.f32 %v8996, %v9030
      %v9061 = vmul.f32 %v8997, %v9032
      %v9062 = vmul.f32 %v8998, %v9034
      %v9063 = vmul.f32 %v8999, %v9036
      %v9064 = vmul.f32 %v9000, %v9038
      %v9065 = vmul.f32 %v9001, %v9040
      %v9066 = vmul.f32 %v9002, %v9042
      %v9067 = vmul.f32 %v9003, %v9044
      %v9068 = vmul.f32 %v9004, %v9046
      %v9069 = vmul.f32 %v9005, %v9048
      %v9070 = vmul.f32 %v9006, %v9050
      %v9071 = vmul.f32 %v9007, %v9052
      %v9072 = vmul.f32 %v9008, %v9054
      %v9073 = vmul.f32 %v9009, %v9056
      %v9074 = vmul.f32 %v9010, %v9058
      %9075 = vrot.lane.b32.xlu0 %v8241, 32
      %v9076 = vpop.permute.xlu0 %9075
      %9077 = vrot.lane.b32.xlu0 %v8242, 32
      %v9078 = vpop.permute.xlu0 %9077
      %9079 = vrot.lane.b32.xlu0 %v8243, 32
      %v9080 = vpop.permute.xlu0 %9079
      %9081 = vrot.lane.b32.xlu0 %v8244, 32
      %v9082 = vpop.permute.xlu0 %9081
      %9083 = vrot.lane.b32.xlu0 %v8245, 32
      %v9084 = vpop.permute.xlu0 %9083
      %9085 = vrot.lane.b32.xlu0 %v8246, 32
      %v9086 = vpop.permute.xlu0 %9085
      %9087 = vrot.lane.b32.xlu0 %v8247, 32
      %v9088 = vpop.permute.xlu0 %9087
      %9089 = vrot.lane.b32.xlu0 %v8248, 32
      %v9090 = vpop.permute.xlu0 %9089
      %9091 = vrot.lane.b32.xlu0 %v8249, 32
      %v9092 = vpop.permute.xlu0 %9091
      %9093 = vrot.lane.b32.xlu0 %v8250, 32
      %v9094 = vpop.permute.xlu0 %9093
      %9095 = vrot.lane.b32.xlu0 %v8251, 32
      %v9096 = vpop.permute.xlu0 %9095
      %9097 = vrot.lane.b32.xlu0 %v8252, 32
      %v9098 = vpop.permute.xlu0 %9097
      %9099 = vrot.lane.b32.xlu0 %v8253, 32
      %v9100 = vpop.permute.xlu0 %9099
      %9101 = vrot.lane.b32.xlu0 %v8254, 32
      %v9102 = vpop.permute.xlu0 %9101
      %9103 = vrot.lane.b32.xlu0 %v8255, 32
      %v9104 = vpop.permute.xlu0 %9103
      %9105 = vrot.lane.b32.xlu0 %v8256, 32
      %v9106 = vpop.permute.xlu0 %9105
      %v9107 = vmul.f32 %v8995, %v9076
      %v9108 = vmul.f32 %v8996, %v9078
      %v9109 = vmul.f32 %v8997, %v9080
      %v9110 = vmul.f32 %v8998, %v9082
      %v9111 = vmul.f32 %v8999, %v9084
      %v9112 = vmul.f32 %v9000, %v9086
      %v9113 = vmul.f32 %v9001, %v9088
      %v9114 = vmul.f32 %v9002, %v9090
      %v9115 = vmul.f32 %v9003, %v9092
      %v9116 = vmul.f32 %v9004, %v9094
      %v9117 = vmul.f32 %v9005, %v9096
      %v9118 = vmul.f32 %v9006, %v9098
      %v9119 = vmul.f32 %v9007, %v9100
      %v9120 = vmul.f32 %v9008, %v9102
      %v9121 = vmul.f32 %v9009, %v9104
      %v9122 = vmul.f32 %v9010, %v9106
      %9123 = vrot.lane.b32.xlu0 %v9107, 96
      %v9124 = vpop.permute.xlu0 %9123
      %9125 = vrot.lane.b32.xlu0 %v9108, 96
      %v9126 = vpop.permute.xlu0 %9125
      %9127 = vrot.lane.b32.xlu0 %v9109, 96
      %v9128 = vpop.permute.xlu0 %9127
      %9129 = vrot.lane.b32.xlu0 %v9110, 96
      %v9130 = vpop.permute.xlu0 %9129
      %9131 = vrot.lane.b32.xlu0 %v9111, 96
      %v9132 = vpop.permute.xlu0 %9131
      %9133 = vrot.lane.b32.xlu0 %v9112, 96
      %v9134 = vpop.permute.xlu0 %9133
      %9135 = vrot.lane.b32.xlu0 %v9113, 96
      %v9136 = vpop.permute.xlu0 %9135
      %9137 = vrot.lane.b32.xlu0 %v9114, 96
      %v9138 = vpop.permute.xlu0 %9137
      %9139 = vrot.lane.b32.xlu0 %v9115, 96
      %v9140 = vpop.permute.xlu0 %9139
      %9141 = vrot.lane.b32.xlu0 %v9116, 96
      %v9142 = vpop.permute.xlu0 %9141
      %9143 = vrot.lane.b32.xlu0 %v9117, 96
      %v9144 = vpop.permute.xlu0 %9143
      %9145 = vrot.lane.b32.xlu0 %v9118, 96
      %v9146 = vpop.permute.xlu0 %9145
      %9147 = vrot.lane.b32.xlu0 %v9119, 96
      %v9148 = vpop.permute.xlu0 %9147
      %9149 = vrot.lane.b32.xlu0 %v9120, 96
      %v9150 = vpop.permute.xlu0 %9149
      %9151 = vrot.lane.b32.xlu0 %v9121, 96
      %v9152 = vpop.permute.xlu0 %9151
      %9153 = vrot.lane.b32.xlu0 %v9122, 96
      %v9154 = vpop.permute.xlu0 %9153
      %v9155 = vadd.f32 %v9059, %v9124
      %v9156 = vadd.f32 %v9060, %v9126
      %v9157 = vadd.f32 %v9061, %v9128
      %v9158 = vadd.f32 %v9062, %v9130
      %v9159 = vadd.f32 %v9063, %v9132
      %v9160 = vadd.f32 %v9064, %v9134
      %v9161 = vadd.f32 %v9065, %v9136
      %v9162 = vadd.f32 %v9066, %v9138
      %v9163 = vadd.f32 %v9067, %v9140
      %v9164 = vadd.f32 %v9068, %v9142
      %v9165 = vadd.f32 %v9069, %v9144
      %v9166 = vadd.f32 %v9070, %v9146
      %v9167 = vadd.f32 %v9071, %v9148
      %v9168 = vadd.f32 %v9072, %v9150
      %v9169 = vadd.f32 %v9073, %v9152
      %v9170 = vadd.f32 %v9074, %v9154
      %v9171 = vsel %vm3235, %v9155, 0.0
      %v9172 = vsel %vm3235, %v9156, 0.0
      %v9173 = vsel %vm3235, %v9157, 0.0
      %v9174 = vsel %vm3235, %v9158, 0.0
      %v9175 = vsel %vm3235, %v9159, 0.0
      %v9176 = vsel %vm3235, %v9160, 0.0
      %v9177 = vsel %vm3235, %v9161, 0.0
      %v9178 = vsel %vm3235, %v9162, 0.0
      %v9179 = vsel %vm3235, %v9163, 0.0
      %v9180 = vsel %vm3235, %v9164, 0.0
      %v9181 = vsel %vm3235, %v9165, 0.0
      %v9182 = vsel %vm3235, %v9166, 0.0
      %v9183 = vsel %vm3235, %v9167, 0.0
      %v9184 = vsel %vm3235, %v9168, 0.0
      %v9185 = vsel %vm3235, %v9169, 0.0
      %v9186 = vsel %vm3235, %v9170, 0.0
      %9187 = vrot.lane.b32.xlu0 %v8995, 32
      %v9188 = vpop.permute.xlu0 %9187
      %9189 = vrot.lane.b32.xlu0 %v8996, 32
      %v9190 = vpop.permute.xlu0 %9189
      %9191 = vrot.lane.b32.xlu0 %v8997, 32
      %v9192 = vpop.permute.xlu0 %9191
      %9193 = vrot.lane.b32.xlu0 %v8998, 32
      %v9194 = vpop.permute.xlu0 %9193
      %9195 = vrot.lane.b32.xlu0 %v8999, 32
      %v9196 = vpop.permute.xlu0 %9195
      %9197 = vrot.lane.b32.xlu0 %v9000, 32
      %v9198 = vpop.permute.xlu0 %9197
      %9199 = vrot.lane.b32.xlu0 %v9001, 32
      %v9200 = vpop.permute.xlu0 %9199
      %9201 = vrot.lane.b32.xlu0 %v9002, 32
      %v9202 = vpop.permute.xlu0 %9201
      %9203 = vrot.lane.b32.xlu0 %v9003, 32
      %v9204 = vpop.permute.xlu0 %9203
      %9205 = vrot.lane.b32.xlu0 %v9004, 32
      %v9206 = vpop.permute.xlu0 %9205
      %9207 = vrot.lane.b32.xlu0 %v9005, 32
      %v9208 = vpop.permute.xlu0 %9207
      %9209 = vrot.lane.b32.xlu0 %v9006, 32
      %v9210 = vpop.permute.xlu0 %9209
      %9211 = vrot.lane.b32.xlu0 %v9007, 32
      %v9212 = vpop.permute.xlu0 %9211
      %9213 = vrot.lane.b32.xlu0 %v9008, 32
      %v9214 = vpop.permute.xlu0 %9213
      %9215 = vrot.lane.b32.xlu0 %v9009, 32
      %v9216 = vpop.permute.xlu0 %9215
      %9217 = vrot.lane.b32.xlu0 %v9010, 32
      %v9218 = vpop.permute.xlu0 %9217
      %v9219 = vtanh.pop %v9171
      %v9220 = vtanh.pop %v9172
      %v9221 = vtanh.pop %v9173
      %v9222 = vtanh.pop %v9174
      %v9223 = vtanh.pop %v9175
      %v9224 = vtanh.pop %v9176
      %v9225 = vtanh.pop %v9177
      %v9226 = vtanh.pop %v9178
      %v9227 = vtanh.pop %v9179
      %v9228 = vtanh.pop %v9180
      %v9229 = vtanh.pop %v9181
      %v9230 = vtanh.pop %v9182
      %v9231 = vtanh.pop %v9183
      %v9232 = vtanh.pop %v9184
      %v9233 = vtanh.pop %v9185
      %v9234 = vtanh.pop %v9186
      %v9235 = vmul.f32 %v9188, %v9219
      %v9236 = vmul.f32 %v9190, %v9220
      %v9237 = vmul.f32 %v9192, %v9221
      %v9238 = vmul.f32 %v9194, %v9222
      %v9239 = vmul.f32 %v9196, %v9223
      %v9240 = vmul.f32 %v9198, %v9224
      %v9241 = vmul.f32 %v9200, %v9225
      %v9242 = vmul.f32 %v9202, %v9226
      %v9243 = vmul.f32 %v9204, %v9227
      %v9244 = vmul.f32 %v9206, %v9228
      %v9245 = vmul.f32 %v9208, %v9229
      %v9246 = vmul.f32 %v9210, %v9230
      %v9247 = vmul.f32 %v9212, %v9231
      %v9248 = vmul.f32 %v9214, %v9232
      %v9249 = vmul.f32 %v9216, %v9233
      %v9250 = vmul.f32 %v9218, %v9234
      %9251 = vrot.lane.b32.xlu0 %v8794, 32
      %v9252 = vpop.permute.xlu0 %9251
      %9253 = vrot.lane.b32.xlu0 %v8795, 32
      %v9254 = vpop.permute.xlu0 %9253
      %9255 = vrot.lane.b32.xlu0 %v8796, 32
      %v9256 = vpop.permute.xlu0 %9255
      %9257 = vrot.lane.b32.xlu0 %v8797, 32
      %v9258 = vpop.permute.xlu0 %9257
      %9259 = vrot.lane.b32.xlu0 %v8798, 32
      %v9260 = vpop.permute.xlu0 %9259
      %9261 = vrot.lane.b32.xlu0 %v8799, 32
      %v9262 = vpop.permute.xlu0 %9261
      %9263 = vrot.lane.b32.xlu0 %v8800, 32
      %v9264 = vpop.permute.xlu0 %9263
      %9265 = vrot.lane.b32.xlu0 %v8801, 32
      %v9266 = vpop.permute.xlu0 %9265
      %9267 = vrot.lane.b32.xlu0 %v8802, 32
      %v9268 = vpop.permute.xlu0 %9267
      %9269 = vrot.lane.b32.xlu0 %v8803, 32
      %v9270 = vpop.permute.xlu0 %9269
      %9271 = vrot.lane.b32.xlu0 %v8804, 32
      %v9272 = vpop.permute.xlu0 %9271
      %9273 = vrot.lane.b32.xlu0 %v8805, 32
      %v9274 = vpop.permute.xlu0 %9273
      %9275 = vrot.lane.b32.xlu0 %v8806, 32
      %v9276 = vpop.permute.xlu0 %9275
      %9277 = vrot.lane.b32.xlu0 %v8807, 32
      %v9278 = vpop.permute.xlu0 %9277
      %9279 = vrot.lane.b32.xlu0 %v8808, 32
      %v9280 = vpop.permute.xlu0 %9279
      %9281 = vrot.lane.b32.xlu0 %v8809, 32
      %v9282 = vpop.permute.xlu0 %9281
      %v9283 = vadd.f32 %v9235, %v9252
      %v9284 = vadd.f32 %v9236, %v9254
      %v9285 = vadd.f32 %v9237, %v9256
      %v9286 = vadd.f32 %v9238, %v9258
      %v9287 = vadd.f32 %v9239, %v9260
      %v9288 = vadd.f32 %v9240, %v9262
      %v9289 = vadd.f32 %v9241, %v9264
      %v9290 = vadd.f32 %v9242, %v9266
      %v9291 = vadd.f32 %v9243, %v9268
      %v9292 = vadd.f32 %v9244, %v9270
      %v9293 = vadd.f32 %v9245, %v9272
      %v9294 = vadd.f32 %v9246, %v9274
      %v9295 = vadd.f32 %v9247, %v9276
      %v9296 = vadd.f32 %v9248, %v9278
      %v9297 = vadd.f32 %v9249, %v9280
      %v9298 = vadd.f32 %v9250, %v9282
      %v9299 = vpack.c.bf16 %v9284, %v9283
      %v9300 = vpack.c.bf16 %v9286, %v9285
      %v9301 = vpack.c.bf16 %v9288, %v9287
      %v9302 = vpack.c.bf16 %v9290, %v9289
      %v9303 = vpack.c.bf16 %v9292, %v9291
      %v9304 = vpack.c.bf16 %v9294, %v9293
      %v9305 = vpack.c.bf16 %v9296, %v9295
      %v9306 = vpack.c.bf16 %v9298, %v9297
      %9307 = vmatprep.subr.bf16.mxu0 0
      %9308 = vmatpush1.bf16.msra.mxu0 %v3750
      %9309 = vmatprep.subr.bf16.mxu0 0
      %9310 = vmatpush1.bf16.msra.mxu0 %v3749
      %9311 = vmatprep.subr.bf16.mxu0 0
      %9312 = vmatpush1.bf16.msra.mxu0 %v3748
      %9313 = vmatprep.subr.bf16.mxu0 0
      %9314 = vmatpush1.bf16.msra.mxu0 %v3747
      %9315 = vmatprep.subr.bf16.mxu0 0
      %9316 = vmatpush1.bf16.msra.mxu0 %v3746
      %9317 = vmatprep.subr.bf16.mxu0 0
      %9318 = vmatpush1.bf16.msra.mxu0 %v3745
      %9319 = vmatprep.subr.bf16.mxu0 0
      %9320 = vmatpush1.bf16.msra.mxu0 %v3744
      %9321 = vmatprep.subr.bf16.mxu0 0
      %9322 = vmatpush1.bf16.msra.mxu0 %v3743
      %9323 = vmatprep.subr.bf16.mxu0 0
      %9324 = vmatpush2.bf16.msra.mxu0 0
      %9325 = vmatprep.subr.bf16.mxu0 0
      %9326 = vmatpush2.bf16.msra.mxu0 0
      %9327 = vmatprep.subr.bf16.mxu0 0
      %9328 = vmatpush2.bf16.msra.mxu0 0
      %9329 = vmatprep.subr.bf16.mxu0 0
      %9330 = vmatpush2.bf16.msra.mxu0 0
      %9331 = vmatprep.subr.bf16.mxu0 0
      %9332 = vmatpush2.bf16.msra.mxu0 0
      %9333 = vmatprep.subr.bf16.mxu0 0
      %9334 = vmatpush2.bf16.msra.mxu0 0
      %9335 = vmatprep.subr.bf16.mxu0 0
      %9336 = vmatpush2.bf16.msra.mxu0 0
      %9337 = vmatprep.subr.bf16.mxu0 0
      %9338 = vmatpush2.bf16.msra.mxu0 0
      %9339 = vmatprep.mubr.bf16.mxu0 0
      %9340 = vmatmul.mubr.bf16.gmra.mxu0 %v9299
      %v9341 = vpop.f32.mrf.mxu0
      %v9342 = vadd.f32 0.0, %v9341
      %v9343 = vpop.f32.mrf.mxu0
      %v9344 = vpop.f32.mrf.mxu0
      %v9345 = vadd.f32 0.0, %v9344
      %v9346 = vpop.f32.mrf.mxu0
      %9347 = vmatprep.mubr.bf16.mxu0 0
      %9348 = vmatmul.mubr.bf16.gmra.mxu0 %v9300
      %v9349 = vpop.f32.mrf.mxu0
      %v9350 = vadd.f32 0.0, %v9349
      %v9351 = vpop.f32.mrf.mxu0
      %v9352 = vpop.f32.mrf.mxu0
      %v9353 = vadd.f32 0.0, %v9352
      %v9354 = vpop.f32.mrf.mxu0
      %9355 = vmatprep.mubr.bf16.mxu0 0
      %9356 = vmatmul.mubr.bf16.gmra.mxu0 %v9301
      %v9357 = vpop.f32.mrf.mxu0
      %v9358 = vadd.f32 0.0, %v9357
      %v9359 = vpop.f32.mrf.mxu0
      %v9360 = vpop.f32.mrf.mxu0
      %v9361 = vadd.f32 0.0, %v9360
      %v9362 = vpop.f32.mrf.mxu0
      %9363 = vmatprep.mubr.bf16.mxu0 0
      %9364 = vmatmul.mubr.bf16.gmra.mxu0 %v9302
      %v9365 = vpop.f32.mrf.mxu0
      %v9366 = vadd.f32 0.0, %v9365
      %v9367 = vpop.f32.mrf.mxu0
      %v9368 = vpop.f32.mrf.mxu0
      %v9369 = vadd.f32 0.0, %v9368
      %v9370 = vpop.f32.mrf.mxu0
      %9371 = vmatprep.mubr.bf16.mxu0 0
      %9372 = vmatmul.mubr.bf16.gmra.mxu0 %v9303
      %v9373 = vpop.f32.mrf.mxu0
      %v9374 = vadd.f32 0.0, %v9373
      %v9375 = vpop.f32.mrf.mxu0
      %v9376 = vpop.f32.mrf.mxu0
      %v9377 = vadd.f32 0.0, %v9376
      %v9378 = vpop.f32.mrf.mxu0
      %9379 = vmatprep.mubr.bf16.mxu0 0
      %9380 = vmatmul.mubr.bf16.gmra.mxu0 %v9304
      %v9381 = vpop.f32.mrf.mxu0
      %v9382 = vadd.f32 0.0, %v9381
      %v9383 = vpop.f32.mrf.mxu0
      %v9384 = vpop.f32.mrf.mxu0
      %v9385 = vadd.f32 0.0, %v9384
      %v9386 = vpop.f32.mrf.mxu0
      %9387 = vmatprep.mubr.bf16.mxu0 0
      %9388 = vmatmul.mubr.bf16.gmra.mxu0 %v9305
      %v9389 = vpop.f32.mrf.mxu0
      %v9390 = vadd.f32 0.0, %v9389
      %v9391 = vpop.f32.mrf.mxu0
      %v9392 = vpop.f32.mrf.mxu0
      %v9393 = vadd.f32 0.0, %v9392
      %v9394 = vpop.f32.mrf.mxu0
      %9395 = vmatprep.mubr.bf16.mxu0 0
      %9396 = vmatmul.mubr.bf16.gmra.mxu0 %v9306
      %v9397 = vpop.f32.mrf.mxu0
      %v9398 = vadd.f32 0.0, %v9397
      %v9399 = vpop.f32.mrf.mxu0
      %v9400 = vpop.f32.mrf.mxu0
      %v9401 = vadd.f32 0.0, %v9400
      %v9402 = vpop.f32.mrf.mxu0
      %9403 = vdwg.mxu0
      %v9404 = vadd.f32 %v3234, %v9342
      %v9405 = vadd.f32 %v3234, %v9345
      %v9406 = vadd.f32 %v3234, %v9350
      %v9407 = vadd.f32 %v3234, %v9353
      %v9408 = vadd.f32 %v3234, %v9358
      %v9409 = vadd.f32 %v3234, %v9361
      %v9410 = vadd.f32 %v3234, %v9366
      %v9411 = vadd.f32 %v3234, %v9369
      %v9412 = vadd.f32 %v3234, %v9374
      %v9413 = vadd.f32 %v3234, %v9377
      %v9414 = vadd.f32 %v3234, %v9382
      %v9415 = vadd.f32 %v3234, %v9385
      %v9416 = vadd.f32 %v3234, %v9390
      %v9417 = vadd.f32 %v3234, %v9393
      %v9418 = vadd.f32 %v3234, %v9398
      %v9419 = vadd.f32 %v3234, %v9401
      %v9420 = vsub.f32 0.0, %v9404
      %v9421 = vsub.f32 0.0, %v9405
      %v9422 = vsub.f32 0.0, %v9406
      %v9423 = vsub.f32 0.0, %v9407
      %v9424 = vsub.f32 0.0, %v9408
      %v9425 = vsub.f32 0.0, %v9409
      %v9426 = vsub.f32 0.0, %v9410
      %v9427 = vsub.f32 0.0, %v9411
      %v9428 = vsub.f32 0.0, %v9412
      %v9429 = vsub.f32 0.0, %v9413
      %v9430 = vsub.f32 0.0, %v9414
      %v9431 = vsub.f32 0.0, %v9415
      %v9432 = vsub.f32 0.0, %v9416
      %v9433 = vsub.f32 0.0, %v9417
      %v9434 = vsub.f32 0.0, %v9418
      %v9435 = vsub.f32 0.0, %v9419
      %v9436 = vmul.f32 %v9420, 1.442695
      %v9437 = vpow.pop %v9436
      %v9438 = vmul.f32 %v9421, 1.442695
      %v9439 = vpow.pop %v9438
      %v9440 = vmul.f32 %v9422, 1.442695
      %v9441 = vpow.pop %v9440
      %v9442 = vmul.f32 %v9423, 1.442695
      %v9443 = vpow.pop %v9442
      %v9444 = vmul.f32 %v9424, 1.442695
      %v9445 = vpow.pop %v9444
      %v9446 = vmul.f32 %v9425, 1.442695
      %v9447 = vpow.pop %v9446
      %v9448 = vmul.f32 %v9426, 1.442695
      %v9449 = vpow.pop %v9448
      %v9450 = vmul.f32 %v9427, 1.442695
      %v9451 = vpow.pop %v9450
      %v9452 = vmul.f32 %v9428, 1.442695
      %v9453 = vpow.pop %v9452
      %v9454 = vmul.f32 %v9429, 1.442695
      %v9455 = vpow.pop %v9454
      %v9456 = vmul.f32 %v9430, 1.442695
      %v9457 = vpow.pop %v9456
      %v9458 = vmul.f32 %v9431, 1.442695
      %v9459 = vpow.pop %v9458
      %v9460 = vmul.f32 %v9432, 1.442695
      %v9461 = vpow.pop %v9460
      %v9462 = vmul.f32 %v9433, 1.442695
      %v9463 = vpow.pop %v9462
      %v9464 = vmul.f32 %v9434, 1.442695
      %v9465 = vpow.pop %v9464
      %v9466 = vmul.f32 %v9435, 1.442695
      %v9467 = vpow.pop %v9466
      %v9468 = vadd.f32 %v9437, 1.0
      %v9469 = vadd.f32 %v9439, 1.0
      %v9470 = vadd.f32 %v9441, 1.0
      %v9471 = vadd.f32 %v9443, 1.0
      %v9472 = vadd.f32 %v9445, 1.0
      %v9473 = vadd.f32 %v9447, 1.0
      %v9474 = vadd.f32 %v9449, 1.0
      %v9475 = vadd.f32 %v9451, 1.0
      %v9476 = vadd.f32 %v9453, 1.0
      %v9477 = vadd.f32 %v9455, 1.0
      %v9478 = vadd.f32 %v9457, 1.0
      %v9479 = vadd.f32 %v9459, 1.0
      %v9480 = vadd.f32 %v9461, 1.0
      %v9481 = vadd.f32 %v9463, 1.0
      %v9482 = vadd.f32 %v9465, 1.0
      %v9483 = vadd.f32 %v9467, 1.0
      %v9484 = vrcp.pop %v9468
      %v9485 = vrcp.pop %v9469
      %v9486 = vrcp.pop %v9470
      %v9487 = vrcp.pop %v9471
      %v9488 = vrcp.pop %v9472
      %v9489 = vrcp.pop %v9473
      %v9490 = vrcp.pop %v9474
      %v9491 = vrcp.pop %v9475
      %v9492 = vrcp.pop %v9476
      %v9493 = vrcp.pop %v9477
      %v9494 = vrcp.pop %v9478
      %v9495 = vrcp.pop %v9479
      %v9496 = vrcp.pop %v9480
      %v9497 = vrcp.pop %v9481
      %v9498 = vrcp.pop %v9482
      %v9499 = vrcp.pop %v9483
      %v9500 = vtanh.pop %v9404
      %v9501 = vtanh.pop %v9405
      %v9502 = vtanh.pop %v9406
      %v9503 = vtanh.pop %v9407
      %v9504 = vtanh.pop %v9408
      %v9505 = vtanh.pop %v9409
      %v9506 = vtanh.pop %v9410
      %v9507 = vtanh.pop %v9411
      %v9508 = vtanh.pop %v9412
      %v9509 = vtanh.pop %v9413
      %v9510 = vtanh.pop %v9414
      %v9511 = vtanh.pop %v9415
      %v9512 = vtanh.pop %v9416
      %v9513 = vtanh.pop %v9417
      %v9514 = vtanh.pop %v9418
      %v9515 = vtanh.pop %v9419
      %9516 = vrot.lane.b32.xlu0 %v9500, 64
      %v9517 = vpop.permute.xlu0 %9516
      %9518 = vrot.lane.b32.xlu0 %v9501, 64
      %v9519 = vpop.permute.xlu0 %9518
      %9520 = vrot.lane.b32.xlu0 %v9502, 64
      %v9521 = vpop.permute.xlu0 %9520
      %9522 = vrot.lane.b32.xlu0 %v9503, 64
      %v9523 = vpop.permute.xlu0 %9522
      %9524 = vrot.lane.b32.xlu0 %v9504, 64
      %v9525 = vpop.permute.xlu0 %9524
      %9526 = vrot.lane.b32.xlu0 %v9505, 64
      %v9527 = vpop.permute.xlu0 %9526
      %9528 = vrot.lane.b32.xlu0 %v9506, 64
      %v9529 = vpop.permute.xlu0 %9528
      %9530 = vrot.lane.b32.xlu0 %v9507, 64
      %v9531 = vpop.permute.xlu0 %9530
      %9532 = vrot.lane.b32.xlu0 %v9508, 64
      %v9533 = vpop.permute.xlu0 %9532
      %9534 = vrot.lane.b32.xlu0 %v9509, 64
      %v9535 = vpop.permute.xlu0 %9534
      %9536 = vrot.lane.b32.xlu0 %v9510, 64
      %v9537 = vpop.permute.xlu0 %9536
      %9538 = vrot.lane.b32.xlu0 %v9511, 64
      %v9539 = vpop.permute.xlu0 %9538
      %9540 = vrot.lane.b32.xlu0 %v9512, 64
      %v9541 = vpop.permute.xlu0 %9540
      %9542 = vrot.lane.b32.xlu0 %v9513, 64
      %v9543 = vpop.permute.xlu0 %9542
      %9544 = vrot.lane.b32.xlu0 %v9514, 64
      %v9545 = vpop.permute.xlu0 %9544
      %9546 = vrot.lane.b32.xlu0 %v9515, 64
      %v9547 = vpop.permute.xlu0 %9546
      %v9548 = vmul.f32 %v9484, %v9517
      %v9549 = vmul.f32 %v9485, %v9519
      %v9550 = vmul.f32 %v9486, %v9521
      %v9551 = vmul.f32 %v9487, %v9523
      %v9552 = vmul.f32 %v9488, %v9525
      %v9553 = vmul.f32 %v9489, %v9527
      %v9554 = vmul.f32 %v9490, %v9529
      %v9555 = vmul.f32 %v9491, %v9531
      %v9556 = vmul.f32 %v9492, %v9533
      %v9557 = vmul.f32 %v9493, %v9535
      %v9558 = vmul.f32 %v9494, %v9537
      %v9559 = vmul.f32 %v9495, %v9539
      %v9560 = vmul.f32 %v9496, %v9541
      %v9561 = vmul.f32 %v9497, %v9543
      %v9562 = vmul.f32 %v9498, %v9545
      %v9563 = vmul.f32 %v9499, %v9547
      %9564 = vrot.lane.b32.xlu0 %v8730, 32
      %v9565 = vpop.permute.xlu0 %9564
      %9566 = vrot.lane.b32.xlu0 %v8731, 32
      %v9567 = vpop.permute.xlu0 %9566
      %9568 = vrot.lane.b32.xlu0 %v8732, 32
      %v9569 = vpop.permute.xlu0 %9568
      %9570 = vrot.lane.b32.xlu0 %v8733, 32
      %v9571 = vpop.permute.xlu0 %9570
      %9572 = vrot.lane.b32.xlu0 %v8734, 32
      %v9573 = vpop.permute.xlu0 %9572
      %9574 = vrot.lane.b32.xlu0 %v8735, 32
      %v9575 = vpop.permute.xlu0 %9574
      %9576 = vrot.lane.b32.xlu0 %v8736, 32
      %v9577 = vpop.permute.xlu0 %9576
      %9578 = vrot.lane.b32.xlu0 %v8737, 32
      %v9579 = vpop.permute.xlu0 %9578
      %9580 = vrot.lane.b32.xlu0 %v8738, 32
      %v9581 = vpop.permute.xlu0 %9580
      %9582 = vrot.lane.b32.xlu0 %v8739, 32
      %v9583 = vpop.permute.xlu0 %9582
      %9584 = vrot.lane.b32.xlu0 %v8740, 32
      %v9585 = vpop.permute.xlu0 %9584
      %9586 = vrot.lane.b32.xlu0 %v8741, 32
      %v9587 = vpop.permute.xlu0 %9586
      %9588 = vrot.lane.b32.xlu0 %v8742, 32
      %v9589 = vpop.permute.xlu0 %9588
      %9590 = vrot.lane.b32.xlu0 %v8743, 32
      %v9591 = vpop.permute.xlu0 %9590
      %9592 = vrot.lane.b32.xlu0 %v8744, 32
      %v9593 = vpop.permute.xlu0 %9592
      %9594 = vrot.lane.b32.xlu0 %v8745, 32
      %v9595 = vpop.permute.xlu0 %9594
      %v9596 = vmul.f32 %v9484, %v9565
      %v9597 = vmul.f32 %v9485, %v9567
      %v9598 = vmul.f32 %v9486, %v9569
      %v9599 = vmul.f32 %v9487, %v9571
      %v9600 = vmul.f32 %v9488, %v9573
      %v9601 = vmul.f32 %v9489, %v9575
      %v9602 = vmul.f32 %v9490, %v9577
      %v9603 = vmul.f32 %v9491, %v9579
      %v9604 = vmul.f32 %v9492, %v9581
      %v9605 = vmul.f32 %v9493, %v9583
      %v9606 = vmul.f32 %v9494, %v9585
      %v9607 = vmul.f32 %v9495, %v9587
      %v9608 = vmul.f32 %v9496, %v9589
      %v9609 = vmul.f32 %v9497, %v9591
      %v9610 = vmul.f32 %v9498, %v9593
      %v9611 = vmul.f32 %v9499, %v9595
      %9612 = vrot.lane.b32.xlu0 %v9596, 96
      %v9613 = vpop.permute.xlu0 %9612
      %9614 = vrot.lane.b32.xlu0 %v9597, 96
      %v9615 = vpop.permute.xlu0 %9614
      %9616 = vrot.lane.b32.xlu0 %v9598, 96
      %v9617 = vpop.permute.xlu0 %9616
      %9618 = vrot.lane.b32.xlu0 %v9599, 96
      %v9619 = vpop.permute.xlu0 %9618
      %9620 = vrot.lane.b32.xlu0 %v9600, 96
      %v9621 = vpop.permute.xlu0 %9620
      %9622 = vrot.lane.b32.xlu0 %v9601, 96
      %v9623 = vpop.permute.xlu0 %9622
      %9624 = vrot.lane.b32.xlu0 %v9602, 96
      %v9625 = vpop.permute.xlu0 %9624
      %9626 = vrot.lane.b32.xlu0 %v9603, 96
      %v9627 = vpop.permute.xlu0 %9626
      %9628 = vrot.lane.b32.xlu0 %v9604, 96
      %v9629 = vpop.permute.xlu0 %9628
      %9630 = vrot.lane.b32.xlu0 %v9605, 96
      %v9631 = vpop.permute.xlu0 %9630
      %9632 = vrot.lane.b32.xlu0 %v9606, 96
      %v9633 = vpop.permute.xlu0 %9632
      %9634 = vrot.lane.b32.xlu0 %v9607, 96
      %v9635 = vpop.permute.xlu0 %9634
      %9636 = vrot.lane.b32.xlu0 %v9608, 96
      %v9637 = vpop.permute.xlu0 %9636
      %9638 = vrot.lane.b32.xlu0 %v9609, 96
      %v9639 = vpop.permute.xlu0 %9638
      %9640 = vrot.lane.b32.xlu0 %v9610, 96
      %v9641 = vpop.permute.xlu0 %9640
      %9642 = vrot.lane.b32.xlu0 %v9611, 96
      %v9643 = vpop.permute.xlu0 %9642
      %v9644 = vadd.f32 %v9548, %v9613
      %v9645 = vadd.f32 %v9549, %v9615
      %v9646 = vadd.f32 %v9550, %v9617
      %v9647 = vadd.f32 %v9551, %v9619
      %v9648 = vadd.f32 %v9552, %v9621
      %v9649 = vadd.f32 %v9553, %v9623
      %v9650 = vadd.f32 %v9554, %v9625
      %v9651 = vadd.f32 %v9555, %v9627
      %v9652 = vadd.f32 %v9556, %v9629
      %v9653 = vadd.f32 %v9557, %v9631
      %v9654 = vadd.f32 %v9558, %v9633
      %v9655 = vadd.f32 %v9559, %v9635
      %v9656 = vadd.f32 %v9560, %v9637
      %v9657 = vadd.f32 %v9561, %v9639
      %v9658 = vadd.f32 %v9562, %v9641
      %v9659 = vadd.f32 %v9563, %v9643
      %v9660 = vsel %vm3235, %v9644, 0.0
      %v9661 = vsel %vm3235, %v9645, 0.0
      %v9662 = vsel %vm3235, %v9646, 0.0
      %v9663 = vsel %vm3235, %v9647, 0.0
      %v9664 = vsel %vm3235, %v9648, 0.0
      %v9665 = vsel %vm3235, %v9649, 0.0
      %v9666 = vsel %vm3235, %v9650, 0.0
      %v9667 = vsel %vm3235, %v9651, 0.0
      %v9668 = vsel %vm3235, %v9652, 0.0
      %v9669 = vsel %vm3235, %v9653, 0.0
      %v9670 = vsel %vm3235, %v9654, 0.0
      %v9671 = vsel %vm3235, %v9655, 0.0
      %v9672 = vsel %vm3235, %v9656, 0.0
      %v9673 = vsel %vm3235, %v9657, 0.0
      %v9674 = vsel %vm3235, %v9658, 0.0
      %v9675 = vsel %vm3235, %v9659, 0.0
      %9676 = vrot.lane.b32.xlu0 %v9484, 32
      %v9677 = vpop.permute.xlu0 %9676
      %9678 = vrot.lane.b32.xlu0 %v9485, 32
      %v9679 = vpop.permute.xlu0 %9678
      %9680 = vrot.lane.b32.xlu0 %v9486, 32
      %v9681 = vpop.permute.xlu0 %9680
      %9682 = vrot.lane.b32.xlu0 %v9487, 32
      %v9683 = vpop.permute.xlu0 %9682
      %9684 = vrot.lane.b32.xlu0 %v9488, 32
      %v9685 = vpop.permute.xlu0 %9684
      %9686 = vrot.lane.b32.xlu0 %v9489, 32
      %v9687 = vpop.permute.xlu0 %9686
      %9688 = vrot.lane.b32.xlu0 %v9490, 32
      %v9689 = vpop.permute.xlu0 %9688
      %9690 = vrot.lane.b32.xlu0 %v9491, 32
      %v9691 = vpop.permute.xlu0 %9690
      %9692 = vrot.lane.b32.xlu0 %v9492, 32
      %v9693 = vpop.permute.xlu0 %9692
      %9694 = vrot.lane.b32.xlu0 %v9493, 32
      %v9695 = vpop.permute.xlu0 %9694
      %9696 = vrot.lane.b32.xlu0 %v9494, 32
      %v9697 = vpop.permute.xlu0 %9696
      %9698 = vrot.lane.b32.xlu0 %v9495, 32
      %v9699 = vpop.permute.xlu0 %9698
      %9700 = vrot.lane.b32.xlu0 %v9496, 32
      %v9701 = vpop.permute.xlu0 %9700
      %9702 = vrot.lane.b32.xlu0 %v9497, 32
      %v9703 = vpop.permute.xlu0 %9702
      %9704 = vrot.lane.b32.xlu0 %v9498, 32
      %v9705 = vpop.permute.xlu0 %9704
      %9706 = vrot.lane.b32.xlu0 %v9499, 32
      %v9707 = vpop.permute.xlu0 %9706
      %v9708 = vtanh.pop %v9660
      %v9709 = vtanh.pop %v9661
      %v9710 = vtanh.pop %v9662
      %v9711 = vtanh.pop %v9663
      %v9712 = vtanh.pop %v9664
      %v9713 = vtanh.pop %v9665
      %v9714 = vtanh.pop %v9666
      %v9715 = vtanh.pop %v9667
      %v9716 = vtanh.pop %v9668
      %v9717 = vtanh.pop %v9669
      %v9718 = vtanh.pop %v9670
      %v9719 = vtanh.pop %v9671
      %v9720 = vtanh.pop %v9672
      %v9721 = vtanh.pop %v9673
      %v9722 = vtanh.pop %v9674
      %v9723 = vtanh.pop %v9675
      %v9724 = vmul.f32 %v9677, %v9708
      %v9725 = vmul.f32 %v9679, %v9709
      %v9726 = vmul.f32 %v9681, %v9710
      %v9727 = vmul.f32 %v9683, %v9711
      %v9728 = vmul.f32 %v9685, %v9712
      %v9729 = vmul.f32 %v9687, %v9713
      %v9730 = vmul.f32 %v9689, %v9714
      %v9731 = vmul.f32 %v9691, %v9715
      %v9732 = vmul.f32 %v9693, %v9716
      %v9733 = vmul.f32 %v9695, %v9717
      %v9734 = vmul.f32 %v9697, %v9718
      %v9735 = vmul.f32 %v9699, %v9719
      %v9736 = vmul.f32 %v9701, %v9720
      %v9737 = vmul.f32 %v9703, %v9721
      %v9738 = vmul.f32 %v9705, %v9722
      %v9739 = vmul.f32 %v9707, %v9723
      %v9740 = vpack.c.bf16 %v9236, %v9235
      %v9741 = vpack.c.bf16 %v9238, %v9237
      %v9742 = vpack.c.bf16 %v9240, %v9239
      %v9743 = vpack.c.bf16 %v9242, %v9241
      %v9744 = vpack.c.bf16 %v9244, %v9243
      %v9745 = vpack.c.bf16 %v9246, %v9245
      %v9746 = vpack.c.bf16 %v9248, %v9247
      %v9747 = vpack.c.bf16 %v9250, %v9249
      %9748 = vmatprep.subr.bf16.mxu0 0
      %9749 = vmatpush1.bf16.msra.mxu0 %v3275
      %9750 = vmatprep.subr.bf16.mxu0 0
      %9751 = vmatpush1.bf16.msra.mxu0 %v3274
      %9752 = vmatprep.subr.bf16.mxu0 0
      %9753 = vmatpush1.bf16.msra.mxu0 %v3273
      %9754 = vmatprep.subr.bf16.mxu0 0
      %9755 = vmatpush1.bf16.msra.mxu0 %v3272
      %9756 = vmatprep.subr.bf16.mxu0 0
      %9757 = vmatpush1.bf16.msra.mxu0 %v3271
      %9758 = vmatprep.subr.bf16.mxu0 0
      %9759 = vmatpush1.bf16.msra.mxu0 %v3270
      %9760 = vmatprep.subr.bf16.mxu0 0
      %9761 = vmatpush1.bf16.msra.mxu0 %v3269
      %9762 = vmatprep.subr.bf16.mxu0 0
      %9763 = vmatpush1.bf16.msra.mxu0 %v3268
      %9764 = vmatprep.subr.bf16.mxu0 0
      %9765 = vmatpush2.bf16.msra.mxu0 0
      %9766 = vmatprep.subr.bf16.mxu0 0
      %9767 = vmatpush2.bf16.msra.mxu0 0
      %9768 = vmatprep.subr.bf16.mxu0 0
      %9769 = vmatpush2.bf16.msra.mxu0 0
      %9770 = vmatprep.subr.bf16.mxu0 0
      %9771 = vmatpush2.bf16.msra.mxu0 0
      %9772 = vmatprep.subr.bf16.mxu0 0
      %9773 = vmatpush2.bf16.msra.mxu0 0
      %9774 = vmatprep.subr.bf16.mxu0 0
      %9775 = vmatpush2.bf16.msra.mxu0 0
      %9776 = vmatprep.subr.bf16.mxu0 0
      %9777 = vmatpush2.bf16.msra.mxu0 0
      %9778 = vmatprep.subr.bf16.mxu0 0
      %9779 = vmatpush2.bf16.msra.mxu0 0
      %9780 = vmatprep.mubr.bf16.mxu0 0
      %9781 = vmatmul.mubr.bf16.gmra.mxu0 %v9740
      %v9782 = vpop.f32.mrf.mxu0
      %v9783 = vadd.f32 0.0, %v9782
      %v9784 = vpop.f32.mrf.mxu0
      %v9785 = vpop.f32.mrf.mxu0
      %v9786 = vadd.f32 0.0, %v9785
      %v9787 = vpop.f32.mrf.mxu0
      %9788 = vmatprep.mubr.bf16.mxu0 0
      %9789 = vmatmul.mubr.bf16.gmra.mxu0 %v9741
      %v9790 = vpop.f32.mrf.mxu0
      %v9791 = vadd.f32 0.0, %v9790
      %v9792 = vpop.f32.mrf.mxu0
      %v9793 = vpop.f32.mrf.mxu0
      %v9794 = vadd.f32 0.0, %v9793
      %v9795 = vpop.f32.mrf.mxu0
      %9796 = vmatprep.mubr.bf16.mxu0 0
      %9797 = vmatmul.mubr.bf16.gmra.mxu0 %v9742
      %v9798 = vpop.f32.mrf.mxu0
      %v9799 = vadd.f32 0.0, %v9798
      %v9800 = vpop.f32.mrf.mxu0
      %v9801 = vpop.f32.mrf.mxu0
      %v9802 = vadd.f32 0.0, %v9801
      %v9803 = vpop.f32.mrf.mxu0
      %9804 = vmatprep.mubr.bf16.mxu0 0
      %9805 = vmatmul.mubr.bf16.gmra.mxu0 %v9743
      %v9806 = vpop.f32.mrf.mxu0
      %v9807 = vadd.f32 0.0, %v9806
      %v9808 = vpop.f32.mrf.mxu0
      %v9809 = vpop.f32.mrf.mxu0
      %v9810 = vadd.f32 0.0, %v9809
      %v9811 = vpop.f32.mrf.mxu0
      %9812 = vmatprep.mubr.bf16.mxu0 0
      %9813 = vmatmul.mubr.bf16.gmra.mxu0 %v9744
      %v9814 = vpop.f32.mrf.mxu0
      %v9815 = vadd.f32 0.0, %v9814
      %v9816 = vpop.f32.mrf.mxu0
      %v9817 = vpop.f32.mrf.mxu0
      %v9818 = vadd.f32 0.0, %v9817
      %v9819 = vpop.f32.mrf.mxu0
      %9820 = vmatprep.mubr.bf16.mxu0 0
      %9821 = vmatmul.mubr.bf16.gmra.mxu0 %v9745
      %v9822 = vpop.f32.mrf.mxu0
      %v9823 = vadd.f32 0.0, %v9822
      %v9824 = vpop.f32.mrf.mxu0
      %v9825 = vpop.f32.mrf.mxu0
      %v9826 = vadd.f32 0.0, %v9825
      %v9827 = vpop.f32.mrf.mxu0
      %9828 = vmatprep.mubr.bf16.mxu0 0
      %9829 = vmatmul.mubr.bf16.gmra.mxu0 %v9746
      %v9830 = vpop.f32.mrf.mxu0
      %v9831 = vadd.f32 0.0, %v9830
      %v9832 = vpop.f32.mrf.mxu0
      %v9833 = vpop.f32.mrf.mxu0
      %v9834 = vadd.f32 0.0, %v9833
      %v9835 = vpop.f32.mrf.mxu0
      %9836 = vmatprep.mubr.bf16.mxu0 0
      %9837 = vmatmul.mubr.bf16.gmra.mxu0 %v9747
      %v9838 = vpop.f32.mrf.mxu0
      %v9839 = vadd.f32 0.0, %v9838
      %v9840 = vpop.f32.mrf.mxu0
      %v9841 = vpop.f32.mrf.mxu0
      %v9842 = vadd.f32 0.0, %v9841
      %v9843 = vpop.f32.mrf.mxu0
      %9844 = vdwg.mxu0
      %v9845 = vadd.f32 %v3169, %v9783
      %v9846 = vadd.f32 %v3172, %v9786
      %v9847 = vadd.f32 %v3177, %v9791
      %v9848 = vadd.f32 %v3180, %v9794
      %v9849 = vadd.f32 %v3185, %v9799
      %v9850 = vadd.f32 %v3188, %v9802
      %v9851 = vadd.f32 %v3193, %v9807
      %v9852 = vadd.f32 %v3196, %v9810
      %v9853 = vadd.f32 %v3201, %v9815
      %v9854 = vadd.f32 %v3204, %v9818
      %v9855 = vadd.f32 %v3209, %v9823
      %v9856 = vadd.f32 %v3212, %v9826
      %v9857 = vadd.f32 %v3217, %v9831
      %v9858 = vadd.f32 %v3220, %v9834
      %v9859 = vadd.f32 %v3225, %v9839
      %v9860 = vadd.f32 %v3228, %v9842
      %v9861 = vsub.f32 0.0, %v9845
      %v9862 = vsub.f32 0.0, %v9846
      %v9863 = vsub.f32 0.0, %v9847
      %v9864 = vsub.f32 0.0, %v9848
      %v9865 = vsub.f32 0.0, %v9849
      %v9866 = vsub.f32 0.0, %v9850
      %v9867 = vsub.f32 0.0, %v9851
      %v9868 = vsub.f32 0.0, %v9852
      %v9869 = vsub.f32 0.0, %v9853
      %v9870 = vsub.f32 0.0, %v9854
      %v9871 = vsub.f32 0.0, %v9855
      %v9872 = vsub.f32 0.0, %v9856
      %v9873 = vsub.f32 0.0, %v9857
      %v9874 = vsub.f32 0.0, %v9858
      %v9875 = vsub.f32 0.0, %v9859
      %v9876 = vsub.f32 0.0, %v9860
      %v9877 = vmul.f32 %v9861, 1.442695
      %v9878 = vpow.pop %v9877
      %v9879 = vmul.f32 %v9862, 1.442695
      %v9880 = vpow.pop %v9879
      %v9881 = vmul.f32 %v9863, 1.442695
      %v9882 = vpow.pop %v9881
      %v9883 = vmul.f32 %v9864, 1.442695
      %v9884 = vpow.pop %v9883
      %v9885 = vmul.f32 %v9865, 1.442695
      %v9886 = vpow.pop %v9885
      %v9887 = vmul.f32 %v9866, 1.442695
      %v9888 = vpow.pop %v9887
      %v9889 = vmul.f32 %v9867, 1.442695
      %v9890 = vpow.pop %v9889
      %v9891 = vmul.f32 %v9868, 1.442695
      %v9892 = vpow.pop %v9891
      %v9893 = vmul.f32 %v9869, 1.442695
      %v9894 = vpow.pop %v9893
      %v9895 = vmul.f32 %v9870, 1.442695
      %v9896 = vpow.pop %v9895
      %v9897 = vmul.f32 %v9871, 1.442695
      %v9898 = vpow.pop %v9897
      %v9899 = vmul.f32 %v9872, 1.442695
      %v9900 = vpow.pop %v9899
      %v9901 = vmul.f32 %v9873, 1.442695
      %v9902 = vpow.pop %v9901
      %v9903 = vmul.f32 %v9874, 1.442695
      %v9904 = vpow.pop %v9903
      %v9905 = vmul.f32 %v9875, 1.442695
      %v9906 = vpow.pop %v9905
      %v9907 = vmul.f32 %v9876, 1.442695
      %v9908 = vpow.pop %v9907
      %v9909 = vadd.f32 %v9878, 1.0
      %v9910 = vadd.f32 %v9880, 1.0
      %v9911 = vadd.f32 %v9882, 1.0
      %v9912 = vadd.f32 %v9884, 1.0
      %v9913 = vadd.f32 %v9886, 1.0
      %v9914 = vadd.f32 %v9888, 1.0
      %v9915 = vadd.f32 %v9890, 1.0
      %v9916 = vadd.f32 %v9892, 1.0
      %v9917 = vadd.f32 %v9894, 1.0
      %v9918 = vadd.f32 %v9896, 1.0
      %v9919 = vadd.f32 %v9898, 1.0
      %v9920 = vadd.f32 %v9900, 1.0
      %v9921 = vadd.f32 %v9902, 1.0
      %v9922 = vadd.f32 %v9904, 1.0
      %v9923 = vadd.f32 %v9906, 1.0
      %v9924 = vadd.f32 %v9908, 1.0
      %v9925 = vrcp.pop %v9909
      %v9926 = vrcp.pop %v9910
      %v9927 = vrcp.pop %v9911
      %v9928 = vrcp.pop %v9912
      %v9929 = vrcp.pop %v9913
      %v9930 = vrcp.pop %v9914
      %v9931 = vrcp.pop %v9915
      %v9932 = vrcp.pop %v9916
      %v9933 = vrcp.pop %v9917
      %v9934 = vrcp.pop %v9918
      %v9935 = vrcp.pop %v9919
      %v9936 = vrcp.pop %v9920
      %v9937 = vrcp.pop %v9921
      %v9938 = vrcp.pop %v9922
      %v9939 = vrcp.pop %v9923
      %v9940 = vrcp.pop %v9924
      %v9941 = vtanh.pop %v9845
      %v9942 = vtanh.pop %v9846
      %v9943 = vtanh.pop %v9847
      %v9944 = vtanh.pop %v9848
      %v9945 = vtanh.pop %v9849
      %v9946 = vtanh.pop %v9850
      %v9947 = vtanh.pop %v9851
      %v9948 = vtanh.pop %v9852
      %v9949 = vtanh.pop %v9853
      %v9950 = vtanh.pop %v9854
      %v9951 = vtanh.pop %v9855
      %v9952 = vtanh.pop %v9856
      %v9953 = vtanh.pop %v9857
      %v9954 = vtanh.pop %v9858
      %v9955 = vtanh.pop %v9859
      %v9956 = vtanh.pop %v9860
      %9957 = vrot.lane.b32.xlu0 %v9941, 64
      %v9958 = vpop.permute.xlu0 %9957
      %9959 = vrot.lane.b32.xlu0 %v9942, 64
      %v9960 = vpop.permute.xlu0 %9959
      %9961 = vrot.lane.b32.xlu0 %v9943, 64
      %v9962 = vpop.permute.xlu0 %9961
      %9963 = vrot.lane.b32.xlu0 %v9944, 64
      %v9964 = vpop.permute.xlu0 %9963
      %9965 = vrot.lane.b32.xlu0 %v9945, 64
      %v9966 = vpop.permute.xlu0 %9965
      %9967 = vrot.lane.b32.xlu0 %v9946, 64
      %v9968 = vpop.permute.xlu0 %9967
      %9969 = vrot.lane.b32.xlu0 %v9947, 64
      %v9970 = vpop.permute.xlu0 %9969
      %9971 = vrot.lane.b32.xlu0 %v9948, 64
      %v9972 = vpop.permute.xlu0 %9971
      %9973 = vrot.lane.b32.xlu0 %v9949, 64
      %v9974 = vpop.permute.xlu0 %9973
      %9975 = vrot.lane.b32.xlu0 %v9950, 64
      %v9976 = vpop.permute.xlu0 %9975
      %9977 = vrot.lane.b32.xlu0 %v9951, 64
      %v9978 = vpop.permute.xlu0 %9977
      %9979 = vrot.lane.b32.xlu0 %v9952, 64
      %v9980 = vpop.permute.xlu0 %9979
      %9981 = vrot.lane.b32.xlu0 %v9953, 64
      %v9982 = vpop.permute.xlu0 %9981
      %9983 = vrot.lane.b32.xlu0 %v9954, 64
      %v9984 = vpop.permute.xlu0 %9983
      %9985 = vrot.lane.b32.xlu0 %v9955, 64
      %v9986 = vpop.permute.xlu0 %9985
      %9987 = vrot.lane.b32.xlu0 %v9956, 64
      %v9988 = vpop.permute.xlu0 %9987
      %v9989 = vmul.f32 %v9925, %v9958
      %v9990 = vmul.f32 %v9926, %v9960
      %v9991 = vmul.f32 %v9927, %v9962
      %v9992 = vmul.f32 %v9928, %v9964
      %v9993 = vmul.f32 %v9929, %v9966
      %v9994 = vmul.f32 %v9930, %v9968
      %v9995 = vmul.f32 %v9931, %v9970
      %v9996 = vmul.f32 %v9932, %v9972
      %v9997 = vmul.f32 %v9933, %v9974
      %v9998 = vmul.f32 %v9934, %v9976
      %v9999 = vmul.f32 %v9935, %v9978
      %v10000 = vmul.f32 %v9936, %v9980
      %v10001 = vmul.f32 %v9937, %v9982
      %v10002 = vmul.f32 %v9938, %v9984
      %v10003 = vmul.f32 %v9939, %v9986
      %v10004 = vmul.f32 %v9940, %v9988
      %10005 = vrot.lane.b32.xlu0 %v9171, 32
      %v10006 = vpop.permute.xlu0 %10005
      %10007 = vrot.lane.b32.xlu0 %v9172, 32
      %v10008 = vpop.permute.xlu0 %10007
      %10009 = vrot.lane.b32.xlu0 %v9173, 32
      %v10010 = vpop.permute.xlu0 %10009
      %10011 = vrot.lane.b32.xlu0 %v9174, 32
      %v10012 = vpop.permute.xlu0 %10011
      %10013 = vrot.lane.b32.xlu0 %v9175, 32
      %v10014 = vpop.permute.xlu0 %10013
      %10015 = vrot.lane.b32.xlu0 %v9176, 32
      %v10016 = vpop.permute.xlu0 %10015
      %10017 = vrot.lane.b32.xlu0 %v9177, 32
      %v10018 = vpop.permute.xlu0 %10017
      %10019 = vrot.lane.b32.xlu0 %v9178, 32
      %v10020 = vpop.permute.xlu0 %10019
      %10021 = vrot.lane.b32.xlu0 %v9179, 32
      %v10022 = vpop.permute.xlu0 %10021
      %10023 = vrot.lane.b32.xlu0 %v9180, 32
      %v10024 = vpop.permute.xlu0 %10023
      %10025 = vrot.lane.b32.xlu0 %v9181, 32
      %v10026 = vpop.permute.xlu0 %10025
      %10027 = vrot.lane.b32.xlu0 %v9182, 32
      %v10028 = vpop.permute.xlu0 %10027
      %10029 = vrot.lane.b32.xlu0 %v9183, 32
      %v10030 = vpop.permute.xlu0 %10029
      %10031 = vrot.lane.b32.xlu0 %v9184, 32
      %v10032 = vpop.permute.xlu0 %10031
      %10033 = vrot.lane.b32.xlu0 %v9185, 32
      %v10034 = vpop.permute.xlu0 %10033
      %10035 = vrot.lane.b32.xlu0 %v9186, 32
      %v10036 = vpop.permute.xlu0 %10035
      %v10037 = vmul.f32 %v9925, %v10006
      %v10038 = vmul.f32 %v9926, %v10008
      %v10039 = vmul.f32 %v9927, %v10010
      %v10040 = vmul.f32 %v9928, %v10012
      %v10041 = vmul.f32 %v9929, %v10014
      %v10042 = vmul.f32 %v9930, %v10016
      %v10043 = vmul.f32 %v9931, %v10018
      %v10044 = vmul.f32 %v9932, %v10020
      %v10045 = vmul.f32 %v9933, %v10022
      %v10046 = vmul.f32 %v9934, %v10024
      %v10047 = vmul.f32 %v9935, %v10026
      %v10048 = vmul.f32 %v9936, %v10028
      %v10049 = vmul.f32 %v9937, %v10030
      %v10050 = vmul.f32 %v9938, %v10032
      %v10051 = vmul.f32 %v9939, %v10034
      %v10052 = vmul.f32 %v9940, %v10036
      %10053 = vrot.lane.b32.xlu0 %v10037, 96
      %v10054 = vpop.permute.xlu0 %10053
      %10055 = vrot.lane.b32.xlu0 %v10038, 96
      %v10056 = vpop.permute.xlu0 %10055
      %10057 = vrot.lane.b32.xlu0 %v10039, 96
      %v10058 = vpop.permute.xlu0 %10057
      %10059 = vrot.lane.b32.xlu0 %v10040, 96
      %v10060 = vpop.permute.xlu0 %10059
      %10061 = vrot.lane.b32.xlu0 %v10041, 96
      %v10062 = vpop.permute.xlu0 %10061
      %10063 = vrot.lane.b32.xlu0 %v10042, 96
      %v10064 = vpop.permute.xlu0 %10063
      %10065 = vrot.lane.b32.xlu0 %v10043, 96
      %v10066 = vpop.permute.xlu0 %10065
      %10067 = vrot.lane.b32.xlu0 %v10044, 96
      %v10068 = vpop.permute.xlu0 %10067
      %10069 = vrot.lane.b32.xlu0 %v10045, 96
      %v10070 = vpop.permute.xlu0 %10069
      %10071 = vrot.lane.b32.xlu0 %v10046, 96
      %v10072 = vpop.permute.xlu0 %10071
      %10073 = vrot.lane.b32.xlu0 %v10047, 96
      %v10074 = vpop.permute.xlu0 %10073
      %10075 = vrot.lane.b32.xlu0 %v10048, 96
      %v10076 = vpop.permute.xlu0 %10075
      %10077 = vrot.lane.b32.xlu0 %v10049, 96
      %v10078 = vpop.permute.xlu0 %10077
      %10079 = vrot.lane.b32.xlu0 %v10050, 96
      %v10080 = vpop.permute.xlu0 %10079
      %10081 = vrot.lane.b32.xlu0 %v10051, 96
      %v10082 = vpop.permute.xlu0 %10081
      %10083 = vrot.lane.b32.xlu0 %v10052, 96
      %v10084 = vpop.permute.xlu0 %10083
      %v10085 = vadd.f32 %v9989, %v10054
      %v10086 = vadd.f32 %v9990, %v10056
      %v10087 = vadd.f32 %v9991, %v10058
      %v10088 = vadd.f32 %v9992, %v10060
      %v10089 = vadd.f32 %v9993, %v10062
      %v10090 = vadd.f32 %v9994, %v10064
      %v10091 = vadd.f32 %v9995, %v10066
      %v10092 = vadd.f32 %v9996, %v10068
      %v10093 = vadd.f32 %v9997, %v10070
      %v10094 = vadd.f32 %v9998, %v10072
      %v10095 = vadd.f32 %v9999, %v10074
      %v10096 = vadd.f32 %v10000, %v10076
      %v10097 = vadd.f32 %v10001, %v10078
      %v10098 = vadd.f32 %v10002, %v10080
      %v10099 = vadd.f32 %v10003, %v10082
      %v10100 = vadd.f32 %v10004, %v10084
      %v10101 = vsel %vm3235, %v10085, 0.0
      %v10102 = vsel %vm3235, %v10086, 0.0
      %v10103 = vsel %vm3235, %v10087, 0.0
      %v10104 = vsel %vm3235, %v10088, 0.0
      %v10105 = vsel %vm3235, %v10089, 0.0
      %v10106 = vsel %vm3235, %v10090, 0.0
      %v10107 = vsel %vm3235, %v10091, 0.0
      %v10108 = vsel %vm3235, %v10092, 0.0
      %v10109 = vsel %vm3235, %v10093, 0.0
      %v10110 = vsel %vm3235, %v10094, 0.0
      %v10111 = vsel %vm3235, %v10095, 0.0
      %v10112 = vsel %vm3235, %v10096, 0.0
      %v10113 = vsel %vm3235, %v10097, 0.0
      %v10114 = vsel %vm3235, %v10098, 0.0
      %v10115 = vsel %vm3235, %v10099, 0.0
      %v10116 = vsel %vm3235, %v10100, 0.0
      %10117 = vrot.lane.b32.xlu0 %v9925, 32
      %v10118 = vpop.permute.xlu0 %10117
      %10119 = vrot.lane.b32.xlu0 %v9926, 32
      %v10120 = vpop.permute.xlu0 %10119
      %10121 = vrot.lane.b32.xlu0 %v9927, 32
      %v10122 = vpop.permute.xlu0 %10121
      %10123 = vrot.lane.b32.xlu0 %v9928, 32
      %v10124 = vpop.permute.xlu0 %10123
      %10125 = vrot.lane.b32.xlu0 %v9929, 32
      %v10126 = vpop.permute.xlu0 %10125
      %10127 = vrot.lane.b32.xlu0 %v9930, 32
      %v10128 = vpop.permute.xlu0 %10127
      %10129 = vrot.lane.b32.xlu0 %v9931, 32
      %v10130 = vpop.permute.xlu0 %10129
      %10131 = vrot.lane.b32.xlu0 %v9932, 32
      %v10132 = vpop.permute.xlu0 %10131
      %10133 = vrot.lane.b32.xlu0 %v9933, 32
      %v10134 = vpop.permute.xlu0 %10133
      %10135 = vrot.lane.b32.xlu0 %v9934, 32
      %v10136 = vpop.permute.xlu0 %10135
      %10137 = vrot.lane.b32.xlu0 %v9935, 32
      %v10138 = vpop.permute.xlu0 %10137
      %10139 = vrot.lane.b32.xlu0 %v9936, 32
      %v10140 = vpop.permute.xlu0 %10139
      %10141 = vrot.lane.b32.xlu0 %v9937, 32
      %v10142 = vpop.permute.xlu0 %10141
      %10143 = vrot.lane.b32.xlu0 %v9938, 32
      %v10144 = vpop.permute.xlu0 %10143
      %10145 = vrot.lane.b32.xlu0 %v9939, 32
      %v10146 = vpop.permute.xlu0 %10145
      %10147 = vrot.lane.b32.xlu0 %v9940, 32
      %v10148 = vpop.permute.xlu0 %10147
      %v10149 = vtanh.pop %v10101
      %v10150 = vtanh.pop %v10102
      %v10151 = vtanh.pop %v10103
      %v10152 = vtanh.pop %v10104
      %v10153 = vtanh.pop %v10105
      %v10154 = vtanh.pop %v10106
      %v10155 = vtanh.pop %v10107
      %v10156 = vtanh.pop %v10108
      %v10157 = vtanh.pop %v10109
      %v10158 = vtanh.pop %v10110
      %v10159 = vtanh.pop %v10111
      %v10160 = vtanh.pop %v10112
      %v10161 = vtanh.pop %v10113
      %v10162 = vtanh.pop %v10114
      %v10163 = vtanh.pop %v10115
      %v10164 = vtanh.pop %v10116
      %v10165 = vmul.f32 %v10118, %v10149
      %v10166 = vmul.f32 %v10120, %v10150
      %v10167 = vmul.f32 %v10122, %v10151
      %v10168 = vmul.f32 %v10124, %v10152
      %v10169 = vmul.f32 %v10126, %v10153
      %v10170 = vmul.f32 %v10128, %v10154
      %v10171 = vmul.f32 %v10130, %v10155
      %v10172 = vmul.f32 %v10132, %v10156
      %v10173 = vmul.f32 %v10134, %v10157
      %v10174 = vmul.f32 %v10136, %v10158
      %v10175 = vmul.f32 %v10138, %v10159
      %v10176 = vmul.f32 %v10140, %v10160
      %v10177 = vmul.f32 %v10142, %v10161
      %v10178 = vmul.f32 %v10144, %v10162
      %v10179 = vmul.f32 %v10146, %v10163
      %v10180 = vmul.f32 %v10148, %v10164
      %10181 = vrot.lane.b32.xlu0 %v9724, 32
      %v10182 = vpop.permute.xlu0 %10181
      %10183 = vrot.lane.b32.xlu0 %v9725, 32
      %v10184 = vpop.permute.xlu0 %10183
      %10185 = vrot.lane.b32.xlu0 %v9726, 32
      %v10186 = vpop.permute.xlu0 %10185
      %10187 = vrot.lane.b32.xlu0 %v9727, 32
      %v10188 = vpop.permute.xlu0 %10187
      %10189 = vrot.lane.b32.xlu0 %v9728, 32
      %v10190 = vpop.permute.xlu0 %10189
      %10191 = vrot.lane.b32.xlu0 %v9729, 32
      %v10192 = vpop.permute.xlu0 %10191
      %10193 = vrot.lane.b32.xlu0 %v9730, 32
      %v10194 = vpop.permute.xlu0 %10193
      %10195 = vrot.lane.b32.xlu0 %v9731, 32
      %v10196 = vpop.permute.xlu0 %10195
      %10197 = vrot.lane.b32.xlu0 %v9732, 32
      %v10198 = vpop.permute.xlu0 %10197
      %10199 = vrot.lane.b32.xlu0 %v9733, 32
      %v10200 = vpop.permute.xlu0 %10199
      %10201 = vrot.lane.b32.xlu0 %v9734, 32
      %v10202 = vpop.permute.xlu0 %10201
      %10203 = vrot.lane.b32.xlu0 %v9735, 32
      %v10204 = vpop.permute.xlu0 %10203
      %10205 = vrot.lane.b32.xlu0 %v9736, 32
      %v10206 = vpop.permute.xlu0 %10205
      %10207 = vrot.lane.b32.xlu0 %v9737, 32
      %v10208 = vpop.permute.xlu0 %10207
      %10209 = vrot.lane.b32.xlu0 %v9738, 32
      %v10210 = vpop.permute.xlu0 %10209
      %10211 = vrot.lane.b32.xlu0 %v9739, 32
      %v10212 = vpop.permute.xlu0 %10211
      %v10213 = vadd.f32 %v10165, %v10182
      %v10214 = vadd.f32 %v10166, %v10184
      %v10215 = vadd.f32 %v10167, %v10186
      %v10216 = vadd.f32 %v10168, %v10188
      %v10217 = vadd.f32 %v10169, %v10190
      %v10218 = vadd.f32 %v10170, %v10192
      %v10219 = vadd.f32 %v10171, %v10194
      %v10220 = vadd.f32 %v10172, %v10196
      %v10221 = vadd.f32 %v10173, %v10198
      %v10222 = vadd.f32 %v10174, %v10200
      %v10223 = vadd.f32 %v10175, %v10202
      %v10224 = vadd.f32 %v10176, %v10204
      %v10225 = vadd.f32 %v10177, %v10206
      %v10226 = vadd.f32 %v10178, %v10208
      %v10227 = vadd.f32 %v10179, %v10210
      %v10228 = vadd.f32 %v10180, %v10212
      %v10229 = vpack.c.bf16 %v10214, %v10213
      %v10230 = vpack.c.bf16 %v10216, %v10215
      %v10231 = vpack.c.bf16 %v10218, %v10217
      %v10232 = vpack.c.bf16 %v10220, %v10219
      %v10233 = vpack.c.bf16 %v10222, %v10221
      %v10234 = vpack.c.bf16 %v10224, %v10223
      %v10235 = vpack.c.bf16 %v10226, %v10225
      %v10236 = vpack.c.bf16 %v10228, %v10227
      %10237 = vmatprep.subr.bf16.mxu0 0
      %10238 = vmatpush1.bf16.msra.mxu0 %v3750
      %10239 = vmatprep.subr.bf16.mxu0 0
      %10240 = vmatpush1.bf16.msra.mxu0 %v3749
      %10241 = vmatprep.subr.bf16.mxu0 0
      %10242 = vmatpush1.bf16.msra.mxu0 %v3748
      %10243 = vmatprep.subr.bf16.mxu0 0
      %10244 = vmatpush1.bf16.msra.mxu0 %v3747
      %10245 = vmatprep.subr.bf16.mxu0 0
      %10246 = vmatpush1.bf16.msra.mxu0 %v3746
      %10247 = vmatprep.subr.bf16.mxu0 0
      %10248 = vmatpush1.bf16.msra.mxu0 %v3745
      %10249 = vmatprep.subr.bf16.mxu0 0
      %10250 = vmatpush1.bf16.msra.mxu0 %v3744
      %10251 = vmatprep.subr.bf16.mxu0 0
      %10252 = vmatpush1.bf16.msra.mxu0 %v3743
      %10253 = vmatprep.subr.bf16.mxu0 0
      %10254 = vmatpush2.bf16.msra.mxu0 0
      %10255 = vmatprep.subr.bf16.mxu0 0
      %10256 = vmatpush2.bf16.msra.mxu0 0
      %10257 = vmatprep.subr.bf16.mxu0 0
      %10258 = vmatpush2.bf16.msra.mxu0 0
      %10259 = vmatprep.subr.bf16.mxu0 0
      %10260 = vmatpush2.bf16.msra.mxu0 0
      %10261 = vmatprep.subr.bf16.mxu0 0
      %10262 = vmatpush2.bf16.msra.mxu0 0
      %10263 = vmatprep.subr.bf16.mxu0 0
      %10264 = vmatpush2.bf16.msra.mxu0 0
      %10265 = vmatprep.subr.bf16.mxu0 0
      %10266 = vmatpush2.bf16.msra.mxu0 0
      %10267 = vmatprep.subr.bf16.mxu0 0
      %10268 = vmatpush2.bf16.msra.mxu0 0
      %10269 = vmatprep.mubr.bf16.mxu0 0
      %10270 = vmatmul.mubr.bf16.gmra.mxu0 %v10229
      %v10271 = vpop.f32.mrf.mxu0
      %v10272 = vadd.f32 0.0, %v10271
      %v10273 = vpop.f32.mrf.mxu0
      %v10274 = vpop.f32.mrf.mxu0
      %v10275 = vadd.f32 0.0, %v10274
      %v10276 = vpop.f32.mrf.mxu0
      %10277 = vmatprep.mubr.bf16.mxu0 0
      %10278 = vmatmul.mubr.bf16.gmra.mxu0 %v10230
      %v10279 = vpop.f32.mrf.mxu0
      %v10280 = vadd.f32 0.0, %v10279
      %v10281 = vpop.f32.mrf.mxu0
      %v10282 = vpop.f32.mrf.mxu0
      %v10283 = vadd.f32 0.0, %v10282
      %v10284 = vpop.f32.mrf.mxu0
      %10285 = vmatprep.mubr.bf16.mxu0 0
      %10286 = vmatmul.mubr.bf16.gmra.mxu0 %v10231
      %v10287 = vpop.f32.mrf.mxu0
      %v10288 = vadd.f32 0.0, %v10287
      %v10289 = vpop.f32.mrf.mxu0
      %v10290 = vpop.f32.mrf.mxu0
      %v10291 = vadd.f32 0.0, %v10290
      %v10292 = vpop.f32.mrf.mxu0
      %10293 = vmatprep.mubr.bf16.mxu0 0
      %10294 = vmatmul.mubr.bf16.gmra.mxu0 %v10232
      %v10295 = vpop.f32.mrf.mxu0
      %v10296 = vadd.f32 0.0, %v10295
      %v10297 = vpop.f32.mrf.mxu0
      %v10298 = vpop.f32.mrf.mxu0
      %v10299 = vadd.f32 0.0, %v10298
      %v10300 = vpop.f32.mrf.mxu0
      %10301 = vmatprep.mubr.bf16.mxu0 0
      %10302 = vmatmul.mubr.bf16.gmra.mxu0 %v10233
      %v10303 = vpop.f32.mrf.mxu0
      %v10304 = vadd.f32 0.0, %v10303
      %v10305 = vpop.f32.mrf.mxu0
      %v10306 = vpop.f32.mrf.mxu0
      %v10307 = vadd.f32 0.0, %v10306
      %v10308 = vpop.f32.mrf.mxu0
      %10309 = vmatprep.mubr.bf16.mxu0 0
      %10310 = vmatmul.mubr.bf16.gmra.mxu0 %v10234
      %v10311 = vpop.f32.mrf.mxu0
      %v10312 = vadd.f32 0.0, %v10311
      %v10313 = vpop.f32.mrf.mxu0
      %v10314 = vpop.f32.mrf.mxu0
      %v10315 = vadd.f32 0.0, %v10314
      %v10316 = vpop.f32.mrf.mxu0
      %10317 = vmatprep.mubr.bf16.mxu0 0
      %10318 = vmatmul.mubr.bf16.gmra.mxu0 %v10235
      %v10319 = vpop.f32.mrf.mxu0
      %v10320 = vadd.f32 0.0, %v10319
      %v10321 = vpop.f32.mrf.mxu0
      %v10322 = vpop.f32.mrf.mxu0
      %v10323 = vadd.f32 0.0, %v10322
      %v10324 = vpop.f32.mrf.mxu0
      %10325 = vmatprep.mubr.bf16.mxu0 0
      %10326 = vmatmul.mubr.bf16.gmra.mxu0 %v10236
      %v10327 = vpop.f32.mrf.mxu0
      %v10328 = vadd.f32 0.0, %v10327
      %v10329 = vpop.f32.mrf.mxu0
      %v10330 = vpop.f32.mrf.mxu0
      %v10331 = vadd.f32 0.0, %v10330
      %v10332 = vpop.f32.mrf.mxu0
      %10333 = vdwg.mxu0
      %v10334 = vadd.f32 %v3234, %v10272
      %v10335 = vadd.f32 %v3234, %v10275
      %v10336 = vadd.f32 %v3234, %v10280
      %v10337 = vadd.f32 %v3234, %v10283
      %v10338 = vadd.f32 %v3234, %v10288
      %v10339 = vadd.f32 %v3234, %v10291
      %v10340 = vadd.f32 %v3234, %v10296
      %v10341 = vadd.f32 %v3234, %v10299
      %v10342 = vadd.f32 %v3234, %v10304
      %v10343 = vadd.f32 %v3234, %v10307
      %v10344 = vadd.f32 %v3234, %v10312
      %v10345 = vadd.f32 %v3234, %v10315
      %v10346 = vadd.f32 %v3234, %v10320
      %v10347 = vadd.f32 %v3234, %v10323
      %v10348 = vadd.f32 %v3234, %v10328
      %v10349 = vadd.f32 %v3234, %v10331
      %v10350 = vsub.f32 0.0, %v10334
      %v10351 = vsub.f32 0.0, %v10335
      %v10352 = vsub.f32 0.0, %v10336
      %v10353 = vsub.f32 0.0, %v10337
      %v10354 = vsub.f32 0.0, %v10338
      %v10355 = vsub.f32 0.0, %v10339
      %v10356 = vsub.f32 0.0, %v10340
      %v10357 = vsub.f32 0.0, %v10341
      %v10358 = vsub.f32 0.0, %v10342
      %v10359 = vsub.f32 0.0, %v10343
      %v10360 = vsub.f32 0.0, %v10344
      %v10361 = vsub.f32 0.0, %v10345
      %v10362 = vsub.f32 0.0, %v10346
      %v10363 = vsub.f32 0.0, %v10347
      %v10364 = vsub.f32 0.0, %v10348
      %v10365 = vsub.f32 0.0, %v10349
      %v10366 = vmul.f32 %v10350, 1.442695
      %v10367 = vpow.pop %v10366
      %v10368 = vmul.f32 %v10351, 1.442695
      %v10369 = vpow.pop %v10368
      %v10370 = vmul.f32 %v10352, 1.442695
      %v10371 = vpow.pop %v10370
      %v10372 = vmul.f32 %v10353, 1.442695
      %v10373 = vpow.pop %v10372
      %v10374 = vmul.f32 %v10354, 1.442695
      %v10375 = vpow.pop %v10374
      %v10376 = vmul.f32 %v10355, 1.442695
      %v10377 = vpow.pop %v10376
      %v10378 = vmul.f32 %v10356, 1.442695
      %v10379 = vpow.pop %v10378
      %v10380 = vmul.f32 %v10357, 1.442695
      %v10381 = vpow.pop %v10380
      %v10382 = vmul.f32 %v10358, 1.442695
      %v10383 = vpow.pop %v10382
      %v10384 = vmul.f32 %v10359, 1.442695
      %v10385 = vpow.pop %v10384
      %v10386 = vmul.f32 %v10360, 1.442695
      %v10387 = vpow.pop %v10386
      %v10388 = vmul.f32 %v10361, 1.442695
      %v10389 = vpow.pop %v10388
      %v10390 = vmul.f32 %v10362, 1.442695
      %v10391 = vpow.pop %v10390
      %v10392 = vmul.f32 %v10363, 1.442695
      %v10393 = vpow.pop %v10392
      %v10394 = vmul.f32 %v10364, 1.442695
      %v10395 = vpow.pop %v10394
      %v10396 = vmul.f32 %v10365, 1.442695
      %v10397 = vpow.pop %v10396
      %v10398 = vadd.f32 %v10367, 1.0
      %v10399 = vadd.f32 %v10369, 1.0
      %v10400 = vadd.f32 %v10371, 1.0
      %v10401 = vadd.f32 %v10373, 1.0
      %v10402 = vadd.f32 %v10375, 1.0
      %v10403 = vadd.f32 %v10377, 1.0
      %v10404 = vadd.f32 %v10379, 1.0
      %v10405 = vadd.f32 %v10381, 1.0
      %v10406 = vadd.f32 %v10383, 1.0
      %v10407 = vadd.f32 %v10385, 1.0
      %v10408 = vadd.f32 %v10387, 1.0
      %v10409 = vadd.f32 %v10389, 1.0
      %v10410 = vadd.f32 %v10391, 1.0
      %v10411 = vadd.f32 %v10393, 1.0
      %v10412 = vadd.f32 %v10395, 1.0
      %v10413 = vadd.f32 %v10397, 1.0
      %v10414 = vrcp.pop %v10398
      %v10415 = vrcp.pop %v10399
      %v10416 = vrcp.pop %v10400
      %v10417 = vrcp.pop %v10401
      %v10418 = vrcp.pop %v10402
      %v10419 = vrcp.pop %v10403
      %v10420 = vrcp.pop %v10404
      %v10421 = vrcp.pop %v10405
      %v10422 = vrcp.pop %v10406
      %v10423 = vrcp.pop %v10407
      %v10424 = vrcp.pop %v10408
      %v10425 = vrcp.pop %v10409
      %v10426 = vrcp.pop %v10410
      %v10427 = vrcp.pop %v10411
      %v10428 = vrcp.pop %v10412
      %v10429 = vrcp.pop %v10413
      %v10430 = vtanh.pop %v10334
      %v10431 = vtanh.pop %v10335
      %v10432 = vtanh.pop %v10336
      %v10433 = vtanh.pop %v10337
      %v10434 = vtanh.pop %v10338
      %v10435 = vtanh.pop %v10339
      %v10436 = vtanh.pop %v10340
      %v10437 = vtanh.pop %v10341
      %v10438 = vtanh.pop %v10342
      %v10439 = vtanh.pop %v10343
      %v10440 = vtanh.pop %v10344
      %v10441 = vtanh.pop %v10345
      %v10442 = vtanh.pop %v10346
      %v10443 = vtanh.pop %v10347
      %v10444 = vtanh.pop %v10348
      %v10445 = vtanh.pop %v10349
      %10446 = vrot.lane.b32.xlu0 %v10430, 64
      %v10447 = vpop.permute.xlu0 %10446
      %10448 = vrot.lane.b32.xlu0 %v10431, 64
      %v10449 = vpop.permute.xlu0 %10448
      %10450 = vrot.lane.b32.xlu0 %v10432, 64
      %v10451 = vpop.permute.xlu0 %10450
      %10452 = vrot.lane.b32.xlu0 %v10433, 64
      %v10453 = vpop.permute.xlu0 %10452
      %10454 = vrot.lane.b32.xlu0 %v10434, 64
      %v10455 = vpop.permute.xlu0 %10454
      %10456 = vrot.lane.b32.xlu0 %v10435, 64
      %v10457 = vpop.permute.xlu0 %10456
      %10458 = vrot.lane.b32.xlu0 %v10436, 64
      %v10459 = vpop.permute.xlu0 %10458
      %10460 = vrot.lane.b32.xlu0 %v10437, 64
      %v10461 = vpop.permute.xlu0 %10460
      %10462 = vrot.lane.b32.xlu0 %v10438, 64
      %v10463 = vpop.permute.xlu0 %10462
      %10464 = vrot.lane.b32.xlu0 %v10439, 64
      %v10465 = vpop.permute.xlu0 %10464
      %10466 = vrot.lane.b32.xlu0 %v10440, 64
      %v10467 = vpop.permute.xlu0 %10466
      %10468 = vrot.lane.b32.xlu0 %v10441, 64
      %v10469 = vpop.permute.xlu0 %10468
      %10470 = vrot.lane.b32.xlu0 %v10442, 64
      %v10471 = vpop.permute.xlu0 %10470
      %10472 = vrot.lane.b32.xlu0 %v10443, 64
      %v10473 = vpop.permute.xlu0 %10472
      %10474 = vrot.lane.b32.xlu0 %v10444, 64
      %v10475 = vpop.permute.xlu0 %10474
      %10476 = vrot.lane.b32.xlu0 %v10445, 64
      %v10477 = vpop.permute.xlu0 %10476
      %v10478 = vmul.f32 %v10414, %v10447
      %v10479 = vmul.f32 %v10415, %v10449
      %v10480 = vmul.f32 %v10416, %v10451
      %v10481 = vmul.f32 %v10417, %v10453
      %v10482 = vmul.f32 %v10418, %v10455
      %v10483 = vmul.f32 %v10419, %v10457
      %v10484 = vmul.f32 %v10420, %v10459
      %v10485 = vmul.f32 %v10421, %v10461
      %v10486 = vmul.f32 %v10422, %v10463
      %v10487 = vmul.f32 %v10423, %v10465
      %v10488 = vmul.f32 %v10424, %v10467
      %v10489 = vmul.f32 %v10425, %v10469
      %v10490 = vmul.f32 %v10426, %v10471
      %v10491 = vmul.f32 %v10427, %v10473
      %v10492 = vmul.f32 %v10428, %v10475
      %v10493 = vmul.f32 %v10429, %v10477
      %10494 = vrot.lane.b32.xlu0 %v9660, 32
      %v10495 = vpop.permute.xlu0 %10494
      %10496 = vrot.lane.b32.xlu0 %v9661, 32
      %v10497 = vpop.permute.xlu0 %10496
      %10498 = vrot.lane.b32.xlu0 %v9662, 32
      %v10499 = vpop.permute.xlu0 %10498
      %10500 = vrot.lane.b32.xlu0 %v9663, 32
      %v10501 = vpop.permute.xlu0 %10500
      %10502 = vrot.lane.b32.xlu0 %v9664, 32
      %v10503 = vpop.permute.xlu0 %10502
      %10504 = vrot.lane.b32.xlu0 %v9665, 32
      %v10505 = vpop.permute.xlu0 %10504
      %10506 = vrot.lane.b32.xlu0 %v9666, 32
      %v10507 = vpop.permute.xlu0 %10506
      %10508 = vrot.lane.b32.xlu0 %v9667, 32
      %v10509 = vpop.permute.xlu0 %10508
      %10510 = vrot.lane.b32.xlu0 %v9668, 32
      %v10511 = vpop.permute.xlu0 %10510
      %10512 = vrot.lane.b32.xlu0 %v9669, 32
      %v10513 = vpop.permute.xlu0 %10512
      %10514 = vrot.lane.b32.xlu0 %v9670, 32
      %v10515 = vpop.permute.xlu0 %10514
      %10516 = vrot.lane.b32.xlu0 %v9671, 32
      %v10517 = vpop.permute.xlu0 %10516
      %10518 = vrot.lane.b32.xlu0 %v9672, 32
      %v10519 = vpop.permute.xlu0 %10518
      %10520 = vrot.lane.b32.xlu0 %v9673, 32
      %v10521 = vpop.permute.xlu0 %10520
      %10522 = vrot.lane.b32.xlu0 %v9674, 32
      %v10523 = vpop.permute.xlu0 %10522
      %10524 = vrot.lane.b32.xlu0 %v9675, 32
      %v10525 = vpop.permute.xlu0 %10524
      %v10526 = vmul.f32 %v10414, %v10495
      %v10527 = vmul.f32 %v10415, %v10497
      %v10528 = vmul.f32 %v10416, %v10499
      %v10529 = vmul.f32 %v10417, %v10501
      %v10530 = vmul.f32 %v10418, %v10503
      %v10531 = vmul.f32 %v10419, %v10505
      %v10532 = vmul.f32 %v10420, %v10507
      %v10533 = vmul.f32 %v10421, %v10509
      %v10534 = vmul.f32 %v10422, %v10511
      %v10535 = vmul.f32 %v10423, %v10513
      %v10536 = vmul.f32 %v10424, %v10515
      %v10537 = vmul.f32 %v10425, %v10517
      %v10538 = vmul.f32 %v10426, %v10519
      %v10539 = vmul.f32 %v10427, %v10521
      %v10540 = vmul.f32 %v10428, %v10523
      %v10541 = vmul.f32 %v10429, %v10525
      %10542 = vrot.lane.b32.xlu0 %v10526, 96
      %v10543 = vpop.permute.xlu0 %10542
      %10544 = vrot.lane.b32.xlu0 %v10527, 96
      %v10545 = vpop.permute.xlu0 %10544
      %10546 = vrot.lane.b32.xlu0 %v10528, 96
      %v10547 = vpop.permute.xlu0 %10546
      %10548 = vrot.lane.b32.xlu0 %v10529, 96
      %v10549 = vpop.permute.xlu0 %10548
      %10550 = vrot.lane.b32.xlu0 %v10530, 96
      %v10551 = vpop.permute.xlu0 %10550
      %10552 = vrot.lane.b32.xlu0 %v10531, 96
      %v10553 = vpop.permute.xlu0 %10552
      %10554 = vrot.lane.b32.xlu0 %v10532, 96
      %v10555 = vpop.permute.xlu0 %10554
      %10556 = vrot.lane.b32.xlu0 %v10533, 96
      %v10557 = vpop.permute.xlu0 %10556
      %10558 = vrot.lane.b32.xlu0 %v10534, 96
      %v10559 = vpop.permute.xlu0 %10558
      %10560 = vrot.lane.b32.xlu0 %v10535, 96
      %v10561 = vpop.permute.xlu0 %10560
      %10562 = vrot.lane.b32.xlu0 %v10536, 96
      %v10563 = vpop.permute.xlu0 %10562
      %10564 = vrot.lane.b32.xlu0 %v10537, 96
      %v10565 = vpop.permute.xlu0 %10564
      %10566 = vrot.lane.b32.xlu0 %v10538, 96
      %v10567 = vpop.permute.xlu0 %10566
      %10568 = vrot.lane.b32.xlu0 %v10539, 96
      %v10569 = vpop.permute.xlu0 %10568
      %10570 = vrot.lane.b32.xlu0 %v10540, 96
      %v10571 = vpop.permute.xlu0 %10570
      %10572 = vrot.lane.b32.xlu0 %v10541, 96
      %v10573 = vpop.permute.xlu0 %10572
      %v10574 = vadd.f32 %v10478, %v10543
      %v10575 = vadd.f32 %v10479, %v10545
      %v10576 = vadd.f32 %v10480, %v10547
      %v10577 = vadd.f32 %v10481, %v10549
      %v10578 = vadd.f32 %v10482, %v10551
      %v10579 = vadd.f32 %v10483, %v10553
      %v10580 = vadd.f32 %v10484, %v10555
      %v10581 = vadd.f32 %v10485, %v10557
      %v10582 = vadd.f32 %v10486, %v10559
      %v10583 = vadd.f32 %v10487, %v10561
      %v10584 = vadd.f32 %v10488, %v10563
      %v10585 = vadd.f32 %v10489, %v10565
      %v10586 = vadd.f32 %v10490, %v10567
      %v10587 = vadd.f32 %v10491, %v10569
      %v10588 = vadd.f32 %v10492, %v10571
      %v10589 = vadd.f32 %v10493, %v10573
      %v10590 = vsel %vm3235, %v10574, 0.0
      %v10591 = vsel %vm3235, %v10575, 0.0
      %v10592 = vsel %vm3235, %v10576, 0.0
      %v10593 = vsel %vm3235, %v10577, 0.0
      %v10594 = vsel %vm3235, %v10578, 0.0
      %v10595 = vsel %vm3235, %v10579, 0.0
      %v10596 = vsel %vm3235, %v10580, 0.0
      %v10597 = vsel %vm3235, %v10581, 0.0
      %v10598 = vsel %vm3235, %v10582, 0.0
      %v10599 = vsel %vm3235, %v10583, 0.0
      %v10600 = vsel %vm3235, %v10584, 0.0
      %v10601 = vsel %vm3235, %v10585, 0.0
      %v10602 = vsel %vm3235, %v10586, 0.0
      %v10603 = vsel %vm3235, %v10587, 0.0
      %v10604 = vsel %vm3235, %v10588, 0.0
      %v10605 = vsel %vm3235, %v10589, 0.0
      %10606 = vrot.lane.b32.xlu0 %v10414, 32
      %v10607 = vpop.permute.xlu0 %10606
      %10608 = vrot.lane.b32.xlu0 %v10415, 32
      %v10609 = vpop.permute.xlu0 %10608
      %10610 = vrot.lane.b32.xlu0 %v10416, 32
      %v10611 = vpop.permute.xlu0 %10610
      %10612 = vrot.lane.b32.xlu0 %v10417, 32
      %v10613 = vpop.permute.xlu0 %10612
      %10614 = vrot.lane.b32.xlu0 %v10418, 32
      %v10615 = vpop.permute.xlu0 %10614
      %10616 = vrot.lane.b32.xlu0 %v10419, 32
      %v10617 = vpop.permute.xlu0 %10616
      %10618 = vrot.lane.b32.xlu0 %v10420, 32
      %v10619 = vpop.permute.xlu0 %10618
      %10620 = vrot.lane.b32.xlu0 %v10421, 32
      %v10621 = vpop.permute.xlu0 %10620
      %10622 = vrot.lane.b32.xlu0 %v10422, 32
      %v10623 = vpop.permute.xlu0 %10622
      %10624 = vrot.lane.b32.xlu0 %v10423, 32
      %v10625 = vpop.permute.xlu0 %10624
      %10626 = vrot.lane.b32.xlu0 %v10424, 32
      %v10627 = vpop.permute.xlu0 %10626
      %10628 = vrot.lane.b32.xlu0 %v10425, 32
      %v10629 = vpop.permute.xlu0 %10628
      %10630 = vrot.lane.b32.xlu0 %v10426, 32
      %v10631 = vpop.permute.xlu0 %10630
      %10632 = vrot.lane.b32.xlu0 %v10427, 32
      %v10633 = vpop.permute.xlu0 %10632
      %10634 = vrot.lane.b32.xlu0 %v10428, 32
      %v10635 = vpop.permute.xlu0 %10634
      %10636 = vrot.lane.b32.xlu0 %v10429, 32
      %v10637 = vpop.permute.xlu0 %10636
      %v10638 = vtanh.pop %v10590
      %v10639 = vtanh.pop %v10591
      %v10640 = vtanh.pop %v10592
      %v10641 = vtanh.pop %v10593
      %v10642 = vtanh.pop %v10594
      %v10643 = vtanh.pop %v10595
      %v10644 = vtanh.pop %v10596
      %v10645 = vtanh.pop %v10597
      %v10646 = vtanh.pop %v10598
      %v10647 = vtanh.pop %v10599
      %v10648 = vtanh.pop %v10600
      %v10649 = vtanh.pop %v10601
      %v10650 = vtanh.pop %v10602
      %v10651 = vtanh.pop %v10603
      %v10652 = vtanh.pop %v10604
      %v10653 = vtanh.pop %v10605
      %v10654 = vmul.f32 %v10607, %v10638
      %v10655 = vmul.f32 %v10609, %v10639
      %v10656 = vmul.f32 %v10611, %v10640
      %v10657 = vmul.f32 %v10613, %v10641
      %v10658 = vmul.f32 %v10615, %v10642
      %v10659 = vmul.f32 %v10617, %v10643
      %v10660 = vmul.f32 %v10619, %v10644
      %v10661 = vmul.f32 %v10621, %v10645
      %v10662 = vmul.f32 %v10623, %v10646
      %v10663 = vmul.f32 %v10625, %v10647
      %v10664 = vmul.f32 %v10627, %v10648
      %v10665 = vmul.f32 %v10629, %v10649
      %v10666 = vmul.f32 %v10631, %v10650
      %v10667 = vmul.f32 %v10633, %v10651
      %v10668 = vmul.f32 %v10635, %v10652
      %v10669 = vmul.f32 %v10637, %v10653
      %v10670 = vpack.c.bf16 %v10655, %v10654
      %v10671 = vpack.c.bf16 %v10657, %v10656
      %v10672 = vpack.c.bf16 %v10659, %v10658
      %v10673 = vpack.c.bf16 %v10661, %v10660
      %v10674 = vpack.c.bf16 %v10663, %v10662
      %v10675 = vpack.c.bf16 %v10665, %v10664
      %v10676 = vpack.c.bf16 %v10667, %v10666
      %v10677 = vpack.c.bf16 %v10669, %v10668
      %v10682 = vunpack.c.l.b16 %v311
      %v10683 = vunpack.c.l.b16 %v312
      %v10684 = vunpack.c.l.b16 %v313
      %v10685 = vunpack.c.l.b16 %v314
      %v10686 = vpack.c.b16 %v10683, %v10682
      %v10687 = vpack.c.b16 %v10685, %v10684
      %10690 = vrot.lane.b32.xlu0 %v694, 32
      %v10691 = vpop.permute.xlu0 %10690
      %v10694 = vsel %vm707, %v10670, 0
      %v10697 = vsel %vm707, %v10671, 0
      %v10700 = vsel %vm707, %v10672, 0
      %v10703 = vsel %vm707, %v10673, 0
      %v10706 = vsel %vm707, %v10674, 0
      %v10709 = vsel %vm707, %v10675, 0
      %v10712 = vsel %vm707, %v10676, 0
      %v10715 = vsel %vm707, %v10677, 0
      %10717 = vmatprep.subr.bf16.mxu0 0
      %10718 = vmatpush1.bf16.msra.mxu0 0
      %10719 = vmatprep.subr.bf16.mxu0 0
      %10720 = vmatpush1.bf16.msra.mxu0 0
      %10721 = vmatprep.subr.bf16.mxu0 0
      %10722 = vmatpush1.bf16.msra.mxu0 0
      %10723 = vmatprep.subr.bf16.mxu0 0
      %10724 = vmatpush1.bf16.msra.mxu0 0
      %10725 = vmatprep.subr.bf16.mxu0 0
      %10726 = vmatpush1.bf16.msra.mxu0 0
      %10727 = vmatprep.subr.bf16.mxu0 0
      %10728 = vmatpush1.bf16.msra.mxu0 0
      %10729 = vmatprep.subr.bf16.mxu0 0
      %10730 = vmatpush1.bf16.msra.mxu0 %v10687
      %10731 = vmatprep.subr.bf16.mxu0 0
      %10732 = vmatpush1.bf16.msra.mxu0 %v10686
      %10733 = vmatprep.subr.bf16.mxu0 0
      %10734 = vmatpush2.bf16.msra.mxu0 0
      %10735 = vmatprep.subr.bf16.mxu0 0
      %10736 = vmatpush2.bf16.msra.mxu0 0
      %10737 = vmatprep.subr.bf16.mxu0 0
      %10738 = vmatpush2.bf16.msra.mxu0 0
      %10739 = vmatprep.subr.bf16.mxu0 0
      %10740 = vmatpush2.bf16.msra.mxu0 0
      %10741 = vmatprep.subr.bf16.mxu0 0
      %10742 = vmatpush2.bf16.msra.mxu0 0
      %10743 = vmatprep.subr.bf16.mxu0 0
      %10744 = vmatpush2.bf16.msra.mxu0 0
      %10745 = vmatprep.subr.bf16.mxu0 0
      %10746 = vmatpush2.bf16.msra.mxu0 0
      %10747 = vmatprep.subr.bf16.mxu0 0
      %10748 = vmatpush2.bf16.msra.mxu0 0
      %10749 = vmatprep.mubr.bf16.mxu0 0
      %10750 = vmatmul.mubr.bf16.gmra.mxu0 %v10694
      %v10751 = vpop.f32.mrf.mxu0
      %v10752 = vadd.f32 %v10691, %v10751
      %v10753 = vpop.f32.mrf.mxu0
      %v10754 = vpop.f32.mrf.mxu0
      %v10755 = vadd.f32 %v10691, %v10754
      %v10756 = vpop.f32.mrf.mxu0
      %10757 = vmatprep.mubr.bf16.mxu0 0
      %10758 = vmatmul.mubr.bf16.gmra.mxu0 %v10697
      %v10759 = vpop.f32.mrf.mxu0
      %v10760 = vadd.f32 %v10691, %v10759
      %v10761 = vpop.f32.mrf.mxu0
      %v10762 = vpop.f32.mrf.mxu0
      %v10763 = vadd.f32 %v10691, %v10762
      %v10764 = vpop.f32.mrf.mxu0
      %10765 = vmatprep.mubr.bf16.mxu0 0
      %10766 = vmatmul.mubr.bf16.gmra.mxu0 %v10700
      %v10767 = vpop.f32.mrf.mxu0
      %v10768 = vadd.f32 %v10691, %v10767
      %v10769 = vpop.f32.mrf.mxu0
      %v10770 = vpop.f32.mrf.mxu0
      %v10771 = vadd.f32 %v10691, %v10770
      %v10772 = vpop.f32.mrf.mxu0
      %10773 = vmatprep.mubr.bf16.mxu0 0
      %10774 = vmatmul.mubr.bf16.gmra.mxu0 %v10703
      %v10775 = vpop.f32.mrf.mxu0
      %v10776 = vadd.f32 %v10691, %v10775
      %v10777 = vpop.f32.mrf.mxu0
      %v10778 = vpop.f32.mrf.mxu0
      %v10779 = vadd.f32 %v10691, %v10778
      %v10780 = vpop.f32.mrf.mxu0
      %10781 = vmatprep.mubr.bf16.mxu0 0
      %10782 = vmatmul.mubr.bf16.gmra.mxu0 %v10706
      %v10783 = vpop.f32.mrf.mxu0
      %v10784 = vadd.f32 %v10691, %v10783
      %v10785 = vpop.f32.mrf.mxu0
      %v10786 = vpop.f32.mrf.mxu0
      %v10787 = vadd.f32 %v10691, %v10786
      %v10788 = vpop.f32.mrf.mxu0
      %10789 = vmatprep.mubr.bf16.mxu0 0
      %10790 = vmatmul.mubr.bf16.gmra.mxu0 %v10709
      %v10791 = vpop.f32.mrf.mxu0
      %v10792 = vadd.f32 %v10691, %v10791
      %v10793 = vpop.f32.mrf.mxu0
      %v10794 = vpop.f32.mrf.mxu0
      %v10795 = vadd.f32 %v10691, %v10794
      %v10796 = vpop.f32.mrf.mxu0
      %10797 = vmatprep.mubr.bf16.mxu0 0
      %10798 = vmatmul.mubr.bf16.gmra.mxu0 %v10712
      %v10799 = vpop.f32.mrf.mxu0
      %v10800 = vadd.f32 %v10691, %v10799
      %v10801 = vpop.f32.mrf.mxu0
      %v10802 = vpop.f32.mrf.mxu0
      %v10803 = vadd.f32 %v10691, %v10802
      %v10804 = vpop.f32.mrf.mxu0
      %10805 = vmatprep.mubr.bf16.mxu0 0
      %10806 = vmatmul.mubr.bf16.gmra.mxu0 %v10715
      %v10807 = vpop.f32.mrf.mxu0
      %v10808 = vadd.f32 %v10691, %v10807
      %v10809 = vpop.f32.mrf.mxu0
      %v10810 = vpop.f32.mrf.mxu0
      %v10811 = vadd.f32 %v10691, %v10810
      %v10812 = vpop.f32.mrf.mxu0
      %10813 = vdwg.mxu0
      %v10814 = vmax.f32 %v10752, 0.0
      %v10815 = vmax.f32 %v10755, 0.0
      %v10816 = vmax.f32 %v10760, 0.0
      %v10817 = vmax.f32 %v10763, 0.0
      %v10818 = vmax.f32 %v10768, 0.0
      %v10819 = vmax.f32 %v10771, 0.0
      %v10820 = vmax.f32 %v10776, 0.0
      %v10821 = vmax.f32 %v10779, 0.0
      %v10822 = vmax.f32 %v10784, 0.0
      %v10823 = vmax.f32 %v10787, 0.0
      %v10824 = vmax.f32 %v10792, 0.0
      %v10825 = vmax.f32 %v10795, 0.0
      %v10826 = vmax.f32 %v10800, 0.0
      %v10827 = vmax.f32 %v10803, 0.0
      %v10828 = vmax.f32 %v10808, 0.0
      %v10829 = vmax.f32 %v10811, 0.0
      %v10830 = vpack.c.bf16 %v10815, %v10814
      %v10831 = vpack.c.bf16 %v10817, %v10816
      %v10832 = vpack.c.bf16 %v10819, %v10818
      %v10833 = vpack.c.bf16 %v10821, %v10820
      %v10834 = vpack.c.bf16 %v10823, %v10822
      %v10835 = vpack.c.bf16 %v10825, %v10824
      %v10836 = vpack.c.bf16 %v10827, %v10826
      %v10837 = vpack.c.bf16 %v10829, %v10828
      %v10838 = vlaneseq
      %v10839 = vshrl.u32 %v10838, 7
      %v10840 = vsub.s32 3, %v10839
      %v10841 = vrot.slane %v319, %v10840
      %v10846 = vunpack.c.l.b16 %v315
      %v10847 = vunpack.c.l.b16 %v316
      %v10848 = vunpack.c.l.b16 %v317
      %v10849 = vunpack.c.l.b16 %v318
      %v10850 = vpack.c.b16 %v10847, %v10846
      %v10851 = vpack.c.b16 %v10849, %v10848
      %v10855 = vsel %vm707, %v10830, 0
      %v10858 = vsel %vm707, %v10831, 0
      %v10861 = vsel %vm707, %v10832, 0
      %v10864 = vsel %vm707, %v10833, 0
      %v10867 = vsel %vm707, %v10834, 0
      %v10870 = vsel %vm707, %v10835, 0
      %v10873 = vsel %vm707, %v10836, 0
      %v10876 = vsel %vm707, %v10837, 0
      %10878 = vmatprep.subr.bf16.mxu0 0
      %10879 = vmatpush1.bf16.msra.mxu0 0
      %10880 = vmatprep.subr.bf16.mxu0 0
      %10881 = vmatpush1.bf16.msra.mxu0 0
      %10882 = vmatprep.subr.bf16.mxu0 0
      %10883 = vmatpush1.bf16.msra.mxu0 0
      %10884 = vmatprep.subr.bf16.mxu0 0
      %10885 = vmatpush1.bf16.msra.mxu0 0
      %10886 = vmatprep.subr.bf16.mxu0 0
      %10887 = vmatpush1.bf16.msra.mxu0 0
      %10888 = vmatprep.subr.bf16.mxu0 0
      %10889 = vmatpush1.bf16.msra.mxu0 0
      %10890 = vmatprep.subr.bf16.mxu0 0
      %10891 = vmatpush1.bf16.msra.mxu0 %v10851
      %10892 = vmatprep.subr.bf16.mxu0 0
      %10893 = vmatpush1.bf16.msra.mxu0 %v10850
      %10894 = vmatprep.subr.bf16.mxu0 0
      %10895 = vmatpush2.bf16.msra.mxu0 0
      %10896 = vmatprep.subr.bf16.mxu0 0
      %10897 = vmatpush2.bf16.msra.mxu0 0
      %10898 = vmatprep.subr.bf16.mxu0 0
      %10899 = vmatpush2.bf16.msra.mxu0 0
      %10900 = vmatprep.subr.bf16.mxu0 0
      %10901 = vmatpush2.bf16.msra.mxu0 0
      %10902 = vmatprep.subr.bf16.mxu0 0
      %10903 = vmatpush2.bf16.msra.mxu0 0
      %10904 = vmatprep.subr.bf16.mxu0 0
      %10905 = vmatpush2.bf16.msra.mxu0 0
      %10906 = vmatprep.subr.bf16.mxu0 0
      %10907 = vmatpush2.bf16.msra.mxu0 0
      %10908 = vmatprep.subr.bf16.mxu0 0
      %10909 = vmatpush2.bf16.msra.mxu0 0
      %10910 = vmatprep.mubr.bf16.mxu0 0
      %10911 = vmatmul.mubr.bf16.gmra.mxu0 %v10855
      %v10912 = vpop.f32.mrf.mxu0
      %v10913 = vadd.f32 %v10841, %v10912
      %v10914 = vpop.f32.mrf.mxu0
      %v10915 = vpop.f32.mrf.mxu0
      %v10916 = vadd.f32 %v10841, %v10915
      %v10917 = vpop.f32.mrf.mxu0
      %10918 = vmatprep.mubr.bf16.mxu0 0
      %10919 = vmatmul.mubr.bf16.gmra.mxu0 %v10858
      %v10920 = vpop.f32.mrf.mxu0
      %v10921 = vadd.f32 %v10841, %v10920
      %v10922 = vpop.f32.mrf.mxu0
      %v10923 = vpop.f32.mrf.mxu0
      %v10924 = vadd.f32 %v10841, %v10923
      %v10925 = vpop.f32.mrf.mxu0
      %10926 = vmatprep.mubr.bf16.mxu0 0
      %10927 = vmatmul.mubr.bf16.gmra.mxu0 %v10861
      %v10928 = vpop.f32.mrf.mxu0
      %v10929 = vadd.f32 %v10841, %v10928
      %v10930 = vpop.f32.mrf.mxu0
      %v10931 = vpop.f32.mrf.mxu0
      %v10932 = vadd.f32 %v10841, %v10931
      %v10933 = vpop.f32.mrf.mxu0
      %10934 = vmatprep.mubr.bf16.mxu0 0
      %10935 = vmatmul.mubr.bf16.gmra.mxu0 %v10864
      %v10936 = vpop.f32.mrf.mxu0
      %v10937 = vadd.f32 %v10841, %v10936
      %v10938 = vpop.f32.mrf.mxu0
      %v10939 = vpop.f32.mrf.mxu0
      %v10940 = vadd.f32 %v10841, %v10939
      %v10941 = vpop.f32.mrf.mxu0
      %10942 = vmatprep.mubr.bf16.mxu0 0
      %10943 = vmatmul.mubr.bf16.gmra.mxu0 %v10867
      %v10944 = vpop.f32.mrf.mxu0
      %v10945 = vadd.f32 %v10841, %v10944
      %v10946 = vpop.f32.mrf.mxu0
      %v10947 = vpop.f32.mrf.mxu0
      %v10948 = vadd.f32 %v10841, %v10947
      %v10949 = vpop.f32.mrf.mxu0
      %10950 = vmatprep.mubr.bf16.mxu0 0
      %10951 = vmatmul.mubr.bf16.gmra.mxu0 %v10870
      %v10952 = vpop.f32.mrf.mxu0
      %v10953 = vadd.f32 %v10841, %v10952
      %v10954 = vpop.f32.mrf.mxu0
      %v10955 = vpop.f32.mrf.mxu0
      %v10956 = vadd.f32 %v10841, %v10955
      %v10957 = vpop.f32.mrf.mxu0
      %10958 = vmatprep.mubr.bf16.mxu0 0
      %10959 = vmatmul.mubr.bf16.gmra.mxu0 %v10873
      %v10960 = vpop.f32.mrf.mxu0
      %v10961 = vadd.f32 %v10841, %v10960
      %v10962 = vpop.f32.mrf.mxu0
      %v10963 = vpop.f32.mrf.mxu0
      %v10964 = vadd.f32 %v10841, %v10963
      %v10965 = vpop.f32.mrf.mxu0
      %10966 = vmatprep.mubr.bf16.mxu0 0
      %10967 = vmatmul.mubr.bf16.gmra.mxu0 %v10876
      %v10968 = vpop.f32.mrf.mxu0
      %v10969 = vadd.f32 %v10841, %v10968
      %v10970 = vpop.f32.mrf.mxu0
      %v10971 = vpop.f32.mrf.mxu0
      %v10972 = vadd.f32 %v10841, %v10971
      %v10973 = vpop.f32.mrf.mxu0
      %10974 = vdwg.mxu0
      %v10975 = vmax.f32 %v10913, 0.0
      %v10976 = vmax.f32 %v10916, 0.0
      %v10977 = vmax.f32 %v10921, 0.0
      %v10978 = vmax.f32 %v10924, 0.0
      %v10979 = vmax.f32 %v10929, 0.0
      %v10980 = vmax.f32 %v10932, 0.0
      %v10981 = vmax.f32 %v10937, 0.0
      %v10982 = vmax.f32 %v10940, 0.0
      %v10983 = vmax.f32 %v10945, 0.0
      %v10984 = vmax.f32 %v10948, 0.0
      %v10985 = vmax.f32 %v10953, 0.0
      %v10986 = vmax.f32 %v10956, 0.0
      %v10987 = vmax.f32 %v10961, 0.0
      %v10988 = vmax.f32 %v10964, 0.0
      %v10989 = vmax.f32 %v10969, 0.0
      %v10990 = vmax.f32 %v10972, 0.0
      %10992 = vrot.lane.b32.xlu0 %v10841, 96
      %v10993 = vpop.permute.xlu0 %10992
      %v10995 = vmul.f32 %v10975, %v10993
      %v10996 = vmul.f32 %v10976, %v10993
      %v10997 = vmul.f32 %v10977, %v10993
      %v10998 = vmul.f32 %v10978, %v10993
      %v10999 = vmul.f32 %v10979, %v10993
      %v11000 = vmul.f32 %v10980, %v10993
      %v11001 = vmul.f32 %v10981, %v10993
      %v11002 = vmul.f32 %v10982, %v10993
      %v11003 = vmul.f32 %v10983, %v10993
      %v11004 = vmul.f32 %v10984, %v10993
      %v11005 = vmul.f32 %v10985, %v10993
      %v11006 = vmul.f32 %v10986, %v10993
      %v11007 = vmul.f32 %v10987, %v10993
      %v11008 = vmul.f32 %v10988, %v10993
      %v11009 = vmul.f32 %v10989, %v10993
      %v11010 = vmul.f32 %v10990, %v10993
      %v11011 = vsel %vm707, %v10995, 0.0
      %11012 = vadd.xlane.f32.xlu0 %v11011
      %v11013 = vpop.xlane.xlu0 %11012
      %v11014 = vsel %vm707, %v10996, 0.0
      %11015 = vadd.xlane.f32.xlu0 %v11014
      %v11016 = vpop.xlane.xlu0 %11015
      %v11017 = vsel %vm707, %v10997, 0.0
      %11018 = vadd.xlane.f32.xlu0 %v11017
      %v11019 = vpop.xlane.xlu0 %11018
      %v11020 = vsel %vm707, %v10998, 0.0
      %11021 = vadd.xlane.f32.xlu0 %v11020
      %v11022 = vpop.xlane.xlu0 %11021
      %v11023 = vsel %vm707, %v10999, 0.0
      %11024 = vadd.xlane.f32.xlu0 %v11023
      %v11025 = vpop.xlane.xlu0 %11024
      %v11026 = vsel %vm707, %v11000, 0.0
      %11027 = vadd.xlane.f32.xlu0 %v11026
      %v11028 = vpop.xlane.xlu0 %11027
      %v11029 = vsel %vm707, %v11001, 0.0
      %11030 = vadd.xlane.f32.xlu0 %v11029
      %v11031 = vpop.xlane.xlu0 %11030
      %v11032 = vsel %vm707, %v11002, 0.0
      %11033 = vadd.xlane.f32.xlu0 %v11032
      %v11034 = vpop.xlane.xlu0 %11033
      %v11035 = vsel %vm707, %v11003, 0.0
      %11036 = vadd.xlane.f32.xlu0 %v11035
      %v11037 = vpop.xlane.xlu0 %11036
      %v11038 = vsel %vm707, %v11004, 0.0
      %11039 = vadd.xlane.f32.xlu0 %v11038
      %v11040 = vpop.xlane.xlu0 %11039
      %v11041 = vsel %vm707, %v11005, 0.0
      %11042 = vadd.xlane.f32.xlu0 %v11041
      %v11043 = vpop.xlane.xlu0 %11042
      %v11044 = vsel %vm707, %v11006, 0.0
      %11045 = vadd.xlane.f32.xlu0 %v11044
      %v11046 = vpop.xlane.xlu0 %11045
      %v11047 = vsel %vm707, %v11007, 0.0
      %11048 = vadd.xlane.f32.xlu0 %v11047
      %v11049 = vpop.xlane.xlu0 %11048
      %v11050 = vsel %vm707, %v11008, 0.0
      %11051 = vadd.xlane.f32.xlu0 %v11050
      %v11052 = vpop.xlane.xlu0 %11051
      %v11053 = vsel %vm707, %v11009, 0.0
      %11054 = vadd.xlane.f32.xlu0 %v11053
      %v11055 = vpop.xlane.xlu0 %11054
      %v11056 = vsel %vm707, %v11010, 0.0
      %11057 = vadd.xlane.f32.xlu0 %v11056
      %v11058 = vpop.xlane.xlu0 %11057
      %v11059 = vadd.f32 %v11013, %v10841
      %v11060 = vadd.f32 %v11016, %v10841
      %v11061 = vadd.f32 %v11019, %v10841
      %v11062 = vadd.f32 %v11022, %v10841
      %v11063 = vadd.f32 %v11025, %v10841
      %v11064 = vadd.f32 %v11028, %v10841
      %v11065 = vadd.f32 %v11031, %v10841
      %v11066 = vadd.f32 %v11034, %v10841
      %v11067 = vadd.f32 %v11037, %v10841
      %v11068 = vadd.f32 %v11040, %v10841
      %v11069 = vadd.f32 %v11043, %v10841
      %v11070 = vadd.f32 %v11046, %v10841
      %v11071 = vadd.f32 %v11049, %v10841
      %v11072 = vadd.f32 %v11052, %v10841
      %v11073 = vadd.f32 %v11055, %v10841
      %v11074 = vadd.f32 %v11058, %v10841
      %v11075 = vsub.f32 0.0, %v11059
      %v11076 = vsub.f32 0.0, %v11060
      %v11077 = vsub.f32 0.0, %v11061
      %v11078 = vsub.f32 0.0, %v11062
      %v11079 = vsub.f32 0.0, %v11063
      %v11080 = vsub.f32 0.0, %v11064
      %v11081 = vsub.f32 0.0, %v11065
      %v11082 = vsub.f32 0.0, %v11066
      %v11083 = vsub.f32 0.0, %v11067
      %v11084 = vsub.f32 0.0, %v11068
      %v11085 = vsub.f32 0.0, %v11069
      %v11086 = vsub.f32 0.0, %v11070
      %v11087 = vsub.f32 0.0, %v11071
      %v11088 = vsub.f32 0.0, %v11072
      %v11089 = vsub.f32 0.0, %v11073
      %v11090 = vsub.f32 0.0, %v11074
      %v11091 = vmul.f32 %v11075, 1.442695
      %v11092 = vpow.pop %v11091
      %v11093 = vmul.f32 %v11076, 1.442695
      %v11094 = vpow.pop %v11093
      %v11095 = vmul.f32 %v11077, 1.442695
      %v11096 = vpow.pop %v11095
      %v11097 = vmul.f32 %v11078, 1.442695
      %v11098 = vpow.pop %v11097
      %v11099 = vmul.f32 %v11079, 1.442695
      %v11100 = vpow.pop %v11099
      %v11101 = vmul.f32 %v11080, 1.442695
      %v11102 = vpow.pop %v11101
      %v11103 = vmul.f32 %v11081, 1.442695
      %v11104 = vpow.pop %v11103
      %v11105 = vmul.f32 %v11082, 1.442695
      %v11106 = vpow.pop %v11105
      %v11107 = vmul.f32 %v11083, 1.442695
      %v11108 = vpow.pop %v11107
      %v11109 = vmul.f32 %v11084, 1.442695
      %v11110 = vpow.pop %v11109
      %v11111 = vmul.f32 %v11085, 1.442695
      %v11112 = vpow.pop %v11111
      %v11113 = vmul.f32 %v11086, 1.442695
      %v11114 = vpow.pop %v11113
      %v11115 = vmul.f32 %v11087, 1.442695
      %v11116 = vpow.pop %v11115
      %v11117 = vmul.f32 %v11088, 1.442695
      %v11118 = vpow.pop %v11117
      %v11119 = vmul.f32 %v11089, 1.442695
      %v11120 = vpow.pop %v11119
      %v11121 = vmul.f32 %v11090, 1.442695
      %v11122 = vpow.pop %v11121
      %v11123 = vadd.f32 %v11092, 1.0
      %v11124 = vadd.f32 %v11094, 1.0
      %v11125 = vadd.f32 %v11096, 1.0
      %v11126 = vadd.f32 %v11098, 1.0
      %v11127 = vadd.f32 %v11100, 1.0
      %v11128 = vadd.f32 %v11102, 1.0
      %v11129 = vadd.f32 %v11104, 1.0
      %v11130 = vadd.f32 %v11106, 1.0
      %v11131 = vadd.f32 %v11108, 1.0
      %v11132 = vadd.f32 %v11110, 1.0
      %v11133 = vadd.f32 %v11112, 1.0
      %v11134 = vadd.f32 %v11114, 1.0
      %v11135 = vadd.f32 %v11116, 1.0
      %v11136 = vadd.f32 %v11118, 1.0
      %v11137 = vadd.f32 %v11120, 1.0
      %v11138 = vadd.f32 %v11122, 1.0
      %v11139 = vrcp.pop %v11123
      %v11140 = vrcp.pop %v11124
      %v11141 = vrcp.pop %v11125
      %v11142 = vrcp.pop %v11126
      %v11143 = vrcp.pop %v11127
      %v11144 = vrcp.pop %v11128
      %v11145 = vrcp.pop %v11129
      %v11146 = vrcp.pop %v11130
      %v11147 = vrcp.pop %v11131
      %v11148 = vrcp.pop %v11132
      %v11149 = vrcp.pop %v11133
      %v11150 = vrcp.pop %v11134
      %v11151 = vrcp.pop %v11135
      %v11152 = vrcp.pop %v11136
      %v11153 = vrcp.pop %v11137
      %v11154 = vrcp.pop %v11138
      %11171 = vrot.lane.b32.xlu0 %v11139, 64
      %v11172 = vpop.permute.xlu0 %11171
      %11173 = vrot.lane.b32.xlu0 %v11140, 64
      %v11174 = vpop.permute.xlu0 %11173
      %11175 = vrot.lane.b32.xlu0 %v11141, 64
      %v11176 = vpop.permute.xlu0 %11175
      %11177 = vrot.lane.b32.xlu0 %v11142, 64
      %v11178 = vpop.permute.xlu0 %11177
      %11179 = vrot.lane.b32.xlu0 %v11143, 64
      %v11180 = vpop.permute.xlu0 %11179
      %11181 = vrot.lane.b32.xlu0 %v11144, 64
      %v11182 = vpop.permute.xlu0 %11181
      %11183 = vrot.lane.b32.xlu0 %v11145, 64
      %v11184 = vpop.permute.xlu0 %11183
      %11185 = vrot.lane.b32.xlu0 %v11146, 64
      %v11186 = vpop.permute.xlu0 %11185
      %11187 = vrot.lane.b32.xlu0 %v11147, 64
      %v11188 = vpop.permute.xlu0 %11187
      %11189 = vrot.lane.b32.xlu0 %v11148, 64
      %v11190 = vpop.permute.xlu0 %11189
      %11191 = vrot.lane.b32.xlu0 %v11149, 64
      %v11192 = vpop.permute.xlu0 %11191
      %11193 = vrot.lane.b32.xlu0 %v11150, 64
      %v11194 = vpop.permute.xlu0 %11193
      %11195 = vrot.lane.b32.xlu0 %v11151, 64
      %v11196 = vpop.permute.xlu0 %11195
      %11197 = vrot.lane.b32.xlu0 %v11152, 64
      %v11198 = vpop.permute.xlu0 %11197
      %11199 = vrot.lane.b32.xlu0 %v11153, 64
      %v11200 = vpop.permute.xlu0 %11199
      %11201 = vrot.lane.b32.xlu0 %v11154, 64
      %v11202 = vpop.permute.xlu0 %11201
      %vm11219 = vcmask 7168
      %11220 = vst.msk [vmem:[%s248] sm:$0xff] %vm11219, %v11172
      %11221 = vst.msk [vmem:[%s248 + $0x8] sm:$0xff] %vm11219, %v11174
      %11222 = vst.msk [vmem:[%s248 + $0x10] sm:$0xff] %vm11219, %v11176
      %11223 = vst.msk [vmem:[%s248 + $0x18] sm:$0xff] %vm11219, %v11178
      %11224 = vst.msk [vmem:[%s248 + $0x20] sm:$0xff] %vm11219, %v11180
      %11225 = vst.msk [vmem:[%s248 + $0x28] sm:$0xff] %vm11219, %v11182
      %11226 = vst.msk [vmem:[%s248 + $0x30] sm:$0xff] %vm11219, %v11184
      %11227 = vst.msk [vmem:[%s248 + $0x38] sm:$0xff] %vm11219, %v11186
      %11228 = vst.msk [vmem:[%s248 + $0x40] sm:$0xff] %vm11219, %v11188
      %11229 = vst.msk [vmem:[%s248 + $0x48] sm:$0xff] %vm11219, %v11190
      %11230 = vst.msk [vmem:[%s248 + $0x50] sm:$0xff] %vm11219, %v11192
      %11231 = vst.msk [vmem:[%s248 + $0x58] sm:$0xff] %vm11219, %v11194
      %11232 = vst.msk [vmem:[%s248 + $0x60] sm:$0xff] %vm11219, %v11196
      %11233 = vst.msk [vmem:[%s248 + $0x68] sm:$0xff] %vm11219, %v11198
      %11234 = vst.msk [vmem:[%s248 + $0x70] sm:$0xff] %vm11219, %v11200
      %11235 = vst.msk [vmem:[%s248 + $0x78] sm:$0xff] %vm11219, %v11202
      %s11236 = smul.u32 16, %s16
      %p11237 = scmp.lt.s32.totalorder %s11236, 31
      %s11238 = scalar_select %p11237, %s11236, 31
      %s11239 = smul.addr %s11238, 8
      %s11240 = scalar_lea.vmem %s5, %s11239
      // Predicated region
      $region41: #{tpu_custom_call.1} parent=39 // pred_check
        %p11241 = pneg %p149
      $region42: #{tpu_custom_call.1} parent=39 // pred_check_branch
        %11243 = sbr.rel (%p11241) target = $region44
      $region43: #{tpu_custom_call.1} parent=39 // pred_region
        %s11244 = smul.u32 16, %s16
      $region44: #{tpu_custom_call.1} parent=39 // pred_fallthru
        _
    $region40: #{tpu_custom_call.1} parent=5 // pred_fallthru
      _
    %p11245 = scmp.le.s32.totalorder 2, %s11
    // Predicated region
    $region45: #{tpu_custom_call.1} parent=5 // pred_check
      %p11246 = pneg %p11245
    $region46: #{tpu_custom_call.1} parent=5 // pred_check_branch
      %11248 = sbr.rel (%p11246) target = $region48
    $region47: #{tpu_custom_call.1} parent=5 // pred_region
      %s11249 = ssub.s32 %s11, 2
      // Predicated region
      $region49: #{tpu_custom_call.1} parent=47 // pred_check
        %p11250 = pneg %p155
      $region50: #{tpu_custom_call.1} parent=47 // pred_check_branch
        %11252 = sbr.rel (%p11250) target = $region52
      $region51: #{tpu_custom_call.1} parent=47 // pred_region
        %s11253 = smul.u32 16, %s17
        %p11254 = scmp.lt.s32.totalorder %s11253, 31
        %s11255 = scalar_select %p11254, %s11253, 31
        %s11256 = smul.addr %s11255, 8
        %s11257 = scalar_lea.vmem %s5, %s11256
      $region52: #{tpu_custom_call.1} parent=47 // pred_fallthru
        _
    $region48: #{tpu_custom_call.1} parent=5 // pred_fallthru
      _
  $region6: #{tpu_custom_call.1} parent=0 // loop_footer
    %s15 = sadd.s32 1, %s11
  $region7: #{tpu_custom_call.1} parent=0 // loop_footer_branch
    %10 = sbr.rel target = $region3
  $region8: #{tpu_custom_call.1} parent=0 // loop_exit
    _

</llo_original>
